<compile_context>
chip_gen: v6e
topology: v6e:2x2x1
jax: 0.10.0
libtpu: 0.0.40
codegen_flags: <defaults>
</compile_context>

<pallas_src>
import jax
import jax.numpy as jnp
from jax import lax
from jax.experimental import pallas as pl
from jax.experimental.pallas import tpu as pltpu

EMBED_DIM = 768
NUM_HEADS = 12
HEAD_DIM = 64  # EMBED_DIM // NUM_HEADS


# ----------------------------------------------------------------------------
# Kernel 1: Conv1D projection  y = x @ W + b   (GPT-2 Conv1D semantics)
# 1-D grid over rows; full-N weight block is resident (constant block index).
# ----------------------------------------------------------------------------
def _matmul_bias_kernel(x_ref, w_ref, b_ref, o_ref):
    x = x_ref[...].astype(jnp.bfloat16)          # bf16 MXU operands
    acc = jnp.dot(x, w_ref[...], preferred_element_type=jnp.float32)
    o_ref[...] = (acc + b_ref[...]).astype(o_ref.dtype)


def conv1d_proj(x2d, w_bf16, b_f32, out_dtype, *, tm=256):
    """x2d: (M, K), w_bf16: (K, N) bf16, b_f32: (N,) -> (M, N) out_dtype."""
    M, K = x2d.shape
    N = w_bf16.shape[1]
    tm = min(tm, M)                               # full-M block when small
    grid = (pl.cdiv(M, tm),)
    return pl.pallas_call(
        _matmul_bias_kernel,
        out_shape=jax.ShapeDtypeStruct((M, N), out_dtype),
        grid=grid,
        in_specs=[
            pl.BlockSpec((tm, K), lambda i: (i, 0)),
            pl.BlockSpec((K, N), lambda i: (0, 0)),   # constant index -> DMA'd once
            pl.BlockSpec((1, N), lambda i: (0, 0)),
        ],
        out_specs=pl.BlockSpec((tm, N), lambda i: (i, 0)),
        compiler_params=pltpu.CompilerParams(
            dimension_semantics=("parallel",),
            vmem_limit_bytes=48 * 1024 * 1024,
        ),
    )(x2d, w_bf16, b_f32.reshape(1, N))


# ----------------------------------------------------------------------------
# Kernel 2: flash-style fused multi-head attention.
# q/k/v are the three 768-wide column blocks of the fused (B, S, 3*768) qkv
# buffer, selected purely via BlockSpec index_maps. All 12 heads of one
# (q-tile, kv-tile) pair are processed per grid step; online-softmax state is
# kept in VMEM scratch; the output is one lane-dense (tq, 768) store.
# ----------------------------------------------------------------------------
def _mha_flash_kernel(q_ref, k_ref, v_ref, o_ref, m_sc, l_sc, acc_sc):
    kv_i = pl.program_id(2)

    @pl.when(kv_i == 0)
    def _init():
        m_sc[...] = jnp.full_like(m_sc, -jnp.inf)
        l_sc[...] = jnp.zeros_like(l_sc)
        acc_sc[...] = jnp.zeros_like(acc_sc)

    q_all = q_ref[0]   # (tq, 768) bf16, scale already folded into weights
    k_all = k_ref[0]   # (tkv, 768) bf16
    v_all = v_ref[0]   # (tkv, 768) bf16

    # TODO(synk): replace the static head unroll with lax.fori_loop(unroll=2..4)
    # + pl.ds slices if vreg pressure becomes the bottleneck at large tiles.
    for h in range(NUM_HEADS):
        c0 = h * HEAD_DIM
        q = q_all[:, c0:c0 + HEAD_DIM]
        k = k_all[:, c0:c0 + HEAD_DIM]
        v = v_all[:, c0:c0 + HEAD_DIM]
        # scores = q @ k^T without materializing a transpose of k
        s = lax.dot_general(
            q, k, dimension_numbers=(((1,), (1,)), ((), ())),
            preferred_element_type=jnp.float32)                 # (tq, tkv) f32
        m_prev = m_sc[:, h:h + 1]
        m_new = jnp.maximum(m_prev, jnp.max(s, axis=-1, keepdims=True))
        alpha = jnp.exp(m_prev - m_new)
        p = jnp.exp(s - m_new)
        l_sc[:, h:h + 1] = alpha * l_sc[:, h:h + 1] + jnp.sum(p, -1, keepdims=True)
        acc_sc[:, c0:c0 + HEAD_DIM] = (
            alpha * acc_sc[:, c0:c0 + HEAD_DIM]
            + jnp.dot(p.astype(jnp.bfloat16), v,
                      preferred_element_type=jnp.float32))
        m_sc[:, h:h + 1] = m_new

    @pl.when(kv_i == pl.num_programs(2) - 1)
    def _finalize():
        inv_l = pl.reciprocal(l_sc[...], approx=True)           # (tq, 12)
        merged = jnp.concatenate(
            [acc_sc[:, h * HEAD_DIM:(h + 1) * HEAD_DIM] * inv_l[:, h:h + 1]
             for h in range(NUM_HEADS)], axis=1)                # (tq, 768)
        o_ref[0] = merged.astype(o_ref.dtype)                   # lane-dense store


def mha_fused(qkv, out_dtype):
    """qkv: (B, S, 3*EMBED_DIM) -> (B, S, EMBED_DIM)."""
    B, S, _ = qkv.shape
    D = EMBED_DIM
    # TODO(synk): ragged / non-divisible S needs kv-tail masking; for now use
    # 256-wide tiles when they divide S, otherwise whole-S blocks.
    tile = 256 if S % 256 == 0 else S
    tq = tkv = tile
    grid = (B, S // tq, S // tkv)

    return pl.pallas_call(
        _mha_flash_kernel,
        out_shape=jax.ShapeDtypeStruct((B, S, D), out_dtype),
        grid=grid,
        in_specs=[
            pl.BlockSpec((1, tq, D), lambda b, qi, ki: (b, qi, 0)),   # Q cols
            pl.BlockSpec((1, tkv, D), lambda b, qi, ki: (b, ki, 1)),  # K cols
            pl.BlockSpec((1, tkv, D), lambda b, qi, ki: (b, ki, 2)),  # V cols
        ],
        out_specs=pl.BlockSpec((1, tq, D), lambda b, qi, ki: (b, qi, 0)),
        scratch_shapes=[
            pltpu.VMEM((tq, NUM_HEADS), jnp.float32),   # running max m
            pltpu.VMEM((tq, NUM_HEADS), jnp.float32),   # running denom l
            pltpu.VMEM((tq, EMBED_DIM), jnp.float32),   # merged accumulator
        ],
        compiler_params=pltpu.CompilerParams(
            dimension_semantics=("parallel", "parallel", "arbitrary"),
            vmem_limit_bytes=48 * 1024 * 1024,
        ),
    )(qkv, qkv, qkv)


# ----------------------------------------------------------------------------
# Parameter preparation (one-time): fold 1/sqrt(64) into the Q columns of
# c_attn and pre-cast GEMM weights to bf16.
# ----------------------------------------------------------------------------
def prepare_params(params):
    scale = jnp.float32(1.0 / (HEAD_DIM ** 0.5))
    w_attn = params["w_attn"]
    b_attn = params["b_attn"]
    w_attn = jnp.concatenate(
        [w_attn[:, :EMBED_DIM] * scale, w_attn[:, EMBED_DIM:]], axis=1)
    b_attn = jnp.concatenate(
        [b_attn[:EMBED_DIM] * scale, b_attn[EMBED_DIM:]])
    return {
        "w_attn": w_attn.astype(jnp.bfloat16),
        "b_attn": b_attn.astype(jnp.float32),
        "w_proj": params["w_proj"].astype(jnp.bfloat16),
        "b_proj": params["b_proj"].astype(jnp.float32),
    }


# ----------------------------------------------------------------------------
# Full forward (self-attention path of the PyTorch module)
# ----------------------------------------------------------------------------
def attention_forward(hidden_states, prep):
    B, S, D = hidden_states.shape
    assert D == EMBED_DIM

    # c_attn: (B, S, D) -> (B, S, 3D), fused qkv buffer, kept in bf16
    x2d = hidden_states.reshape(B * S, D)
    qkv = conv1d_proj(x2d, prep["w_attn"], prep["b_attn"], jnp.bfloat16)
    qkv = qkv.reshape(B, S, 3 * D)

    # fused flash-style multi-head attention; output already merged (B, S, D)
    attn = mha_fused(qkv, jnp.bfloat16)

    # c_proj back to the input dtype
    out = conv1d_proj(attn.reshape(B * S, D), prep["w_proj"], prep["b_proj"],
                      hidden_states.dtype)

    # attn_dropout / resid_dropout: identity in eval mode.
    # TODO(synk): training-mode dropout (p=0.1) not implemented.
    return out.reshape(B, S, EMBED_DIM)


# ----------------------------------------------------------------------------
# Pure-JAX reference (matches the PyTorch module, f32 everywhere)
# ----------------------------------------------------------------------------
def attention_reference(hidden_states, params):
    B, S, D = hidden_states.shape
    qkv = hidden_states @ params["w_attn"] + params["b_attn"]  # (B, S, 3D)
    q, k, v = jnp.split(qkv, 3, axis=-1)

    def split_heads(t):
        return t.reshape(B, S, NUM_HEADS, HEAD_DIM).transpose(0, 2, 1, 3)

    q, k, v = split_heads(q), split_heads(k), split_heads(v)
    s = jnp.einsum("bhqd,bhkd->bhqk", q, k) / jnp.sqrt(jnp.float32(HEAD_DIM))
    p = jax.nn.softmax(s, axis=-1)
    o = jnp.einsum("bhqk,bhkd->bhqd", p, v)
    o = o.transpose(0, 2, 1, 3).reshape(B, S, D)
    return o @ params["w_proj"] + params["b_proj"]


# ----------------------------------------------------------------------------
# Deterministic parameter init (GPT-2 Conv1D: weight ~ N(0, 0.02), bias = 0)
# ----------------------------------------------------------------------------
def init_params(key):
    k1, k2 = jax.random.split(key)
    return {
        "w_attn": 0.02 * jax.random.normal(k1, (EMBED_DIM, 3 * EMBED_DIM),
                                           dtype=jnp.float32),
        "b_attn": jnp.zeros((3 * EMBED_DIM,), dtype=jnp.float32),
        "w_proj": 0.02 * jax.random.normal(k2, (EMBED_DIM, EMBED_DIM),
                                           dtype=jnp.float32),
        "b_proj": jnp.zeros((EMBED_DIM,), dtype=jnp.float32),
    }


if __name__ == "__main__":
    key = jax.random.PRNGKey(0)
    pkey, xkey = jax.random.split(key)

    B, S = 2, 8  # small batch / seq; embed dim fixed at 768 by the module
    params = init_params(pkey)
    prep = prepare_params(params)
    hidden_states = jax.random.normal(xkey, (B, S, EMBED_DIM), dtype=jnp.float32)

    fwd = jax.jit(attention_forward)
    out = jax.block_until_ready(fwd(hidden_states, prep))

    ref = attention_reference(hidden_states, params)
    assert out.shape == (B, S, EMBED_DIM)
    max_err = jnp.max(jnp.abs(out - ref))
    # bf16 MXU operands + approx reciprocal -> looser tolerance than pure f32
    assert jnp.allclose(out, ref, atol=3e-2, rtol=3e-2), (
        f"mismatch vs reference, max abs err = {max_err}")

    print("KERNEL_OK")
</pallas_src>

<mosaic_0001>
module attributes {stable_mosaic.version = 11 : i64} {
  func.func @_matmul_bias_kernel(%arg0: i32, %arg1: memref<16x768xf32, #tpu.memory_space<vmem>>, %arg2: memref<768x2304xbf16, #tpu.memory_space<vmem>>, %arg3: memref<1x2304xf32, #tpu.memory_space<vmem>>, %arg4: memref<16x2304xbf16, #tpu.memory_space<vmem>>) attributes {dimension_semantics = [#tpu.dimension_semantics<parallel>], iteration_bounds = array<i64: 1>, scalar_prefetch = 0 : i64, scratch_operands = 0 : i64, tpu.core_type = #tpu.core_type<tc>, window_params = [{transform_indices = @transform_0, window_bounds = array<i64: 16, 768>}, {pipeline_mode = #tpu.pipeline_mode<synchronous>, transform_indices = @transform_1, window_bounds = array<i64: 768, 2304>}, {pipeline_mode = #tpu.pipeline_mode<synchronous>, transform_indices = @transform_2, window_bounds = array<i64: 1, 2304>}, {transform_indices = @transform_3, window_bounds = array<i64: 16, 2304>}]} {
    %c0 = arith.constant 0 : index
    %c0_0 = arith.constant 0 : index
    %0 = vector.load %arg1[%c0, %c0_0] : memref<16x768xf32, #tpu.memory_space<vmem>>, vector<16x768xf32>
    %1 = arith.truncf %0 : vector<16x768xf32> to vector<16x768xbf16>
    %c0_1 = arith.constant 0 : index
    %c0_2 = arith.constant 0 : index
    %2 = vector.load %arg2[%c0_1, %c0_2] : memref<768x2304xbf16, #tpu.memory_space<vmem>>, vector<768x2304xbf16>
    %cst = arith.constant dense<0.000000e+00> : vector<16x2304xf32>
    %3 = tpu.matmul %1, %2, %cst {dimension_numbers = #tpu.dot_dimension_numbers<[1], [0], [0], [1], [0, 0, 1, 1], [], []>} : vector<16x768xbf16>, vector<768x2304xbf16>, vector<16x2304xf32> -> vector<16x2304xf32>
    %c0_3 = arith.constant 0 : index
    %c0_4 = arith.constant 0 : index
    %4 = vector.load %arg3[%c0_3, %c0_4] : memref<1x2304xf32, #tpu.memory_space<vmem>>, vector<1x2304xf32>
    %5 = vector.broadcast %4 : vector<1x2304xf32> to vector<16x2304xf32>
    %6 = arith.addf %3, %5 : vector<16x2304xf32>
    %7 = arith.truncf %6 : vector<16x2304xf32> to vector<16x2304xbf16>
    %c0_5 = arith.constant 0 : index
    %c0_6 = arith.constant 0 : index
    %8 = vector.load %arg4[%c0_5, %c0_6] : memref<16x2304xbf16, #tpu.memory_space<vmem>>, vector<16x2304xbf16>
    tpu.vector_store %arg4[%c0_5, %c0_6], %7 {strides = array<i32>} : memref<16x2304xbf16, #tpu.memory_space<vmem>>, vector<16x2304xbf16>,
    return
  }
  func.func @transform_0(%arg0: i32) -> (i32, i32) {
    %c0_i32 = arith.constant 0 : i32
    %c0_i32_0 = arith.constant 0 : i32
    return %arg0, %c0_i32 : i32, i32
  }
  func.func @transform_1(%arg0: i32) -> (i32, i32) {
    %c0_i32 = arith.constant 0 : i32
    %c0_i32_0 = arith.constant 0 : i32
    %c0_i32_1 = arith.constant 0 : i32
    return %c0_i32, %c0_i32_0 : i32, i32
  }
  func.func @transform_2(%arg0: i32) -> (i32, i32) {
    %c0_i32 = arith.constant 0 : i32
    %c0_i32_0 = arith.constant 0 : i32
    %c0_i32_1 = arith.constant 0 : i32
    return %c0_i32, %c0_i32_0 : i32, i32
  }
  func.func @transform_3(%arg0: i32) -> (i32, i32) {
    %c0_i32 = arith.constant 0 : i32
    %c0_i32_0 = arith.constant 0 : i32
    return %arg0, %c0_i32 : i32, i32
  }
}

module attributes {stable_mosaic.version = 11 : i64} {
  func.func @_mha_flash_kernel(%arg0: i32, %arg1: i32, %arg2: i32, %arg3: memref<1x8x768xbf16, #tpu.memory_space<vmem>>, %arg4: memref<1x8x768xbf16, #tpu.memory_space<vmem>>, %arg5: memref<1x8x768xbf16, #tpu.memory_space<vmem>>, %arg6: memref<1x8x768xbf16, #tpu.memory_space<vmem>>, %arg7: memref<8x12xf32, #tpu.memory_space<vmem>>, %arg8: memref<8x12xf32, #tpu.memory_space<vmem>>, %arg9: memref<8x768xf32, #tpu.memory_space<vmem>>) attributes {dimension_semantics = [#tpu.dimension_semantics<parallel>, #tpu.dimension_semantics<parallel>, #tpu.dimension_semantics<arbitrary>], iteration_bounds = array<i64: 2, 1, 1>, scalar_prefetch = 0 : i64, scratch_operands = 3 : i64, tpu.core_type = #tpu.core_type<tc>, window_params = [{transform_indices = @transform_0, window_bounds = array<i64: 1, 8, 768>}, {transform_indices = @transform_1, window_bounds = array<i64: 1, 8, 768>}, {transform_indices = @transform_2, window_bounds = array<i64: 1, 8, 768>}, {transform_indices = @transform_3, window_bounds = array<i64: 1, 8, 768>}]} {
    %c0_i32 = arith.constant 0 : i32
    %0 = arith.cmpi eq, %arg2, %c0_i32 : i32
    %1 = arith.extui %0 : i1 to i32
    %c0_i32_0 = arith.constant 0 : i32
    %2 = arith.cmpi ne, %1, %c0_i32_0 : i32
    scf.if %2 {
      %cst_180 = arith.constant 0xFF800000 : f32
      %336 = vector.broadcast %cst_180 : f32 to vector<8x12xf32>
      %c0_181 = arith.constant 0 : index
      %c0_182 = arith.constant 0 : index
      %337 = vector.load %arg7[%c0_181, %c0_182] : memref<8x12xf32, #tpu.memory_space<vmem>>, vector<8x12xf32>
      tpu.vector_store %arg7[%c0_181, %c0_182], %336 {strides = array<i32>} : memref<8x12xf32, #tpu.memory_space<vmem>>, vector<8x12xf32>,
      %cst_183 = arith.constant 0.000000e+00 : f32
      %338 = vector.broadcast %cst_183 : f32 to vector<8x12xf32>
      %c0_184 = arith.constant 0 : index
      %c0_185 = arith.constant 0 : index
      %339 = vector.load %arg8[%c0_184, %c0_185] : memref<8x12xf32, #tpu.memory_space<vmem>>, vector<8x12xf32>
      tpu.vector_store %arg8[%c0_184, %c0_185], %338 {strides = array<i32>} : memref<8x12xf32, #tpu.memory_space<vmem>>, vector<8x12xf32>,
      %cst_186 = arith.constant 0.000000e+00 : f32
      %340 = vector.broadcast %cst_186 : f32 to vector<8x768xf32>
      %c0_187 = arith.constant 0 : index
      %c0_188 = arith.constant 0 : index
      %341 = vector.load %arg9[%c0_187, %c0_188] : memref<8x768xf32, #tpu.memory_space<vmem>>, vector<8x768xf32>
      tpu.vector_store %arg9[%c0_187, %c0_188], %340 {strides = array<i32>} : memref<8x768xf32, #tpu.memory_space<vmem>>, vector<8x768xf32>,
    } else {
    }
    %c0 = arith.constant 0 : index
    %c0_1 = arith.constant 0 : index
    %c0_2 = arith.constant 0 : index
    %3 = vector.load %arg3[%c0, %c0_1, %c0_2] : memref<1x8x768xbf16, #tpu.memory_space<vmem>>, vector<1x8x768xbf16>
    %4 = vector.shape_cast %3 : vector<1x8x768xbf16> to vector<8x768xbf16>
    %c0_3 = arith.constant 0 : index
    %c0_4 = arith.constant 0 : index
    %c0_5 = arith.constant 0 : index
    %5 = vector.load %arg4[%c0_3, %c0_4, %c0_5] : memref<1x8x768xbf16, #tpu.memory_space<vmem>>, vector<1x8x768xbf16>
    %6 = vector.shape_cast %5 : vector<1x8x768xbf16> to vector<8x768xbf16>
    %c0_6 = arith.constant 0 : index
    %c0_7 = arith.constant 0 : index
    %c0_8 = arith.constant 0 : index
    %7 = vector.load %arg5[%c0_6, %c0_7, %c0_8] : memref<1x8x768xbf16, #tpu.memory_space<vmem>>, vector<1x8x768xbf16>
    %8 = vector.shape_cast %7 : vector<1x8x768xbf16> to vector<8x768xbf16>
    %9 = vector.extract_strided_slice %4 {offsets = [0, 0], sizes = [8, 64], strides = [1, 1]} : vector<8x768xbf16> to vector<8x64xbf16>
    %10 = vector.extract_strided_slice %6 {offsets = [0, 0], sizes = [8, 64], strides = [1, 1]} : vector<8x768xbf16> to vector<8x64xbf16>
    %11 = vector.extract_strided_slice %8 {offsets = [0, 0], sizes = [8, 64], strides = [1, 1]} : vector<8x768xbf16> to vector<8x64xbf16>
    %cst = arith.constant dense<0.000000e+00> : vector<8x8xf32>
    %12 = tpu.matmul %9, %10, %cst {dimension_numbers = #tpu.dot_dimension_numbers<[1], [1], [0], [0], [0, 0, 1, 0], [], []>} : vector<8x64xbf16>, vector<8x64xbf16>, vector<8x8xf32> -> vector<8x8xf32>
    %c0_9 = arith.constant 0 : index
    %c0_10 = arith.constant 0 : index
    %13 = vector.load %arg7[%c0_9, %c0_10] : memref<8x12xf32, #tpu.memory_space<vmem>>, vector<8x1xf32>
    %cst_11 = arith.constant dense<0xFF800000> : vector<8xf32>
    %14 = vector.multi_reduction <maximumf>, %12, %cst_11 [1] : vector<8x8xf32> to vector<8xf32>
    %15 = vector.shape_cast %14 : vector<8xf32> to vector<8x1xf32>
    %16 = arith.maximumf %13, %15 : vector<8x1xf32>
    %17 = arith.subf %13, %16 : vector<8x1xf32>
    %18 = math.exp %17 : vector<8x1xf32>
    %19 = vector.broadcast %16 : vector<8x1xf32> to vector<8x8xf32>
    %20 = arith.subf %12, %19 : vector<8x8xf32>
    %21 = math.exp %20 : vector<8x8xf32>
    %c0_12 = arith.constant 0 : index
    %c0_13 = arith.constant 0 : index
    %22 = vector.load %arg8[%c0_12, %c0_13] : memref<8x12xf32, #tpu.memory_space<vmem>>, vector<8x1xf32>
    %23 = arith.mulf %18, %22 : vector<8x1xf32>
    %cst_14 = arith.constant dense<0.000000e+00> : vector<8xf32>
    %24 = vector.multi_reduction <add>, %21, %cst_14 [1] : vector<8x8xf32> to vector<8xf32>
    %25 = vector.shape_cast %24 : vector<8xf32> to vector<8x1xf32>
    %26 = arith.addf %23, %25 : vector<8x1xf32>
    %c0_15 = arith.constant 0 : index
    %c0_16 = arith.constant 0 : index
    %27 = vector.load %arg8[%c0_15, %c0_16] : memref<8x12xf32, #tpu.memory_space<vmem>>, vector<8x1xf32>
    tpu.vector_store %arg8[%c0_15, %c0_16], %26 {strides = array<i32>} : memref<8x12xf32, #tpu.memory_space<vmem>>, vector<8x1xf32>,
    %c0_17 = arith.constant 0 : index
    %c0_18 = arith.constant 0 : index
    %28 = vector.load %arg9[%c0_17, %c0_18] : memref<8x768xf32, #tpu.memory_space<vmem>>, vector<8x64xf32>
    %29 = vector.broadcast %18 : vector<8x1xf32> to vector<8x64xf32>
    %30 = arith.mulf %29, %28 : vector<8x64xf32>
    %31 = arith.truncf %21 : vector<8x8xf32> to vector<8x8xbf16>
    %cst_19 = arith.constant dense<0.000000e+00> : vector<8x64xf32>
    %32 = tpu.matmul %31, %11, %cst_19 {dimension_numbers = #tpu.dot_dimension_numbers<[1], [0], [0], [1], [0, 0, 1, 1], [], []>} : vector<8x8xbf16>, vector<8x64xbf16>, vector<8x64xf32> -> vector<8x64xf32>
    %33 = arith.addf %30, %32 : vector<8x64xf32>
    %c0_20 = arith.constant 0 : index
    %c0_21 = arith.constant 0 : index
    %34 = vector.load %arg9[%c0_20, %c0_21] : memref<8x768xf32, #tpu.memory_space<vmem>>, vector<8x64xf32>
    tpu.vector_store %arg9[%c0_20, %c0_21], %33 {strides = array<i32>} : memref<8x768xf32, #tpu.memory_space<vmem>>, vector<8x64xf32>,
    %c0_22 = arith.constant 0 : index
    %c0_23 = arith.constant 0 : index
    %35 = vector.load %arg7[%c0_22, %c0_23] : memref<8x12xf32, #tpu.memory_space<vmem>>, vector<8x1xf32>
    tpu.vector_store %arg7[%c0_22, %c0_23], %16 {strides = array<i32>} : memref<8x12xf32, #tpu.memory_space<vmem>>, vector<8x1xf32>,
    %36 = vector.extract_strided_slice %4 {offsets = [0, 64], sizes = [8, 64], strides = [1, 1]} : vector<8x768xbf16> to vector<8x64xbf16>
    %37 = vector.extract_strided_slice %6 {offsets = [0, 64], sizes = [8, 64], strides = [1, 1]} : vector<8x768xbf16> to vector<8x64xbf16>
    %38 = vector.extract_strided_slice %8 {offsets = [0, 64], sizes = [8, 64], strides = [1, 1]} : vector<8x768xbf16> to vector<8x64xbf16>
    %cst_24 = arith.constant dense<0.000000e+00> : vector<8x8xf32>
    %39 = tpu.matmul %36, %37, %cst_24 {dimension_numbers = #tpu.dot_dimension_numbers<[1], [1], [0], [0], [0, 0, 1, 0], [], []>} : vector<8x64xbf16>, vector<8x64xbf16>, vector<8x8xf32> -> vector<8x8xf32>
    %c0_25 = arith.constant 0 : index
    %c1 = arith.constant 1 : index
    %40 = vector.load %arg7[%c0_25, %c1] : memref<8x12xf32, #tpu.memory_space<vmem>>, vector<8x1xf32>
    %cst_26 = arith.constant dense<0xFF800000> : vector<8xf32>
    %41 = vector.multi_reduction <maximumf>, %39, %cst_26 [1] : vector<8x8xf32> to vector<8xf32>
    %42 = vector.shape_cast %41 : vector<8xf32> to vector<8x1xf32>
    %43 = arith.maximumf %40, %42 : vector<8x1xf32>
    %44 = arith.subf %40, %43 : vector<8x1xf32>
    %45 = math.exp %44 : vector<8x1xf32>
    %46 = vector.broadcast %43 : vector<8x1xf32> to vector<8x8xf32>
    %47 = arith.subf %39, %46 : vector<8x8xf32>
    %48 = math.exp %47 : vector<8x8xf32>
    %c0_27 = arith.constant 0 : index
    %c1_28 = arith.constant 1 : index
    %49 = vector.load %arg8[%c0_27, %c1_28] : memref<8x12xf32, #tpu.memory_space<vmem>>, vector<8x1xf32>
    %50 = arith.mulf %45, %49 : vector<8x1xf32>
    %cst_29 = arith.constant dense<0.000000e+00> : vector<8xf32>
    %51 = vector.multi_reduction <add>, %48, %cst_29 [1] : vector<8x8xf32> to vector<8xf32>
    %52 = vector.shape_cast %51 : vector<8xf32> to vector<8x1xf32>
    %53 = arith.addf %50, %52 : vector<8x1xf32>
    %c0_30 = arith.constant 0 : index
    %c1_31 = arith.constant 1 : index
    %54 = vector.load %arg8[%c0_30, %c1_31] : memref<8x12xf32, #tpu.memory_space<vmem>>, vector<8x1xf32>
    tpu.vector_store %arg8[%c0_30, %c1_31], %53 {strides = array<i32>} : memref<8x12xf32, #tpu.memory_space<vmem>>, vector<8x1xf32>,
    %c0_32 = arith.constant 0 : index
    %c64 = arith.constant 64 : index
    %55 = vector.load %arg9[%c0_32, %c64] : memref<8x768xf32, #tpu.memory_space<vmem>>, vector<8x64xf32>
    %56 = vector.broadcast %45 : vector<8x1xf32> to vector<8x64xf32>
    %57 = arith.mulf %56, %55 : vector<8x64xf32>
    %58 = arith.truncf %48 : vector<8x8xf32> to vector<8x8xbf16>
    %cst_33 = arith.constant dense<0.000000e+00> : vector<8x64xf32>
    %59 = tpu.matmul %58, %38, %cst_33 {dimension_numbers = #tpu.dot_dimension_numbers<[1], [0], [0], [1], [0, 0, 1, 1], [], []>} : vector<8x8xbf16>, vector<8x64xbf16>, vector<8x64xf32> -> vector<8x64xf32>
    %60 = arith.addf %57, %59 : vector<8x64xf32>
    %c0_34 = arith.constant 0 : index
    %c64_35 = arith.constant 64 : index
    %61 = vector.load %arg9[%c0_34, %c64_35] : memref<8x768xf32, #tpu.memory_space<vmem>>, vector<8x64xf32>
    tpu.vector_store %arg9[%c0_34, %c64_35], %60 {strides = array<i32>} : memref<8x768xf32, #tpu.memory_space<vmem>>, vector<8x64xf32>,
    %c0_36 = arith.constant 0 : index
    %c1_37 = arith.constant 1 : index
    %62 = vector.load %arg7[%c0_36, %c1_37] : memref<8x12xf32, #tpu.memory_space<vmem>>, vector<8x1xf32>
    tpu.vector_store %arg7[%c0_36, %c1_37], %43 {strides = array<i32>} : memref<8x12xf32, #tpu.memory_space<vmem>>, vector<8x1xf32>,
    %63 = vector.extract_strided_slice %4 {offsets = [0, 128], sizes = [8, 64], strides = [1, 1]} : vector<8x768xbf16> to vector<8x64xbf16>
    %64 = vector.extract_strided_slice %6 {offsets = [0, 128], sizes = [8, 64], strides = [1, 1]} : vector<8x768xbf16> to vector<8x64xbf16>
    %65 = vector.extract_strided_slice %8 {offsets = [0, 128], sizes = [8, 64], strides = [1, 1]} : vector<8x768xbf16> to vector<8x64xbf16>
    %cst_38 = arith.constant dense<0.000000e+00> : vector<8x8xf32>
    %66 = tpu.matmul %63, %64, %cst_38 {dimension_numbers = #tpu.dot_dimension_numbers<[1], [1], [0], [0], [0, 0, 1, 0], [], []>} : vector<8x64xbf16>, vector<8x64xbf16>, vector<8x8xf32> -> vector<8x8xf32>
    %c0_39 = arith.constant 0 : index
    %c2 = arith.constant 2 : index
    %67 = vector.load %arg7[%c0_39, %c2] : memref<8x12xf32, #tpu.memory_space<vmem>>, vector<8x1xf32>
    %cst_40 = arith.constant dense<0xFF800000> : vector<8xf32>
    %68 = vector.multi_reduction <maximumf>, %66, %cst_40 [1] : vector<8x8xf32> to vector<8xf32>
    %69 = vector.shape_cast %68 : vector<8xf32> to vector<8x1xf32>
    %70 = arith.maximumf %67, %69 : vector<8x1xf32>
    %71 = arith.subf %67, %70 : vector<8x1xf32>
    %72 = math.exp %71 : vector<8x1xf32>
    %73 = vector.broadcast %70 : vector<8x1xf32> to vector<8x8xf32>
    %74 = arith.subf %66, %73 : vector<8x8xf32>
    %75 = math.exp %74 : vector<8x8xf32>
    %c0_41 = arith.constant 0 : index
    %c2_42 = arith.constant 2 : index
    %76 = vector.load %arg8[%c0_41, %c2_42] : memref<8x12xf32, #tpu.memory_space<vmem>>, vector<8x1xf32>
    %77 = arith.mulf %72, %76 : vector<8x1xf32>
    %cst_43 = arith.constant dense<0.000000e+00> : vector<8xf32>
    %78 = vector.multi_reduction <add>, %75, %cst_43 [1] : vector<8x8xf32> to vector<8xf32>
    %79 = vector.shape_cast %78 : vector<8xf32> to vector<8x1xf32>
    %80 = arith.addf %77, %79 : vector<8x1xf32>
    %c0_44 = arith.constant 0 : index
    %c2_45 = arith.constant 2 : index
    %81 = vector.load %arg8[%c0_44, %c2_45] : memref<8x12xf32, #tpu.memory_space<vmem>>, vector<8x1xf32>
    tpu.vector_store %arg8[%c0_44, %c2_45], %80 {strides = array<i32>} : memref<8x12xf32, #tpu.memory_space<vmem>>, vector<8x1xf32>,
    %c0_46 = arith.constant 0 : index
    %c128 = arith.constant 128 : index
    %82 = vector.load %arg9[%c0_46, %c128] : memref<8x768xf32, #tpu.memory_space<vmem>>, vector<8x64xf32>
    %83 = vector.broadcast %72 : vector<8x1xf32> to vector<8x64xf32>
    %84 = arith.mulf %83, %82 : vector<8x64xf32>
    %85 = arith.truncf %75 : vector<8x8xf32> to vector<8x8xbf16>
    %cst_47 = arith.constant dense<0.000000e+00> : vector<8x64xf32>
    %86 = tpu.matmul %85, %65, %cst_47 {dimension_numbers = #tpu.dot_dimension_numbers<[1], [0], [0], [1], [0, 0, 1, 1], [], []>} : vector<8x8xbf16>, vector<8x64xbf16>, vector<8x64xf32> -> vector<8x64xf32>
    %87 = arith.addf %84, %86 : vector<8x64xf32>
    %c0_48 = arith.constant 0 : index
    %c128_49 = arith.constant 128 : index
    %88 = vector.load %arg9[%c0_48, %c128_49] : memref<8x768xf32, #tpu.memory_space<vmem>>, vector<8x64xf32>
    tpu.vector_store %arg9[%c0_48, %c128_49], %87 {strides = array<i32>} : memref<8x768xf32, #tpu.memory_space<vmem>>, vector<8x64xf32>,
    %c0_50 = arith.constant 0 : index
    %c2_51 = arith.constant 2 : index
    %89 = vector.load %arg7[%c0_50, %c2_51] : memref<8x12xf32, #tpu.memory_space<vmem>>, vector<8x1xf32>
    tpu.vector_store %arg7[%c0_50, %c2_51], %70 {strides = array<i32>} : memref<8x12xf32, #tpu.memory_space<vmem>>, vector<8x1xf32>,
    %90 = vector.extract_strided_slice %4 {offsets = [0, 192], sizes = [8, 64], strides = [1, 1]} : vector<8x768xbf16> to vector<8x64xbf16>
    %91 = vector.extract_strided_slice %6 {offsets = [0, 192], sizes = [8, 64], strides = [1, 1]} : vector<8x768xbf16> to vector<8x64xbf16>
    %92 = vector.extract_strided_slice %8 {offsets = [0, 192], sizes = [8, 64], strides = [1, 1]} : vector<8x768xbf16> to vector<8x64xbf16>
    %cst_52 = arith.constant dense<0.000000e+00> : vector<8x8xf32>
    %93 = tpu.matmul %90, %91, %cst_52 {dimension_numbers = #tpu.dot_dimension_numbers<[1], [1], [0], [0], [0, 0, 1, 0], [], []>} : vector<8x64xbf16>, vector<8x64xbf16>, vector<8x8xf32> -> vector<8x8xf32>
    %c0_53 = arith.constant 0 : index
    %c3 = arith.constant 3 : index
    %94 = vector.load %arg7[%c0_53, %c3] : memref<8x12xf32, #tpu.memory_space<vmem>>, vector<8x1xf32>
    %cst_54 = arith.constant dense<0xFF800000> : vector<8xf32>
    %95 = vector.multi_reduction <maximumf>, %93, %cst_54 [1] : vector<8x8xf32> to vector<8xf32>
    %96 = vector.shape_cast %95 : vector<8xf32> to vector<8x1xf32>
    %97 = arith.maximumf %94, %96 : vector<8x1xf32>
    %98 = arith.subf %94, %97 : vector<8x1xf32>
    %99 = math.exp %98 : vector<8x1xf32>
    %100 = vector.broadcast %97 : vector<8x1xf32> to vector<8x8xf32>
    %101 = arith.subf %93, %100 : vector<8x8xf32>
    %102 = math.exp %101 : vector<8x8xf32>
    %c0_55 = arith.constant 0 : index
    %c3_56 = arith.constant 3 : index
    %103 = vector.load %arg8[%c0_55, %c3_56] : memref<8x12xf32, #tpu.memory_space<vmem>>, vector<8x1xf32>
    %104 = arith.mulf %99, %103 : vector<8x1xf32>
    %cst_57 = arith.constant dense<0.000000e+00> : vector<8xf32>
    %105 = vector.multi_reduction <add>, %102, %cst_57 [1] : vector<8x8xf32> to vector<8xf32>
    %106 = vector.shape_cast %105 : vector<8xf32> to vector<8x1xf32>
    %107 = arith.addf %104, %106 : vector<8x1xf32>
    %c0_58 = arith.constant 0 : index
    %c3_59 = arith.constant 3 : index
    %108 = vector.load %arg8[%c0_58, %c3_59] : memref<8x12xf32, #tpu.memory_space<vmem>>, vector<8x1xf32>
    tpu.vector_store %arg8[%c0_58, %c3_59], %107 {strides = array<i32>} : memref<8x12xf32, #tpu.memory_space<vmem>>, vector<8x1xf32>,
    %c0_60 = arith.constant 0 : index
    %c192 = arith.constant 192 : index
    %109 = vector.load %arg9[%c0_60, %c192] : memref<8x768xf32, #tpu.memory_space<vmem>>, vector<8x64xf32>
    %110 = vector.broadcast %99 : vector<8x1xf32> to vector<8x64xf32>
    %111 = arith.mulf %110, %109 : vector<8x64xf32>
    %112 = arith.truncf %102 : vector<8x8xf32> to vector<8x8xbf16>
    %cst_61 = arith.constant dense<0.000000e+00> : vector<8x64xf32>
    %113 = tpu.matmul %112, %92, %cst_61 {dimension_numbers = #tpu.dot_dimension_numbers<[1], [0], [0], [1], [0, 0, 1, 1], [], []>} : vector<8x8xbf16>, vector<8x64xbf16>, vector<8x64xf32> -> vector<8x64xf32>
    %114 = arith.addf %111, %113 : vector<8x64xf32>
    %c0_62 = arith.constant 0 : index
    %c192_63 = arith.constant 192 : index
    %115 = vector.load %arg9[%c0_62, %c192_63] : memref<8x768xf32, #tpu.memory_space<vmem>>, vector<8x64xf32>
    tpu.vector_store %arg9[%c0_62, %c192_63], %114 {strides = array<i32>} : memref<8x768xf32, #tpu.memory_space<vmem>>, vector<8x64xf32>,
    %c0_64 = arith.constant 0 : index
    %c3_65 = arith.constant 3 : index
    %116 = vector.load %arg7[%c0_64, %c3_65] : memref<8x12xf32, #tpu.memory_space<vmem>>, vector<8x1xf32>
    tpu.vector_store %arg7[%c0_64, %c3_65], %97 {strides = array<i32>} : memref<8x12xf32, #tpu.memory_space<vmem>>, vector<8x1xf32>,
    %117 = vector.extract_strided_slice %4 {offsets = [0, 256], sizes = [8, 64], strides = [1, 1]} : vector<8x768xbf16> to vector<8x64xbf16>
    %118 = vector.extract_strided_slice %6 {offsets = [0, 256], sizes = [8, 64], strides = [1, 1]} : vector<8x768xbf16> to vector<8x64xbf16>
    %119 = vector.extract_strided_slice %8 {offsets = [0, 256], sizes = [8, 64], strides = [1, 1]} : vector<8x768xbf16> to vector<8x64xbf16>
    %cst_66 = arith.constant dense<0.000000e+00> : vector<8x8xf32>
    %120 = tpu.matmul %117, %118, %cst_66 {dimension_numbers = #tpu.dot_dimension_numbers<[1], [1], [0], [0], [0, 0, 1, 0], [], []>} : vector<8x64xbf16>, vector<8x64xbf16>, vector<8x8xf32> -> vector<8x8xf32>
    %c0_67 = arith.constant 0 : index
    %c4 = arith.constant 4 : index
    %121 = vector.load %arg7[%c0_67, %c4] : memref<8x12xf32, #tpu.memory_space<vmem>>, vector<8x1xf32>
    %cst_68 = arith.constant dense<0xFF800000> : vector<8xf32>
    %122 = vector.multi_reduction <maximumf>, %120, %cst_68 [1] : vector<8x8xf32> to vector<8xf32>
    %123 = vector.shape_cast %122 : vector<8xf32> to vector<8x1xf32>
    %124 = arith.maximumf %121, %123 : vector<8x1xf32>
    %125 = arith.subf %121, %124 : vector<8x1xf32>
    %126 = math.exp %125 : vector<8x1xf32>
    %127 = vector.broadcast %124 : vector<8x1xf32> to vector<8x8xf32>
    %128 = arith.subf %120, %127 : vector<8x8xf32>
    %129 = math.exp %128 : vector<8x8xf32>
    %c0_69 = arith.constant 0 : index
    %c4_70 = arith.constant 4 : index
    %130 = vector.load %arg8[%c0_69, %c4_70] : memref<8x12xf32, #tpu.memory_space<vmem>>, vector<8x1xf32>
    %131 = arith.mulf %126, %130 : vector<8x1xf32>
    %cst_71 = arith.constant dense<0.000000e+00> : vector<8xf32>
    %132 = vector.multi_reduction <add>, %129, %cst_71 [1] : vector<8x8xf32> to vector<8xf32>
    %133 = vector.shape_cast %132 : vector<8xf32> to vector<8x1xf32>
    %134 = arith.addf %131, %133 : vector<8x1xf32>
    %c0_72 = arith.constant 0 : index
    %c4_73 = arith.constant 4 : index
    %135 = vector.load %arg8[%c0_72, %c4_73] : memref<8x12xf32, #tpu.memory_space<vmem>>, vector<8x1xf32>
    tpu.vector_store %arg8[%c0_72, %c4_73], %134 {strides = array<i32>} : memref<8x12xf32, #tpu.memory_space<vmem>>, vector<8x1xf32>,
    %c0_74 = arith.constant 0 : index
    %c256 = arith.constant 256 : index
    %136 = vector.load %arg9[%c0_74, %c256] : memref<8x768xf32, #tpu.memory_space<vmem>>, vector<8x64xf32>
    %137 = vector.broadcast %126 : vector<8x1xf32> to vector<8x64xf32>
    %138 = arith.mulf %137, %136 : vector<8x64xf32>
    %139 = arith.truncf %129 : vector<8x8xf32> to vector<8x8xbf16>
    %cst_75 = arith.constant dense<0.000000e+00> : vector<8x64xf32>
    %140 = tpu.matmul %139, %119, %cst_75 {dimension_numbers = #tpu.dot_dimension_numbers<[1], [0], [0], [1], [0, 0, 1, 1], [], []>} : vector<8x8xbf16>, vector<8x64xbf16>, vector<8x64xf32> -> vector<8x64xf32>
    %141 = arith.addf %138, %140 : vector<8x64xf32>
    %c0_76 = arith.constant 0 : index
    %c256_77 = arith.constant 256 : index
    %142 = vector.load %arg9[%c0_76, %c256_77] : memref<8x768xf32, #tpu.memory_space<vmem>>, vector<8x64xf32>
    tpu.vector_store %arg9[%c0_76, %c256_77], %141 {strides = array<i32>} : memref<8x768xf32, #tpu.memory_space<vmem>>, vector<8x64xf32>,
    %c0_78 = arith.constant 0 : index
    %c4_79 = arith.constant 4 : index
    %143 = vector.load %arg7[%c0_78, %c4_79] : memref<8x12xf32, #tpu.memory_space<vmem>>, vector<8x1xf32>
    tpu.vector_store %arg7[%c0_78, %c4_79], %124 {strides = array<i32>} : memref<8x12xf32, #tpu.memory_space<vmem>>, vector<8x1xf32>,
    %144 = vector.extract_strided_slice %4 {offsets = [0, 320], sizes = [8, 64], strides = [1, 1]} : vector<8x768xbf16> to vector<8x64xbf16>
    %145 = vector.extract_strided_slice %6 {offsets = [0, 320], sizes = [8, 64], strides = [1, 1]} : vector<8x768xbf16> to vector<8x64xbf16>
    %146 = vector.extract_strided_slice %8 {offsets = [0, 320], sizes = [8, 64], strides = [1, 1]} : vector<8x768xbf16> to vector<8x64xbf16>
    %cst_80 = arith.constant dense<0.000000e+00> : vector<8x8xf32>
    %147 = tpu.matmul %144, %145, %cst_80 {dimension_numbers = #tpu.dot_dimension_numbers<[1], [1], [0], [0], [0, 0, 1, 0], [], []>} : vector<8x64xbf16>, vector<8x64xbf16>, vector<8x8xf32> -> vector<8x8xf32>
    %c0_81 = arith.constant 0 : index
    %c5 = arith.constant 5 : index
    %148 = vector.load %arg7[%c0_81, %c5] : memref<8x12xf32, #tpu.memory_space<vmem>>, vector<8x1xf32>
    %cst_82 = arith.constant dense<0xFF800000> : vector<8xf32>
    %149 = vector.multi_reduction <maximumf>, %147, %cst_82 [1] : vector<8x8xf32> to vector<8xf32>
    %150 = vector.shape_cast %149 : vector<8xf32> to vector<8x1xf32>
    %151 = arith.maximumf %148, %150 : vector<8x1xf32>
    %152 = arith.subf %148, %151 : vector<8x1xf32>
    %153 = math.exp %152 : vector<8x1xf32>
    %154 = vector.broadcast %151 : vector<8x1xf32> to vector<8x8xf32>
    %155 = arith.subf %147, %154 : vector<8x8xf32>
    %156 = math.exp %155 : vector<8x8xf32>
    %c0_83 = arith.constant 0 : index
    %c5_84 = arith.constant 5 : index
    %157 = vector.load %arg8[%c0_83, %c5_84] : memref<8x12xf32, #tpu.memory_space<vmem>>, vector<8x1xf32>
    %158 = arith.mulf %153, %157 : vector<8x1xf32>
    %cst_85 = arith.constant dense<0.000000e+00> : vector<8xf32>
    %159 = vector.multi_reduction <add>, %156, %cst_85 [1] : vector<8x8xf32> to vector<8xf32>
    %160 = vector.shape_cast %159 : vector<8xf32> to vector<8x1xf32>
    %161 = arith.addf %158, %160 : vector<8x1xf32>
    %c0_86 = arith.constant 0 : index
    %c5_87 = arith.constant 5 : index
    %162 = vector.load %arg8[%c0_86, %c5_87] : memref<8x12xf32, #tpu.memory_space<vmem>>, vector<8x1xf32>
    tpu.vector_store %arg8[%c0_86, %c5_87], %161 {strides = array<i32>} : memref<8x12xf32, #tpu.memory_space<vmem>>, vector<8x1xf32>,
    %c0_88 = arith.constant 0 : index
    %c320 = arith.constant 320 : index
    %163 = vector.load %arg9[%c0_88, %c320] : memref<8x768xf32, #tpu.memory_space<vmem>>, vector<8x64xf32>
    %164 = vector.broadcast %153 : vector<8x1xf32> to vector<8x64xf32>
    %165 = arith.mulf %164, %163 : vector<8x64xf32>
    %166 = arith.truncf %156 : vector<8x8xf32> to vector<8x8xbf16>
    %cst_89 = arith.constant dense<0.000000e+00> : vector<8x64xf32>
    %167 = tpu.matmul %166, %146, %cst_89 {dimension_numbers = #tpu.dot_dimension_numbers<[1], [0], [0], [1], [0, 0, 1, 1], [], []>} : vector<8x8xbf16>, vector<8x64xbf16>, vector<8x64xf32> -> vector<8x64xf32>
    %168 = arith.addf %165, %167 : vector<8x64xf32>
    %c0_90 = arith.constant 0 : index
    %c320_91 = arith.constant 320 : index
    %169 = vector.load %arg9[%c0_90, %c320_91] : memref<8x768xf32, #tpu.memory_space<vmem>>, vector<8x64xf32>
    tpu.vector_store %arg9[%c0_90, %c320_91], %168 {strides = array<i32>} : memref<8x768xf32, #tpu.memory_space<vmem>>, vector<8x64xf32>,
    %c0_92 = arith.constant 0 : index
    %c5_93 = arith.constant 5 : index
    %170 = vector.load %arg7[%c0_92, %c5_93] : memref<8x12xf32, #tpu.memory_space<vmem>>, vector<8x1xf32>
    tpu.vector_store %arg7[%c0_92, %c5_93], %151 {strides = array<i32>} : memref<8x12xf32, #tpu.memory_space<vmem>>, vector<8x1xf32>,
    %171 = vector.extract_strided_slice %4 {offsets = [0, 384], sizes = [8, 64], strides = [1, 1]} : vector<8x768xbf16> to vector<8x64xbf16>
    %172 = vector.extract_strided_slice %6 {offsets = [0, 384], sizes = [8, 64], strides = [1, 1]} : vector<8x768xbf16> to vector<8x64xbf16>
    %173 = vector.extract_strided_slice %8 {offsets = [0, 384], sizes = [8, 64], strides = [1, 1]} : vector<8x768xbf16> to vector<8x64xbf16>
    %cst_94 = arith.constant dense<0.000000e+00> : vector<8x8xf32>
    %174 = tpu.matmul %171, %172, %cst_94 {dimension_numbers = #tpu.dot_dimension_numbers<[1], [1], [0], [0], [0, 0, 1, 0], [], []>} : vector<8x64xbf16>, vector<8x64xbf16>, vector<8x8xf32> -> vector<8x8xf32>
    %c0_95 = arith.constant 0 : index
    %c6 = arith.constant 6 : index
    %175 = vector.load %arg7[%c0_95, %c6] : memref<8x12xf32, #tpu.memory_space<vmem>>, vector<8x1xf32>
    %cst_96 = arith.constant dense<0xFF800000> : vector<8xf32>
    %176 = vector.multi_reduction <maximumf>, %174, %cst_96 [1] : vector<8x8xf32> to vector<8xf32>
    %177 = vector.shape_cast %176 : vector<8xf32> to vector<8x1xf32>
    %178 = arith.maximumf %175, %177 : vector<8x1xf32>
    %179 = arith.subf %175, %178 : vector<8x1xf32>
    %180 = math.exp %179 : vector<8x1xf32>
    %181 = vector.broadcast %178 : vector<8x1xf32> to vector<8x8xf32>
    %182 = arith.subf %174, %181 : vector<8x8xf32>
    %183 = math.exp %182 : vector<8x8xf32>
    %c0_97 = arith.constant 0 : index
    %c6_98 = arith.constant 6 : index
    %184 = vector.load %arg8[%c0_97, %c6_98] : memref<8x12xf32, #tpu.memory_space<vmem>>, vector<8x1xf32>
    %185 = arith.mulf %180, %184 : vector<8x1xf32>
    %cst_99 = arith.constant dense<0.000000e+00> : vector<8xf32>
    %186 = vector.multi_reduction <add>, %183, %cst_99 [1] : vector<8x8xf32> to vector<8xf32>
    %187 = vector.shape_cast %186 : vector<8xf32> to vector<8x1xf32>
    %188 = arith.addf %185, %187 : vector<8x1xf32>
    %c0_100 = arith.constant 0 : index
    %c6_101 = arith.constant 6 : index
    %189 = vector.load %arg8[%c0_100, %c6_101] : memref<8x12xf32, #tpu.memory_space<vmem>>, vector<8x1xf32>
    tpu.vector_store %arg8[%c0_100, %c6_101], %188 {strides = array<i32>} : memref<8x12xf32, #tpu.memory_space<vmem>>, vector<8x1xf32>,
    %c0_102 = arith.constant 0 : index
    %c384 = arith.constant 384 : index
    %190 = vector.load %arg9[%c0_102, %c384] : memref<8x768xf32, #tpu.memory_space<vmem>>, vector<8x64xf32>
    %191 = vector.broadcast %180 : vector<8x1xf32> to vector<8x64xf32>
    %192 = arith.mulf %191, %190 : vector<8x64xf32>
    %193 = arith.truncf %183 : vector<8x8xf32> to vector<8x8xbf16>
    %cst_103 = arith.constant dense<0.000000e+00> : vector<8x64xf32>
    %194 = tpu.matmul %193, %173, %cst_103 {dimension_numbers = #tpu.dot_dimension_numbers<[1], [0], [0], [1], [0, 0, 1, 1], [], []>} : vector<8x8xbf16>, vector<8x64xbf16>, vector<8x64xf32> -> vector<8x64xf32>
    %195 = arith.addf %192, %194 : vector<8x64xf32>
    %c0_104 = arith.constant 0 : index
    %c384_105 = arith.constant 384 : index
    %196 = vector.load %arg9[%c0_104, %c384_105] : memref<8x768xf32, #tpu.memory_space<vmem>>, vector<8x64xf32>
    tpu.vector_store %arg9[%c0_104, %c384_105], %195 {strides = array<i32>} : memref<8x768xf32, #tpu.memory_space<vmem>>, vector<8x64xf32>,
    %c0_106 = arith.constant 0 : index
    %c6_107 = arith.constant 6 : index
    %197 = vector.load %arg7[%c0_106, %c6_107] : memref<8x12xf32, #tpu.memory_space<vmem>>, vector<8x1xf32>
    tpu.vector_store %arg7[%c0_106, %c6_107], %178 {strides = array<i32>} : memref<8x12xf32, #tpu.memory_space<vmem>>, vector<8x1xf32>,
    %198 = vector.extract_strided_slice %4 {offsets = [0, 448], sizes = [8, 64], strides = [1, 1]} : vector<8x768xbf16> to vector<8x64xbf16>
    %199 = vector.extract_strided_slice %6 {offsets = [0, 448], sizes = [8, 64], strides = [1, 1]} : vector<8x768xbf16> to vector<8x64xbf16>
    %200 = vector.extract_strided_slice %8 {offsets = [0, 448], sizes = [8, 64], strides = [1, 1]} : vector<8x768xbf16> to vector<8x64xbf16>
    %cst_108 = arith.constant dense<0.000000e+00> : vector<8x8xf32>
    %201 = tpu.matmul %198, %199, %cst_108 {dimension_numbers = #tpu.dot_dimension_numbers<[1], [1], [0], [0], [0, 0, 1, 0], [], []>} : vector<8x64xbf16>, vector<8x64xbf16>, vector<8x8xf32> -> vector<8x8xf32>
    %c0_109 = arith.constant 0 : index
    %c7 = arith.constant 7 : index
    %202 = vector.load %arg7[%c0_109, %c7] : memref<8x12xf32, #tpu.memory_space<vmem>>, vector<8x1xf32>
    %cst_110 = arith.constant dense<0xFF800000> : vector<8xf32>
    %203 = vector.multi_reduction <maximumf>, %201, %cst_110 [1] : vector<8x8xf32> to vector<8xf32>
    %204 = vector.shape_cast %203 : vector<8xf32> to vector<8x1xf32>
    %205 = arith.maximumf %202, %204 : vector<8x1xf32>
    %206 = arith.subf %202, %205 : vector<8x1xf32>
    %207 = math.exp %206 : vector<8x1xf32>
    %208 = vector.broadcast %205 : vector<8x1xf32> to vector<8x8xf32>
    %209 = arith.subf %201, %208 : vector<8x8xf32>
    %210 = math.exp %209 : vector<8x8xf32>
    %c0_111 = arith.constant 0 : index
    %c7_112 = arith.constant 7 : index
    %211 = vector.load %arg8[%c0_111, %c7_112] : memref<8x12xf32, #tpu.memory_space<vmem>>, vector<8x1xf32>
    %212 = arith.mulf %207, %211 : vector<8x1xf32>
    %cst_113 = arith.constant dense<0.000000e+00> : vector<8xf32>
    %213 = vector.multi_reduction <add>, %210, %cst_113 [1] : vector<8x8xf32> to vector<8xf32>
    %214 = vector.shape_cast %213 : vector<8xf32> to vector<8x1xf32>
    %215 = arith.addf %212, %214 : vector<8x1xf32>
    %c0_114 = arith.constant 0 : index
    %c7_115 = arith.constant 7 : index
    %216 = vector.load %arg8[%c0_114, %c7_115] : memref<8x12xf32, #tpu.memory_space<vmem>>, vector<8x1xf32>
    tpu.vector_store %arg8[%c0_114, %c7_115], %215 {strides = array<i32>} : memref<8x12xf32, #tpu.memory_space<vmem>>, vector<8x1xf32>,
    %c0_116 = arith.constant 0 : index
    %c448 = arith.constant 448 : index
    %217 = vector.load %arg9[%c0_116, %c448] : memref<8x768xf32, #tpu.memory_space<vmem>>, vector<8x64xf32>
    %218 = vector.broadcast %207 : vector<8x1xf32> to vector<8x64xf32>
    %219 = arith.mulf %218, %217 : vector<8x64xf32>
    %220 = arith.truncf %210 : vector<8x8xf32> to vector<8x8xbf16>
    %cst_117 = arith.constant dense<0.000000e+00> : vector<8x64xf32>
    %221 = tpu.matmul %220, %200, %cst_117 {dimension_numbers = #tpu.dot_dimension_numbers<[1], [0], [0], [1], [0, 0, 1, 1], [], []>} : vector<8x8xbf16>, vector<8x64xbf16>, vector<8x64xf32> -> vector<8x64xf32>
    %222 = arith.addf %219, %221 : vector<8x64xf32>
    %c0_118 = arith.constant 0 : index
    %c448_119 = arith.constant 448 : index
    %223 = vector.load %arg9[%c0_118, %c448_119] : memref<8x768xf32, #tpu.memory_space<vmem>>, vector<8x64xf32>
    tpu.vector_store %arg9[%c0_118, %c448_119], %222 {strides = array<i32>} : memref<8x768xf32, #tpu.memory_space<vmem>>, vector<8x64xf32>,
    %c0_120 = arith.constant 0 : index
    %c7_121 = arith.constant 7 : index
    %224 = vector.load %arg7[%c0_120, %c7_121] : memref<8x12xf32, #tpu.memory_space<vmem>>, vector<8x1xf32>
    tpu.vector_store %arg7[%c0_120, %c7_121], %205 {strides = array<i32>} : memref<8x12xf32, #tpu.memory_space<vmem>>, vector<8x1xf32>,
    %225 = vector.extract_strided_slice %4 {offsets = [0, 512], sizes = [8, 64], strides = [1, 1]} : vector<8x768xbf16> to vector<8x64xbf16>
    %226 = vector.extract_strided_slice %6 {offsets = [0, 512], sizes = [8, 64], strides = [1, 1]} : vector<8x768xbf16> to vector<8x64xbf16>
    %227 = vector.extract_strided_slice %8 {offsets = [0, 512], sizes = [8, 64], strides = [1, 1]} : vector<8x768xbf16> to vector<8x64xbf16>
    %cst_122 = arith.constant dense<0.000000e+00> : vector<8x8xf32>
    %228 = tpu.matmul %225, %226, %cst_122 {dimension_numbers = #tpu.dot_dimension_numbers<[1], [1], [0], [0], [0, 0, 1, 0], [], []>} : vector<8x64xbf16>, vector<8x64xbf16>, vector<8x8xf32> -> vector<8x8xf32>
    %c0_123 = arith.constant 0 : index
    %c8 = arith.constant 8 : index
    %229 = vector.load %arg7[%c0_123, %c8] : memref<8x12xf32, #tpu.memory_space<vmem>>, vector<8x1xf32>
    %cst_124 = arith.constant dense<0xFF800000> : vector<8xf32>
    %230 = vector.multi_reduction <maximumf>, %228, %cst_124 [1] : vector<8x8xf32> to vector<8xf32>
    %231 = vector.shape_cast %230 : vector<8xf32> to vector<8x1xf32>
    %232 = arith.maximumf %229, %231 : vector<8x1xf32>
    %233 = arith.subf %229, %232 : vector<8x1xf32>
    %234 = math.exp %233 : vector<8x1xf32>
    %235 = vector.broadcast %232 : vector<8x1xf32> to vector<8x8xf32>
    %236 = arith.subf %228, %235 : vector<8x8xf32>
    %237 = math.exp %236 : vector<8x8xf32>
    %c0_125 = arith.constant 0 : index
    %c8_126 = arith.constant 8 : index
    %238 = vector.load %arg8[%c0_125, %c8_126] : memref<8x12xf32, #tpu.memory_space<vmem>>, vector<8x1xf32>
    %239 = arith.mulf %234, %238 : vector<8x1xf32>
    %cst_127 = arith.constant dense<0.000000e+00> : vector<8xf32>
    %240 = vector.multi_reduction <add>, %237, %cst_127 [1] : vector<8x8xf32> to vector<8xf32>
    %241 = vector.shape_cast %240 : vector<8xf32> to vector<8x1xf32>
    %242 = arith.addf %239, %241 : vector<8x1xf32>
    %c0_128 = arith.constant 0 : index
    %c8_129 = arith.constant 8 : index
    %243 = vector.load %arg8[%c0_128, %c8_129] : memref<8x12xf32, #tpu.memory_space<vmem>>, vector<8x1xf32>
    tpu.vector_store %arg8[%c0_128, %c8_129], %242 {strides = array<i32>} : memref<8x12xf32, #tpu.memory_space<vmem>>, vector<8x1xf32>,
    %c0_130 = arith.constant 0 : index
    %c512 = arith.constant 512 : index
    %244 = vector.load %arg9[%c0_130, %c512] : memref<8x768xf32, #tpu.memory_space<vmem>>, vector<8x64xf32>
    %245 = vector.broadcast %234 : vector<8x1xf32> to vector<8x64xf32>
    %246 = arith.mulf %245, %244 : vector<8x64xf32>
    %247 = arith.truncf %237 : vector<8x8xf32> to vector<8x8xbf16>
    %cst_131 = arith.constant dense<0.000000e+00> : vector<8x64xf32>
    %248 = tpu.matmul %247, %227, %cst_131 {dimension_numbers = #tpu.dot_dimension_numbers<[1], [0], [0], [1], [0, 0, 1, 1], [], []>} : vector<8x8xbf16>, vector<8x64xbf16>, vector<8x64xf32> -> vector<8x64xf32>
    %249 = arith.addf %246, %248 : vector<8x64xf32>
    %c0_132 = arith.constant 0 : index
    %c512_133 = arith.constant 512 : index
    %250 = vector.load %arg9[%c0_132, %c512_133] : memref<8x768xf32, #tpu.memory_space<vmem>>, vector<8x64xf32>
    tpu.vector_store %arg9[%c0_132, %c512_133], %249 {strides = array<i32>} : memref<8x768xf32, #tpu.memory_space<vmem>>, vector<8x64xf32>,
    %c0_134 = arith.constant 0 : index
    %c8_135 = arith.constant 8 : index
    %251 = vector.load %arg7[%c0_134, %c8_135] : memref<8x12xf32, #tpu.memory_space<vmem>>, vector<8x1xf32>
    tpu.vector_store %arg7[%c0_134, %c8_135], %232 {strides = array<i32>} : memref<8x12xf32, #tpu.memory_space<vmem>>, vector<8x1xf32>,
    %252 = vector.extract_strided_slice %4 {offsets = [0, 576], sizes = [8, 64], strides = [1, 1]} : vector<8x768xbf16> to vector<8x64xbf16>
    %253 = vector.extract_strided_slice %6 {offsets = [0, 576], sizes = [8, 64], strides = [1, 1]} : vector<8x768xbf16> to vector<8x64xbf16>
    %254 = vector.extract_strided_slice %8 {offsets = [0, 576], sizes = [8, 64], strides = [1, 1]} : vector<8x768xbf16> to vector<8x64xbf16>
    %cst_136 = arith.constant dense<0.000000e+00> : vector<8x8xf32>
    %255 = tpu.matmul %252, %253, %cst_136 {dimension_numbers = #tpu.dot_dimension_numbers<[1], [1], [0], [0], [0, 0, 1, 0], [], []>} : vector<8x64xbf16>, vector<8x64xbf16>, vector<8x8xf32> -> vector<8x8xf32>
    %c0_137 = arith.constant 0 : index
    %c9 = arith.constant 9 : index
    %256 = vector.load %arg7[%c0_137, %c9] : memref<8x12xf32, #tpu.memory_space<vmem>>, vector<8x1xf32>
    %cst_138 = arith.constant dense<0xFF800000> : vector<8xf32>
    %257 = vector.multi_reduction <maximumf>, %255, %cst_138 [1] : vector<8x8xf32> to vector<8xf32>
    %258 = vector.shape_cast %257 : vector<8xf32> to vector<8x1xf32>
    %259 = arith.maximumf %256, %258 : vector<8x1xf32>
    %260 = arith.subf %256, %259 : vector<8x1xf32>
    %261 = math.exp %260 : vector<8x1xf32>
    %262 = vector.broadcast %259 : vector<8x1xf32> to vector<8x8xf32>
    %263 = arith.subf %255, %262 : vector<8x8xf32>
    %264 = math.exp %263 : vector<8x8xf32>
    %c0_139 = arith.constant 0 : index
    %c9_140 = arith.constant 9 : index
    %265 = vector.load %arg8[%c0_139, %c9_140] : memref<8x12xf32, #tpu.memory_space<vmem>>, vector<8x1xf32>
    %266 = arith.mulf %261, %265 : vector<8x1xf32>
    %cst_141 = arith.constant dense<0.000000e+00> : vector<8xf32>
    %267 = vector.multi_reduction <add>, %264, %cst_141 [1] : vector<8x8xf32> to vector<8xf32>
    %268 = vector.shape_cast %267 : vector<8xf32> to vector<8x1xf32>
    %269 = arith.addf %266, %268 : vector<8x1xf32>
    %c0_142 = arith.constant 0 : index
    %c9_143 = arith.constant 9 : index
    %270 = vector.load %arg8[%c0_142, %c9_143] : memref<8x12xf32, #tpu.memory_space<vmem>>, vector<8x1xf32>
    tpu.vector_store %arg8[%c0_142, %c9_143], %269 {strides = array<i32>} : memref<8x12xf32, #tpu.memory_space<vmem>>, vector<8x1xf32>,
    %c0_144 = arith.constant 0 : index
    %c576 = arith.constant 576 : index
    %271 = vector.load %arg9[%c0_144, %c576] : memref<8x768xf32, #tpu.memory_space<vmem>>, vector<8x64xf32>
    %272 = vector.broadcast %261 : vector<8x1xf32> to vector<8x64xf32>
    %273 = arith.mulf %272, %271 : vector<8x64xf32>
    %274 = arith.truncf %264 : vector<8x8xf32> to vector<8x8xbf16>
    %cst_145 = arith.constant dense<0.000000e+00> : vector<8x64xf32>
    %275 = tpu.matmul %274, %254, %cst_145 {dimension_numbers = #tpu.dot_dimension_numbers<[1], [0], [0], [1], [0, 0, 1, 1], [], []>} : vector<8x8xbf16>, vector<8x64xbf16>, vector<8x64xf32> -> vector<8x64xf32>
    %276 = arith.addf %273, %275 : vector<8x64xf32>
    %c0_146 = arith.constant 0 : index
    %c576_147 = arith.constant 576 : index
    %277 = vector.load %arg9[%c0_146, %c576_147] : memref<8x768xf32, #tpu.memory_space<vmem>>, vector<8x64xf32>
    tpu.vector_store %arg9[%c0_146, %c576_147], %276 {strides = array<i32>} : memref<8x768xf32, #tpu.memory_space<vmem>>, vector<8x64xf32>,
    %c0_148 = arith.constant 0 : index
    %c9_149 = arith.constant 9 : index
    %278 = vector.load %arg7[%c0_148, %c9_149] : memref<8x12xf32, #tpu.memory_space<vmem>>, vector<8x1xf32>
    tpu.vector_store %arg7[%c0_148, %c9_149], %259 {strides = array<i32>} : memref<8x12xf32, #tpu.memory_space<vmem>>, vector<8x1xf32>,
    %279 = vector.extract_strided_slice %4 {offsets = [0, 640], sizes = [8, 64], strides = [1, 1]} : vector<8x768xbf16> to vector<8x64xbf16>
    %280 = vector.extract_strided_slice %6 {offsets = [0, 640], sizes = [8, 64], strides = [1, 1]} : vector<8x768xbf16> to vector<8x64xbf16>
    %281 = vector.extract_strided_slice %8 {offsets = [0, 640], sizes = [8, 64], strides = [1, 1]} : vector<8x768xbf16> to vector<8x64xbf16>
    %cst_150 = arith.constant dense<0.000000e+00> : vector<8x8xf32>
    %282 = tpu.matmul %279, %280, %cst_150 {dimension_numbers = #tpu.dot_dimension_numbers<[1], [1], [0], [0], [0, 0, 1, 0], [], []>} : vector<8x64xbf16>, vector<8x64xbf16>, vector<8x8xf32> -> vector<8x8xf32>
    %c0_151 = arith.constant 0 : index
    %c10 = arith.constant 10 : index
    %283 = vector.load %arg7[%c0_151, %c10] : memref<8x12xf32, #tpu.memory_space<vmem>>, vector<8x1xf32>
    %cst_152 = arith.constant dense<0xFF800000> : vector<8xf32>
    %284 = vector.multi_reduction <maximumf>, %282, %cst_152 [1] : vector<8x8xf32> to vector<8xf32>
    %285 = vector.shape_cast %284 : vector<8xf32> to vector<8x1xf32>
    %286 = arith.maximumf %283, %285 : vector<8x1xf32>
    %287 = arith.subf %283, %286 : vector<8x1xf32>
    %288 = math.exp %287 : vector<8x1xf32>
    %289 = vector.broadcast %286 : vector<8x1xf32> to vector<8x8xf32>
    %290 = arith.subf %282, %289 : vector<8x8xf32>
    %291 = math.exp %290 : vector<8x8xf32>
    %c0_153 = arith.constant 0 : index
    %c10_154 = arith.constant 10 : index
    %292 = vector.load %arg8[%c0_153, %c10_154] : memref<8x12xf32, #tpu.memory_space<vmem>>, vector<8x1xf32>
    %293 = arith.mulf %288, %292 : vector<8x1xf32>
    %cst_155 = arith.constant dense<0.000000e+00> : vector<8xf32>
    %294 = vector.multi_reduction <add>, %291, %cst_155 [1] : vector<8x8xf32> to vector<8xf32>
    %295 = vector.shape_cast %294 : vector<8xf32> to vector<8x1xf32>
    %296 = arith.addf %293, %295 : vector<8x1xf32>
    %c0_156 = arith.constant 0 : index
    %c10_157 = arith.constant 10 : index
    %297 = vector.load %arg8[%c0_156, %c10_157] : memref<8x12xf32, #tpu.memory_space<vmem>>, vector<8x1xf32>
    tpu.vector_store %arg8[%c0_156, %c10_157], %296 {strides = array<i32>} : memref<8x12xf32, #tpu.memory_space<vmem>>, vector<8x1xf32>,
    %c0_158 = arith.constant 0 : index
    %c640 = arith.constant 640 : index
    %298 = vector.load %arg9[%c0_158, %c640] : memref<8x768xf32, #tpu.memory_space<vmem>>, vector<8x64xf32>
    %299 = vector.broadcast %288 : vector<8x1xf32> to vector<8x64xf32>
    %300 = arith.mulf %299, %298 : vector<8x64xf32>
    %301 = arith.truncf %291 : vector<8x8xf32> to vector<8x8xbf16>
    %cst_159 = arith.constant dense<0.000000e+00> : vector<8x64xf32>
    %302 = tpu.matmul %301, %281, %cst_159 {dimension_numbers = #tpu.dot_dimension_numbers<[1], [0], [0], [1], [0, 0, 1, 1], [], []>} : vector<8x8xbf16>, vector<8x64xbf16>, vector<8x64xf32> -> vector<8x64xf32>
    %303 = arith.addf %300, %302 : vector<8x64xf32>
    %c0_160 = arith.constant 0 : index
    %c640_161 = arith.constant 640 : index
    %304 = vector.load %arg9[%c0_160, %c640_161] : memref<8x768xf32, #tpu.memory_space<vmem>>, vector<8x64xf32>
    tpu.vector_store %arg9[%c0_160, %c640_161], %303 {strides = array<i32>} : memref<8x768xf32, #tpu.memory_space<vmem>>, vector<8x64xf32>,
    %c0_162 = arith.constant 0 : index
    %c10_163 = arith.constant 10 : index
    %305 = vector.load %arg7[%c0_162, %c10_163] : memref<8x12xf32, #tpu.memory_space<vmem>>, vector<8x1xf32>
    tpu.vector_store %arg7[%c0_162, %c10_163], %286 {strides = array<i32>} : memref<8x12xf32, #tpu.memory_space<vmem>>, vector<8x1xf32>,
    %306 = vector.extract_strided_slice %4 {offsets = [0, 704], sizes = [8, 64], strides = [1, 1]} : vector<8x768xbf16> to vector<8x64xbf16>
    %307 = vector.extract_strided_slice %6 {offsets = [0, 704], sizes = [8, 64], strides = [1, 1]} : vector<8x768xbf16> to vector<8x64xbf16>
    %308 = vector.extract_strided_slice %8 {offsets = [0, 704], sizes = [8, 64], strides = [1, 1]} : vector<8x768xbf16> to vector<8x64xbf16>
    %cst_164 = arith.constant dense<0.000000e+00> : vector<8x8xf32>
    %309 = tpu.matmul %306, %307, %cst_164 {dimension_numbers = #tpu.dot_dimension_numbers<[1], [1], [0], [0], [0, 0, 1, 0], [], []>} : vector<8x64xbf16>, vector<8x64xbf16>, vector<8x8xf32> -> vector<8x8xf32>
    %c0_165 = arith.constant 0 : index
    %c11 = arith.constant 11 : index
    %310 = vector.load %arg7[%c0_165, %c11] : memref<8x12xf32, #tpu.memory_space<vmem>>, vector<8x1xf32>
    %cst_166 = arith.constant dense<0xFF800000> : vector<8xf32>
    %311 = vector.multi_reduction <maximumf>, %309, %cst_166 [1] : vector<8x8xf32> to vector<8xf32>
    %312 = vector.shape_cast %311 : vector<8xf32> to vector<8x1xf32>
    %313 = arith.maximumf %310, %312 : vector<8x1xf32>
    %314 = arith.subf %310, %313 : vector<8x1xf32>
    %315 = math.exp %314 : vector<8x1xf32>
    %316 = vector.broadcast %313 : vector<8x1xf32> to vector<8x8xf32>
    %317 = arith.subf %309, %316 : vector<8x8xf32>
    %318 = math.exp %317 : vector<8x8xf32>
    %c0_167 = arith.constant 0 : index
    %c11_168 = arith.constant 11 : index
    %319 = vector.load %arg8[%c0_167, %c11_168] : memref<8x12xf32, #tpu.memory_space<vmem>>, vector<8x1xf32>
    %320 = arith.mulf %315, %319 : vector<8x1xf32>
    %cst_169 = arith.constant dense<0.000000e+00> : vector<8xf32>
    %321 = vector.multi_reduction <add>, %318, %cst_169 [1] : vector<8x8xf32> to vector<8xf32>
    %322 = vector.shape_cast %321 : vector<8xf32> to vector<8x1xf32>
    %323 = arith.addf %320, %322 : vector<8x1xf32>
    %c0_170 = arith.constant 0 : index
    %c11_171 = arith.constant 11 : index
    %324 = vector.load %arg8[%c0_170, %c11_171] : memref<8x12xf32, #tpu.memory_space<vmem>>, vector<8x1xf32>
    tpu.vector_store %arg8[%c0_170, %c11_171], %323 {strides = array<i32>} : memref<8x12xf32, #tpu.memory_space<vmem>>, vector<8x1xf32>,
    %c0_172 = arith.constant 0 : index
    %c704 = arith.constant 704 : index
    %325 = vector.load %arg9[%c0_172, %c704] : memref<8x768xf32, #tpu.memory_space<vmem>>, vector<8x64xf32>
    %326 = vector.broadcast %315 : vector<8x1xf32> to vector<8x64xf32>
    %327 = arith.mulf %326, %325 : vector<8x64xf32>
    %328 = arith.truncf %318 : vector<8x8xf32> to vector<8x8xbf16>
    %cst_173 = arith.constant dense<0.000000e+00> : vector<8x64xf32>
    %329 = tpu.matmul %328, %308, %cst_173 {dimension_numbers = #tpu.dot_dimension_numbers<[1], [0], [0], [1], [0, 0, 1, 1], [], []>} : vector<8x8xbf16>, vector<8x64xbf16>, vector<8x64xf32> -> vector<8x64xf32>
    %330 = arith.addf %327, %329 : vector<8x64xf32>
    %c0_174 = arith.constant 0 : index
    %c704_175 = arith.constant 704 : index
    %331 = vector.load %arg9[%c0_174, %c704_175] : memref<8x768xf32, #tpu.memory_space<vmem>>, vector<8x64xf32>
    tpu.vector_store %arg9[%c0_174, %c704_175], %330 {strides = array<i32>} : memref<8x768xf32, #tpu.memory_space<vmem>>, vector<8x64xf32>,
    %c0_176 = arith.constant 0 : index
    %c11_177 = arith.constant 11 : index
    %332 = vector.load %arg7[%c0_176, %c11_177] : memref<8x12xf32, #tpu.memory_space<vmem>>, vector<8x1xf32>
    tpu.vector_store %arg7[%c0_176, %c11_177], %313 {strides = array<i32>} : memref<8x12xf32, #tpu.memory_space<vmem>>, vector<8x1xf32>,
    %c0_i32_178 = arith.constant 0 : i32
    %333 = arith.cmpi eq, %arg2, %c0_i32_178 : i32
    %334 = arith.extui %333 : i1 to i32
    %c0_i32_179 = arith.constant 0 : i32
    %335 = arith.cmpi ne, %334, %c0_i32_179 : i32
    scf.if %335 {
      %c0_180 = arith.constant 0 : index
      %c0_181 = arith.constant 0 : index
      %336 = vector.load %arg8[%c0_180, %c0_181] : memref<8x12xf32, #tpu.memory_space<vmem>>, vector<8x12xf32>
      %337 = tpu.reciprocal %336 {approx = true} : vector<8x12xf32> -> vector<8x12xf32>
      %c0_182 = arith.constant 0 : index
      %c0_183 = arith.constant 0 : index
      %338 = vector.load %arg9[%c0_182, %c0_183] : memref<8x768xf32, #tpu.memory_space<vmem>>, vector<8x64xf32>
      %339 = vector.extract_strided_slice %337 {offsets = [0, 0], sizes = [8, 1], strides = [1, 1]} : vector<8x12xf32> to vector<8x1xf32>
      %340 = vector.broadcast %339 : vector<8x1xf32> to vector<8x64xf32>
      %341 = arith.mulf %338, %340 : vector<8x64xf32>
      %c0_184 = arith.constant 0 : index
      %c64_185 = arith.constant 64 : index
      %342 = vector.load %arg9[%c0_184, %c64_185] : memref<8x768xf32, #tpu.memory_space<vmem>>, vector<8x64xf32>
      %343 = vector.extract_strided_slice %337 {offsets = [0, 1], sizes = [8, 1], strides = [1, 1]} : vector<8x12xf32> to vector<8x1xf32>
      %344 = vector.broadcast %343 : vector<8x1xf32> to vector<8x64xf32>
      %345 = arith.mulf %342, %344 : vector<8x64xf32>
      %c0_186 = arith.constant 0 : index
      %c128_187 = arith.constant 128 : index
      %346 = vector.load %arg9[%c0_186, %c128_187] : memref<8x768xf32, #tpu.memory_space<vmem>>, vector<8x64xf32>
      %347 = vector.extract_strided_slice %337 {offsets = [0, 2], sizes = [8, 1], strides = [1, 1]} : vector<8x12xf32> to vector<8x1xf32>
      %348 = vector.broadcast %347 : vector<8x1xf32> to vector<8x64xf32>
      %349 = arith.mulf %346, %348 : vector<8x64xf32>
      %c0_188 = arith.constant 0 : index
      %c192_189 = arith.constant 192 : index
      %350 = vector.load %arg9[%c0_188, %c192_189] : memref<8x768xf32, #tpu.memory_space<vmem>>, vector<8x64xf32>
      %351 = vector.extract_strided_slice %337 {offsets = [0, 3], sizes = [8, 1], strides = [1, 1]} : vector<8x12xf32> to vector<8x1xf32>
      %352 = vector.broadcast %351 : vector<8x1xf32> to vector<8x64xf32>
      %353 = arith.mulf %350, %352 : vector<8x64xf32>
      %c0_190 = arith.constant 0 : index
      %c256_191 = arith.constant 256 : index
      %354 = vector.load %arg9[%c0_190, %c256_191] : memref<8x768xf32, #tpu.memory_space<vmem>>, vector<8x64xf32>
      %355 = vector.extract_strided_slice %337 {offsets = [0, 4], sizes = [8, 1], strides = [1, 1]} : vector<8x12xf32> to vector<8x1xf32>
      %356 = vector.broadcast %355 : vector<8x1xf32> to vector<8x64xf32>
      %357 = arith.mulf %354, %356 : vector<8x64xf32>
      %c0_192 = arith.constant 0 : index
      %c320_193 = arith.constant 320 : index
      %358 = vector.load %arg9[%c0_192, %c320_193] : memref<8x768xf32, #tpu.memory_space<vmem>>, vector<8x64xf32>
      %359 = vector.extract_strided_slice %337 {offsets = [0, 5], sizes = [8, 1], strides = [1, 1]} : vector<8x12xf32> to vector<8x1xf32>
      %360 = vector.broadcast %359 : vector<8x1xf32> to vector<8x64xf32>
      %361 = arith.mulf %358, %360 : vector<8x64xf32>
      %c0_194 = arith.constant 0 : index
      %c384_195 = arith.constant 384 : index
      %362 = vector.load %arg9[%c0_194, %c384_195] : memref<8x768xf32, #tpu.memory_space<vmem>>, vector<8x64xf32>
      %363 = vector.extract_strided_slice %337 {offsets = [0, 6], sizes = [8, 1], strides = [1, 1]} : vector<8x12xf32> to vector<8x1xf32>
      %364 = vector.broadcast %363 : vector<8x1xf32> to vector<8x64xf32>
      %365 = arith.mulf %362, %364 : vector<8x64xf32>
      %c0_196 = arith.constant 0 : index
      %c448_197 = arith.constant 448 : index
      %366 = vector.load %arg9[%c0_196, %c448_197] : memref<8x768xf32, #tpu.memory_space<vmem>>, vector<8x64xf32>
      %367 = vector.extract_strided_slice %337 {offsets = [0, 7], sizes = [8, 1], strides = [1, 1]} : vector<8x12xf32> to vector<8x1xf32>
      %368 = vector.broadcast %367 : vector<8x1xf32> to vector<8x64xf32>
      %369 = arith.mulf %366, %368 : vector<8x64xf32>
      %c0_198 = arith.constant 0 : index
      %c512_199 = arith.constant 512 : index
      %370 = vector.load %arg9[%c0_198, %c512_199] : memref<8x768xf32, #tpu.memory_space<vmem>>, vector<8x64xf32>
      %371 = vector.extract_strided_slice %337 {offsets = [0, 8], sizes = [8, 1], strides = [1, 1]} : vector<8x12xf32> to vector<8x1xf32>
      %372 = vector.broadcast %371 : vector<8x1xf32> to vector<8x64xf32>
      %373 = arith.mulf %370, %372 : vector<8x64xf32>
      %c0_200 = arith.constant 0 : index
      %c576_201 = arith.constant 576 : index
      %374 = vector.load %arg9[%c0_200, %c576_201] : memref<8x768xf32, #tpu.memory_space<vmem>>, vector<8x64xf32>
      %375 = vector.extract_strided_slice %337 {offsets = [0, 9], sizes = [8, 1], strides = [1, 1]} : vector<8x12xf32> to vector<8x1xf32>
      %376 = vector.broadcast %375 : vector<8x1xf32> to vector<8x64xf32>
      %377 = arith.mulf %374, %376 : vector<8x64xf32>
      %c0_202 = arith.constant 0 : index
      %c640_203 = arith.constant 640 : index
      %378 = vector.load %arg9[%c0_202, %c640_203] : memref<8x768xf32, #tpu.memory_space<vmem>>, vector<8x64xf32>
      %379 = vector.extract_strided_slice %337 {offsets = [0, 10], sizes = [8, 1], strides = [1, 1]} : vector<8x12xf32> to vector<8x1xf32>
      %380 = vector.broadcast %379 : vector<8x1xf32> to vector<8x64xf32>
      %381 = arith.mulf %378, %380 : vector<8x64xf32>
      %c0_204 = arith.constant 0 : index
      %c704_205 = arith.constant 704 : index
      %382 = vector.load %arg9[%c0_204, %c704_205] : memref<8x768xf32, #tpu.memory_space<vmem>>, vector<8x64xf32>
      %383 = vector.extract_strided_slice %337 {offsets = [0, 11], sizes = [8, 1], strides = [1, 1]} : vector<8x12xf32> to vector<8x1xf32>
      %384 = vector.broadcast %383 : vector<8x1xf32> to vector<8x64xf32>
      %385 = arith.mulf %382, %384 : vector<8x64xf32>
      %386 = tpu.concatenate %341, %345, %349, %353, %357, %361, %365, %369, %373, %377, %381, %385 in 1 : vector<8x64xf32>, vector<8x64xf32>, vector<8x64xf32>, vector<8x64xf32>, vector<8x64xf32>, vector<8x64xf32>, vector<8x64xf32>, vector<8x64xf32>, vector<8x64xf32>, vector<8x64xf32>, vector<8x64xf32>, vector<8x64xf32> -> vector<8x768xf32>
      %387 = arith.truncf %386 : vector<8x768xf32> to vector<8x768xbf16>
      %c0_206 = arith.constant 0 : index
      %c0_207 = arith.constant 0 : index
      %c0_208 = arith.constant 0 : index
      %388 = vector.load %arg6[%c0_206, %c0_207, %c0_208] : memref<1x8x768xbf16, #tpu.memory_space<vmem>>, vector<1x8x768xbf16>
      %389 = vector.shape_cast %388 : vector<1x8x768xbf16> to vector<8x768xbf16>
      %390 = vector.shape_cast %387 : vector<8x768xbf16> to vector<1x8x768xbf16>
      tpu.vector_store %arg6[%c0_206, %c0_207, %c0_208], %390 {strides = array<i32>} : memref<1x8x768xbf16, #tpu.memory_space<vmem>>, vector<1x8x768xbf16>,
    } else {
    }
    return
  }
  func.func @transform_0(%arg0: i32, %arg1: i32, %arg2: i32) -> (i32, i32, i32) {
    %c0_i32 = arith.constant 0 : i32
    %c0_i32_0 = arith.constant 0 : i32
    return %arg0, %arg1, %c0_i32 : i32, i32, i32
  }
  func.func @transform_1(%arg0: i32, %arg1: i32, %arg2: i32) -> (i32, i32, i32) {
    %c1_i32 = arith.constant 1 : i32
    %c0_i32 = arith.constant 0 : i32
    return %arg0, %arg2, %c1_i32 : i32, i32, i32
  }
  func.func @transform_2(%arg0: i32, %arg1: i32, %arg2: i32) -> (i32, i32, i32) {
    %c2_i32 = arith.constant 2 : i32
    %c0_i32 = arith.constant 0 : i32
    return %arg0, %arg2, %c2_i32 : i32, i32, i32
  }
  func.func @transform_3(%arg0: i32, %arg1: i32, %arg2: i32) -> (i32, i32, i32) {
    %c0_i32 = arith.constant 0 : i32
    %c0_i32_0 = arith.constant 0 : i32
    return %arg0, %arg1, %c0_i32 : i32, i32, i32
  }
}

module attributes {stable_mosaic.version = 11 : i64} {
  func.func @_matmul_bias_kernel(%arg0: i32, %arg1: memref<16x768xbf16, #tpu.memory_space<vmem>>, %arg2: memref<768x768xbf16, #tpu.memory_space<vmem>>, %arg3: memref<1x768xf32, #tpu.memory_space<vmem>>, %arg4: memref<16x768xf32, #tpu.memory_space<vmem>>) attributes {dimension_semantics = [#tpu.dimension_semantics<parallel>], iteration_bounds = array<i64: 1>, scalar_prefetch = 0 : i64, scratch_operands = 0 : i64, tpu.core_type = #tpu.core_type<tc>, window_params = [{transform_indices = @transform_0, window_bounds = array<i64: 16, 768>}, {pipeline_mode = #tpu.pipeline_mode<synchronous>, transform_indices = @transform_1, window_bounds = array<i64: 768, 768>}, {pipeline_mode = #tpu.pipeline_mode<synchronous>, transform_indices = @transform_2, window_bounds = array<i64: 1, 768>}, {transform_indices = @transform_3, window_bounds = array<i64: 16, 768>}]} {
    %c0 = arith.constant 0 : index
    %c0_0 = arith.constant 0 : index
    %0 = vector.load %arg1[%c0, %c0_0] : memref<16x768xbf16, #tpu.memory_space<vmem>>, vector<16x768xbf16>
    %c0_1 = arith.constant 0 : index
    %c0_2 = arith.constant 0 : index
    %1 = vector.load %arg2[%c0_1, %c0_2] : memref<768x768xbf16, #tpu.memory_space<vmem>>, vector<768x768xbf16>
    %cst = arith.constant dense<0.000000e+00> : vector<16x768xf32>
    %2 = tpu.matmul %0, %1, %cst {dimension_numbers = #tpu.dot_dimension_numbers<[1], [0], [0], [1], [0, 0, 1, 1], [], []>} : vector<16x768xbf16>, vector<768x768xbf16>, vector<16x768xf32> -> vector<16x768xf32>
    %c0_3 = arith.constant 0 : index
    %c0_4 = arith.constant 0 : index
    %3 = vector.load %arg3[%c0_3, %c0_4] : memref<1x768xf32, #tpu.memory_space<vmem>>, vector<1x768xf32>
    %4 = vector.broadcast %3 : vector<1x768xf32> to vector<16x768xf32>
    %5 = arith.addf %2, %4 : vector<16x768xf32>
    %c0_5 = arith.constant 0 : index
    %c0_6 = arith.constant 0 : index
    %6 = vector.load %arg4[%c0_5, %c0_6] : memref<16x768xf32, #tpu.memory_space<vmem>>, vector<16x768xf32>
    tpu.vector_store %arg4[%c0_5, %c0_6], %5 {strides = array<i32>} : memref<16x768xf32, #tpu.memory_space<vmem>>, vector<16x768xf32>,
    return
  }
  func.func @transform_0(%arg0: i32) -> (i32, i32) {
    %c0_i32 = arith.constant 0 : i32
    %c0_i32_0 = arith.constant 0 : i32
    return %arg0, %c0_i32 : i32, i32
  }
  func.func @transform_1(%arg0: i32) -> (i32, i32) {
    %c0_i32 = arith.constant 0 : i32
    %c0_i32_0 = arith.constant 0 : i32
    %c0_i32_1 = arith.constant 0 : i32
    return %c0_i32, %c0_i32_0 : i32, i32
  }
  func.func @transform_2(%arg0: i32) -> (i32, i32) {
    %c0_i32 = arith.constant 0 : i32
    %c0_i32_0 = arith.constant 0 : i32
    %c0_i32_1 = arith.constant 0 : i32
    return %c0_i32, %c0_i32_0 : i32, i32
  }
  func.func @transform_3(%arg0: i32) -> (i32, i32) {
    %c0_i32 = arith.constant 0 : i32
    %c0_i32_0 = arith.constant 0 : i32
    return %arg0, %c0_i32 : i32, i32
  }
}

</mosaic_0001>

<llo_original>
// kernel: attention_forward.4
$region0: #{attention_forward.4}
  #allocation0 [shape = 'u32[]', space=smem, size = 0x4, offset = 0x4, fixed_abs, tag = 'smem constant byte address 0x4 - core index']
  #allocation1 [shape = 'u32[144,128]{1,0:T(1,128)}', space=vmem, size = 0x12000, scoped, tag = 'internal scratch']
  #allocation2 [shape = 'f32[8,12]{1,0:T(8,128)}', space=vmem, size = 0x1000, scoped, tag = 'scratch operand']
  #allocation3 [shape = 'f32[8,12]{1,0:T(8,128)}', space=vmem, size = 0x1000, scoped, tag = 'scratch operand']
  #allocation4 [shape = 'f32[8,768]{1,0:T(8,128)}', space=vmem, size = 0x6000, scoped, tag = 'scratch operand']
  %s0 = inlined_call_operand.vmem [shape: bf16[2,8,2304], index: 0, kind: input, shape index: {}, may-alias: {0,1,2}]
  %s1 = inlined_call_operand.vmem [shape: bf16[2,8,2304], index: 1, kind: input, shape index: {}, may-alias: {0,1,2}]
  %s2 = inlined_call_operand.vmem [shape: bf16[2,8,2304], index: 2, kind: input, shape index: {}, may-alias: {0,1,2}]
  %s3 = inlined_call_operand.vmem [shape: bf16[2,8,768], index: 3, kind: output, shape index: {}]
  %s4 = sld [smem:[#allocation0]]
  $region53: #{attention_forward.4} parent=0
    _
  %s6 = ssub.s32 1, %s4
  %s7 = scalar_select 0, %s6, %s4
  loop: start=0, step=1, limit=4
  $region2: #{attention_forward.4} parent=0 // loop_pre_header
    _
  $region3: #{attention_forward.4} parent=0 // loop_header
    %s9 = sphi 0, %s13
    %p10 = scmp.ge.s32.totalorder %s9, 4
    %s16 = sphi 0, %s35
    %s17 = sphi 0, %s31
    %s18 = sphi 0, %s27
    %s19 = sphi 0, %s16
    %s20 = sphi 0, %s17
    %s21 = sphi 0, %s18
    %s22 = sphi 0, %s19
    %s23 = sphi 0, %s20
    %s24 = sphi 0, %s21
    %s40 = sphi 0, %s42
    %s43 = sphi 0, %s40
    %s44 = sphi 0, %s43
    %s60 = sphi 0, %s44
    %s68 = sphi 0, %s70
    %s71 = sphi 0, %s68
    %s72 = sphi 0, %s71
    %s88 = sphi 0, %s72
    %s96 = sphi 0, %s98
    %s99 = sphi 0, %s96
    %s100 = sphi 0, %s99
    %s116 = sphi 0, %s100
    %s124 = sphi 0, %s126
    %s127 = sphi 0, %s124
    %s128 = sphi 0, %s127
    %s144 = sphi 0, %s128
  $region4: #{attention_forward.4} parent=0 // loop_header_branch
    %12 = sbr.rel (%p10) target = $region8
  $region5: #{attention_forward.4} parent=0 // loop_body
    %s14 = ssub.s32 %s9, 1
    %s15 = ssub.s32 %s9, 2
    %s25 = sadd.s32 1, %s18
    %p26 = scmp.ge.s32.totalorder %s25, 1
    %s27 = scalar_select %p26, 0, %s25
    %s28 = sadd.s32 1, %s17
    %s29 = scalar_select %p26, %s28, %s17
    %p30 = scmp.ge.s32.totalorder %s29, 1
    %s31 = scalar_select %p30, 0, %s29
    %s32 = sadd.s32 1, %s16
    %s33 = scalar_select %p30, %s32, %s16
    %p34 = scmp.ge.s32.totalorder %s33, 2
    %s35 = scalar_select %p34, 0, %s33
    %s36 = ssub.s32 %s16, %s35
    %s37 = ssub.s32 %s17, %s31
    %s38 = sor.u32 %s36, %s37
    %p39 = scmp.eq.s32.totalorder %s38, 0
    %s41 = sadd.s32 %s40, 1
    %s42 = scalar_select %p39, %s40, %s41
    %p45 = pneg %p39
    %p46 = scmp.eq.s32.totalorder %s9, 1
    %p47 = por %p45, %p46
    %p48 = scmp.ne.s32.totalorder %s40, %s43
    %p49 = scmp.eq.s32.totalorder %s9, 0
    %p50 = por %p48, %p49
    %p51 = scmp.ne.s32.totalorder %s40, %s43
    %p52 = scmp.eq.s32.totalorder %s14, 1
    %p53 = por %p51, %p52
    %p54 = scmp.ne.s32.totalorder %s43, %s44
    %p55 = scmp.eq.s32.totalorder %s14, 0
    %p56 = por %p54, %p55
    %p57 = scmp.ne.s32.totalorder %s43, %s44
    %p58 = scmp.eq.s32.totalorder %s15, 1
    %p59 = por %p57, %p58
    %p61 = scmp.ne.s32.totalorder %s44, %s60
    %p62 = scmp.eq.s32.totalorder %s15, 0
    %p63 = por %p61, %p62
    %s64 = ssub.s32 %s16, %s35
    %s65 = ssub.s32 %s18, %s27
    %s66 = sor.u32 %s64, %s65
    %p67 = scmp.eq.s32.totalorder %s66, 0
    %s69 = sadd.s32 %s68, 1
    %s70 = scalar_select %p67, %s68, %s69
    %p73 = pneg %p67
    %p74 = scmp.eq.s32.totalorder %s9, 1
    %p75 = por %p73, %p74
    %p76 = scmp.ne.s32.totalorder %s68, %s71
    %p77 = scmp.eq.s32.totalorder %s9, 0
    %p78 = por %p76, %p77
    %p79 = scmp.ne.s32.totalorder %s68, %s71
    %p80 = scmp.eq.s32.totalorder %s14, 1
    %p81 = por %p79, %p80
    %p82 = scmp.ne.s32.totalorder %s71, %s72
    %p83 = scmp.eq.s32.totalorder %s14, 0
    %p84 = por %p82, %p83
    %p85 = scmp.ne.s32.totalorder %s71, %s72
    %p86 = scmp.eq.s32.totalorder %s15, 1
    %p87 = por %p85, %p86
    %p89 = scmp.ne.s32.totalorder %s72, %s88
    %p90 = scmp.eq.s32.totalorder %s15, 0
    %p91 = por %p89, %p90
    %s92 = ssub.s32 %s16, %s35
    %s93 = ssub.s32 %s18, %s27
    %s94 = sor.u32 %s92, %s93
    %p95 = scmp.eq.s32.totalorder %s94, 0
    %s97 = sadd.s32 %s96, 1
    %s98 = scalar_select %p95, %s96, %s97
    %p101 = pneg %p95
    %p102 = scmp.eq.s32.totalorder %s9, 1
    %p103 = por %p101, %p102
    %p104 = scmp.ne.s32.totalorder %s96, %s99
    %p105 = scmp.eq.s32.totalorder %s9, 0
    %p106 = por %p104, %p105
    %p107 = scmp.ne.s32.totalorder %s96, %s99
    %p108 = scmp.eq.s32.totalorder %s14, 1
    %p109 = por %p107, %p108
    %p110 = scmp.ne.s32.totalorder %s99, %s100
    %p111 = scmp.eq.s32.totalorder %s14, 0
    %p112 = por %p110, %p111
    %p113 = scmp.ne.s32.totalorder %s99, %s100
    %p114 = scmp.eq.s32.totalorder %s15, 1
    %p115 = por %p113, %p114
    %p117 = scmp.ne.s32.totalorder %s100, %s116
    %p118 = scmp.eq.s32.totalorder %s15, 0
    %p119 = por %p117, %p118
    %s120 = ssub.s32 %s16, %s35
    %s121 = ssub.s32 %s17, %s31
    %s122 = sor.u32 %s120, %s121
    %p123 = scmp.eq.s32.totalorder %s122, 0
    %s125 = sadd.s32 %s124, 1
    %s126 = scalar_select %p123, %s124, %s125
    %p129 = pneg %p123
    %p130 = scmp.eq.s32.totalorder %s9, 1
    %p131 = por %p129, %p130
    %p132 = scmp.ne.s32.totalorder %s124, %s127
    %p133 = scmp.eq.s32.totalorder %s9, 0
    %p134 = por %p132, %p133
    %p135 = scmp.ne.s32.totalorder %s124, %s127
    %p136 = scmp.eq.s32.totalorder %s14, 1
    %p137 = por %p135, %p136
    %p138 = scmp.ne.s32.totalorder %s127, %s128
    %p139 = scmp.eq.s32.totalorder %s14, 0
    %p140 = por %p138, %p139
    %p141 = scmp.ne.s32.totalorder %s127, %s128
    %p142 = scmp.eq.s32.totalorder %s15, 1
    %p143 = por %p141, %p142
    %p145 = scmp.ne.s32.totalorder %s128, %s144
    %p146 = scmp.eq.s32.totalorder %s15, 0
    %p147 = por %p145, %p146
    %p148 = scmp.le.s32.totalorder 1, %s9
    %p149 = scmp.lt.s32.totalorder %s9, 3
    %p150 = pnand %p148, %p149
    %p151 = pneg %p150
    // Predicated region
    $region9: #{attention_forward.4} parent=5 // pred_check
      _
    $region10: #{attention_forward.4} parent=5 // pred_check_branch
      %153 = sbr.rel (%p150) target = $region12
    $region11: #{attention_forward.4} parent=5 // pred_region
      %s154 = ssub.s32 %s9, 1
    $region12: #{attention_forward.4} parent=5 // pred_fallthru
      _
    %p155 = scmp.lt.s32.totalorder %s9, 2
    // Predicated region
    $region13: #{attention_forward.4} parent=5 // pred_check
      %p156 = pneg %p155
    $region14: #{attention_forward.4} parent=5 // pred_check_branch
      %158 = sbr.rel (%p156) target = $region16
    $region15: #{attention_forward.4} parent=5 // pred_region
      // Predicated region
      $region17: #{attention_forward.4} parent=15 // pred_check
        %p159 = pneg %p50
      $region18: #{attention_forward.4} parent=15 // pred_check_branch
        %161 = sbr.rel (%p159) target = $region20
      $region19: #{attention_forward.4} parent=15 // pred_region
        %p162 = scmp.lt.s32.totalorder %s16, 1
        %s163 = scalar_select %p162, %s16, 1
        %p164 = scmp.lt.s32.totalorder %s17, 0
        %s165 = scalar_select %p164, %s17, 0
        %s166 = smul.addr %s165, 18
        %s167 = smul.addr %s163, 18
        %s168 = sadd.s32 %s166, %s167
        %s169 = smul.addr %s168, 4
        %s170 = scalar_lea.vmem %s0, %s169
      $region20: #{attention_forward.4} parent=15 // pred_fallthru
        _
      // Predicated region
      $region21: #{attention_forward.4} parent=15 // pred_check
        %p171 = pneg %p78
      $region22: #{attention_forward.4} parent=15 // pred_check_branch
        %173 = sbr.rel (%p171) target = $region24
      $region23: #{attention_forward.4} parent=15 // pred_region
        %p174 = scmp.lt.s32.totalorder %s16, 1
        %s175 = scalar_select %p174, %s16, 1
        %p176 = scmp.lt.s32.totalorder %s18, 0
        %s177 = scalar_select %p176, %s18, 0
        %s178 = smul.addr %s177, 18
        %s179 = sadd.s32 6, %s178
        %s180 = smul.addr %s175, 18
        %s181 = sadd.s32 %s179, %s180
        %s182 = smul.addr %s181, 4
        %s183 = scalar_lea.vmem %s1, %s182
      $region24: #{attention_forward.4} parent=15 // pred_fallthru
        _
      // Predicated region
      $region25: #{attention_forward.4} parent=15 // pred_check
        %p184 = pneg %p106
      $region26: #{attention_forward.4} parent=15 // pred_check_branch
        %186 = sbr.rel (%p184) target = $region28
      $region27: #{attention_forward.4} parent=15 // pred_region
        %p187 = scmp.lt.s32.totalorder %s16, 1
        %s188 = scalar_select %p187, %s16, 1
        %p189 = scmp.lt.s32.totalorder %s18, 0
        %s190 = scalar_select %p189, %s18, 0
        %s191 = smul.addr %s190, 18
        %s192 = sadd.s32 12, %s191
        %s193 = smul.addr %s188, 18
        %s194 = sadd.s32 %s192, %s193
        %s195 = smul.addr %s194, 4
        %s196 = scalar_lea.vmem %s2, %s195
      $region28: #{attention_forward.4} parent=15 // pred_fallthru
        _
    $region16: #{attention_forward.4} parent=5 // pred_fallthru
      _
    %p197 = scmp.le.s32.totalorder 1, %s9
    %p198 = scmp.lt.s32.totalorder %s9, 3
    %p199 = pnand %p197, %p198
    %p200 = pneg %p199
    // Predicated region
    $region29: #{attention_forward.4} parent=5 // pred_check
      _
    $region30: #{attention_forward.4} parent=5 // pred_check_branch
      %202 = sbr.rel (%p199) target = $region32
    $region31: #{attention_forward.4} parent=5 // pred_region
      %s203 = ssub.s32 %s9, 1
      %p204 = scmp.lt.s32.totalorder %s19, 1
      %s205 = scalar_select %p204, %s19, 1
      %p206 = scmp.lt.s32.totalorder %s20, 0
      %s207 = scalar_select %p206, %s20, 0
      %s208 = smul.addr %s207, 18
      %s209 = smul.addr %s205, 18
      %s210 = sadd.s32 %s208, %s209
      %s211 = smul.addr %s210, 4
      %s212 = scalar_lea.vmem %s0, %s211
      %p213 = pneg %p56
      %p214 = pneg %p53
      %p215 = scmp.lt.s32.totalorder %s19, 1
      %s216 = scalar_select %p215, %s19, 1
      %p217 = scmp.lt.s32.totalorder %s21, 0
      %s218 = scalar_select %p217, %s21, 0
      %s219 = smul.addr %s218, 18
      %s220 = sadd.s32 6, %s219
      %s221 = smul.addr %s216, 18
      %s222 = sadd.s32 %s220, %s221
      %s223 = smul.addr %s222, 4
      %s224 = scalar_lea.vmem %s1, %s223
      %p225 = pneg %p84
      %p226 = pneg %p81
      %p227 = scmp.lt.s32.totalorder %s19, 1
      %s228 = scalar_select %p227, %s19, 1
      %p229 = scmp.lt.s32.totalorder %s21, 0
      %s230 = scalar_select %p229, %s21, 0
      %s231 = smul.addr %s230, 18
      %s232 = sadd.s32 12, %s231
      %s233 = smul.addr %s228, 18
      %s234 = sadd.s32 %s232, %s233
      %s235 = smul.addr %s234, 4
      %s236 = scalar_lea.vmem %s2, %s235
      %p237 = pneg %p112
      %p238 = pneg %p109
      %p239 = pneg %p140
      %p240 = pneg %p137
      %p241 = scmp.lt.s32.totalorder %s19, 1
      %s242 = scalar_select %p241, %s19, 1
      %p243 = scmp.lt.s32.totalorder %s20, 0
      %s244 = scalar_select %p243, %s20, 0
      %s245 = smul.addr %s244, 6
      %s246 = smul.addr %s242, 6
      %s247 = sadd.s32 %s245, %s246
      %s248 = smul.addr %s247, 4
      %s249 = scalar_lea.vmem %s3, %s248
      %p250 = scmp.lt.s32.totalorder %s19, 1
      %s251 = scalar_select %p250, %s19, 1
      %p252 = scmp.lt.s32.totalorder %s20, 0
      %s253 = scalar_select %p252, %s20, 0
      %s254 = smul.addr %s253, 18
      %s255 = smul.addr %s251, 18
      %s256 = sadd.s32 %s254, %s255
      %s257 = smul.addr %s256, 4
      %s258 = scalar_lea.vmem %s0, %s257
      %p259 = scmp.lt.s32.totalorder %s19, 1
      %s260 = scalar_select %p259, %s19, 1
      %p261 = scmp.lt.s32.totalorder %s21, 0
      %s262 = scalar_select %p261, %s21, 0
      %s263 = smul.addr %s262, 18
      %s264 = sadd.s32 6, %s263
      %s265 = smul.addr %s260, 18
      %s266 = sadd.s32 %s264, %s265
      %s267 = smul.addr %s266, 4
      %s268 = scalar_lea.vmem %s1, %s267
      %p269 = scmp.lt.s32.totalorder %s19, 1
      %s270 = scalar_select %p269, %s19, 1
      %p271 = scmp.lt.s32.totalorder %s21, 0
      %s272 = scalar_select %p271, %s21, 0
      %s273 = smul.addr %s272, 18
      %s274 = sadd.s32 12, %s273
      %s275 = smul.addr %s270, 18
      %s276 = sadd.s32 %s274, %s275
      %s277 = smul.addr %s276, 4
      %s278 = scalar_lea.vmem %s2, %s277
      %p279 = scmp.lt.s32.totalorder %s19, 1
      %s280 = scalar_select %p279, %s19, 1
      %p281 = scmp.lt.s32.totalorder %s20, 0
      %s282 = scalar_select %p281, %s20, 0
      %s283 = smul.addr %s282, 6
      %s284 = smul.addr %s280, 6
      %s285 = sadd.s32 %s283, %s284
      %s286 = smul.addr %s285, 4
      %s287 = scalar_lea.vmem %s3, %s286
      %p289 = scmp.eq.s32.totalorder %s21, 0
      // Predicated region
      $region33: #{attention_forward.4} parent=31 // pred_check
        %p290 = pneg %p289
      $region34: #{attention_forward.4} parent=31 // pred_check_branch
        %292 = sbr.rel (%p290) target = $region36
      $region35: #{attention_forward.4} parent=31 // pred_region
        %vm293 = vcmask 97280
        %294 = vst.msk [vmem:[#allocation2] sm:$0xff] %vm293, -inf
        %295 = vst.msk [vmem:[#allocation3] sm:$0xff] %vm293, 0.0
        %296 = vst [vmem:[#allocation4] sm:$0xff] 0.0
        %297 = vst [vmem:[#allocation4 + $0x8] sm:$0xff] 0.0
        %298 = vst [vmem:[#allocation4 + $0x10] sm:$0xff] 0.0
        %299 = vst [vmem:[#allocation4 + $0x18] sm:$0xff] 0.0
        %300 = vst [vmem:[#allocation4 + $0x20] sm:$0xff] 0.0
        %301 = vst [vmem:[#allocation4 + $0x28] sm:$0xff] 0.0
      $region36: #{attention_forward.4} parent=31 // pred_fallthru
        _
      %v302 = vld [vmem:[%s258] sm:$0xff]
      %v303 = vld [vmem:[%s258 + $0x8] sm:$0xff]
      %v304 = vld [vmem:[%s258 + $0x10] sm:$0xff]
      %v305 = vld [vmem:[%s268] sm:$0xff]
      %v306 = vld [vmem:[%s268 + $0x8] sm:$0xff]
      %v307 = vld [vmem:[%s268 + $0x10] sm:$0xff]
      %v308 = vld [vmem:[%s278] sm:$0xff]
      %v309 = vld [vmem:[%s278 + $0x8] sm:$0xff]
      %v310 = vld [vmem:[%s278 + $0x10] sm:$0xff]
      %vm311 = vcmask 523264
      %v313 = vsel %vm311, %v302, 0
      %v316 = vsel %vm311, %v305, 0
      %318 = vmatprep.subr.bf16.mxu0 0
      %319 = vmatpush1.bf16.xpose.msra.mxu0 0
      %320 = vmatprep.subr.bf16.mxu0 0
      %321 = vmatpush1.bf16.xpose.msra.mxu0 0
      %322 = vmatprep.subr.bf16.mxu0 0
      %323 = vmatpush1.bf16.xpose.msra.mxu0 0
      %324 = vmatprep.subr.bf16.mxu0 0
      %325 = vmatpush1.bf16.xpose.msra.mxu0 0
      %326 = vmatprep.subr.bf16.mxu0 0
      %327 = vmatpush1.bf16.xpose.msra.mxu0 0
      %328 = vmatprep.subr.bf16.mxu0 0
      %329 = vmatpush1.bf16.xpose.msra.mxu0 0
      %330 = vmatprep.subr.bf16.mxu0 0
      %331 = vmatpush1.bf16.xpose.msra.mxu0 0
      %332 = vmatprep.subr.bf16.mxu0 0
      %333 = vmatpush1.bf16.xpose.msra.mxu0 %v316
      %334 = vmatprep.subr.bf16.mxu0 0
      %335 = vmatpush2.bf16.xpose.msra.mxu0 0
      %336 = vmatprep.subr.bf16.mxu0 0
      %337 = vmatpush2.bf16.xpose.msra.mxu0 0
      %338 = vmatprep.subr.bf16.mxu0 0
      %339 = vmatpush2.bf16.xpose.msra.mxu0 0
      %340 = vmatprep.subr.bf16.mxu0 0
      %341 = vmatpush2.bf16.xpose.msra.mxu0 0
      %342 = vmatprep.subr.bf16.mxu0 0
      %343 = vmatpush2.bf16.xpose.msra.mxu0 0
      %344 = vmatprep.subr.bf16.mxu0 0
      %345 = vmatpush2.bf16.xpose.msra.mxu0 0
      %346 = vmatprep.subr.bf16.mxu0 0
      %347 = vmatpush2.bf16.xpose.msra.mxu0 0
      %348 = vmatprep.subr.bf16.mxu0 0
      %349 = vmatpush2.bf16.xpose.msra.mxu0 0
      %350 = vmatprep.mubr.bf16.mxu0 0
      %351 = vmatmul.mubr.bf16.gmra.mxu0 %v313
      %v352 = vpop.f32.mrf.mxu0
      %v353 = vadd.f32 0.0, %v352
      %v354 = vpop.f32.mrf.mxu0
      %v355 = vpop.f32.mrf.mxu0
      %v356 = vpop.f32.mrf.mxu0
      %357 = vdwg.mxu0
      %v358 = vld [vmem:[#allocation2] sm:$0xff]
      %vm359 = vcmask 64512
      %v360 = vsel %vm359, %v353, -inf
      %361 = vmax.xlane.f32.xlu0 %v360
      %v362 = vpop.xlane.xlu0 %361
      %v363 = vmax.f32 %v358, %v362
      %v364 = vsub.f32 %v358, %v363
      %v365 = vmul.f32 %v364, 1.442695
      %v366 = vpow.pop %v365
      %368 = vset.pattern.permute.xlu0 0
      %369 = vperm.xlu0 %368, %v363
      %v370 = vpop.permute.xlu0 %369
      %v372 = vsub.f32 %v353, %v370
      %v373 = vmul.f32 %v372, 1.442695
      %v374 = vpow.pop %v373
      %v375 = vld [vmem:[#allocation3] sm:$0xff]
      %v376 = vmul.f32 %v366, %v375
      %v377 = vsel %vm359, %v374, 0.0
      %378 = vadd.xlane.f32.xlu0 %v377
      %v379 = vpop.xlane.xlu0 %378
      %v380 = vadd.f32 %v376, %v379
      %vm381 = vcmask 7168
      %382 = vst.msk [vmem:[#allocation3] sm:$0xff] %vm381, %v380
      %v383 = vld [vmem:[#allocation4] sm:$0xff]
      %385 = vset.pattern.permute.xlu0 0
      %386 = vperm.xlu0 %385, %v366
      %v387 = vpop.permute.xlu0 %386
      %v389 = vmul.f32 %v387, %v383
      %v390 = vpack.c.bf16 %v374, %v374
      %v392 = vsel %vm359, %v390, 0
      %vm394 = vcmask 1043456
      %v396 = vsel %vm394, %v308, 0
      %398 = vmatprep.subr.bf16.mxu0 0
      %399 = vmatpush1.bf16.msra.mxu0 0
      %400 = vmatprep.subr.bf16.mxu0 0
      %401 = vmatpush1.bf16.msra.mxu0 0
      %402 = vmatprep.subr.bf16.mxu0 0
      %403 = vmatpush1.bf16.msra.mxu0 0
      %404 = vmatprep.subr.bf16.mxu0 0
      %405 = vmatpush1.bf16.msra.mxu0 0
      %406 = vmatprep.subr.bf16.mxu0 0
      %407 = vmatpush1.bf16.msra.mxu0 0
      %408 = vmatprep.subr.bf16.mxu0 0
      %409 = vmatpush1.bf16.msra.mxu0 0
      %410 = vmatprep.subr.bf16.mxu0 0
      %411 = vmatpush1.bf16.msra.mxu0 0
      %412 = vmatprep.subr.bf16.mxu0 0
      %413 = vmatpush1.bf16.msra.mxu0 %v396
      %414 = vmatprep.subr.bf16.mxu0 0
      %415 = vmatpush2.bf16.msra.mxu0 0
      %416 = vmatprep.subr.bf16.mxu0 0
      %417 = vmatpush2.bf16.msra.mxu0 0
      %418 = vmatprep.subr.bf16.mxu0 0
      %419 = vmatpush2.bf16.msra.mxu0 0
      %420 = vmatprep.subr.bf16.mxu0 0
      %421 = vmatpush2.bf16.msra.mxu0 0
      %422 = vmatprep.subr.bf16.mxu0 0
      %423 = vmatpush2.bf16.msra.mxu0 0
      %424 = vmatprep.subr.bf16.mxu0 0
      %425 = vmatpush2.bf16.msra.mxu0 0
      %426 = vmatprep.subr.bf16.mxu0 0
      %427 = vmatpush2.bf16.msra.mxu0 0
      %428 = vmatprep.subr.bf16.mxu0 0
      %429 = vmatpush2.bf16.msra.mxu0 0
      %430 = vmatprep.mubr.bf16.mxu0 0
      %431 = vmatmul.mubr.bf16.gmra.mxu0 %v392
      %v432 = vpop.f32.mrf.mxu0
      %v433 = vadd.f32 0.0, %v432
      %v434 = vpop.f32.mrf.mxu0
      %v435 = vpop.f32.mrf.mxu0
      %v436 = vpop.f32.mrf.mxu0
      %437 = vdwg.mxu0
      %v438 = vadd.f32 %v389, %v433
      %439 = vst.msk [vmem:[#allocation4] sm:$0xff] %vm311, %v438
      %440 = vst.msk [vmem:[#allocation2] sm:$0xff] %vm381, %v363
      %v442 = vunpack.c.l.b16 %v302
      %v443 = vpack.c.b16 %v442, %v442
      %444 = vrot.lane.b32.xlu0 %v443, 64
      %v445 = vpop.permute.xlu0 %444
      %v447 = vunpack.c.l.b16 %v305
      %v448 = vpack.c.b16 %v447, %v447
      %449 = vrot.lane.b32.xlu0 %v448, 64
      %v450 = vpop.permute.xlu0 %449
      %v452 = vsel %vm311, %v445, 0
      %v455 = vsel %vm311, %v450, 0
      %457 = vmatprep.subr.bf16.mxu0 0
      %458 = vmatpush1.bf16.xpose.msra.mxu0 0
      %459 = vmatprep.subr.bf16.mxu0 0
      %460 = vmatpush1.bf16.xpose.msra.mxu0 0
      %461 = vmatprep.subr.bf16.mxu0 0
      %462 = vmatpush1.bf16.xpose.msra.mxu0 0
      %463 = vmatprep.subr.bf16.mxu0 0
      %464 = vmatpush1.bf16.xpose.msra.mxu0 0
      %465 = vmatprep.subr.bf16.mxu0 0
      %466 = vmatpush1.bf16.xpose.msra.mxu0 0
      %467 = vmatprep.subr.bf16.mxu0 0
      %468 = vmatpush1.bf16.xpose.msra.mxu0 0
      %469 = vmatprep.subr.bf16.mxu0 0
      %470 = vmatpush1.bf16.xpose.msra.mxu0 0
      %471 = vmatprep.subr.bf16.mxu0 0
      %472 = vmatpush1.bf16.xpose.msra.mxu0 %v455
      %473 = vmatprep.subr.bf16.mxu0 0
      %474 = vmatpush2.bf16.xpose.msra.mxu0 0
      %475 = vmatprep.subr.bf16.mxu0 0
      %476 = vmatpush2.bf16.xpose.msra.mxu0 0
      %477 = vmatprep.subr.bf16.mxu0 0
      %478 = vmatpush2.bf16.xpose.msra.mxu0 0
      %479 = vmatprep.subr.bf16.mxu0 0
      %480 = vmatpush2.bf16.xpose.msra.mxu0 0
      %481 = vmatprep.subr.bf16.mxu0 0
      %482 = vmatpush2.bf16.xpose.msra.mxu0 0
      %483 = vmatprep.subr.bf16.mxu0 0
      %484 = vmatpush2.bf16.xpose.msra.mxu0 0
      %485 = vmatprep.subr.bf16.mxu0 0
      %486 = vmatpush2.bf16.xpose.msra.mxu0 0
      %487 = vmatprep.subr.bf16.mxu0 0
      %488 = vmatpush2.bf16.xpose.msra.mxu0 0
      %489 = vmatprep.mubr.bf16.mxu0 0
      %490 = vmatmul.mubr.bf16.gmra.mxu0 %v452
      %v491 = vpop.f32.mrf.mxu0
      %v492 = vadd.f32 0.0, %v491
      %v493 = vpop.f32.mrf.mxu0
      %v494 = vpop.f32.mrf.mxu0
      %v495 = vpop.f32.mrf.mxu0
      %496 = vdwg.mxu0
      %v497 = vld [vmem:[#allocation2] sm:$0xff]
      %v498 = vsel %vm359, %v492, -inf
      %499 = vmax.xlane.f32.xlu0 %v498
      %v500 = vpop.xlane.xlu0 %499
      %v501 = vmax.f32 %v497, %v500
      %v502 = vsub.f32 %v497, %v501
      %v503 = vmul.f32 %v502, 1.442695
      %v504 = vpow.pop %v503
      %506 = vset.pattern.permute.xlu0 1
      %507 = vperm.xlu0 %506, %v501
      %v508 = vpop.permute.xlu0 %507
      %v510 = vsub.f32 %v492, %v508
      %v511 = vmul.f32 %v510, 1.442695
      %v512 = vpow.pop %v511
      %v513 = vld [vmem:[#allocation3] sm:$0xff]
      %v514 = vmul.f32 %v504, %v513
      %v515 = vsel %vm359, %v512, 0.0
      %516 = vadd.xlane.f32.xlu0 %v515
      %v517 = vpop.xlane.xlu0 %516
      %v518 = vadd.f32 %v514, %v517
      %vm519 = vcmask 15368
      %520 = vst.msk [vmem:[#allocation3] sm:$0xff] %vm519, %v518
      %v521 = vld [vmem:[#allocation4] sm:$0xff]
      %523 = vset.pattern.permute.xlu0 1
      %524 = vperm.xlu0 %523, %v504
      %v525 = vpop.permute.xlu0 %524
      %v527 = vmul.f32 %v525, %v521
      %v528 = vpack.c.bf16 %v512, %v512
      %v530 = vunpack.c.l.b16 %v308
      %v531 = vpack.c.b16 %v530, %v530
      %532 = vrot.lane.b32.xlu0 %v531, 64
      %v533 = vpop.permute.xlu0 %532
      %v535 = vsel %vm359, %v528, 0
      %v538 = vsel %vm394, %v533, 0
      %540 = vmatprep.subr.bf16.mxu0 0
      %541 = vmatpush1.bf16.msra.mxu0 0
      %542 = vmatprep.subr.bf16.mxu0 0
      %543 = vmatpush1.bf16.msra.mxu0 0
      %544 = vmatprep.subr.bf16.mxu0 0
      %545 = vmatpush1.bf16.msra.mxu0 0
      %546 = vmatprep.subr.bf16.mxu0 0
      %547 = vmatpush1.bf16.msra.mxu0 0
      %548 = vmatprep.subr.bf16.mxu0 0
      %549 = vmatpush1.bf16.msra.mxu0 0
      %550 = vmatprep.subr.bf16.mxu0 0
      %551 = vmatpush1.bf16.msra.mxu0 0
      %552 = vmatprep.subr.bf16.mxu0 0
      %553 = vmatpush1.bf16.msra.mxu0 0
      %554 = vmatprep.subr.bf16.mxu0 0
      %555 = vmatpush1.bf16.msra.mxu0 %v538
      %556 = vmatprep.subr.bf16.mxu0 0
      %557 = vmatpush2.bf16.msra.mxu0 0
      %558 = vmatprep.subr.bf16.mxu0 0
      %559 = vmatpush2.bf16.msra.mxu0 0
      %560 = vmatprep.subr.bf16.mxu0 0
      %561 = vmatpush2.bf16.msra.mxu0 0
      %562 = vmatprep.subr.bf16.mxu0 0
      %563 = vmatpush2.bf16.msra.mxu0 0
      %564 = vmatprep.subr.bf16.mxu0 0
      %565 = vmatpush2.bf16.msra.mxu0 0
      %566 = vmatprep.subr.bf16.mxu0 0
      %567 = vmatpush2.bf16.msra.mxu0 0
      %568 = vmatprep.subr.bf16.mxu0 0
      %569 = vmatpush2.bf16.msra.mxu0 0
      %570 = vmatprep.subr.bf16.mxu0 0
      %571 = vmatpush2.bf16.msra.mxu0 0
      %572 = vmatprep.mubr.bf16.mxu0 0
      %573 = vmatmul.mubr.bf16.gmra.mxu0 %v535
      %v574 = vpop.f32.mrf.mxu0
      %v575 = vadd.f32 0.0, %v574
      %v576 = vpop.f32.mrf.mxu0
      %v577 = vpop.f32.mrf.mxu0
      %v578 = vpop.f32.mrf.mxu0
      %579 = vdwg.mxu0
      %581 = vrot.lane.b32.xlu0 %v575, 64
      %v582 = vpop.permute.xlu0 %581
      %v584 = vadd.f32 %v527, %v582
      %vm585 = vcmask 1048064
      %586 = vst.msk [vmem:[#allocation4] sm:$0xff] %vm585, %v584
      %587 = vst.msk [vmem:[#allocation2] sm:$0xff] %vm519, %v501
      %v588 = vunpack.c.h.b16 %v302
      %v589 = vpack.c.b16 %v588, %v588
      %v590 = vunpack.c.h.b16 %v305
      %v591 = vpack.c.b16 %v590, %v590
      %v593 = vsel %vm311, %v589, 0
      %v596 = vsel %vm311, %v591, 0
      %598 = vmatprep.subr.bf16.mxu0 0
      %599 = vmatpush1.bf16.xpose.msra.mxu0 0
      %600 = vmatprep.subr.bf16.mxu0 0
      %601 = vmatpush1.bf16.xpose.msra.mxu0 0
      %602 = vmatprep.subr.bf16.mxu0 0
      %603 = vmatpush1.bf16.xpose.msra.mxu0 0
      %604 = vmatprep.subr.bf16.mxu0 0
      %605 = vmatpush1.bf16.xpose.msra.mxu0 0
      %606 = vmatprep.subr.bf16.mxu0 0
      %607 = vmatpush1.bf16.xpose.msra.mxu0 0
      %608 = vmatprep.subr.bf16.mxu0 0
      %609 = vmatpush1.bf16.xpose.msra.mxu0 0
      %610 = vmatprep.subr.bf16.mxu0 0
      %611 = vmatpush1.bf16.xpose.msra.mxu0 0
      %612 = vmatprep.subr.bf16.mxu0 0
      %613 = vmatpush1.bf16.xpose.msra.mxu0 %v596
      %614 = vmatprep.subr.bf16.mxu0 0
      %615 = vmatpush2.bf16.xpose.msra.mxu0 0
      %616 = vmatprep.subr.bf16.mxu0 0
      %617 = vmatpush2.bf16.xpose.msra.mxu0 0
      %618 = vmatprep.subr.bf16.mxu0 0
      %619 = vmatpush2.bf16.xpose.msra.mxu0 0
      %620 = vmatprep.subr.bf16.mxu0 0
      %621 = vmatpush2.bf16.xpose.msra.mxu0 0
      %622 = vmatprep.subr.bf16.mxu0 0
      %623 = vmatpush2.bf16.xpose.msra.mxu0 0
      %624 = vmatprep.subr.bf16.mxu0 0
      %625 = vmatpush2.bf16.xpose.msra.mxu0 0
      %626 = vmatprep.subr.bf16.mxu0 0
      %627 = vmatpush2.bf16.xpose.msra.mxu0 0
      %628 = vmatprep.subr.bf16.mxu0 0
      %629 = vmatpush2.bf16.xpose.msra.mxu0 0
      %630 = vmatprep.mubr.bf16.mxu0 0
      %631 = vmatmul.mubr.bf16.gmra.mxu0 %v593
      %v632 = vpop.f32.mrf.mxu0
      %v633 = vadd.f32 0.0, %v632
      %v634 = vpop.f32.mrf.mxu0
      %v635 = vpop.f32.mrf.mxu0
      %v636 = vpop.f32.mrf.mxu0
      %637 = vdwg.mxu0
      %v638 = vld [vmem:[#allocation2] sm:$0xff]
      %v639 = vsel %vm359, %v633, -inf
      %640 = vmax.xlane.f32.xlu0 %v639
      %v641 = vpop.xlane.xlu0 %640
      %v642 = vmax.f32 %v638, %v641
      %v643 = vsub.f32 %v638, %v642
      %v644 = vmul.f32 %v643, 1.442695
      %v645 = vpow.pop %v644
      %647 = vset.pattern.permute.xlu0 2
      %648 = vperm.xlu0 %647, %v642
      %v649 = vpop.permute.xlu0 %648
      %v651 = vsub.f32 %v633, %v649
      %v652 = vmul.f32 %v651, 1.442695
      %v653 = vpow.pop %v652
      %v654 = vld [vmem:[#allocation3] sm:$0xff]
      %v655 = vmul.f32 %v645, %v654
      %v656 = vsel %vm359, %v653, 0.0
      %657 = vadd.xlane.f32.xlu0 %v656
      %v658 = vpop.xlane.xlu0 %657
      %v659 = vadd.f32 %v655, %v658
      %vm660 = vcmask 23568
      %661 = vst.msk [vmem:[#allocation3] sm:$0xff] %vm660, %v659
      %v662 = vld [vmem:[#allocation4 + $0x8] sm:$0xff]
      %664 = vset.pattern.permute.xlu0 2
      %665 = vperm.xlu0 %664, %v645
      %v666 = vpop.permute.xlu0 %665
      %v668 = vmul.f32 %v666, %v662
      %v669 = vpack.c.bf16 %v653, %v653
      %v670 = vunpack.c.h.b16 %v308
      %v671 = vpack.c.b16 %v670, %v670
      %v673 = vsel %vm359, %v669, 0
      %v676 = vsel %vm394, %v671, 0
      %678 = vmatprep.subr.bf16.mxu0 0
      %679 = vmatpush1.bf16.msra.mxu0 0
      %680 = vmatprep.subr.bf16.mxu0 0
      %681 = vmatpush1.bf16.msra.mxu0 0
      %682 = vmatprep.subr.bf16.mxu0 0
      %683 = vmatpush1.bf16.msra.mxu0 0
      %684 = vmatprep.subr.bf16.mxu0 0
      %685 = vmatpush1.bf16.msra.mxu0 0
      %686 = vmatprep.subr.bf16.mxu0 0
      %687 = vmatpush1.bf16.msra.mxu0 0
      %688 = vmatprep.subr.bf16.mxu0 0
      %689 = vmatpush1.bf16.msra.mxu0 0
      %690 = vmatprep.subr.bf16.mxu0 0
      %691 = vmatpush1.bf16.msra.mxu0 0
      %692 = vmatprep.subr.bf16.mxu0 0
      %693 = vmatpush1.bf16.msra.mxu0 %v676
      %694 = vmatprep.subr.bf16.mxu0 0
      %695 = vmatpush2.bf16.msra.mxu0 0
      %696 = vmatprep.subr.bf16.mxu0 0
      %697 = vmatpush2.bf16.msra.mxu0 0
      %698 = vmatprep.subr.bf16.mxu0 0
      %699 = vmatpush2.bf16.msra.mxu0 0
      %700 = vmatprep.subr.bf16.mxu0 0
      %701 = vmatpush2.bf16.msra.mxu0 0
      %702 = vmatprep.subr.bf16.mxu0 0
      %703 = vmatpush2.bf16.msra.mxu0 0
      %704 = vmatprep.subr.bf16.mxu0 0
      %705 = vmatpush2.bf16.msra.mxu0 0
      %706 = vmatprep.subr.bf16.mxu0 0
      %707 = vmatpush2.bf16.msra.mxu0 0
      %708 = vmatprep.subr.bf16.mxu0 0
      %709 = vmatpush2.bf16.msra.mxu0 0
      %710 = vmatprep.mubr.bf16.mxu0 0
      %711 = vmatmul.mubr.bf16.gmra.mxu0 %v673
      %v712 = vpop.f32.mrf.mxu0
      %v713 = vadd.f32 0.0, %v712
      %v714 = vpop.f32.mrf.mxu0
      %v715 = vpop.f32.mrf.mxu0
      %v716 = vpop.f32.mrf.mxu0
      %717 = vdwg.mxu0
      %v718 = vadd.f32 %v668, %v713
      %719 = vst.msk [vmem:[#allocation4 + $0x8] sm:$0xff] %vm311, %v718
      %720 = vst.msk [vmem:[#allocation2] sm:$0xff] %vm660, %v642
      %721 = vrot.lane.b32.xlu0 %v589, 64
      %v722 = vpop.permute.xlu0 %721
      %723 = vrot.lane.b32.xlu0 %v591, 64
      %v724 = vpop.permute.xlu0 %723
      %v726 = vsel %vm311, %v722, 0
      %v729 = vsel %vm311, %v724, 0
      %731 = vmatprep.subr.bf16.mxu0 0
      %732 = vmatpush1.bf16.xpose.msra.mxu0 0
      %733 = vmatprep.subr.bf16.mxu0 0
      %734 = vmatpush1.bf16.xpose.msra.mxu0 0
      %735 = vmatprep.subr.bf16.mxu0 0
      %736 = vmatpush1.bf16.xpose.msra.mxu0 0
      %737 = vmatprep.subr.bf16.mxu0 0
      %738 = vmatpush1.bf16.xpose.msra.mxu0 0
      %739 = vmatprep.subr.bf16.mxu0 0
      %740 = vmatpush1.bf16.xpose.msra.mxu0 0
      %741 = vmatprep.subr.bf16.mxu0 0
      %742 = vmatpush1.bf16.xpose.msra.mxu0 0
      %743 = vmatprep.subr.bf16.mxu0 0
      %744 = vmatpush1.bf16.xpose.msra.mxu0 0
      %745 = vmatprep.subr.bf16.mxu0 0
      %746 = vmatpush1.bf16.xpose.msra.mxu0 %v729
      %747 = vmatprep.subr.bf16.mxu0 0
      %748 = vmatpush2.bf16.xpose.msra.mxu0 0
      %749 = vmatprep.subr.bf16.mxu0 0
      %750 = vmatpush2.bf16.xpose.msra.mxu0 0
      %751 = vmatprep.subr.bf16.mxu0 0
      %752 = vmatpush2.bf16.xpose.msra.mxu0 0
      %753 = vmatprep.subr.bf16.mxu0 0
      %754 = vmatpush2.bf16.xpose.msra.mxu0 0
      %755 = vmatprep.subr.bf16.mxu0 0
      %756 = vmatpush2.bf16.xpose.msra.mxu0 0
      %757 = vmatprep.subr.bf16.mxu0 0
      %758 = vmatpush2.bf16.xpose.msra.mxu0 0
      %759 = vmatprep.subr.bf16.mxu0 0
      %760 = vmatpush2.bf16.xpose.msra.mxu0 0
      %761 = vmatprep.subr.bf16.mxu0 0
      %762 = vmatpush2.bf16.xpose.msra.mxu0 0
      %763 = vmatprep.mubr.bf16.mxu0 0
      %764 = vmatmul.mubr.bf16.gmra.mxu0 %v726
      %v765 = vpop.f32.mrf.mxu0
      %v766 = vadd.f32 0.0, %v765
      %v767 = vpop.f32.mrf.mxu0
      %v768 = vpop.f32.mrf.mxu0
      %v769 = vpop.f32.mrf.mxu0
      %770 = vdwg.mxu0
      %v771 = vld [vmem:[#allocation2] sm:$0xff]
      %v772 = vsel %vm359, %v766, -inf
      %773 = vmax.xlane.f32.xlu0 %v772
      %v774 = vpop.xlane.xlu0 %773
      %v775 = vmax.f32 %v771, %v774
      %v776 = vsub.f32 %v771, %v775
      %v777 = vmul.f32 %v776, 1.442695
      %v778 = vpow.pop %v777
      %780 = vset.pattern.permute.xlu0 3
      %781 = vperm.xlu0 %780, %v775
      %v782 = vpop.permute.xlu0 %781
      %v784 = vsub.f32 %v766, %v782
      %v785 = vmul.f32 %v784, 1.442695
      %v786 = vpow.pop %v785
      %v787 = vld [vmem:[#allocation3] sm:$0xff]
      %v788 = vmul.f32 %v778, %v787
      %v789 = vsel %vm359, %v786, 0.0
      %790 = vadd.xlane.f32.xlu0 %v789
      %v791 = vpop.xlane.xlu0 %790
      %v792 = vadd.f32 %v788, %v791
      %vm793 = vcmask 31768
      %794 = vst.msk [vmem:[#allocation3] sm:$0xff] %vm793, %v792
      %v795 = vld [vmem:[#allocation4 + $0x8] sm:$0xff]
      %797 = vset.pattern.permute.xlu0 3
      %798 = vperm.xlu0 %797, %v778
      %v799 = vpop.permute.xlu0 %798
      %v801 = vmul.f32 %v799, %v795
      %v802 = vpack.c.bf16 %v786, %v786
      %803 = vrot.lane.b32.xlu0 %v671, 64
      %v804 = vpop.permute.xlu0 %803
      %v806 = vsel %vm359, %v802, 0
      %v809 = vsel %vm394, %v804, 0
      %811 = vmatprep.subr.bf16.mxu0 0
      %812 = vmatpush1.bf16.msra.mxu0 0
      %813 = vmatprep.subr.bf16.mxu0 0
      %814 = vmatpush1.bf16.msra.mxu0 0
      %815 = vmatprep.subr.bf16.mxu0 0
      %816 = vmatpush1.bf16.msra.mxu0 0
      %817 = vmatprep.subr.bf16.mxu0 0
      %818 = vmatpush1.bf16.msra.mxu0 0
      %819 = vmatprep.subr.bf16.mxu0 0
      %820 = vmatpush1.bf16.msra.mxu0 0
      %821 = vmatprep.subr.bf16.mxu0 0
      %822 = vmatpush1.bf16.msra.mxu0 0
      %823 = vmatprep.subr.bf16.mxu0 0
      %824 = vmatpush1.bf16.msra.mxu0 0
      %825 = vmatprep.subr.bf16.mxu0 0
      %826 = vmatpush1.bf16.msra.mxu0 %v809
      %827 = vmatprep.subr.bf16.mxu0 0
      %828 = vmatpush2.bf16.msra.mxu0 0
      %829 = vmatprep.subr.bf16.mxu0 0
      %830 = vmatpush2.bf16.msra.mxu0 0
      %831 = vmatprep.subr.bf16.mxu0 0
      %832 = vmatpush2.bf16.msra.mxu0 0
      %833 = vmatprep.subr.bf16.mxu0 0
      %834 = vmatpush2.bf16.msra.mxu0 0
      %835 = vmatprep.subr.bf16.mxu0 0
      %836 = vmatpush2.bf16.msra.mxu0 0
      %837 = vmatprep.subr.bf16.mxu0 0
      %838 = vmatpush2.bf16.msra.mxu0 0
      %839 = vmatprep.subr.bf16.mxu0 0
      %840 = vmatpush2.bf16.msra.mxu0 0
      %841 = vmatprep.subr.bf16.mxu0 0
      %842 = vmatpush2.bf16.msra.mxu0 0
      %843 = vmatprep.mubr.bf16.mxu0 0
      %844 = vmatmul.mubr.bf16.gmra.mxu0 %v806
      %v845 = vpop.f32.mrf.mxu0
      %v846 = vadd.f32 0.0, %v845
      %v847 = vpop.f32.mrf.mxu0
      %v848 = vpop.f32.mrf.mxu0
      %v849 = vpop.f32.mrf.mxu0
      %850 = vdwg.mxu0
      %852 = vrot.lane.b32.xlu0 %v846, 64
      %v853 = vpop.permute.xlu0 %852
      %v855 = vadd.f32 %v801, %v853
      %856 = vst.msk [vmem:[#allocation4 + $0x8] sm:$0xff] %vm585, %v855
      %857 = vst.msk [vmem:[#allocation2] sm:$0xff] %vm793, %v775
      %v859 = vsel %vm311, %v303, 0
      %v862 = vsel %vm311, %v306, 0
      %864 = vmatprep.subr.bf16.mxu0 0
      %865 = vmatpush1.bf16.xpose.msra.mxu0 0
      %866 = vmatprep.subr.bf16.mxu0 0
      %867 = vmatpush1.bf16.xpose.msra.mxu0 0
      %868 = vmatprep.subr.bf16.mxu0 0
      %869 = vmatpush1.bf16.xpose.msra.mxu0 0
      %870 = vmatprep.subr.bf16.mxu0 0
      %871 = vmatpush1.bf16.xpose.msra.mxu0 0
      %872 = vmatprep.subr.bf16.mxu0 0
      %873 = vmatpush1.bf16.xpose.msra.mxu0 0
      %874 = vmatprep.subr.bf16.mxu0 0
      %875 = vmatpush1.bf16.xpose.msra.mxu0 0
      %876 = vmatprep.subr.bf16.mxu0 0
      %877 = vmatpush1.bf16.xpose.msra.mxu0 0
      %878 = vmatprep.subr.bf16.mxu0 0
      %879 = vmatpush1.bf16.xpose.msra.mxu0 %v862
      %880 = vmatprep.subr.bf16.mxu0 0
      %881 = vmatpush2.bf16.xpose.msra.mxu0 0
      %882 = vmatprep.subr.bf16.mxu0 0
      %883 = vmatpush2.bf16.xpose.msra.mxu0 0
      %884 = vmatprep.subr.bf16.mxu0 0
      %885 = vmatpush2.bf16.xpose.msra.mxu0 0
      %886 = vmatprep.subr.bf16.mxu0 0
      %887 = vmatpush2.bf16.xpose.msra.mxu0 0
      %888 = vmatprep.subr.bf16.mxu0 0
      %889 = vmatpush2.bf16.xpose.msra.mxu0 0
      %890 = vmatprep.subr.bf16.mxu0 0
      %891 = vmatpush2.bf16.xpose.msra.mxu0 0
      %892 = vmatprep.subr.bf16.mxu0 0
      %893 = vmatpush2.bf16.xpose.msra.mxu0 0
      %894 = vmatprep.subr.bf16.mxu0 0
      %895 = vmatpush2.bf16.xpose.msra.mxu0 0
      %896 = vmatprep.mubr.bf16.mxu0 0
      %897 = vmatmul.mubr.bf16.gmra.mxu0 %v859
      %v898 = vpop.f32.mrf.mxu0
      %v899 = vadd.f32 0.0, %v898
      %v900 = vpop.f32.mrf.mxu0
      %v901 = vpop.f32.mrf.mxu0
      %v902 = vpop.f32.mrf.mxu0
      %903 = vdwg.mxu0
      %v904 = vld [vmem:[#allocation2] sm:$0xff]
      %v905 = vsel %vm359, %v899, -inf
      %906 = vmax.xlane.f32.xlu0 %v905
      %v907 = vpop.xlane.xlu0 %906
      %v908 = vmax.f32 %v904, %v907
      %v909 = vsub.f32 %v904, %v908
      %v910 = vmul.f32 %v909, 1.442695
      %v911 = vpow.pop %v910
      %913 = vset.pattern.permute.xlu0 4
      %914 = vperm.xlu0 %913, %v908
      %v915 = vpop.permute.xlu0 %914
      %v917 = vsub.f32 %v899, %v915
      %v918 = vmul.f32 %v917, 1.442695
      %v919 = vpow.pop %v918
      %v920 = vld [vmem:[#allocation3] sm:$0xff]
      %v921 = vmul.f32 %v911, %v920
      %v922 = vsel %vm359, %v919, 0.0
      %923 = vadd.xlane.f32.xlu0 %v922
      %v924 = vpop.xlane.xlu0 %923
      %v925 = vadd.f32 %v921, %v924
      %vm926 = vcmask 39968
      %927 = vst.msk [vmem:[#allocation3] sm:$0xff] %vm926, %v925
      %v928 = vld [vmem:[#allocation4 + $0x10] sm:$0xff]
      %930 = vset.pattern.permute.xlu0 4
      %931 = vperm.xlu0 %930, %v911
      %v932 = vpop.permute.xlu0 %931
      %v934 = vmul.f32 %v932, %v928
      %v935 = vpack.c.bf16 %v919, %v919
      %v937 = vsel %vm359, %v935, 0
      %v940 = vsel %vm394, %v309, 0
      %942 = vmatprep.subr.bf16.mxu0 0
      %943 = vmatpush1.bf16.msra.mxu0 0
      %944 = vmatprep.subr.bf16.mxu0 0
      %945 = vmatpush1.bf16.msra.mxu0 0
      %946 = vmatprep.subr.bf16.mxu0 0
      %947 = vmatpush1.bf16.msra.mxu0 0
      %948 = vmatprep.subr.bf16.mxu0 0
      %949 = vmatpush1.bf16.msra.mxu0 0
      %950 = vmatprep.subr.bf16.mxu0 0
      %951 = vmatpush1.bf16.msra.mxu0 0
      %952 = vmatprep.subr.bf16.mxu0 0
      %953 = vmatpush1.bf16.msra.mxu0 0
      %954 = vmatprep.subr.bf16.mxu0 0
      %955 = vmatpush1.bf16.msra.mxu0 0
      %956 = vmatprep.subr.bf16.mxu0 0
      %957 = vmatpush1.bf16.msra.mxu0 %v940
      %958 = vmatprep.subr.bf16.mxu0 0
      %959 = vmatpush2.bf16.msra.mxu0 0
      %960 = vmatprep.subr.bf16.mxu0 0
      %961 = vmatpush2.bf16.msra.mxu0 0
      %962 = vmatprep.subr.bf16.mxu0 0
      %963 = vmatpush2.bf16.msra.mxu0 0
      %964 = vmatprep.subr.bf16.mxu0 0
      %965 = vmatpush2.bf16.msra.mxu0 0
      %966 = vmatprep.subr.bf16.mxu0 0
      %967 = vmatpush2.bf16.msra.mxu0 0
      %968 = vmatprep.subr.bf16.mxu0 0
      %969 = vmatpush2.bf16.msra.mxu0 0
      %970 = vmatprep.subr.bf16.mxu0 0
      %971 = vmatpush2.bf16.msra.mxu0 0
      %972 = vmatprep.subr.bf16.mxu0 0
      %973 = vmatpush2.bf16.msra.mxu0 0
      %974 = vmatprep.mubr.bf16.mxu0 0
      %975 = vmatmul.mubr.bf16.gmra.mxu0 %v937
      %v976 = vpop.f32.mrf.mxu0
      %v977 = vadd.f32 0.0, %v976
      %v978 = vpop.f32.mrf.mxu0
      %v979 = vpop.f32.mrf.mxu0
      %v980 = vpop.f32.mrf.mxu0
      %981 = vdwg.mxu0
      %v982 = vadd.f32 %v934, %v977
      %983 = vst.msk [vmem:[#allocation4 + $0x10] sm:$0xff] %vm311, %v982
      %984 = vst.msk [vmem:[#allocation2] sm:$0xff] %vm926, %v908
      %v986 = vunpack.c.l.b16 %v303
      %v987 = vpack.c.b16 %v986, %v986
      %988 = vrot.lane.b32.xlu0 %v987, 64
      %v989 = vpop.permute.xlu0 %988
      %v991 = vunpack.c.l.b16 %v306
      %v992 = vpack.c.b16 %v991, %v991
      %993 = vrot.lane.b32.xlu0 %v992, 64
      %v994 = vpop.permute.xlu0 %993
      %v996 = vsel %vm311, %v989, 0
      %v999 = vsel %vm311, %v994, 0
      %1001 = vmatprep.subr.bf16.mxu0 0
      %1002 = vmatpush1.bf16.xpose.msra.mxu0 0
      %1003 = vmatprep.subr.bf16.mxu0 0
      %1004 = vmatpush1.bf16.xpose.msra.mxu0 0
      %1005 = vmatprep.subr.bf16.mxu0 0
      %1006 = vmatpush1.bf16.xpose.msra.mxu0 0
      %1007 = vmatprep.subr.bf16.mxu0 0
      %1008 = vmatpush1.bf16.xpose.msra.mxu0 0
      %1009 = vmatprep.subr.bf16.mxu0 0
      %1010 = vmatpush1.bf16.xpose.msra.mxu0 0
      %1011 = vmatprep.subr.bf16.mxu0 0
      %1012 = vmatpush1.bf16.xpose.msra.mxu0 0
      %1013 = vmatprep.subr.bf16.mxu0 0
      %1014 = vmatpush1.bf16.xpose.msra.mxu0 0
      %1015 = vmatprep.subr.bf16.mxu0 0
      %1016 = vmatpush1.bf16.xpose.msra.mxu0 %v999
      %1017 = vmatprep.subr.bf16.mxu0 0
      %1018 = vmatpush2.bf16.xpose.msra.mxu0 0
      %1019 = vmatprep.subr.bf16.mxu0 0
      %1020 = vmatpush2.bf16.xpose.msra.mxu0 0
      %1021 = vmatprep.subr.bf16.mxu0 0
      %1022 = vmatpush2.bf16.xpose.msra.mxu0 0
      %1023 = vmatprep.subr.bf16.mxu0 0
      %1024 = vmatpush2.bf16.xpose.msra.mxu0 0
      %1025 = vmatprep.subr.bf16.mxu0 0
      %1026 = vmatpush2.bf16.xpose.msra.mxu0 0
      %1027 = vmatprep.subr.bf16.mxu0 0
      %1028 = vmatpush2.bf16.xpose.msra.mxu0 0
      %1029 = vmatprep.subr.bf16.mxu0 0
      %1030 = vmatpush2.bf16.xpose.msra.mxu0 0
      %1031 = vmatprep.subr.bf16.mxu0 0
      %1032 = vmatpush2.bf16.xpose.msra.mxu0 0
      %1033 = vmatprep.mubr.bf16.mxu0 0
      %1034 = vmatmul.mubr.bf16.gmra.mxu0 %v996
      %v1035 = vpop.f32.mrf.mxu0
      %v1036 = vadd.f32 0.0, %v1035
      %v1037 = vpop.f32.mrf.mxu0
      %v1038 = vpop.f32.mrf.mxu0
      %v1039 = vpop.f32.mrf.mxu0
      %1040 = vdwg.mxu0
      %v1041 = vld [vmem:[#allocation2] sm:$0xff]
      %v1042 = vsel %vm359, %v1036, -inf
      %1043 = vmax.xlane.f32.xlu0 %v1042
      %v1044 = vpop.xlane.xlu0 %1043
      %v1045 = vmax.f32 %v1041, %v1044
      %v1046 = vsub.f32 %v1041, %v1045
      %v1047 = vmul.f32 %v1046, 1.442695
      %v1048 = vpow.pop %v1047
      %1050 = vset.pattern.permute.xlu0 5
      %1051 = vperm.xlu0 %1050, %v1045
      %v1052 = vpop.permute.xlu0 %1051
      %v1054 = vsub.f32 %v1036, %v1052
      %v1055 = vmul.f32 %v1054, 1.442695
      %v1056 = vpow.pop %v1055
      %v1057 = vld [vmem:[#allocation3] sm:$0xff]
      %v1058 = vmul.f32 %v1048, %v1057
      %v1059 = vsel %vm359, %v1056, 0.0
      %1060 = vadd.xlane.f32.xlu0 %v1059
      %v1061 = vpop.xlane.xlu0 %1060
      %v1062 = vadd.f32 %v1058, %v1061
      %vm1063 = vcmask 48168
      %1064 = vst.msk [vmem:[#allocation3] sm:$0xff] %vm1063, %v1062
      %v1065 = vld [vmem:[#allocation4 + $0x10] sm:$0xff]
      %1067 = vset.pattern.permute.xlu0 5
      %1068 = vperm.xlu0 %1067, %v1048
      %v1069 = vpop.permute.xlu0 %1068
      %v1071 = vmul.f32 %v1069, %v1065
      %v1072 = vpack.c.bf16 %v1056, %v1056
      %v1074 = vunpack.c.l.b16 %v309
      %v1075 = vpack.c.b16 %v1074, %v1074
      %1076 = vrot.lane.b32.xlu0 %v1075, 64
      %v1077 = vpop.permute.xlu0 %1076
      %v1079 = vsel %vm359, %v1072, 0
      %v1082 = vsel %vm394, %v1077, 0
      %1084 = vmatprep.subr.bf16.mxu0 0
      %1085 = vmatpush1.bf16.msra.mxu0 0
      %1086 = vmatprep.subr.bf16.mxu0 0
      %1087 = vmatpush1.bf16.msra.mxu0 0
      %1088 = vmatprep.subr.bf16.mxu0 0
      %1089 = vmatpush1.bf16.msra.mxu0 0
      %1090 = vmatprep.subr.bf16.mxu0 0
      %1091 = vmatpush1.bf16.msra.mxu0 0
      %1092 = vmatprep.subr.bf16.mxu0 0
      %1093 = vmatpush1.bf16.msra.mxu0 0
      %1094 = vmatprep.subr.bf16.mxu0 0
      %1095 = vmatpush1.bf16.msra.mxu0 0
      %1096 = vmatprep.subr.bf16.mxu0 0
      %1097 = vmatpush1.bf16.msra.mxu0 0
      %1098 = vmatprep.subr.bf16.mxu0 0
      %1099 = vmatpush1.bf16.msra.mxu0 %v1082
      %1100 = vmatprep.subr.bf16.mxu0 0
      %1101 = vmatpush2.bf16.msra.mxu0 0
      %1102 = vmatprep.subr.bf16.mxu0 0
      %1103 = vmatpush2.bf16.msra.mxu0 0
      %1104 = vmatprep.subr.bf16.mxu0 0
      %1105 = vmatpush2.bf16.msra.mxu0 0
      %1106 = vmatprep.subr.bf16.mxu0 0
      %1107 = vmatpush2.bf16.msra.mxu0 0
      %1108 = vmatprep.subr.bf16.mxu0 0
      %1109 = vmatpush2.bf16.msra.mxu0 0
      %1110 = vmatprep.subr.bf16.mxu0 0
      %1111 = vmatpush2.bf16.msra.mxu0 0
      %1112 = vmatprep.subr.bf16.mxu0 0
      %1113 = vmatpush2.bf16.msra.mxu0 0
      %1114 = vmatprep.subr.bf16.mxu0 0
      %1115 = vmatpush2.bf16.msra.mxu0 0
      %1116 = vmatprep.mubr.bf16.mxu0 0
      %1117 = vmatmul.mubr.bf16.gmra.mxu0 %v1079
      %v1118 = vpop.f32.mrf.mxu0
      %v1119 = vadd.f32 0.0, %v1118
      %v1120 = vpop.f32.mrf.mxu0
      %v1121 = vpop.f32.mrf.mxu0
      %v1122 = vpop.f32.mrf.mxu0
      %1123 = vdwg.mxu0
      %1125 = vrot.lane.b32.xlu0 %v1119, 64
      %v1126 = vpop.permute.xlu0 %1125
      %v1128 = vadd.f32 %v1071, %v1126
      %1129 = vst.msk [vmem:[#allocation4 + $0x10] sm:$0xff] %vm585, %v1128
      %1130 = vst.msk [vmem:[#allocation2] sm:$0xff] %vm1063, %v1045
      %v1131 = vunpack.c.h.b16 %v303
      %v1132 = vpack.c.b16 %v1131, %v1131
      %v1133 = vunpack.c.h.b16 %v306
      %v1134 = vpack.c.b16 %v1133, %v1133
      %v1136 = vsel %vm311, %v1132, 0
      %v1139 = vsel %vm311, %v1134, 0
      %1141 = vmatprep.subr.bf16.mxu0 0
      %1142 = vmatpush1.bf16.xpose.msra.mxu0 0
      %1143 = vmatprep.subr.bf16.mxu0 0
      %1144 = vmatpush1.bf16.xpose.msra.mxu0 0
      %1145 = vmatprep.subr.bf16.mxu0 0
      %1146 = vmatpush1.bf16.xpose.msra.mxu0 0
      %1147 = vmatprep.subr.bf16.mxu0 0
      %1148 = vmatpush1.bf16.xpose.msra.mxu0 0
      %1149 = vmatprep.subr.bf16.mxu0 0
      %1150 = vmatpush1.bf16.xpose.msra.mxu0 0
      %1151 = vmatprep.subr.bf16.mxu0 0
      %1152 = vmatpush1.bf16.xpose.msra.mxu0 0
      %1153 = vmatprep.subr.bf16.mxu0 0
      %1154 = vmatpush1.bf16.xpose.msra.mxu0 0
      %1155 = vmatprep.subr.bf16.mxu0 0
      %1156 = vmatpush1.bf16.xpose.msra.mxu0 %v1139
      %1157 = vmatprep.subr.bf16.mxu0 0
      %1158 = vmatpush2.bf16.xpose.msra.mxu0 0
      %1159 = vmatprep.subr.bf16.mxu0 0
      %1160 = vmatpush2.bf16.xpose.msra.mxu0 0
      %1161 = vmatprep.subr.bf16.mxu0 0
      %1162 = vmatpush2.bf16.xpose.msra.mxu0 0
      %1163 = vmatprep.subr.bf16.mxu0 0
      %1164 = vmatpush2.bf16.xpose.msra.mxu0 0
      %1165 = vmatprep.subr.bf16.mxu0 0
      %1166 = vmatpush2.bf16.xpose.msra.mxu0 0
      %1167 = vmatprep.subr.bf16.mxu0 0
      %1168 = vmatpush2.bf16.xpose.msra.mxu0 0
      %1169 = vmatprep.subr.bf16.mxu0 0
      %1170 = vmatpush2.bf16.xpose.msra.mxu0 0
      %1171 = vmatprep.subr.bf16.mxu0 0
      %1172 = vmatpush2.bf16.xpose.msra.mxu0 0
      %1173 = vmatprep.mubr.bf16.mxu0 0
      %1174 = vmatmul.mubr.bf16.gmra.mxu0 %v1136
      %v1175 = vpop.f32.mrf.mxu0
      %v1176 = vadd.f32 0.0, %v1175
      %v1177 = vpop.f32.mrf.mxu0
      %v1178 = vpop.f32.mrf.mxu0
      %v1179 = vpop.f32.mrf.mxu0
      %1180 = vdwg.mxu0
      %v1181 = vld [vmem:[#allocation2] sm:$0xff]
      %v1182 = vsel %vm359, %v1176, -inf
      %1183 = vmax.xlane.f32.xlu0 %v1182
      %v1184 = vpop.xlane.xlu0 %1183
      %v1185 = vmax.f32 %v1181, %v1184
      %v1186 = vsub.f32 %v1181, %v1185
      %v1187 = vmul.f32 %v1186, 1.442695
      %v1188 = vpow.pop %v1187
      %1190 = vset.pattern.permute.xlu0 6
      %1191 = vperm.xlu0 %1190, %v1185
      %v1192 = vpop.permute.xlu0 %1191
      %v1194 = vsub.f32 %v1176, %v1192
      %v1195 = vmul.f32 %v1194, 1.442695
      %v1196 = vpow.pop %v1195
      %v1197 = vld [vmem:[#allocation3] sm:$0xff]
      %v1198 = vmul.f32 %v1188, %v1197
      %v1199 = vsel %vm359, %v1196, 0.0
      %1200 = vadd.xlane.f32.xlu0 %v1199
      %v1201 = vpop.xlane.xlu0 %1200
      %v1202 = vadd.f32 %v1198, %v1201
      %vm1203 = vcmask 56368
      %1204 = vst.msk [vmem:[#allocation3] sm:$0xff] %vm1203, %v1202
      %v1205 = vld [vmem:[#allocation4 + $0x18] sm:$0xff]
      %1207 = vset.pattern.permute.xlu0 6
      %1208 = vperm.xlu0 %1207, %v1188
      %v1209 = vpop.permute.xlu0 %1208
      %v1211 = vmul.f32 %v1209, %v1205
      %v1212 = vpack.c.bf16 %v1196, %v1196
      %v1213 = vunpack.c.h.b16 %v309
      %v1214 = vpack.c.b16 %v1213, %v1213
      %v1216 = vsel %vm359, %v1212, 0
      %v1219 = vsel %vm394, %v1214, 0
      %1221 = vmatprep.subr.bf16.mxu0 0
      %1222 = vmatpush1.bf16.msra.mxu0 0
      %1223 = vmatprep.subr.bf16.mxu0 0
      %1224 = vmatpush1.bf16.msra.mxu0 0
      %1225 = vmatprep.subr.bf16.mxu0 0
      %1226 = vmatpush1.bf16.msra.mxu0 0
      %1227 = vmatprep.subr.bf16.mxu0 0
      %1228 = vmatpush1.bf16.msra.mxu0 0
      %1229 = vmatprep.subr.bf16.mxu0 0
      %1230 = vmatpush1.bf16.msra.mxu0 0
      %1231 = vmatprep.subr.bf16.mxu0 0
      %1232 = vmatpush1.bf16.msra.mxu0 0
      %1233 = vmatprep.subr.bf16.mxu0 0
      %1234 = vmatpush1.bf16.msra.mxu0 0
      %1235 = vmatprep.subr.bf16.mxu0 0
      %1236 = vmatpush1.bf16.msra.mxu0 %v1219
      %1237 = vmatprep.subr.bf16.mxu0 0
      %1238 = vmatpush2.bf16.msra.mxu0 0
      %1239 = vmatprep.subr.bf16.mxu0 0
      %1240 = vmatpush2.bf16.msra.mxu0 0
      %1241 = vmatprep.subr.bf16.mxu0 0
      %1242 = vmatpush2.bf16.msra.mxu0 0
      %1243 = vmatprep.subr.bf16.mxu0 0
      %1244 = vmatpush2.bf16.msra.mxu0 0
      %1245 = vmatprep.subr.bf16.mxu0 0
      %1246 = vmatpush2.bf16.msra.mxu0 0
      %1247 = vmatprep.subr.bf16.mxu0 0
      %1248 = vmatpush2.bf16.msra.mxu0 0
      %1249 = vmatprep.subr.bf16.mxu0 0
      %1250 = vmatpush2.bf16.msra.mxu0 0
      %1251 = vmatprep.subr.bf16.mxu0 0
      %1252 = vmatpush2.bf16.msra.mxu0 0
      %1253 = vmatprep.mubr.bf16.mxu0 0
      %1254 = vmatmul.mubr.bf16.gmra.mxu0 %v1216
      %v1255 = vpop.f32.mrf.mxu0
      %v1256 = vadd.f32 0.0, %v1255
      %v1257 = vpop.f32.mrf.mxu0
      %v1258 = vpop.f32.mrf.mxu0
      %v1259 = vpop.f32.mrf.mxu0
      %1260 = vdwg.mxu0
      %v1261 = vadd.f32 %v1211, %v1256
      %1262 = vst.msk [vmem:[#allocation4 + $0x18] sm:$0xff] %vm311, %v1261
      %1263 = vst.msk [vmem:[#allocation2] sm:$0xff] %vm1203, %v1185
      %1264 = vrot.lane.b32.xlu0 %v1132, 64
      %v1265 = vpop.permute.xlu0 %1264
      %1266 = vrot.lane.b32.xlu0 %v1134, 64
      %v1267 = vpop.permute.xlu0 %1266
      %v1269 = vsel %vm311, %v1265, 0
      %v1272 = vsel %vm311, %v1267, 0
      %1274 = vmatprep.subr.bf16.mxu0 0
      %1275 = vmatpush1.bf16.xpose.msra.mxu0 0
      %1276 = vmatprep.subr.bf16.mxu0 0
      %1277 = vmatpush1.bf16.xpose.msra.mxu0 0
      %1278 = vmatprep.subr.bf16.mxu0 0
      %1279 = vmatpush1.bf16.xpose.msra.mxu0 0
      %1280 = vmatprep.subr.bf16.mxu0 0
      %1281 = vmatpush1.bf16.xpose.msra.mxu0 0
      %1282 = vmatprep.subr.bf16.mxu0 0
      %1283 = vmatpush1.bf16.xpose.msra.mxu0 0
      %1284 = vmatprep.subr.bf16.mxu0 0
      %1285 = vmatpush1.bf16.xpose.msra.mxu0 0
      %1286 = vmatprep.subr.bf16.mxu0 0
      %1287 = vmatpush1.bf16.xpose.msra.mxu0 0
      %1288 = vmatprep.subr.bf16.mxu0 0
      %1289 = vmatpush1.bf16.xpose.msra.mxu0 %v1272
      %1290 = vmatprep.subr.bf16.mxu0 0
      %1291 = vmatpush2.bf16.xpose.msra.mxu0 0
      %1292 = vmatprep.subr.bf16.mxu0 0
      %1293 = vmatpush2.bf16.xpose.msra.mxu0 0
      %1294 = vmatprep.subr.bf16.mxu0 0
      %1295 = vmatpush2.bf16.xpose.msra.mxu0 0
      %1296 = vmatprep.subr.bf16.mxu0 0
      %1297 = vmatpush2.bf16.xpose.msra.mxu0 0
      %1298 = vmatprep.subr.bf16.mxu0 0
      %1299 = vmatpush2.bf16.xpose.msra.mxu0 0
      %1300 = vmatprep.subr.bf16.mxu0 0
      %1301 = vmatpush2.bf16.xpose.msra.mxu0 0
      %1302 = vmatprep.subr.bf16.mxu0 0
      %1303 = vmatpush2.bf16.xpose.msra.mxu0 0
      %1304 = vmatprep.subr.bf16.mxu0 0
      %1305 = vmatpush2.bf16.xpose.msra.mxu0 0
      %1306 = vmatprep.mubr.bf16.mxu0 0
      %1307 = vmatmul.mubr.bf16.gmra.mxu0 %v1269
      %v1308 = vpop.f32.mrf.mxu0
      %v1309 = vadd.f32 0.0, %v1308
      %v1310 = vpop.f32.mrf.mxu0
      %v1311 = vpop.f32.mrf.mxu0
      %v1312 = vpop.f32.mrf.mxu0
      %1313 = vdwg.mxu0
      %v1314 = vld [vmem:[#allocation2] sm:$0xff]
      %v1315 = vsel %vm359, %v1309, -inf
      %1316 = vmax.xlane.f32.xlu0 %v1315
      %v1317 = vpop.xlane.xlu0 %1316
      %v1318 = vmax.f32 %v1314, %v1317
      %v1319 = vsub.f32 %v1314, %v1318
      %v1320 = vmul.f32 %v1319, 1.442695
      %v1321 = vpow.pop %v1320
      %1323 = vset.pattern.permute.xlu0 7
      %1324 = vperm.xlu0 %1323, %v1318
      %v1325 = vpop.permute.xlu0 %1324
      %v1327 = vsub.f32 %v1309, %v1325
      %v1328 = vmul.f32 %v1327, 1.442695
      %v1329 = vpow.pop %v1328
      %v1330 = vld [vmem:[#allocation3] sm:$0xff]
      %v1331 = vmul.f32 %v1321, %v1330
      %v1332 = vsel %vm359, %v1329, 0.0
      %1333 = vadd.xlane.f32.xlu0 %v1332
      %v1334 = vpop.xlane.xlu0 %1333
      %v1335 = vadd.f32 %v1331, %v1334
      %vm1336 = vcmask 64568
      %1337 = vst.msk [vmem:[#allocation3] sm:$0xff] %vm1336, %v1335
      %v1338 = vld [vmem:[#allocation4 + $0x18] sm:$0xff]
      %1340 = vset.pattern.permute.xlu0 7
      %1341 = vperm.xlu0 %1340, %v1321
      %v1342 = vpop.permute.xlu0 %1341
      %v1344 = vmul.f32 %v1342, %v1338
      %v1345 = vpack.c.bf16 %v1329, %v1329
      %1346 = vrot.lane.b32.xlu0 %v1214, 64
      %v1347 = vpop.permute.xlu0 %1346
      %v1349 = vsel %vm359, %v1345, 0
      %v1352 = vsel %vm394, %v1347, 0
      %1354 = vmatprep.subr.bf16.mxu0 0
      %1355 = vmatpush1.bf16.msra.mxu0 0
      %1356 = vmatprep.subr.bf16.mxu0 0
      %1357 = vmatpush1.bf16.msra.mxu0 0
      %1358 = vmatprep.subr.bf16.mxu0 0
      %1359 = vmatpush1.bf16.msra.mxu0 0
      %1360 = vmatprep.subr.bf16.mxu0 0
      %1361 = vmatpush1.bf16.msra.mxu0 0
      %1362 = vmatprep.subr.bf16.mxu0 0
      %1363 = vmatpush1.bf16.msra.mxu0 0
      %1364 = vmatprep.subr.bf16.mxu0 0
      %1365 = vmatpush1.bf16.msra.mxu0 0
      %1366 = vmatprep.subr.bf16.mxu0 0
      %1367 = vmatpush1.bf16.msra.mxu0 0
      %1368 = vmatprep.subr.bf16.mxu0 0
      %1369 = vmatpush1.bf16.msra.mxu0 %v1352
      %1370 = vmatprep.subr.bf16.mxu0 0
      %1371 = vmatpush2.bf16.msra.mxu0 0
      %1372 = vmatprep.subr.bf16.mxu0 0
      %1373 = vmatpush2.bf16.msra.mxu0 0
      %1374 = vmatprep.subr.bf16.mxu0 0
      %1375 = vmatpush2.bf16.msra.mxu0 0
      %1376 = vmatprep.subr.bf16.mxu0 0
      %1377 = vmatpush2.bf16.msra.mxu0 0
      %1378 = vmatprep.subr.bf16.mxu0 0
      %1379 = vmatpush2.bf16.msra.mxu0 0
      %1380 = vmatprep.subr.bf16.mxu0 0
      %1381 = vmatpush2.bf16.msra.mxu0 0
      %1382 = vmatprep.subr.bf16.mxu0 0
      %1383 = vmatpush2.bf16.msra.mxu0 0
      %1384 = vmatprep.subr.bf16.mxu0 0
      %1385 = vmatpush2.bf16.msra.mxu0 0
      %1386 = vmatprep.mubr.bf16.mxu0 0
      %1387 = vmatmul.mubr.bf16.gmra.mxu0 %v1349
      %v1388 = vpop.f32.mrf.mxu0
      %v1389 = vadd.f32 0.0, %v1388
      %v1390 = vpop.f32.mrf.mxu0
      %v1391 = vpop.f32.mrf.mxu0
      %v1392 = vpop.f32.mrf.mxu0
      %1393 = vdwg.mxu0
      %1395 = vrot.lane.b32.xlu0 %v1389, 64
      %v1396 = vpop.permute.xlu0 %1395
      %v1398 = vadd.f32 %v1344, %v1396
      %1399 = vst.msk [vmem:[#allocation4 + $0x18] sm:$0xff] %vm585, %v1398
      %1400 = vst.msk [vmem:[#allocation2] sm:$0xff] %vm1336, %v1318
      %v1402 = vsel %vm311, %v304, 0
      %v1405 = vsel %vm311, %v307, 0
      %1407 = vmatprep.subr.bf16.mxu0 0
      %1408 = vmatpush1.bf16.xpose.msra.mxu0 0
      %1409 = vmatprep.subr.bf16.mxu0 0
      %1410 = vmatpush1.bf16.xpose.msra.mxu0 0
      %1411 = vmatprep.subr.bf16.mxu0 0
      %1412 = vmatpush1.bf16.xpose.msra.mxu0 0
      %1413 = vmatprep.subr.bf16.mxu0 0
      %1414 = vmatpush1.bf16.xpose.msra.mxu0 0
      %1415 = vmatprep.subr.bf16.mxu0 0
      %1416 = vmatpush1.bf16.xpose.msra.mxu0 0
      %1417 = vmatprep.subr.bf16.mxu0 0
      %1418 = vmatpush1.bf16.xpose.msra.mxu0 0
      %1419 = vmatprep.subr.bf16.mxu0 0
      %1420 = vmatpush1.bf16.xpose.msra.mxu0 0
      %1421 = vmatprep.subr.bf16.mxu0 0
      %1422 = vmatpush1.bf16.xpose.msra.mxu0 %v1405
      %1423 = vmatprep.subr.bf16.mxu0 0
      %1424 = vmatpush2.bf16.xpose.msra.mxu0 0
      %1425 = vmatprep.subr.bf16.mxu0 0
      %1426 = vmatpush2.bf16.xpose.msra.mxu0 0
      %1427 = vmatprep.subr.bf16.mxu0 0
      %1428 = vmatpush2.bf16.xpose.msra.mxu0 0
      %1429 = vmatprep.subr.bf16.mxu0 0
      %1430 = vmatpush2.bf16.xpose.msra.mxu0 0
      %1431 = vmatprep.subr.bf16.mxu0 0
      %1432 = vmatpush2.bf16.xpose.msra.mxu0 0
      %1433 = vmatprep.subr.bf16.mxu0 0
      %1434 = vmatpush2.bf16.xpose.msra.mxu0 0
      %1435 = vmatprep.subr.bf16.mxu0 0
      %1436 = vmatpush2.bf16.xpose.msra.mxu0 0
      %1437 = vmatprep.subr.bf16.mxu0 0
      %1438 = vmatpush2.bf16.xpose.msra.mxu0 0
      %1439 = vmatprep.mubr.bf16.mxu0 0
      %1440 = vmatmul.mubr.bf16.gmra.mxu0 %v1402
      %v1441 = vpop.f32.mrf.mxu0
      %v1442 = vadd.f32 0.0, %v1441
      %v1443 = vpop.f32.mrf.mxu0
      %v1444 = vpop.f32.mrf.mxu0
      %v1445 = vpop.f32.mrf.mxu0
      %1446 = vdwg.mxu0
      %v1447 = vld [vmem:[#allocation2] sm:$0xff]
      %v1448 = vsel %vm359, %v1442, -inf
      %1449 = vmax.xlane.f32.xlu0 %v1448
      %v1450 = vpop.xlane.xlu0 %1449
      %v1451 = vmax.f32 %v1447, %v1450
      %v1452 = vsub.f32 %v1447, %v1451
      %v1453 = vmul.f32 %v1452, 1.442695
      %v1454 = vpow.pop %v1453
      %1456 = vset.pattern.permute.xlu0 8
      %1457 = vperm.xlu0 %1456, %v1451
      %v1458 = vpop.permute.xlu0 %1457
      %v1460 = vsub.f32 %v1442, %v1458
      %v1461 = vmul.f32 %v1460, 1.442695
      %v1462 = vpow.pop %v1461
      %v1463 = vld [vmem:[#allocation3] sm:$0xff]
      %v1464 = vmul.f32 %v1454, %v1463
      %v1465 = vsel %vm359, %v1462, 0.0
      %1466 = vadd.xlane.f32.xlu0 %v1465
      %v1467 = vpop.xlane.xlu0 %1466
      %v1468 = vadd.f32 %v1464, %v1467
      %vm1469 = vcmask 72768
      %1470 = vst.msk [vmem:[#allocation3] sm:$0xff] %vm1469, %v1468
      %v1471 = vld [vmem:[#allocation4 + $0x20] sm:$0xff]
      %1473 = vset.pattern.permute.xlu0 8
      %1474 = vperm.xlu0 %1473, %v1454
      %v1475 = vpop.permute.xlu0 %1474
      %v1477 = vmul.f32 %v1475, %v1471
      %v1478 = vpack.c.bf16 %v1462, %v1462
      %v1480 = vsel %vm359, %v1478, 0
      %v1483 = vsel %vm394, %v310, 0
      %1485 = vmatprep.subr.bf16.mxu0 0
      %1486 = vmatpush1.bf16.msra.mxu0 0
      %1487 = vmatprep.subr.bf16.mxu0 0
      %1488 = vmatpush1.bf16.msra.mxu0 0
      %1489 = vmatprep.subr.bf16.mxu0 0
      %1490 = vmatpush1.bf16.msra.mxu0 0
      %1491 = vmatprep.subr.bf16.mxu0 0
      %1492 = vmatpush1.bf16.msra.mxu0 0
      %1493 = vmatprep.subr.bf16.mxu0 0
      %1494 = vmatpush1.bf16.msra.mxu0 0
      %1495 = vmatprep.subr.bf16.mxu0 0
      %1496 = vmatpush1.bf16.msra.mxu0 0
      %1497 = vmatprep.subr.bf16.mxu0 0
      %1498 = vmatpush1.bf16.msra.mxu0 0
      %1499 = vmatprep.subr.bf16.mxu0 0
      %1500 = vmatpush1.bf16.msra.mxu0 %v1483
      %1501 = vmatprep.subr.bf16.mxu0 0
      %1502 = vmatpush2.bf16.msra.mxu0 0
      %1503 = vmatprep.subr.bf16.mxu0 0
      %1504 = vmatpush2.bf16.msra.mxu0 0
      %1505 = vmatprep.subr.bf16.mxu0 0
      %1506 = vmatpush2.bf16.msra.mxu0 0
      %1507 = vmatprep.subr.bf16.mxu0 0
      %1508 = vmatpush2.bf16.msra.mxu0 0
      %1509 = vmatprep.subr.bf16.mxu0 0
      %1510 = vmatpush2.bf16.msra.mxu0 0
      %1511 = vmatprep.subr.bf16.mxu0 0
      %1512 = vmatpush2.bf16.msra.mxu0 0
      %1513 = vmatprep.subr.bf16.mxu0 0
      %1514 = vmatpush2.bf16.msra.mxu0 0
      %1515 = vmatprep.subr.bf16.mxu0 0
      %1516 = vmatpush2.bf16.msra.mxu0 0
      %1517 = vmatprep.mubr.bf16.mxu0 0
      %1518 = vmatmul.mubr.bf16.gmra.mxu0 %v1480
      %v1519 = vpop.f32.mrf.mxu0
      %v1520 = vadd.f32 0.0, %v1519
      %v1521 = vpop.f32.mrf.mxu0
      %v1522 = vpop.f32.mrf.mxu0
      %v1523 = vpop.f32.mrf.mxu0
      %1524 = vdwg.mxu0
      %v1525 = vadd.f32 %v1477, %v1520
      %1526 = vst.msk [vmem:[#allocation4 + $0x20] sm:$0xff] %vm311, %v1525
      %1527 = vst.msk [vmem:[#allocation2] sm:$0xff] %vm1469, %v1451
      %v1529 = vunpack.c.l.b16 %v304
      %v1530 = vpack.c.b16 %v1529, %v1529
      %1531 = vrot.lane.b32.xlu0 %v1530, 64
      %v1532 = vpop.permute.xlu0 %1531
      %v1534 = vunpack.c.l.b16 %v307
      %v1535 = vpack.c.b16 %v1534, %v1534
      %1536 = vrot.lane.b32.xlu0 %v1535, 64
      %v1537 = vpop.permute.xlu0 %1536
      %v1539 = vsel %vm311, %v1532, 0
      %v1542 = vsel %vm311, %v1537, 0
      %1544 = vmatprep.subr.bf16.mxu0 0
      %1545 = vmatpush1.bf16.xpose.msra.mxu0 0
      %1546 = vmatprep.subr.bf16.mxu0 0
      %1547 = vmatpush1.bf16.xpose.msra.mxu0 0
      %1548 = vmatprep.subr.bf16.mxu0 0
      %1549 = vmatpush1.bf16.xpose.msra.mxu0 0
      %1550 = vmatprep.subr.bf16.mxu0 0
      %1551 = vmatpush1.bf16.xpose.msra.mxu0 0
      %1552 = vmatprep.subr.bf16.mxu0 0
      %1553 = vmatpush1.bf16.xpose.msra.mxu0 0
      %1554 = vmatprep.subr.bf16.mxu0 0
      %1555 = vmatpush1.bf16.xpose.msra.mxu0 0
      %1556 = vmatprep.subr.bf16.mxu0 0
      %1557 = vmatpush1.bf16.xpose.msra.mxu0 0
      %1558 = vmatprep.subr.bf16.mxu0 0
      %1559 = vmatpush1.bf16.xpose.msra.mxu0 %v1542
      %1560 = vmatprep.subr.bf16.mxu0 0
      %1561 = vmatpush2.bf16.xpose.msra.mxu0 0
      %1562 = vmatprep.subr.bf16.mxu0 0
      %1563 = vmatpush2.bf16.xpose.msra.mxu0 0
      %1564 = vmatprep.subr.bf16.mxu0 0
      %1565 = vmatpush2.bf16.xpose.msra.mxu0 0
      %1566 = vmatprep.subr.bf16.mxu0 0
      %1567 = vmatpush2.bf16.xpose.msra.mxu0 0
      %1568 = vmatprep.subr.bf16.mxu0 0
      %1569 = vmatpush2.bf16.xpose.msra.mxu0 0
      %1570 = vmatprep.subr.bf16.mxu0 0
      %1571 = vmatpush2.bf16.xpose.msra.mxu0 0
      %1572 = vmatprep.subr.bf16.mxu0 0
      %1573 = vmatpush2.bf16.xpose.msra.mxu0 0
      %1574 = vmatprep.subr.bf16.mxu0 0
      %1575 = vmatpush2.bf16.xpose.msra.mxu0 0
      %1576 = vmatprep.mubr.bf16.mxu0 0
      %1577 = vmatmul.mubr.bf16.gmra.mxu0 %v1539
      %v1578 = vpop.f32.mrf.mxu0
      %v1579 = vadd.f32 0.0, %v1578
      %v1580 = vpop.f32.mrf.mxu0
      %v1581 = vpop.f32.mrf.mxu0
      %v1582 = vpop.f32.mrf.mxu0
      %1583 = vdwg.mxu0
      %v1584 = vld [vmem:[#allocation2] sm:$0xff]
      %v1585 = vsel %vm359, %v1579, -inf
      %1586 = vmax.xlane.f32.xlu0 %v1585
      %v1587 = vpop.xlane.xlu0 %1586
      %v1588 = vmax.f32 %v1584, %v1587
      %v1589 = vsub.f32 %v1584, %v1588
      %v1590 = vmul.f32 %v1589, 1.442695
      %v1591 = vpow.pop %v1590
      %1593 = vset.pattern.permute.xlu0 9
      %1594 = vperm.xlu0 %1593, %v1588
      %v1595 = vpop.permute.xlu0 %1594
      %v1597 = vsub.f32 %v1579, %v1595
      %v1598 = vmul.f32 %v1597, 1.442695
      %v1599 = vpow.pop %v1598
      %v1600 = vld [vmem:[#allocation3] sm:$0xff]
      %v1601 = vmul.f32 %v1591, %v1600
      %v1602 = vsel %vm359, %v1599, 0.0
      %1603 = vadd.xlane.f32.xlu0 %v1602
      %v1604 = vpop.xlane.xlu0 %1603
      %v1605 = vadd.f32 %v1601, %v1604
      %vm1606 = vcmask 80968
      %1607 = vst.msk [vmem:[#allocation3] sm:$0xff] %vm1606, %v1605
      %v1608 = vld [vmem:[#allocation4 + $0x20] sm:$0xff]
      %1610 = vset.pattern.permute.xlu0 9
      %1611 = vperm.xlu0 %1610, %v1591
      %v1612 = vpop.permute.xlu0 %1611
      %v1614 = vmul.f32 %v1612, %v1608
      %v1615 = vpack.c.bf16 %v1599, %v1599
      %v1617 = vunpack.c.l.b16 %v310
      %v1618 = vpack.c.b16 %v1617, %v1617
      %1619 = vrot.lane.b32.xlu0 %v1618, 64
      %v1620 = vpop.permute.xlu0 %1619
      %v1622 = vsel %vm359, %v1615, 0
      %v1625 = vsel %vm394, %v1620, 0
      %1627 = vmatprep.subr.bf16.mxu0 0
      %1628 = vmatpush1.bf16.msra.mxu0 0
      %1629 = vmatprep.subr.bf16.mxu0 0
      %1630 = vmatpush1.bf16.msra.mxu0 0
      %1631 = vmatprep.subr.bf16.mxu0 0
      %1632 = vmatpush1.bf16.msra.mxu0 0
      %1633 = vmatprep.subr.bf16.mxu0 0
      %1634 = vmatpush1.bf16.msra.mxu0 0
      %1635 = vmatprep.subr.bf16.mxu0 0
      %1636 = vmatpush1.bf16.msra.mxu0 0
      %1637 = vmatprep.subr.bf16.mxu0 0
      %1638 = vmatpush1.bf16.msra.mxu0 0
      %1639 = vmatprep.subr.bf16.mxu0 0
      %1640 = vmatpush1.bf16.msra.mxu0 0
      %1641 = vmatprep.subr.bf16.mxu0 0
      %1642 = vmatpush1.bf16.msra.mxu0 %v1625
      %1643 = vmatprep.subr.bf16.mxu0 0
      %1644 = vmatpush2.bf16.msra.mxu0 0
      %1645 = vmatprep.subr.bf16.mxu0 0
      %1646 = vmatpush2.bf16.msra.mxu0 0
      %1647 = vmatprep.subr.bf16.mxu0 0
      %1648 = vmatpush2.bf16.msra.mxu0 0
      %1649 = vmatprep.subr.bf16.mxu0 0
      %1650 = vmatpush2.bf16.msra.mxu0 0
      %1651 = vmatprep.subr.bf16.mxu0 0
      %1652 = vmatpush2.bf16.msra.mxu0 0
      %1653 = vmatprep.subr.bf16.mxu0 0
      %1654 = vmatpush2.bf16.msra.mxu0 0
      %1655 = vmatprep.subr.bf16.mxu0 0
      %1656 = vmatpush2.bf16.msra.mxu0 0
      %1657 = vmatprep.subr.bf16.mxu0 0
      %1658 = vmatpush2.bf16.msra.mxu0 0
      %1659 = vmatprep.mubr.bf16.mxu0 0
      %1660 = vmatmul.mubr.bf16.gmra.mxu0 %v1622
      %v1661 = vpop.f32.mrf.mxu0
      %v1662 = vadd.f32 0.0, %v1661
      %v1663 = vpop.f32.mrf.mxu0
      %v1664 = vpop.f32.mrf.mxu0
      %v1665 = vpop.f32.mrf.mxu0
      %1666 = vdwg.mxu0
      %1668 = vrot.lane.b32.xlu0 %v1662, 64
      %v1669 = vpop.permute.xlu0 %1668
      %v1671 = vadd.f32 %v1614, %v1669
      %1672 = vst.msk [vmem:[#allocation4 + $0x20] sm:$0xff] %vm585, %v1671
      %1673 = vst.msk [vmem:[#allocation2] sm:$0xff] %vm1606, %v1588
      %v1674 = vunpack.c.h.b16 %v304
      %v1675 = vpack.c.b16 %v1674, %v1674
      %v1676 = vunpack.c.h.b16 %v307
      %v1677 = vpack.c.b16 %v1676, %v1676
      %v1679 = vsel %vm311, %v1675, 0
      %v1682 = vsel %vm311, %v1677, 0
      %1684 = vmatprep.subr.bf16.mxu0 0
      %1685 = vmatpush1.bf16.xpose.msra.mxu0 0
      %1686 = vmatprep.subr.bf16.mxu0 0
      %1687 = vmatpush1.bf16.xpose.msra.mxu0 0
      %1688 = vmatprep.subr.bf16.mxu0 0
      %1689 = vmatpush1.bf16.xpose.msra.mxu0 0
      %1690 = vmatprep.subr.bf16.mxu0 0
      %1691 = vmatpush1.bf16.xpose.msra.mxu0 0
      %1692 = vmatprep.subr.bf16.mxu0 0
      %1693 = vmatpush1.bf16.xpose.msra.mxu0 0
      %1694 = vmatprep.subr.bf16.mxu0 0
      %1695 = vmatpush1.bf16.xpose.msra.mxu0 0
      %1696 = vmatprep.subr.bf16.mxu0 0
      %1697 = vmatpush1.bf16.xpose.msra.mxu0 0
      %1698 = vmatprep.subr.bf16.mxu0 0
      %1699 = vmatpush1.bf16.xpose.msra.mxu0 %v1682
      %1700 = vmatprep.subr.bf16.mxu0 0
      %1701 = vmatpush2.bf16.xpose.msra.mxu0 0
      %1702 = vmatprep.subr.bf16.mxu0 0
      %1703 = vmatpush2.bf16.xpose.msra.mxu0 0
      %1704 = vmatprep.subr.bf16.mxu0 0
      %1705 = vmatpush2.bf16.xpose.msra.mxu0 0
      %1706 = vmatprep.subr.bf16.mxu0 0
      %1707 = vmatpush2.bf16.xpose.msra.mxu0 0
      %1708 = vmatprep.subr.bf16.mxu0 0
      %1709 = vmatpush2.bf16.xpose.msra.mxu0 0
      %1710 = vmatprep.subr.bf16.mxu0 0
      %1711 = vmatpush2.bf16.xpose.msra.mxu0 0
      %1712 = vmatprep.subr.bf16.mxu0 0
      %1713 = vmatpush2.bf16.xpose.msra.mxu0 0
      %1714 = vmatprep.subr.bf16.mxu0 0
      %1715 = vmatpush2.bf16.xpose.msra.mxu0 0
      %1716 = vmatprep.mubr.bf16.mxu0 0
      %1717 = vmatmul.mubr.bf16.gmra.mxu0 %v1679
      %v1718 = vpop.f32.mrf.mxu0
      %v1719 = vadd.f32 0.0, %v1718
      %v1720 = vpop.f32.mrf.mxu0
      %v1721 = vpop.f32.mrf.mxu0
      %v1722 = vpop.f32.mrf.mxu0
      %1723 = vdwg.mxu0
      %v1724 = vld [vmem:[#allocation2] sm:$0xff]
      %v1725 = vsel %vm359, %v1719, -inf
      %1726 = vmax.xlane.f32.xlu0 %v1725
      %v1727 = vpop.xlane.xlu0 %1726
      %v1728 = vmax.f32 %v1724, %v1727
      %v1729 = vsub.f32 %v1724, %v1728
      %v1730 = vmul.f32 %v1729, 1.442695
      %v1731 = vpow.pop %v1730
      %1733 = vset.pattern.permute.xlu0 10
      %1734 = vperm.xlu0 %1733, %v1728
      %v1735 = vpop.permute.xlu0 %1734
      %v1737 = vsub.f32 %v1719, %v1735
      %v1738 = vmul.f32 %v1737, 1.442695
      %v1739 = vpow.pop %v1738
      %v1740 = vld [vmem:[#allocation3] sm:$0xff]
      %v1741 = vmul.f32 %v1731, %v1740
      %v1742 = vsel %vm359, %v1739, 0.0
      %1743 = vadd.xlane.f32.xlu0 %v1742
      %v1744 = vpop.xlane.xlu0 %1743
      %v1745 = vadd.f32 %v1741, %v1744
      %vm1746 = vcmask 89168
      %1747 = vst.msk [vmem:[#allocation3] sm:$0xff] %vm1746, %v1745
      %v1748 = vld [vmem:[#allocation4 + $0x28] sm:$0xff]
      %1750 = vset.pattern.permute.xlu0 10
      %1751 = vperm.xlu0 %1750, %v1731
      %v1752 = vpop.permute.xlu0 %1751
      %v1754 = vmul.f32 %v1752, %v1748
      %v1755 = vpack.c.bf16 %v1739, %v1739
      %v1756 = vunpack.c.h.b16 %v310
      %v1757 = vpack.c.b16 %v1756, %v1756
      %v1759 = vsel %vm359, %v1755, 0
      %v1762 = vsel %vm394, %v1757, 0
      %1764 = vmatprep.subr.bf16.mxu0 0
      %1765 = vmatpush1.bf16.msra.mxu0 0
      %1766 = vmatprep.subr.bf16.mxu0 0
      %1767 = vmatpush1.bf16.msra.mxu0 0
      %1768 = vmatprep.subr.bf16.mxu0 0
      %1769 = vmatpush1.bf16.msra.mxu0 0
      %1770 = vmatprep.subr.bf16.mxu0 0
      %1771 = vmatpush1.bf16.msra.mxu0 0
      %1772 = vmatprep.subr.bf16.mxu0 0
      %1773 = vmatpush1.bf16.msra.mxu0 0
      %1774 = vmatprep.subr.bf16.mxu0 0
      %1775 = vmatpush1.bf16.msra.mxu0 0
      %1776 = vmatprep.subr.bf16.mxu0 0
      %1777 = vmatpush1.bf16.msra.mxu0 0
      %1778 = vmatprep.subr.bf16.mxu0 0
      %1779 = vmatpush1.bf16.msra.mxu0 %v1762
      %1780 = vmatprep.subr.bf16.mxu0 0
      %1781 = vmatpush2.bf16.msra.mxu0 0
      %1782 = vmatprep.subr.bf16.mxu0 0
      %1783 = vmatpush2.bf16.msra.mxu0 0
      %1784 = vmatprep.subr.bf16.mxu0 0
      %1785 = vmatpush2.bf16.msra.mxu0 0
      %1786 = vmatprep.subr.bf16.mxu0 0
      %1787 = vmatpush2.bf16.msra.mxu0 0
      %1788 = vmatprep.subr.bf16.mxu0 0
      %1789 = vmatpush2.bf16.msra.mxu0 0
      %1790 = vmatprep.subr.bf16.mxu0 0
      %1791 = vmatpush2.bf16.msra.mxu0 0
      %1792 = vmatprep.subr.bf16.mxu0 0
      %1793 = vmatpush2.bf16.msra.mxu0 0
      %1794 = vmatprep.subr.bf16.mxu0 0
      %1795 = vmatpush2.bf16.msra.mxu0 0
      %1796 = vmatprep.mubr.bf16.mxu0 0
      %1797 = vmatmul.mubr.bf16.gmra.mxu0 %v1759
      %v1798 = vpop.f32.mrf.mxu0
      %v1799 = vadd.f32 0.0, %v1798
      %v1800 = vpop.f32.mrf.mxu0
      %v1801 = vpop.f32.mrf.mxu0
      %v1802 = vpop.f32.mrf.mxu0
      %1803 = vdwg.mxu0
      %v1804 = vadd.f32 %v1754, %v1799
      %1805 = vst.msk [vmem:[#allocation4 + $0x28] sm:$0xff] %vm311, %v1804
      %1806 = vst.msk [vmem:[#allocation2] sm:$0xff] %vm1746, %v1728
      %1807 = vrot.lane.b32.xlu0 %v1675, 64
      %v1808 = vpop.permute.xlu0 %1807
      %1809 = vrot.lane.b32.xlu0 %v1677, 64
      %v1810 = vpop.permute.xlu0 %1809
      %v1812 = vsel %vm311, %v1808, 0
      %v1815 = vsel %vm311, %v1810, 0
      %1817 = vmatprep.subr.bf16.mxu0 0
      %1818 = vmatpush1.bf16.xpose.msra.mxu0 0
      %1819 = vmatprep.subr.bf16.mxu0 0
      %1820 = vmatpush1.bf16.xpose.msra.mxu0 0
      %1821 = vmatprep.subr.bf16.mxu0 0
      %1822 = vmatpush1.bf16.xpose.msra.mxu0 0
      %1823 = vmatprep.subr.bf16.mxu0 0
      %1824 = vmatpush1.bf16.xpose.msra.mxu0 0
      %1825 = vmatprep.subr.bf16.mxu0 0
      %1826 = vmatpush1.bf16.xpose.msra.mxu0 0
      %1827 = vmatprep.subr.bf16.mxu0 0
      %1828 = vmatpush1.bf16.xpose.msra.mxu0 0
      %1829 = vmatprep.subr.bf16.mxu0 0
      %1830 = vmatpush1.bf16.xpose.msra.mxu0 0
      %1831 = vmatprep.subr.bf16.mxu0 0
      %1832 = vmatpush1.bf16.xpose.msra.mxu0 %v1815
      %1833 = vmatprep.subr.bf16.mxu0 0
      %1834 = vmatpush2.bf16.xpose.msra.mxu0 0
      %1835 = vmatprep.subr.bf16.mxu0 0
      %1836 = vmatpush2.bf16.xpose.msra.mxu0 0
      %1837 = vmatprep.subr.bf16.mxu0 0
      %1838 = vmatpush2.bf16.xpose.msra.mxu0 0
      %1839 = vmatprep.subr.bf16.mxu0 0
      %1840 = vmatpush2.bf16.xpose.msra.mxu0 0
      %1841 = vmatprep.subr.bf16.mxu0 0
      %1842 = vmatpush2.bf16.xpose.msra.mxu0 0
      %1843 = vmatprep.subr.bf16.mxu0 0
      %1844 = vmatpush2.bf16.xpose.msra.mxu0 0
      %1845 = vmatprep.subr.bf16.mxu0 0
      %1846 = vmatpush2.bf16.xpose.msra.mxu0 0
      %1847 = vmatprep.subr.bf16.mxu0 0
      %1848 = vmatpush2.bf16.xpose.msra.mxu0 0
      %1849 = vmatprep.mubr.bf16.mxu0 0
      %1850 = vmatmul.mubr.bf16.gmra.mxu0 %v1812
      %v1851 = vpop.f32.mrf.mxu0
      %v1852 = vadd.f32 0.0, %v1851
      %v1853 = vpop.f32.mrf.mxu0
      %v1854 = vpop.f32.mrf.mxu0
      %v1855 = vpop.f32.mrf.mxu0
      %1856 = vdwg.mxu0
      %v1857 = vld [vmem:[#allocation2] sm:$0xff]
      %v1858 = vsel %vm359, %v1852, -inf
      %1859 = vmax.xlane.f32.xlu0 %v1858
      %v1860 = vpop.xlane.xlu0 %1859
      %v1861 = vmax.f32 %v1857, %v1860
      %v1862 = vsub.f32 %v1857, %v1861
      %v1863 = vmul.f32 %v1862, 1.442695
      %v1864 = vpow.pop %v1863
      %1866 = vset.pattern.permute.xlu0 11
      %1867 = vperm.xlu0 %1866, %v1861
      %v1868 = vpop.permute.xlu0 %1867
      %v1870 = vsub.f32 %v1852, %v1868
      %v1871 = vmul.f32 %v1870, 1.442695
      %v1872 = vpow.pop %v1871
      %v1873 = vld [vmem:[#allocation3] sm:$0xff]
      %v1874 = vmul.f32 %v1864, %v1873
      %v1875 = vsel %vm359, %v1872, 0.0
      %1876 = vadd.xlane.f32.xlu0 %v1875
      %v1877 = vpop.xlane.xlu0 %1876
      %v1878 = vadd.f32 %v1874, %v1877
      %vm1879 = vcmask 97368
      %1880 = vst.msk [vmem:[#allocation3] sm:$0xff] %vm1879, %v1878
      %v1881 = vld [vmem:[#allocation4 + $0x28] sm:$0xff]
      %1883 = vset.pattern.permute.xlu0 11
      %1884 = vperm.xlu0 %1883, %v1864
      %v1885 = vpop.permute.xlu0 %1884
      %v1887 = vmul.f32 %v1885, %v1881
      %v1888 = vpack.c.bf16 %v1872, %v1872
      %1889 = vrot.lane.b32.xlu0 %v1757, 64
      %v1890 = vpop.permute.xlu0 %1889
      %v1892 = vsel %vm359, %v1888, 0
      %v1895 = vsel %vm394, %v1890, 0
      %1897 = vmatprep.subr.bf16.mxu0 0
      %1898 = vmatpush1.bf16.msra.mxu0 0
      %1899 = vmatprep.subr.bf16.mxu0 0
      %1900 = vmatpush1.bf16.msra.mxu0 0
      %1901 = vmatprep.subr.bf16.mxu0 0
      %1902 = vmatpush1.bf16.msra.mxu0 0
      %1903 = vmatprep.subr.bf16.mxu0 0
      %1904 = vmatpush1.bf16.msra.mxu0 0
      %1905 = vmatprep.subr.bf16.mxu0 0
      %1906 = vmatpush1.bf16.msra.mxu0 0
      %1907 = vmatprep.subr.bf16.mxu0 0
      %1908 = vmatpush1.bf16.msra.mxu0 0
      %1909 = vmatprep.subr.bf16.mxu0 0
      %1910 = vmatpush1.bf16.msra.mxu0 0
      %1911 = vmatprep.subr.bf16.mxu0 0
      %1912 = vmatpush1.bf16.msra.mxu0 %v1895
      %1913 = vmatprep.subr.bf16.mxu0 0
      %1914 = vmatpush2.bf16.msra.mxu0 0
      %1915 = vmatprep.subr.bf16.mxu0 0
      %1916 = vmatpush2.bf16.msra.mxu0 0
      %1917 = vmatprep.subr.bf16.mxu0 0
      %1918 = vmatpush2.bf16.msra.mxu0 0
      %1919 = vmatprep.subr.bf16.mxu0 0
      %1920 = vmatpush2.bf16.msra.mxu0 0
      %1921 = vmatprep.subr.bf16.mxu0 0
      %1922 = vmatpush2.bf16.msra.mxu0 0
      %1923 = vmatprep.subr.bf16.mxu0 0
      %1924 = vmatpush2.bf16.msra.mxu0 0
      %1925 = vmatprep.subr.bf16.mxu0 0
      %1926 = vmatpush2.bf16.msra.mxu0 0
      %1927 = vmatprep.subr.bf16.mxu0 0
      %1928 = vmatpush2.bf16.msra.mxu0 0
      %1929 = vmatprep.mubr.bf16.mxu0 0
      %1930 = vmatmul.mubr.bf16.gmra.mxu0 %v1892
      %v1931 = vpop.f32.mrf.mxu0
      %v1932 = vadd.f32 0.0, %v1931
      %v1933 = vpop.f32.mrf.mxu0
      %v1934 = vpop.f32.mrf.mxu0
      %v1935 = vpop.f32.mrf.mxu0
      %1936 = vdwg.mxu0
      %1938 = vrot.lane.b32.xlu0 %v1932, 64
      %v1939 = vpop.permute.xlu0 %1938
      %v1941 = vadd.f32 %v1887, %v1939
      %1942 = vst.msk [vmem:[#allocation4 + $0x28] sm:$0xff] %vm585, %v1941
      %1943 = vst.msk [vmem:[#allocation2] sm:$0xff] %vm1879, %v1861
      // Predicated region
      $region37: #{attention_forward.4} parent=31 // pred_check
        %p1944 = pneg %p289
      $region38: #{attention_forward.4} parent=31 // pred_check_branch
        %1946 = sbr.rel (%p1944) target = $region40
      $region39: #{attention_forward.4} parent=31 // pred_region
        %v1947 = vld [vmem:[#allocation3] sm:$0xff]
        %v1948 = vrcp.pop %v1947
        %v1949 = vld [vmem:[#allocation4] sm:$0xff]
        %1951 = vset.pattern.permute.xlu0 0
        %1952 = vperm.xlu0 %1951, %v1948
        %v1953 = vpop.permute.xlu0 %1952
        %v1955 = vmul.f32 %v1949, %v1953
        %1956 = vset.pattern.permute.xlu0 1
        %1957 = vperm.xlu0 %1956, %v1948
        %v1958 = vpop.permute.xlu0 %1957
        %v1960 = vmul.f32 %v1949, %v1958
        %v1961 = vld [vmem:[#allocation4 + $0x8] sm:$0xff]
        %1962 = vset.pattern.permute.xlu0 2
        %1963 = vperm.xlu0 %1962, %v1948
        %v1964 = vpop.permute.xlu0 %1963
        %v1966 = vmul.f32 %v1961, %v1964
        %1967 = vset.pattern.permute.xlu0 3
        %1968 = vperm.xlu0 %1967, %v1948
        %v1969 = vpop.permute.xlu0 %1968
        %v1971 = vmul.f32 %v1961, %v1969
        %v1972 = vld [vmem:[#allocation4 + $0x10] sm:$0xff]
        %1973 = vset.pattern.permute.xlu0 4
        %1974 = vperm.xlu0 %1973, %v1948
        %v1975 = vpop.permute.xlu0 %1974
        %v1977 = vmul.f32 %v1972, %v1975
        %1978 = vset.pattern.permute.xlu0 5
        %1979 = vperm.xlu0 %1978, %v1948
        %v1980 = vpop.permute.xlu0 %1979
        %v1982 = vmul.f32 %v1972, %v1980
        %v1983 = vld [vmem:[#allocation4 + $0x18] sm:$0xff]
        %1984 = vset.pattern.permute.xlu0 6
        %1985 = vperm.xlu0 %1984, %v1948
        %v1986 = vpop.permute.xlu0 %1985
        %v1988 = vmul.f32 %v1983, %v1986
        %1989 = vset.pattern.permute.xlu0 7
        %1990 = vperm.xlu0 %1989, %v1948
        %v1991 = vpop.permute.xlu0 %1990
        %v1993 = vmul.f32 %v1983, %v1991
        %v1994 = vld [vmem:[#allocation4 + $0x20] sm:$0xff]
        %1995 = vset.pattern.permute.xlu0 8
        %1996 = vperm.xlu0 %1995, %v1948
        %v1997 = vpop.permute.xlu0 %1996
        %v1999 = vmul.f32 %v1994, %v1997
        %2000 = vset.pattern.permute.xlu0 9
        %2001 = vperm.xlu0 %2000, %v1948
        %v2002 = vpop.permute.xlu0 %2001
        %v2004 = vmul.f32 %v1994, %v2002
        %v2005 = vld [vmem:[#allocation4 + $0x28] sm:$0xff]
        %2006 = vset.pattern.permute.xlu0 10
        %2007 = vperm.xlu0 %2006, %v1948
        %v2008 = vpop.permute.xlu0 %2007
        %v2010 = vmul.f32 %v2005, %v2008
        %2011 = vset.pattern.permute.xlu0 11
        %2012 = vperm.xlu0 %2011, %v1948
        %v2013 = vpop.permute.xlu0 %2012
        %v2015 = vmul.f32 %v2005, %v2013
        %v2016 = vsel %vm311, %v1955, %v1960
        %v2017 = vsel %vm311, %v1966, %v1971
        %v2018 = vsel %vm311, %v1977, %v1982
        %v2019 = vsel %vm311, %v1988, %v1993
        %v2020 = vsel %vm311, %v1999, %v2004
        %v2021 = vsel %vm311, %v2010, %v2015
        %v2022 = vpack.c.bf16 %v2016, %v2016
        %v2023 = vpack.c.bf16 %v2017, %v2017
        %v2024 = vpack.c.bf16 %v2018, %v2018
        %v2025 = vpack.c.bf16 %v2019, %v2019
        %v2026 = vpack.c.bf16 %v2020, %v2020
        %v2027 = vpack.c.bf16 %v2021, %v2021
        %v2034 = vunpack.c.l.b16 %v2022
        %v2035 = vunpack.c.l.b16 %v2023
        %v2036 = vunpack.c.l.b16 %v2024
        %v2037 = vunpack.c.l.b16 %v2025
        %v2038 = vunpack.c.l.b16 %v2026
        %v2039 = vunpack.c.l.b16 %v2027
        %v2040 = vpack.c.b16 %v2035, %v2034
        %v2041 = vpack.c.b16 %v2037, %v2036
        %v2042 = vpack.c.b16 %v2039, %v2038
        %2046 = vst [vmem:[%s287] sm:$0xff] %v2040
        %2047 = vst [vmem:[%s287 + $0x8] sm:$0xff] %v2041
        %2048 = vst [vmem:[%s287 + $0x10] sm:$0xff] %v2042
      $region40: #{attention_forward.4} parent=31 // pred_fallthru
        _
      %p2049 = scmp.lt.s32.totalorder %s19, 1
      %s2050 = scalar_select %p2049, %s19, 1
      %p2051 = scmp.lt.s32.totalorder %s20, 0
      %s2052 = scalar_select %p2051, %s20, 0
      %s2053 = smul.addr %s2052, 6
      %s2054 = smul.addr %s2050, 6
      %s2055 = sadd.s32 %s2053, %s2054
      %s2056 = smul.addr %s2055, 4
      %s2057 = scalar_lea.vmem %s3, %s2056
      // Predicated region
      $region41: #{attention_forward.4} parent=31 // pred_check
        %p2058 = pneg %p137
      $region42: #{attention_forward.4} parent=31 // pred_check_branch
        %2060 = sbr.rel (%p2058) target = $region44
      $region43: #{attention_forward.4} parent=31 // pred_region
        _
      $region44: #{attention_forward.4} parent=31 // pred_fallthru
        _
    $region32: #{attention_forward.4} parent=5 // pred_fallthru
      _
    %p2061 = scmp.le.s32.totalorder 2, %s9
    // Predicated region
    $region45: #{attention_forward.4} parent=5 // pred_check
      %p2062 = pneg %p2061
    $region46: #{attention_forward.4} parent=5 // pred_check_branch
      %2064 = sbr.rel (%p2062) target = $region48
    $region47: #{attention_forward.4} parent=5 // pred_region
      %s2065 = ssub.s32 %s9, 2
      // Predicated region
      $region49: #{attention_forward.4} parent=47 // pred_check
        %p2066 = pneg %p143
      $region50: #{attention_forward.4} parent=47 // pred_check_branch
        %2068 = sbr.rel (%p2066) target = $region52
      $region51: #{attention_forward.4} parent=47 // pred_region
        %p2069 = scmp.lt.s32.totalorder %s22, 1
        %s2070 = scalar_select %p2069, %s22, 1
        %p2071 = scmp.lt.s32.totalorder %s23, 0
        %s2072 = scalar_select %p2071, %s23, 0
        %s2073 = smul.addr %s2072, 6
        %s2074 = smul.addr %s2070, 6
        %s2075 = sadd.s32 %s2073, %s2074
        %s2076 = smul.addr %s2075, 4
        %s2077 = scalar_lea.vmem %s3, %s2076
      $region52: #{attention_forward.4} parent=47 // pred_fallthru
        _
    $region48: #{attention_forward.4} parent=5 // pred_fallthru
      _
  $region6: #{attention_forward.4} parent=0 // loop_footer
    %s13 = sadd.s32 1, %s9
  $region7: #{attention_forward.4} parent=0 // loop_footer_branch
    %8 = sbr.rel target = $region3
  $region8: #{attention_forward.4} parent=0 // loop_exit
    _

// kernel: attention_forward.5
$region0: #{attention_forward.5}
  #allocation0 [shape = 'u32[]', space=smem, size = 0x4, offset = 0x4, fixed_abs, tag = 'smem constant byte address 0x4 - core index']
  #allocation1 [shape = 'u32[144,128]{1,0:T(1,128)}', space=vmem, size = 0x12000, scoped, tag = 'internal scratch']
  %s0 = inlined_call_operand.vmem [shape: bf16[16,768], index: 0, kind: input, shape index: {}]
  %s1 = inlined_call_operand.vmem [shape: bf16[768,768], index: 1, kind: input, shape index: {}]
  %s2 = inlined_call_operand.vmem [shape: f32[1,768], index: 2, kind: input, shape index: {}]
  %s3 = inlined_call_operand.hbm [shape: f32[16,768], index: 3, kind: output, shape index: {}]
  %s4 = sld [smem:[#allocation0]]
  $region22: #{attention_forward.5} parent=0
    _
  %s6 = ssub.s32 1, %s4
  %s7 = scalar_select 0, %s6, %s4
  $region1: #{attention_forward.5} parent=0
    #allocation2 [shape = 'u8[49152]{0}', space=vmem, size = 0xc000, scoped, tag = 'output window, operand 0, single buffered']
    #allocation3 [shape = 's32[1]{0}', space=sflag, size = 0x4, scoped, tag = 'scoped memory for attention_forward.5']
    %8 = vsyncpa [#allocation3], 0
    // Predicated region
    $region2: #{attention_forward.5} parent=1 // pred_check
      _
    $region3: #{attention_forward.5} parent=1 // pred_check_branch
      %10 = sbr.rel (0) target = $region5
    $region4: #{attention_forward.5} parent=1 // pred_region
      _
    $region5: #{attention_forward.5} parent=1 // pred_fallthru
      _
    // Predicated region
    $region6: #{attention_forward.5} parent=1 // pred_check
      _
    $region7: #{attention_forward.5} parent=1 // pred_check_branch
      %12 = sbr.rel (0) target = $region9
    $region8: #{attention_forward.5} parent=1 // pred_region
      _
    $region9: #{attention_forward.5} parent=1 // pred_fallthru
      _
    // Predicated region
    $region10: #{attention_forward.5} parent=1 // pred_check
      _
    $region11: #{attention_forward.5} parent=1 // pred_check_branch
      %14 = sbr.rel (0) target = $region13
    $region12: #{attention_forward.5} parent=1 // pred_region
      _
    $region13: #{attention_forward.5} parent=1 // pred_fallthru
      _
    %v15 = vld [vmem:[%s0] sm:$0xff]
    %v16 = vld [vmem:[%s0 + $0x8] sm:$0xff]
    %v17 = vld [vmem:[%s0 + $0x10] sm:$0xff]
    %v18 = vld [vmem:[%s0 + $0x18] sm:$0xff]
    %v19 = vld [vmem:[%s0 + $0x20] sm:$0xff]
    %v20 = vld [vmem:[%s0 + $0x28] sm:$0xff]
    %v21 = vld [vmem:[%s1] sm:$0xff]
    %v22 = vld [vmem:[%s1 + $0x8] sm:$0xff]
    %v23 = vld [vmem:[%s1 + $0x10] sm:$0xff]
    %v24 = vld [vmem:[%s1 + $0x18] sm:$0xff]
    %v25 = vld [vmem:[%s1 + $0x20] sm:$0xff]
    %v26 = vld [vmem:[%s1 + $0x28] sm:$0xff]
    %v27 = vld [vmem:[%s1 + $0x30] sm:$0xff]
    %v28 = vld [vmem:[%s1 + $0x38] sm:$0xff]
    %v29 = vld [vmem:[%s1 + $0x40] sm:$0xff]
    %v30 = vld [vmem:[%s1 + $0x48] sm:$0xff]
    %v31 = vld [vmem:[%s1 + $0x50] sm:$0xff]
    %v32 = vld [vmem:[%s1 + $0x58] sm:$0xff]
    %v33 = vld [vmem:[%s1 + $0x60] sm:$0xff]
    %v34 = vld [vmem:[%s1 + $0x68] sm:$0xff]
    %v35 = vld [vmem:[%s1 + $0x70] sm:$0xff]
    %v36 = vld [vmem:[%s1 + $0x78] sm:$0xff]
    %v37 = vld [vmem:[%s1 + $0x80] sm:$0xff]
    %v38 = vld [vmem:[%s1 + $0x88] sm:$0xff]
    %v39 = vld [vmem:[%s1 + $0x90] sm:$0xff]
    %v40 = vld [vmem:[%s1 + $0x98] sm:$0xff]
    %v41 = vld [vmem:[%s1 + $0xa0] sm:$0xff]
    %v42 = vld [vmem:[%s1 + $0xa8] sm:$0xff]
    %v43 = vld [vmem:[%s1 + $0xb0] sm:$0xff]
    %v44 = vld [vmem:[%s1 + $0xb8] sm:$0xff]
    %v45 = vld [vmem:[%s1 + $0xc0] sm:$0xff]
    %v46 = vld [vmem:[%s1 + $0xc8] sm:$0xff]
    %v47 = vld [vmem:[%s1 + $0xd0] sm:$0xff]
    %v48 = vld [vmem:[%s1 + $0xd8] sm:$0xff]
    %v49 = vld [vmem:[%s1 + $0xe0] sm:$0xff]
    %v50 = vld [vmem:[%s1 + $0xe8] sm:$0xff]
    %v51 = vld [vmem:[%s1 + $0xf0] sm:$0xff]
    %v52 = vld [vmem:[%s1 + $0xf8] sm:$0xff]
    %v53 = vld [vmem:[%s1 + $0x100] sm:$0xff]
    %v54 = vld [vmem:[%s1 + $0x108] sm:$0xff]
    %v55 = vld [vmem:[%s1 + $0x110] sm:$0xff]
    %v56 = vld [vmem:[%s1 + $0x118] sm:$0xff]
    %v57 = vld [vmem:[%s1 + $0x120] sm:$0xff]
    %v58 = vld [vmem:[%s1 + $0x128] sm:$0xff]
    %v59 = vld [vmem:[%s1 + $0x130] sm:$0xff]
    %v60 = vld [vmem:[%s1 + $0x138] sm:$0xff]
    %v61 = vld [vmem:[%s1 + $0x140] sm:$0xff]
    %v62 = vld [vmem:[%s1 + $0x148] sm:$0xff]
    %v63 = vld [vmem:[%s1 + $0x150] sm:$0xff]
    %v64 = vld [vmem:[%s1 + $0x158] sm:$0xff]
    %v65 = vld [vmem:[%s1 + $0x160] sm:$0xff]
    %v66 = vld [vmem:[%s1 + $0x168] sm:$0xff]
    %v67 = vld [vmem:[%s1 + $0x170] sm:$0xff]
    %v68 = vld [vmem:[%s1 + $0x178] sm:$0xff]
    %v69 = vld [vmem:[%s1 + $0x180] sm:$0xff]
    %v70 = vld [vmem:[%s1 + $0x188] sm:$0xff]
    %v71 = vld [vmem:[%s1 + $0x190] sm:$0xff]
    %v72 = vld [vmem:[%s1 + $0x198] sm:$0xff]
    %v73 = vld [vmem:[%s1 + $0x1a0] sm:$0xff]
    %v74 = vld [vmem:[%s1 + $0x1a8] sm:$0xff]
    %v75 = vld [vmem:[%s1 + $0x1b0] sm:$0xff]
    %v76 = vld [vmem:[%s1 + $0x1b8] sm:$0xff]
    %v77 = vld [vmem:[%s1 + $0x1c0] sm:$0xff]
    %v78 = vld [vmem:[%s1 + $0x1c8] sm:$0xff]
    %v79 = vld [vmem:[%s1 + $0x1d0] sm:$0xff]
    %v80 = vld [vmem:[%s1 + $0x1d8] sm:$0xff]
    %v81 = vld [vmem:[%s1 + $0x1e0] sm:$0xff]
    %v82 = vld [vmem:[%s1 + $0x1e8] sm:$0xff]
    %v83 = vld [vmem:[%s1 + $0x1f0] sm:$0xff]
    %v84 = vld [vmem:[%s1 + $0x1f8] sm:$0xff]
    %v85 = vld [vmem:[%s1 + $0x200] sm:$0xff]
    %v86 = vld [vmem:[%s1 + $0x208] sm:$0xff]
    %v87 = vld [vmem:[%s1 + $0x210] sm:$0xff]
    %v88 = vld [vmem:[%s1 + $0x218] sm:$0xff]
    %v89 = vld [vmem:[%s1 + $0x220] sm:$0xff]
    %v90 = vld [vmem:[%s1 + $0x228] sm:$0xff]
    %v91 = vld [vmem:[%s1 + $0x230] sm:$0xff]
    %v92 = vld [vmem:[%s1 + $0x238] sm:$0xff]
    %v93 = vld [vmem:[%s1 + $0x240] sm:$0xff]
    %v94 = vld [vmem:[%s1 + $0x248] sm:$0xff]
    %v95 = vld [vmem:[%s1 + $0x250] sm:$0xff]
    %v96 = vld [vmem:[%s1 + $0x258] sm:$0xff]
    %v97 = vld [vmem:[%s1 + $0x260] sm:$0xff]
    %v98 = vld [vmem:[%s1 + $0x268] sm:$0xff]
    %v99 = vld [vmem:[%s1 + $0x270] sm:$0xff]
    %v100 = vld [vmem:[%s1 + $0x278] sm:$0xff]
    %v101 = vld [vmem:[%s1 + $0x280] sm:$0xff]
    %v102 = vld [vmem:[%s1 + $0x288] sm:$0xff]
    %v103 = vld [vmem:[%s1 + $0x290] sm:$0xff]
    %v104 = vld [vmem:[%s1 + $0x298] sm:$0xff]
    %v105 = vld [vmem:[%s1 + $0x2a0] sm:$0xff]
    %v106 = vld [vmem:[%s1 + $0x2a8] sm:$0xff]
    %v107 = vld [vmem:[%s1 + $0x2b0] sm:$0xff]
    %v108 = vld [vmem:[%s1 + $0x2b8] sm:$0xff]
    %v109 = vld [vmem:[%s1 + $0x2c0] sm:$0xff]
    %v110 = vld [vmem:[%s1 + $0x2c8] sm:$0xff]
    %v111 = vld [vmem:[%s1 + $0x2d0] sm:$0xff]
    %v112 = vld [vmem:[%s1 + $0x2d8] sm:$0xff]
    %v113 = vld [vmem:[%s1 + $0x2e0] sm:$0xff]
    %v114 = vld [vmem:[%s1 + $0x2e8] sm:$0xff]
    %v115 = vld [vmem:[%s1 + $0x2f0] sm:$0xff]
    %v116 = vld [vmem:[%s1 + $0x2f8] sm:$0xff]
    %v117 = vld [vmem:[%s1 + $0x300] sm:$0xff]
    %v118 = vld [vmem:[%s1 + $0x308] sm:$0xff]
    %v119 = vld [vmem:[%s1 + $0x310] sm:$0xff]
    %v120 = vld [vmem:[%s1 + $0x318] sm:$0xff]
    %v121 = vld [vmem:[%s1 + $0x320] sm:$0xff]
    %v122 = vld [vmem:[%s1 + $0x328] sm:$0xff]
    %v123 = vld [vmem:[%s1 + $0x330] sm:$0xff]
    %v124 = vld [vmem:[%s1 + $0x338] sm:$0xff]
    %v125 = vld [vmem:[%s1 + $0x340] sm:$0xff]
    %v126 = vld [vmem:[%s1 + $0x348] sm:$0xff]
    %v127 = vld [vmem:[%s1 + $0x350] sm:$0xff]
    %v128 = vld [vmem:[%s1 + $0x358] sm:$0xff]
    %v129 = vld [vmem:[%s1 + $0x360] sm:$0xff]
    %v130 = vld [vmem:[%s1 + $0x368] sm:$0xff]
    %v131 = vld [vmem:[%s1 + $0x370] sm:$0xff]
    %v132 = vld [vmem:[%s1 + $0x378] sm:$0xff]
    %v133 = vld [vmem:[%s1 + $0x380] sm:$0xff]
    %v134 = vld [vmem:[%s1 + $0x388] sm:$0xff]
    %v135 = vld [vmem:[%s1 + $0x390] sm:$0xff]
    %v136 = vld [vmem:[%s1 + $0x398] sm:$0xff]
    %v137 = vld [vmem:[%s1 + $0x3a0] sm:$0xff]
    %v138 = vld [vmem:[%s1 + $0x3a8] sm:$0xff]
    %v139 = vld [vmem:[%s1 + $0x3b0] sm:$0xff]
    %v140 = vld [vmem:[%s1 + $0x3b8] sm:$0xff]
    %v141 = vld [vmem:[%s1 + $0x3c0] sm:$0xff]
    %v142 = vld [vmem:[%s1 + $0x3c8] sm:$0xff]
    %v143 = vld [vmem:[%s1 + $0x3d0] sm:$0xff]
    %v144 = vld [vmem:[%s1 + $0x3d8] sm:$0xff]
    %v145 = vld [vmem:[%s1 + $0x3e0] sm:$0xff]
    %v146 = vld [vmem:[%s1 + $0x3e8] sm:$0xff]
    %v147 = vld [vmem:[%s1 + $0x3f0] sm:$0xff]
    %v148 = vld [vmem:[%s1 + $0x3f8] sm:$0xff]
    %v149 = vld [vmem:[%s1 + $0x400] sm:$0xff]
    %v150 = vld [vmem:[%s1 + $0x408] sm:$0xff]
    %v151 = vld [vmem:[%s1 + $0x410] sm:$0xff]
    %v152 = vld [vmem:[%s1 + $0x418] sm:$0xff]
    %v153 = vld [vmem:[%s1 + $0x420] sm:$0xff]
    %v154 = vld [vmem:[%s1 + $0x428] sm:$0xff]
    %v155 = vld [vmem:[%s1 + $0x430] sm:$0xff]
    %v156 = vld [vmem:[%s1 + $0x438] sm:$0xff]
    %v157 = vld [vmem:[%s1 + $0x440] sm:$0xff]
    %v158 = vld [vmem:[%s1 + $0x448] sm:$0xff]
    %v159 = vld [vmem:[%s1 + $0x450] sm:$0xff]
    %v160 = vld [vmem:[%s1 + $0x458] sm:$0xff]
    %v161 = vld [vmem:[%s1 + $0x460] sm:$0xff]
    %v162 = vld [vmem:[%s1 + $0x468] sm:$0xff]
    %v163 = vld [vmem:[%s1 + $0x470] sm:$0xff]
    %v164 = vld [vmem:[%s1 + $0x478] sm:$0xff]
    %v165 = vld [vmem:[%s1 + $0x480] sm:$0xff]
    %v166 = vld [vmem:[%s1 + $0x488] sm:$0xff]
    %v167 = vld [vmem:[%s1 + $0x490] sm:$0xff]
    %v168 = vld [vmem:[%s1 + $0x498] sm:$0xff]
    %v169 = vld [vmem:[%s1 + $0x4a0] sm:$0xff]
    %v170 = vld [vmem:[%s1 + $0x4a8] sm:$0xff]
    %v171 = vld [vmem:[%s1 + $0x4b0] sm:$0xff]
    %v172 = vld [vmem:[%s1 + $0x4b8] sm:$0xff]
    %v173 = vld [vmem:[%s1 + $0x4c0] sm:$0xff]
    %v174 = vld [vmem:[%s1 + $0x4c8] sm:$0xff]
    %v175 = vld [vmem:[%s1 + $0x4d0] sm:$0xff]
    %v176 = vld [vmem:[%s1 + $0x4d8] sm:$0xff]
    %v177 = vld [vmem:[%s1 + $0x4e0] sm:$0xff]
    %v178 = vld [vmem:[%s1 + $0x4e8] sm:$0xff]
    %v179 = vld [vmem:[%s1 + $0x4f0] sm:$0xff]
    %v180 = vld [vmem:[%s1 + $0x4f8] sm:$0xff]
    %v181 = vld [vmem:[%s1 + $0x500] sm:$0xff]
    %v182 = vld [vmem:[%s1 + $0x508] sm:$0xff]
    %v183 = vld [vmem:[%s1 + $0x510] sm:$0xff]
    %v184 = vld [vmem:[%s1 + $0x518] sm:$0xff]
    %v185 = vld [vmem:[%s1 + $0x520] sm:$0xff]
    %v186 = vld [vmem:[%s1 + $0x528] sm:$0xff]
    %v187 = vld [vmem:[%s1 + $0x530] sm:$0xff]
    %v188 = vld [vmem:[%s1 + $0x538] sm:$0xff]
    %v189 = vld [vmem:[%s1 + $0x540] sm:$0xff]
    %v190 = vld [vmem:[%s1 + $0x548] sm:$0xff]
    %v191 = vld [vmem:[%s1 + $0x550] sm:$0xff]
    %v192 = vld [vmem:[%s1 + $0x558] sm:$0xff]
    %v193 = vld [vmem:[%s1 + $0x560] sm:$0xff]
    %v194 = vld [vmem:[%s1 + $0x568] sm:$0xff]
    %v195 = vld [vmem:[%s1 + $0x570] sm:$0xff]
    %v196 = vld [vmem:[%s1 + $0x578] sm:$0xff]
    %v197 = vld [vmem:[%s1 + $0x580] sm:$0xff]
    %v198 = vld [vmem:[%s1 + $0x588] sm:$0xff]
    %v199 = vld [vmem:[%s1 + $0x590] sm:$0xff]
    %v200 = vld [vmem:[%s1 + $0x598] sm:$0xff]
    %v201 = vld [vmem:[%s1 + $0x5a0] sm:$0xff]
    %v202 = vld [vmem:[%s1 + $0x5a8] sm:$0xff]
    %v203 = vld [vmem:[%s1 + $0x5b0] sm:$0xff]
    %v204 = vld [vmem:[%s1 + $0x5b8] sm:$0xff]
    %v205 = vld [vmem:[%s1 + $0x5c0] sm:$0xff]
    %v206 = vld [vmem:[%s1 + $0x5c8] sm:$0xff]
    %v207 = vld [vmem:[%s1 + $0x5d0] sm:$0xff]
    %v208 = vld [vmem:[%s1 + $0x5d8] sm:$0xff]
    %v209 = vld [vmem:[%s1 + $0x5e0] sm:$0xff]
    %v210 = vld [vmem:[%s1 + $0x5e8] sm:$0xff]
    %v211 = vld [vmem:[%s1 + $0x5f0] sm:$0xff]
    %v212 = vld [vmem:[%s1 + $0x5f8] sm:$0xff]
    %v213 = vld [vmem:[%s1 + $0x600] sm:$0xff]
    %v214 = vld [vmem:[%s1 + $0x608] sm:$0xff]
    %v215 = vld [vmem:[%s1 + $0x610] sm:$0xff]
    %v216 = vld [vmem:[%s1 + $0x618] sm:$0xff]
    %v217 = vld [vmem:[%s1 + $0x620] sm:$0xff]
    %v218 = vld [vmem:[%s1 + $0x628] sm:$0xff]
    %v219 = vld [vmem:[%s1 + $0x630] sm:$0xff]
    %v220 = vld [vmem:[%s1 + $0x638] sm:$0xff]
    %v221 = vld [vmem:[%s1 + $0x640] sm:$0xff]
    %v222 = vld [vmem:[%s1 + $0x648] sm:$0xff]
    %v223 = vld [vmem:[%s1 + $0x650] sm:$0xff]
    %v224 = vld [vmem:[%s1 + $0x658] sm:$0xff]
    %v225 = vld [vmem:[%s1 + $0x660] sm:$0xff]
    %v226 = vld [vmem:[%s1 + $0x668] sm:$0xff]
    %v227 = vld [vmem:[%s1 + $0x670] sm:$0xff]
    %v228 = vld [vmem:[%s1 + $0x678] sm:$0xff]
    %v229 = vld [vmem:[%s1 + $0x680] sm:$0xff]
    %v230 = vld [vmem:[%s1 + $0x688] sm:$0xff]
    %v231 = vld [vmem:[%s1 + $0x690] sm:$0xff]
    %v232 = vld [vmem:[%s1 + $0x698] sm:$0xff]
    %v233 = vld [vmem:[%s1 + $0x6a0] sm:$0xff]
    %v234 = vld [vmem:[%s1 + $0x6a8] sm:$0xff]
    %v235 = vld [vmem:[%s1 + $0x6b0] sm:$0xff]
    %v236 = vld [vmem:[%s1 + $0x6b8] sm:$0xff]
    %v237 = vld [vmem:[%s1 + $0x6c0] sm:$0xff]
    %v238 = vld [vmem:[%s1 + $0x6c8] sm:$0xff]
    %v239 = vld [vmem:[%s1 + $0x6d0] sm:$0xff]
    %v240 = vld [vmem:[%s1 + $0x6d8] sm:$0xff]
    %v241 = vld [vmem:[%s1 + $0x6e0] sm:$0xff]
    %v242 = vld [vmem:[%s1 + $0x6e8] sm:$0xff]
    %v243 = vld [vmem:[%s1 + $0x6f0] sm:$0xff]
    %v244 = vld [vmem:[%s1 + $0x6f8] sm:$0xff]
    %v245 = vld [vmem:[%s1 + $0x700] sm:$0xff]
    %v246 = vld [vmem:[%s1 + $0x708] sm:$0xff]
    %v247 = vld [vmem:[%s1 + $0x710] sm:$0xff]
    %v248 = vld [vmem:[%s1 + $0x718] sm:$0xff]
    %v249 = vld [vmem:[%s1 + $0x720] sm:$0xff]
    %v250 = vld [vmem:[%s1 + $0x728] sm:$0xff]
    %v251 = vld [vmem:[%s1 + $0x730] sm:$0xff]
    %v252 = vld [vmem:[%s1 + $0x738] sm:$0xff]
    %v253 = vld [vmem:[%s1 + $0x740] sm:$0xff]
    %v254 = vld [vmem:[%s1 + $0x748] sm:$0xff]
    %v255 = vld [vmem:[%s1 + $0x750] sm:$0xff]
    %v256 = vld [vmem:[%s1 + $0x758] sm:$0xff]
    %v257 = vld [vmem:[%s1 + $0x760] sm:$0xff]
    %v258 = vld [vmem:[%s1 + $0x768] sm:$0xff]
    %v259 = vld [vmem:[%s1 + $0x770] sm:$0xff]
    %v260 = vld [vmem:[%s1 + $0x778] sm:$0xff]
    %v261 = vld [vmem:[%s1 + $0x780] sm:$0xff]
    %v262 = vld [vmem:[%s1 + $0x788] sm:$0xff]
    %v263 = vld [vmem:[%s1 + $0x790] sm:$0xff]
    %v264 = vld [vmem:[%s1 + $0x798] sm:$0xff]
    %v265 = vld [vmem:[%s1 + $0x7a0] sm:$0xff]
    %v266 = vld [vmem:[%s1 + $0x7a8] sm:$0xff]
    %v267 = vld [vmem:[%s1 + $0x7b0] sm:$0xff]
    %v268 = vld [vmem:[%s1 + $0x7b8] sm:$0xff]
    %v269 = vld [vmem:[%s1 + $0x7c0] sm:$0xff]
    %v270 = vld [vmem:[%s1 + $0x7c8] sm:$0xff]
    %v271 = vld [vmem:[%s1 + $0x7d0] sm:$0xff]
    %v272 = vld [vmem:[%s1 + $0x7d8] sm:$0xff]
    %v273 = vld [vmem:[%s1 + $0x7e0] sm:$0xff]
    %v274 = vld [vmem:[%s1 + $0x7e8] sm:$0xff]
    %v275 = vld [vmem:[%s1 + $0x7f0] sm:$0xff]
    %v276 = vld [vmem:[%s1 + $0x7f8] sm:$0xff]
    %v277 = vld [vmem:[%s1 + $0x800] sm:$0xff]
    %v278 = vld [vmem:[%s1 + $0x808] sm:$0xff]
    %v279 = vld [vmem:[%s1 + $0x810] sm:$0xff]
    %v280 = vld [vmem:[%s1 + $0x818] sm:$0xff]
    %v281 = vld [vmem:[%s1 + $0x820] sm:$0xff]
    %v282 = vld [vmem:[%s1 + $0x828] sm:$0xff]
    %v283 = vld [vmem:[%s1 + $0x830] sm:$0xff]
    %v284 = vld [vmem:[%s1 + $0x838] sm:$0xff]
    %v285 = vld [vmem:[%s1 + $0x840] sm:$0xff]
    %v286 = vld [vmem:[%s1 + $0x848] sm:$0xff]
    %v287 = vld [vmem:[%s1 + $0x850] sm:$0xff]
    %v288 = vld [vmem:[%s1 + $0x858] sm:$0xff]
    %v289 = vld [vmem:[%s1 + $0x860] sm:$0xff]
    %v290 = vld [vmem:[%s1 + $0x868] sm:$0xff]
    %v291 = vld [vmem:[%s1 + $0x870] sm:$0xff]
    %v292 = vld [vmem:[%s1 + $0x878] sm:$0xff]
    %v293 = vld [vmem:[%s1 + $0x880] sm:$0xff]
    %v294 = vld [vmem:[%s1 + $0x888] sm:$0xff]
    %v295 = vld [vmem:[%s1 + $0x890] sm:$0xff]
    %v296 = vld [vmem:[%s1 + $0x898] sm:$0xff]
    %v297 = vld [vmem:[%s1 + $0x8a0] sm:$0xff]
    %v298 = vld [vmem:[%s1 + $0x8a8] sm:$0xff]
    %v299 = vld [vmem:[%s1 + $0x8b0] sm:$0xff]
    %v300 = vld [vmem:[%s1 + $0x8b8] sm:$0xff]
    %v301 = vld [vmem:[%s1 + $0x8c0] sm:$0xff]
    %v302 = vld [vmem:[%s1 + $0x8c8] sm:$0xff]
    %v303 = vld [vmem:[%s1 + $0x8d0] sm:$0xff]
    %v304 = vld [vmem:[%s1 + $0x8d8] sm:$0xff]
    %v305 = vld [vmem:[%s1 + $0x8e0] sm:$0xff]
    %v306 = vld [vmem:[%s1 + $0x8e8] sm:$0xff]
    %v307 = vld [vmem:[%s1 + $0x8f0] sm:$0xff]
    %v308 = vld [vmem:[%s1 + $0x8f8] sm:$0xff]
    %v309 = vld [vmem:[%s2] sm:$0x3f]
    %v311 = vlaneseq
    %v312 = vshrl.u32 %v311, 7
    %v313 = vsub.s32 0, %v312
    %v314 = vrot.slane %v309, %v313
    %v315 = vlaneseq
    %v316 = vshrl.u32 %v315, 7
    %v317 = vsub.s32 1, %v316
    %v318 = vrot.slane %v309, %v317
    %v319 = vlaneseq
    %v320 = vshrl.u32 %v319, 7
    %v321 = vsub.s32 2, %v320
    %v322 = vrot.slane %v309, %v321
    %v323 = vlaneseq
    %v324 = vshrl.u32 %v323, 7
    %v325 = vsub.s32 3, %v324
    %v326 = vrot.slane %v309, %v325
    %v327 = vlaneseq
    %v328 = vshrl.u32 %v327, 7
    %v329 = vsub.s32 4, %v328
    %v330 = vrot.slane %v309, %v329
    %v331 = vlaneseq
    %v332 = vshrl.u32 %v331, 7
    %v333 = vsub.s32 5, %v332
    %v334 = vrot.slane %v309, %v333
    %v347 = vunpack.c.l.b16 %v15
    %v348 = vunpack.c.h.b16 %v15
    %v349 = vunpack.c.l.b16 %v16
    %v350 = vunpack.c.h.b16 %v16
    %v351 = vunpack.c.l.b16 %v17
    %v352 = vunpack.c.h.b16 %v17
    %v353 = vunpack.c.l.b16 %v18
    %v354 = vunpack.c.h.b16 %v18
    %v355 = vunpack.c.l.b16 %v19
    %v356 = vunpack.c.h.b16 %v19
    %v357 = vunpack.c.l.b16 %v20
    %v358 = vunpack.c.h.b16 %v20
    %v359 = vpack.c.b16 %v353, %v347
    %v360 = vpack.c.b16 %v354, %v348
    %v361 = vpack.c.b16 %v355, %v349
    %v362 = vpack.c.b16 %v356, %v350
    %v363 = vpack.c.b16 %v357, %v351
    %v364 = vpack.c.b16 %v358, %v352
    %v659 = vunpack.c.l.b16 %v21
    %v660 = vunpack.c.h.b16 %v21
    %v661 = vunpack.c.l.b16 %v22
    %v662 = vunpack.c.h.b16 %v22
    %v663 = vunpack.c.l.b16 %v23
    %v664 = vunpack.c.h.b16 %v23
    %v665 = vunpack.c.l.b16 %v24
    %v666 = vunpack.c.h.b16 %v24
    %v667 = vunpack.c.l.b16 %v25
    %v668 = vunpack.c.h.b16 %v25
    %v669 = vunpack.c.l.b16 %v26
    %v670 = vunpack.c.h.b16 %v26
    %v671 = vunpack.c.l.b16 %v27
    %v672 = vunpack.c.h.b16 %v27
    %v673 = vunpack.c.l.b16 %v28
    %v674 = vunpack.c.h.b16 %v28
    %v675 = vunpack.c.l.b16 %v29
    %v676 = vunpack.c.h.b16 %v29
    %v677 = vunpack.c.l.b16 %v30
    %v678 = vunpack.c.h.b16 %v30
    %v679 = vunpack.c.l.b16 %v31
    %v680 = vunpack.c.h.b16 %v31
    %v681 = vunpack.c.l.b16 %v32
    %v682 = vunpack.c.h.b16 %v32
    %v683 = vunpack.c.l.b16 %v33
    %v684 = vunpack.c.h.b16 %v33
    %v685 = vunpack.c.l.b16 %v34
    %v686 = vunpack.c.h.b16 %v34
    %v687 = vunpack.c.l.b16 %v35
    %v688 = vunpack.c.h.b16 %v35
    %v689 = vunpack.c.l.b16 %v36
    %v690 = vunpack.c.h.b16 %v36
    %v691 = vunpack.c.l.b16 %v37
    %v692 = vunpack.c.h.b16 %v37
    %v693 = vunpack.c.l.b16 %v38
    %v694 = vunpack.c.h.b16 %v38
    %v695 = vunpack.c.l.b16 %v39
    %v696 = vunpack.c.h.b16 %v39
    %v697 = vunpack.c.l.b16 %v40
    %v698 = vunpack.c.h.b16 %v40
    %v699 = vunpack.c.l.b16 %v41
    %v700 = vunpack.c.h.b16 %v41
    %v701 = vunpack.c.l.b16 %v42
    %v702 = vunpack.c.h.b16 %v42
    %v703 = vunpack.c.l.b16 %v43
    %v704 = vunpack.c.h.b16 %v43
    %v705 = vunpack.c.l.b16 %v44
    %v706 = vunpack.c.h.b16 %v44
    %v707 = vunpack.c.l.b16 %v45
    %v708 = vunpack.c.h.b16 %v45
    %v709 = vunpack.c.l.b16 %v46
    %v710 = vunpack.c.h.b16 %v46
    %v711 = vunpack.c.l.b16 %v47
    %v712 = vunpack.c.h.b16 %v47
    %v713 = vunpack.c.l.b16 %v48
    %v714 = vunpack.c.h.b16 %v48
    %v715 = vunpack.c.l.b16 %v49
    %v716 = vunpack.c.h.b16 %v49
    %v717 = vunpack.c.l.b16 %v50
    %v718 = vunpack.c.h.b16 %v50
    %v719 = vunpack.c.l.b16 %v51
    %v720 = vunpack.c.h.b16 %v51
    %v721 = vunpack.c.l.b16 %v52
    %v722 = vunpack.c.h.b16 %v52
    %v723 = vunpack.c.l.b16 %v53
    %v724 = vunpack.c.h.b16 %v53
    %v725 = vunpack.c.l.b16 %v54
    %v726 = vunpack.c.h.b16 %v54
    %v727 = vunpack.c.l.b16 %v55
    %v728 = vunpack.c.h.b16 %v55
    %v729 = vunpack.c.l.b16 %v56
    %v730 = vunpack.c.h.b16 %v56
    %v731 = vunpack.c.l.b16 %v57
    %v732 = vunpack.c.h.b16 %v57
    %v733 = vunpack.c.l.b16 %v58
    %v734 = vunpack.c.h.b16 %v58
    %v735 = vunpack.c.l.b16 %v59
    %v736 = vunpack.c.h.b16 %v59
    %v737 = vunpack.c.l.b16 %v60
    %v738 = vunpack.c.h.b16 %v60
    %v739 = vunpack.c.l.b16 %v61
    %v740 = vunpack.c.h.b16 %v61
    %v741 = vunpack.c.l.b16 %v62
    %v742 = vunpack.c.h.b16 %v62
    %v743 = vunpack.c.l.b16 %v63
    %v744 = vunpack.c.h.b16 %v63
    %v745 = vunpack.c.l.b16 %v64
    %v746 = vunpack.c.h.b16 %v64
    %v747 = vunpack.c.l.b16 %v65
    %v748 = vunpack.c.h.b16 %v65
    %v749 = vunpack.c.l.b16 %v66
    %v750 = vunpack.c.h.b16 %v66
    %v751 = vunpack.c.l.b16 %v67
    %v752 = vunpack.c.h.b16 %v67
    %v753 = vunpack.c.l.b16 %v68
    %v754 = vunpack.c.h.b16 %v68
    %v755 = vunpack.c.l.b16 %v69
    %v756 = vunpack.c.h.b16 %v69
    %v757 = vunpack.c.l.b16 %v70
    %v758 = vunpack.c.h.b16 %v70
    %v759 = vunpack.c.l.b16 %v71
    %v760 = vunpack.c.h.b16 %v71
    %v761 = vunpack.c.l.b16 %v72
    %v762 = vunpack.c.h.b16 %v72
    %v763 = vunpack.c.l.b16 %v73
    %v764 = vunpack.c.h.b16 %v73
    %v765 = vunpack.c.l.b16 %v74
    %v766 = vunpack.c.h.b16 %v74
    %v767 = vunpack.c.l.b16 %v75
    %v768 = vunpack.c.h.b16 %v75
    %v769 = vunpack.c.l.b16 %v76
    %v770 = vunpack.c.h.b16 %v76
    %v771 = vunpack.c.l.b16 %v77
    %v772 = vunpack.c.h.b16 %v77
    %v773 = vunpack.c.l.b16 %v78
    %v774 = vunpack.c.h.b16 %v78
    %v775 = vunpack.c.l.b16 %v79
    %v776 = vunpack.c.h.b16 %v79
    %v777 = vunpack.c.l.b16 %v80
    %v778 = vunpack.c.h.b16 %v80
    %v779 = vunpack.c.l.b16 %v81
    %v780 = vunpack.c.h.b16 %v81
    %v781 = vunpack.c.l.b16 %v82
    %v782 = vunpack.c.h.b16 %v82
    %v783 = vunpack.c.l.b16 %v83
    %v784 = vunpack.c.h.b16 %v83
    %v785 = vunpack.c.l.b16 %v84
    %v786 = vunpack.c.h.b16 %v84
    %v787 = vunpack.c.l.b16 %v85
    %v788 = vunpack.c.h.b16 %v85
    %v789 = vunpack.c.l.b16 %v86
    %v790 = vunpack.c.h.b16 %v86
    %v791 = vunpack.c.l.b16 %v87
    %v792 = vunpack.c.h.b16 %v87
    %v793 = vunpack.c.l.b16 %v88
    %v794 = vunpack.c.h.b16 %v88
    %v795 = vunpack.c.l.b16 %v89
    %v796 = vunpack.c.h.b16 %v89
    %v797 = vunpack.c.l.b16 %v90
    %v798 = vunpack.c.h.b16 %v90
    %v799 = vunpack.c.l.b16 %v91
    %v800 = vunpack.c.h.b16 %v91
    %v801 = vunpack.c.l.b16 %v92
    %v802 = vunpack.c.h.b16 %v92
    %v803 = vunpack.c.l.b16 %v93
    %v804 = vunpack.c.h.b16 %v93
    %v805 = vunpack.c.l.b16 %v94
    %v806 = vunpack.c.h.b16 %v94
    %v807 = vunpack.c.l.b16 %v95
    %v808 = vunpack.c.h.b16 %v95
    %v809 = vunpack.c.l.b16 %v96
    %v810 = vunpack.c.h.b16 %v96
    %v811 = vunpack.c.l.b16 %v97
    %v812 = vunpack.c.h.b16 %v97
    %v813 = vunpack.c.l.b16 %v98
    %v814 = vunpack.c.h.b16 %v98
    %v815 = vunpack.c.l.b16 %v99
    %v816 = vunpack.c.h.b16 %v99
    %v817 = vunpack.c.l.b16 %v100
    %v818 = vunpack.c.h.b16 %v100
    %v819 = vunpack.c.l.b16 %v101
    %v820 = vunpack.c.h.b16 %v101
    %v821 = vunpack.c.l.b16 %v102
    %v822 = vunpack.c.h.b16 %v102
    %v823 = vunpack.c.l.b16 %v103
    %v824 = vunpack.c.h.b16 %v103
    %v825 = vunpack.c.l.b16 %v104
    %v826 = vunpack.c.h.b16 %v104
    %v827 = vunpack.c.l.b16 %v105
    %v828 = vunpack.c.h.b16 %v105
    %v829 = vunpack.c.l.b16 %v106
    %v830 = vunpack.c.h.b16 %v106
    %v831 = vunpack.c.l.b16 %v107
    %v832 = vunpack.c.h.b16 %v107
    %v833 = vunpack.c.l.b16 %v108
    %v834 = vunpack.c.h.b16 %v108
    %v835 = vunpack.c.l.b16 %v109
    %v836 = vunpack.c.h.b16 %v109
    %v837 = vunpack.c.l.b16 %v110
    %v838 = vunpack.c.h.b16 %v110
    %v839 = vunpack.c.l.b16 %v111
    %v840 = vunpack.c.h.b16 %v111
    %v841 = vunpack.c.l.b16 %v112
    %v842 = vunpack.c.h.b16 %v112
    %v843 = vunpack.c.l.b16 %v113
    %v844 = vunpack.c.h.b16 %v113
    %v845 = vunpack.c.l.b16 %v114
    %v846 = vunpack.c.h.b16 %v114
    %v847 = vunpack.c.l.b16 %v115
    %v848 = vunpack.c.h.b16 %v115
    %v849 = vunpack.c.l.b16 %v116
    %v850 = vunpack.c.h.b16 %v116
    %v851 = vunpack.c.l.b16 %v117
    %v852 = vunpack.c.h.b16 %v117
    %v853 = vunpack.c.l.b16 %v118
    %v854 = vunpack.c.h.b16 %v118
    %v855 = vunpack.c.l.b16 %v119
    %v856 = vunpack.c.h.b16 %v119
    %v857 = vunpack.c.l.b16 %v120
    %v858 = vunpack.c.h.b16 %v120
    %v859 = vunpack.c.l.b16 %v121
    %v860 = vunpack.c.h.b16 %v121
    %v861 = vunpack.c.l.b16 %v122
    %v862 = vunpack.c.h.b16 %v122
    %v863 = vunpack.c.l.b16 %v123
    %v864 = vunpack.c.h.b16 %v123
    %v865 = vunpack.c.l.b16 %v124
    %v866 = vunpack.c.h.b16 %v124
    %v867 = vunpack.c.l.b16 %v125
    %v868 = vunpack.c.h.b16 %v125
    %v869 = vunpack.c.l.b16 %v126
    %v870 = vunpack.c.h.b16 %v126
    %v871 = vunpack.c.l.b16 %v127
    %v872 = vunpack.c.h.b16 %v127
    %v873 = vunpack.c.l.b16 %v128
    %v874 = vunpack.c.h.b16 %v128
    %v875 = vunpack.c.l.b16 %v129
    %v876 = vunpack.c.h.b16 %v129
    %v877 = vunpack.c.l.b16 %v130
    %v878 = vunpack.c.h.b16 %v130
    %v879 = vunpack.c.l.b16 %v131
    %v880 = vunpack.c.h.b16 %v131
    %v881 = vunpack.c.l.b16 %v132
    %v882 = vunpack.c.h.b16 %v132
    %v883 = vunpack.c.l.b16 %v133
    %v884 = vunpack.c.h.b16 %v133
    %v885 = vunpack.c.l.b16 %v134
    %v886 = vunpack.c.h.b16 %v134
    %v887 = vunpack.c.l.b16 %v135
    %v888 = vunpack.c.h.b16 %v135
    %v889 = vunpack.c.l.b16 %v136
    %v890 = vunpack.c.h.b16 %v136
    %v891 = vunpack.c.l.b16 %v137
    %v892 = vunpack.c.h.b16 %v137
    %v893 = vunpack.c.l.b16 %v138
    %v894 = vunpack.c.h.b16 %v138
    %v895 = vunpack.c.l.b16 %v139
    %v896 = vunpack.c.h.b16 %v139
    %v897 = vunpack.c.l.b16 %v140
    %v898 = vunpack.c.h.b16 %v140
    %v899 = vunpack.c.l.b16 %v141
    %v900 = vunpack.c.h.b16 %v141
    %v901 = vunpack.c.l.b16 %v142
    %v902 = vunpack.c.h.b16 %v142
    %v903 = vunpack.c.l.b16 %v143
    %v904 = vunpack.c.h.b16 %v143
    %v905 = vunpack.c.l.b16 %v144
    %v906 = vunpack.c.h.b16 %v144
    %v907 = vunpack.c.l.b16 %v145
    %v908 = vunpack.c.h.b16 %v145
    %v909 = vunpack.c.l.b16 %v146
    %v910 = vunpack.c.h.b16 %v146
    %v911 = vunpack.c.l.b16 %v147
    %v912 = vunpack.c.h.b16 %v147
    %v913 = vunpack.c.l.b16 %v148
    %v914 = vunpack.c.h.b16 %v148
    %v915 = vunpack.c.l.b16 %v149
    %v916 = vunpack.c.h.b16 %v149
    %v917 = vunpack.c.l.b16 %v150
    %v918 = vunpack.c.h.b16 %v150
    %v919 = vunpack.c.l.b16 %v151
    %v920 = vunpack.c.h.b16 %v151
    %v921 = vunpack.c.l.b16 %v152
    %v922 = vunpack.c.h.b16 %v152
    %v923 = vunpack.c.l.b16 %v153
    %v924 = vunpack.c.h.b16 %v153
    %v925 = vunpack.c.l.b16 %v154
    %v926 = vunpack.c.h.b16 %v154
    %v927 = vunpack.c.l.b16 %v155
    %v928 = vunpack.c.h.b16 %v155
    %v929 = vunpack.c.l.b16 %v156
    %v930 = vunpack.c.h.b16 %v156
    %v931 = vunpack.c.l.b16 %v157
    %v932 = vunpack.c.h.b16 %v157
    %v933 = vunpack.c.l.b16 %v158
    %v934 = vunpack.c.h.b16 %v158
    %v935 = vunpack.c.l.b16 %v159
    %v936 = vunpack.c.h.b16 %v159
    %v937 = vunpack.c.l.b16 %v160
    %v938 = vunpack.c.h.b16 %v160
    %v939 = vunpack.c.l.b16 %v161
    %v940 = vunpack.c.h.b16 %v161
    %v941 = vunpack.c.l.b16 %v162
    %v942 = vunpack.c.h.b16 %v162
    %v943 = vunpack.c.l.b16 %v163
    %v944 = vunpack.c.h.b16 %v163
    %v945 = vunpack.c.l.b16 %v164
    %v946 = vunpack.c.h.b16 %v164
    %v947 = vunpack.c.l.b16 %v165
    %v948 = vunpack.c.h.b16 %v165
    %v949 = vunpack.c.l.b16 %v166
    %v950 = vunpack.c.h.b16 %v166
    %v951 = vunpack.c.l.b16 %v167
    %v952 = vunpack.c.h.b16 %v167
    %v953 = vunpack.c.l.b16 %v168
    %v954 = vunpack.c.h.b16 %v168
    %v955 = vunpack.c.l.b16 %v169
    %v956 = vunpack.c.h.b16 %v169
    %v957 = vunpack.c.l.b16 %v170
    %v958 = vunpack.c.h.b16 %v170
    %v959 = vunpack.c.l.b16 %v171
    %v960 = vunpack.c.h.b16 %v171
    %v961 = vunpack.c.l.b16 %v172
    %v962 = vunpack.c.h.b16 %v172
    %v963 = vunpack.c.l.b16 %v173
    %v964 = vunpack.c.h.b16 %v173
    %v965 = vunpack.c.l.b16 %v174
    %v966 = vunpack.c.h.b16 %v174
    %v967 = vunpack.c.l.b16 %v175
    %v968 = vunpack.c.h.b16 %v175
    %v969 = vunpack.c.l.b16 %v176
    %v970 = vunpack.c.h.b16 %v176
    %v971 = vunpack.c.l.b16 %v177
    %v972 = vunpack.c.h.b16 %v177
    %v973 = vunpack.c.l.b16 %v178
    %v974 = vunpack.c.h.b16 %v178
    %v975 = vunpack.c.l.b16 %v179
    %v976 = vunpack.c.h.b16 %v179
    %v977 = vunpack.c.l.b16 %v180
    %v978 = vunpack.c.h.b16 %v180
    %v979 = vunpack.c.l.b16 %v181
    %v980 = vunpack.c.h.b16 %v181
    %v981 = vunpack.c.l.b16 %v182
    %v982 = vunpack.c.h.b16 %v182
    %v983 = vunpack.c.l.b16 %v183
    %v984 = vunpack.c.h.b16 %v183
    %v985 = vunpack.c.l.b16 %v184
    %v986 = vunpack.c.h.b16 %v184
    %v987 = vunpack.c.l.b16 %v185
    %v988 = vunpack.c.h.b16 %v185
    %v989 = vunpack.c.l.b16 %v186
    %v990 = vunpack.c.h.b16 %v186
    %v991 = vunpack.c.l.b16 %v187
    %v992 = vunpack.c.h.b16 %v187
    %v993 = vunpack.c.l.b16 %v188
    %v994 = vunpack.c.h.b16 %v188
    %v995 = vunpack.c.l.b16 %v189
    %v996 = vunpack.c.h.b16 %v189
    %v997 = vunpack.c.l.b16 %v190
    %v998 = vunpack.c.h.b16 %v190
    %v999 = vunpack.c.l.b16 %v191
    %v1000 = vunpack.c.h.b16 %v191
    %v1001 = vunpack.c.l.b16 %v192
    %v1002 = vunpack.c.h.b16 %v192
    %v1003 = vunpack.c.l.b16 %v193
    %v1004 = vunpack.c.h.b16 %v193
    %v1005 = vunpack.c.l.b16 %v194
    %v1006 = vunpack.c.h.b16 %v194
    %v1007 = vunpack.c.l.b16 %v195
    %v1008 = vunpack.c.h.b16 %v195
    %v1009 = vunpack.c.l.b16 %v196
    %v1010 = vunpack.c.h.b16 %v196
    %v1011 = vunpack.c.l.b16 %v197
    %v1012 = vunpack.c.h.b16 %v197
    %v1013 = vunpack.c.l.b16 %v198
    %v1014 = vunpack.c.h.b16 %v198
    %v1015 = vunpack.c.l.b16 %v199
    %v1016 = vunpack.c.h.b16 %v199
    %v1017 = vunpack.c.l.b16 %v200
    %v1018 = vunpack.c.h.b16 %v200
    %v1019 = vunpack.c.l.b16 %v201
    %v1020 = vunpack.c.h.b16 %v201
    %v1021 = vunpack.c.l.b16 %v202
    %v1022 = vunpack.c.h.b16 %v202
    %v1023 = vunpack.c.l.b16 %v203
    %v1024 = vunpack.c.h.b16 %v203
    %v1025 = vunpack.c.l.b16 %v204
    %v1026 = vunpack.c.h.b16 %v204
    %v1027 = vunpack.c.l.b16 %v205
    %v1028 = vunpack.c.h.b16 %v205
    %v1029 = vunpack.c.l.b16 %v206
    %v1030 = vunpack.c.h.b16 %v206
    %v1031 = vunpack.c.l.b16 %v207
    %v1032 = vunpack.c.h.b16 %v207
    %v1033 = vunpack.c.l.b16 %v208
    %v1034 = vunpack.c.h.b16 %v208
    %v1035 = vunpack.c.l.b16 %v209
    %v1036 = vunpack.c.h.b16 %v209
    %v1037 = vunpack.c.l.b16 %v210
    %v1038 = vunpack.c.h.b16 %v210
    %v1039 = vunpack.c.l.b16 %v211
    %v1040 = vunpack.c.h.b16 %v211
    %v1041 = vunpack.c.l.b16 %v212
    %v1042 = vunpack.c.h.b16 %v212
    %v1043 = vunpack.c.l.b16 %v213
    %v1044 = vunpack.c.h.b16 %v213
    %v1045 = vunpack.c.l.b16 %v214
    %v1046 = vunpack.c.h.b16 %v214
    %v1047 = vunpack.c.l.b16 %v215
    %v1048 = vunpack.c.h.b16 %v215
    %v1049 = vunpack.c.l.b16 %v216
    %v1050 = vunpack.c.h.b16 %v216
    %v1051 = vunpack.c.l.b16 %v217
    %v1052 = vunpack.c.h.b16 %v217
    %v1053 = vunpack.c.l.b16 %v218
    %v1054 = vunpack.c.h.b16 %v218
    %v1055 = vunpack.c.l.b16 %v219
    %v1056 = vunpack.c.h.b16 %v219
    %v1057 = vunpack.c.l.b16 %v220
    %v1058 = vunpack.c.h.b16 %v220
    %v1059 = vunpack.c.l.b16 %v221
    %v1060 = vunpack.c.h.b16 %v221
    %v1061 = vunpack.c.l.b16 %v222
    %v1062 = vunpack.c.h.b16 %v222
    %v1063 = vunpack.c.l.b16 %v223
    %v1064 = vunpack.c.h.b16 %v223
    %v1065 = vunpack.c.l.b16 %v224
    %v1066 = vunpack.c.h.b16 %v224
    %v1067 = vunpack.c.l.b16 %v225
    %v1068 = vunpack.c.h.b16 %v225
    %v1069 = vunpack.c.l.b16 %v226
    %v1070 = vunpack.c.h.b16 %v226
    %v1071 = vunpack.c.l.b16 %v227
    %v1072 = vunpack.c.h.b16 %v227
    %v1073 = vunpack.c.l.b16 %v228
    %v1074 = vunpack.c.h.b16 %v228
    %v1075 = vunpack.c.l.b16 %v229
    %v1076 = vunpack.c.h.b16 %v229
    %v1077 = vunpack.c.l.b16 %v230
    %v1078 = vunpack.c.h.b16 %v230
    %v1079 = vunpack.c.l.b16 %v231
    %v1080 = vunpack.c.h.b16 %v231
    %v1081 = vunpack.c.l.b16 %v232
    %v1082 = vunpack.c.h.b16 %v232
    %v1083 = vunpack.c.l.b16 %v233
    %v1084 = vunpack.c.h.b16 %v233
    %v1085 = vunpack.c.l.b16 %v234
    %v1086 = vunpack.c.h.b16 %v234
    %v1087 = vunpack.c.l.b16 %v235
    %v1088 = vunpack.c.h.b16 %v235
    %v1089 = vunpack.c.l.b16 %v236
    %v1090 = vunpack.c.h.b16 %v236
    %v1091 = vunpack.c.l.b16 %v237
    %v1092 = vunpack.c.h.b16 %v237
    %v1093 = vunpack.c.l.b16 %v238
    %v1094 = vunpack.c.h.b16 %v238
    %v1095 = vunpack.c.l.b16 %v239
    %v1096 = vunpack.c.h.b16 %v239
    %v1097 = vunpack.c.l.b16 %v240
    %v1098 = vunpack.c.h.b16 %v240
    %v1099 = vunpack.c.l.b16 %v241
    %v1100 = vunpack.c.h.b16 %v241
    %v1101 = vunpack.c.l.b16 %v242
    %v1102 = vunpack.c.h.b16 %v242
    %v1103 = vunpack.c.l.b16 %v243
    %v1104 = vunpack.c.h.b16 %v243
    %v1105 = vunpack.c.l.b16 %v244
    %v1106 = vunpack.c.h.b16 %v244
    %v1107 = vunpack.c.l.b16 %v245
    %v1108 = vunpack.c.h.b16 %v245
    %v1109 = vunpack.c.l.b16 %v246
    %v1110 = vunpack.c.h.b16 %v246
    %v1111 = vunpack.c.l.b16 %v247
    %v1112 = vunpack.c.h.b16 %v247
    %v1113 = vunpack.c.l.b16 %v248
    %v1114 = vunpack.c.h.b16 %v248
    %v1115 = vunpack.c.l.b16 %v249
    %v1116 = vunpack.c.h.b16 %v249
    %v1117 = vunpack.c.l.b16 %v250
    %v1118 = vunpack.c.h.b16 %v250
    %v1119 = vunpack.c.l.b16 %v251
    %v1120 = vunpack.c.h.b16 %v251
    %v1121 = vunpack.c.l.b16 %v252
    %v1122 = vunpack.c.h.b16 %v252
    %v1123 = vunpack.c.l.b16 %v253
    %v1124 = vunpack.c.h.b16 %v253
    %v1125 = vunpack.c.l.b16 %v254
    %v1126 = vunpack.c.h.b16 %v254
    %v1127 = vunpack.c.l.b16 %v255
    %v1128 = vunpack.c.h.b16 %v255
    %v1129 = vunpack.c.l.b16 %v256
    %v1130 = vunpack.c.h.b16 %v256
    %v1131 = vunpack.c.l.b16 %v257
    %v1132 = vunpack.c.h.b16 %v257
    %v1133 = vunpack.c.l.b16 %v258
    %v1134 = vunpack.c.h.b16 %v258
    %v1135 = vunpack.c.l.b16 %v259
    %v1136 = vunpack.c.h.b16 %v259
    %v1137 = vunpack.c.l.b16 %v260
    %v1138 = vunpack.c.h.b16 %v260
    %v1139 = vunpack.c.l.b16 %v261
    %v1140 = vunpack.c.h.b16 %v261
    %v1141 = vunpack.c.l.b16 %v262
    %v1142 = vunpack.c.h.b16 %v262
    %v1143 = vunpack.c.l.b16 %v263
    %v1144 = vunpack.c.h.b16 %v263
    %v1145 = vunpack.c.l.b16 %v264
    %v1146 = vunpack.c.h.b16 %v264
    %v1147 = vunpack.c.l.b16 %v265
    %v1148 = vunpack.c.h.b16 %v265
    %v1149 = vunpack.c.l.b16 %v266
    %v1150 = vunpack.c.h.b16 %v266
    %v1151 = vunpack.c.l.b16 %v267
    %v1152 = vunpack.c.h.b16 %v267
    %v1153 = vunpack.c.l.b16 %v268
    %v1154 = vunpack.c.h.b16 %v268
    %v1155 = vunpack.c.l.b16 %v269
    %v1156 = vunpack.c.h.b16 %v269
    %v1157 = vunpack.c.l.b16 %v270
    %v1158 = vunpack.c.h.b16 %v270
    %v1159 = vunpack.c.l.b16 %v271
    %v1160 = vunpack.c.h.b16 %v271
    %v1161 = vunpack.c.l.b16 %v272
    %v1162 = vunpack.c.h.b16 %v272
    %v1163 = vunpack.c.l.b16 %v273
    %v1164 = vunpack.c.h.b16 %v273
    %v1165 = vunpack.c.l.b16 %v274
    %v1166 = vunpack.c.h.b16 %v274
    %v1167 = vunpack.c.l.b16 %v275
    %v1168 = vunpack.c.h.b16 %v275
    %v1169 = vunpack.c.l.b16 %v276
    %v1170 = vunpack.c.h.b16 %v276
    %v1171 = vunpack.c.l.b16 %v277
    %v1172 = vunpack.c.h.b16 %v277
    %v1173 = vunpack.c.l.b16 %v278
    %v1174 = vunpack.c.h.b16 %v278
    %v1175 = vunpack.c.l.b16 %v279
    %v1176 = vunpack.c.h.b16 %v279
    %v1177 = vunpack.c.l.b16 %v280
    %v1178 = vunpack.c.h.b16 %v280
    %v1179 = vunpack.c.l.b16 %v281
    %v1180 = vunpack.c.h.b16 %v281
    %v1181 = vunpack.c.l.b16 %v282
    %v1182 = vunpack.c.h.b16 %v282
    %v1183 = vunpack.c.l.b16 %v283
    %v1184 = vunpack.c.h.b16 %v283
    %v1185 = vunpack.c.l.b16 %v284
    %v1186 = vunpack.c.h.b16 %v284
    %v1187 = vunpack.c.l.b16 %v285
    %v1188 = vunpack.c.h.b16 %v285
    %v1189 = vunpack.c.l.b16 %v286
    %v1190 = vunpack.c.h.b16 %v286
    %v1191 = vunpack.c.l.b16 %v287
    %v1192 = vunpack.c.h.b16 %v287
    %v1193 = vunpack.c.l.b16 %v288
    %v1194 = vunpack.c.h.b16 %v288
    %v1195 = vunpack.c.l.b16 %v289
    %v1196 = vunpack.c.h.b16 %v289
    %v1197 = vunpack.c.l.b16 %v290
    %v1198 = vunpack.c.h.b16 %v290
    %v1199 = vunpack.c.l.b16 %v291
    %v1200 = vunpack.c.h.b16 %v291
    %v1201 = vunpack.c.l.b16 %v292
    %v1202 = vunpack.c.h.b16 %v292
    %v1203 = vunpack.c.l.b16 %v293
    %v1204 = vunpack.c.h.b16 %v293
    %v1205 = vunpack.c.l.b16 %v294
    %v1206 = vunpack.c.h.b16 %v294
    %v1207 = vunpack.c.l.b16 %v295
    %v1208 = vunpack.c.h.b16 %v295
    %v1209 = vunpack.c.l.b16 %v296
    %v1210 = vunpack.c.h.b16 %v296
    %v1211 = vunpack.c.l.b16 %v297
    %v1212 = vunpack.c.h.b16 %v297
    %v1213 = vunpack.c.l.b16 %v298
    %v1214 = vunpack.c.h.b16 %v298
    %v1215 = vunpack.c.l.b16 %v299
    %v1216 = vunpack.c.h.b16 %v299
    %v1217 = vunpack.c.l.b16 %v300
    %v1218 = vunpack.c.h.b16 %v300
    %v1219 = vunpack.c.l.b16 %v301
    %v1220 = vunpack.c.h.b16 %v301
    %v1221 = vunpack.c.l.b16 %v302
    %v1222 = vunpack.c.h.b16 %v302
    %v1223 = vunpack.c.l.b16 %v303
    %v1224 = vunpack.c.h.b16 %v303
    %v1225 = vunpack.c.l.b16 %v304
    %v1226 = vunpack.c.h.b16 %v304
    %v1227 = vunpack.c.l.b16 %v305
    %v1228 = vunpack.c.h.b16 %v305
    %v1229 = vunpack.c.l.b16 %v306
    %v1230 = vunpack.c.h.b16 %v306
    %v1231 = vunpack.c.l.b16 %v307
    %v1232 = vunpack.c.h.b16 %v307
    %v1233 = vunpack.c.l.b16 %v308
    %v1234 = vunpack.c.h.b16 %v308
    %v1235 = vpack.c.b16 %v665, %v659
    %v1236 = vpack.c.b16 %v666, %v660
    %v1237 = vpack.c.b16 %v667, %v661
    %v1238 = vpack.c.b16 %v668, %v662
    %v1239 = vpack.c.b16 %v669, %v663
    %v1240 = vpack.c.b16 %v670, %v664
    %v1241 = vpack.c.b16 %v677, %v671
    %v1242 = vpack.c.b16 %v678, %v672
    %v1243 = vpack.c.b16 %v679, %v673
    %v1244 = vpack.c.b16 %v680, %v674
    %v1245 = vpack.c.b16 %v681, %v675
    %v1246 = vpack.c.b16 %v682, %v676
    %v1247 = vpack.c.b16 %v689, %v683
    %v1248 = vpack.c.b16 %v690, %v684
    %v1249 = vpack.c.b16 %v691, %v685
    %v1250 = vpack.c.b16 %v692, %v686
    %v1251 = vpack.c.b16 %v693, %v687
    %v1252 = vpack.c.b16 %v694, %v688
    %v1253 = vpack.c.b16 %v701, %v695
    %v1254 = vpack.c.b16 %v702, %v696
    %v1255 = vpack.c.b16 %v703, %v697
    %v1256 = vpack.c.b16 %v704, %v698
    %v1257 = vpack.c.b16 %v705, %v699
    %v1258 = vpack.c.b16 %v706, %v700
    %v1259 = vpack.c.b16 %v713, %v707
    %v1260 = vpack.c.b16 %v714, %v708
    %v1261 = vpack.c.b16 %v715, %v709
    %v1262 = vpack.c.b16 %v716, %v710
    %v1263 = vpack.c.b16 %v717, %v711
    %v1264 = vpack.c.b16 %v718, %v712
    %v1265 = vpack.c.b16 %v725, %v719
    %v1266 = vpack.c.b16 %v726, %v720
    %v1267 = vpack.c.b16 %v727, %v721
    %v1268 = vpack.c.b16 %v728, %v722
    %v1269 = vpack.c.b16 %v729, %v723
    %v1270 = vpack.c.b16 %v730, %v724
    %v1271 = vpack.c.b16 %v737, %v731
    %v1272 = vpack.c.b16 %v738, %v732
    %v1273 = vpack.c.b16 %v739, %v733
    %v1274 = vpack.c.b16 %v740, %v734
    %v1275 = vpack.c.b16 %v741, %v735
    %v1276 = vpack.c.b16 %v742, %v736
    %v1277 = vpack.c.b16 %v749, %v743
    %v1278 = vpack.c.b16 %v750, %v744
    %v1279 = vpack.c.b16 %v751, %v745
    %v1280 = vpack.c.b16 %v752, %v746
    %v1281 = vpack.c.b16 %v753, %v747
    %v1282 = vpack.c.b16 %v754, %v748
    %v1283 = vpack.c.b16 %v761, %v755
    %v1284 = vpack.c.b16 %v762, %v756
    %v1285 = vpack.c.b16 %v763, %v757
    %v1286 = vpack.c.b16 %v764, %v758
    %v1287 = vpack.c.b16 %v765, %v759
    %v1288 = vpack.c.b16 %v766, %v760
    %v1289 = vpack.c.b16 %v773, %v767
    %v1290 = vpack.c.b16 %v774, %v768
    %v1291 = vpack.c.b16 %v775, %v769
    %v1292 = vpack.c.b16 %v776, %v770
    %v1293 = vpack.c.b16 %v777, %v771
    %v1294 = vpack.c.b16 %v778, %v772
    %v1295 = vpack.c.b16 %v785, %v779
    %v1296 = vpack.c.b16 %v786, %v780
    %v1297 = vpack.c.b16 %v787, %v781
    %v1298 = vpack.c.b16 %v788, %v782
    %v1299 = vpack.c.b16 %v789, %v783
    %v1300 = vpack.c.b16 %v790, %v784
    %v1301 = vpack.c.b16 %v797, %v791
    %v1302 = vpack.c.b16 %v798, %v792
    %v1303 = vpack.c.b16 %v799, %v793
    %v1304 = vpack.c.b16 %v800, %v794
    %v1305 = vpack.c.b16 %v801, %v795
    %v1306 = vpack.c.b16 %v802, %v796
    %v1307 = vpack.c.b16 %v809, %v803
    %v1308 = vpack.c.b16 %v810, %v804
    %v1309 = vpack.c.b16 %v811, %v805
    %v1310 = vpack.c.b16 %v812, %v806
    %v1311 = vpack.c.b16 %v813, %v807
    %v1312 = vpack.c.b16 %v814, %v808
    %v1313 = vpack.c.b16 %v821, %v815
    %v1314 = vpack.c.b16 %v822, %v816
    %v1315 = vpack.c.b16 %v823, %v817
    %v1316 = vpack.c.b16 %v824, %v818
    %v1317 = vpack.c.b16 %v825, %v819
    %v1318 = vpack.c.b16 %v826, %v820
    %v1319 = vpack.c.b16 %v833, %v827
    %v1320 = vpack.c.b16 %v834, %v828
    %v1321 = vpack.c.b16 %v835, %v829
    %v1322 = vpack.c.b16 %v836, %v830
    %v1323 = vpack.c.b16 %v837, %v831
    %v1324 = vpack.c.b16 %v838, %v832
    %v1325 = vpack.c.b16 %v845, %v839
    %v1326 = vpack.c.b16 %v846, %v840
    %v1327 = vpack.c.b16 %v847, %v841
    %v1328 = vpack.c.b16 %v848, %v842
    %v1329 = vpack.c.b16 %v849, %v843
    %v1330 = vpack.c.b16 %v850, %v844
    %v1331 = vpack.c.b16 %v857, %v851
    %v1332 = vpack.c.b16 %v858, %v852
    %v1333 = vpack.c.b16 %v859, %v853
    %v1334 = vpack.c.b16 %v860, %v854
    %v1335 = vpack.c.b16 %v861, %v855
    %v1336 = vpack.c.b16 %v862, %v856
    %v1337 = vpack.c.b16 %v869, %v863
    %v1338 = vpack.c.b16 %v870, %v864
    %v1339 = vpack.c.b16 %v871, %v865
    %v1340 = vpack.c.b16 %v872, %v866
    %v1341 = vpack.c.b16 %v873, %v867
    %v1342 = vpack.c.b16 %v874, %v868
    %v1343 = vpack.c.b16 %v881, %v875
    %v1344 = vpack.c.b16 %v882, %v876
    %v1345 = vpack.c.b16 %v883, %v877
    %v1346 = vpack.c.b16 %v884, %v878
    %v1347 = vpack.c.b16 %v885, %v879
    %v1348 = vpack.c.b16 %v886, %v880
    %v1349 = vpack.c.b16 %v893, %v887
    %v1350 = vpack.c.b16 %v894, %v888
    %v1351 = vpack.c.b16 %v895, %v889
    %v1352 = vpack.c.b16 %v896, %v890
    %v1353 = vpack.c.b16 %v897, %v891
    %v1354 = vpack.c.b16 %v898, %v892
    %v1355 = vpack.c.b16 %v905, %v899
    %v1356 = vpack.c.b16 %v906, %v900
    %v1357 = vpack.c.b16 %v907, %v901
    %v1358 = vpack.c.b16 %v908, %v902
    %v1359 = vpack.c.b16 %v909, %v903
    %v1360 = vpack.c.b16 %v910, %v904
    %v1361 = vpack.c.b16 %v917, %v911
    %v1362 = vpack.c.b16 %v918, %v912
    %v1363 = vpack.c.b16 %v919, %v913
    %v1364 = vpack.c.b16 %v920, %v914
    %v1365 = vpack.c.b16 %v921, %v915
    %v1366 = vpack.c.b16 %v922, %v916
    %v1367 = vpack.c.b16 %v929, %v923
    %v1368 = vpack.c.b16 %v930, %v924
    %v1369 = vpack.c.b16 %v931, %v925
    %v1370 = vpack.c.b16 %v932, %v926
    %v1371 = vpack.c.b16 %v933, %v927
    %v1372 = vpack.c.b16 %v934, %v928
    %v1373 = vpack.c.b16 %v941, %v935
    %v1374 = vpack.c.b16 %v942, %v936
    %v1375 = vpack.c.b16 %v943, %v937
    %v1376 = vpack.c.b16 %v944, %v938
    %v1377 = vpack.c.b16 %v945, %v939
    %v1378 = vpack.c.b16 %v946, %v940
    %v1379 = vpack.c.b16 %v953, %v947
    %v1380 = vpack.c.b16 %v954, %v948
    %v1381 = vpack.c.b16 %v955, %v949
    %v1382 = vpack.c.b16 %v956, %v950
    %v1383 = vpack.c.b16 %v957, %v951
    %v1384 = vpack.c.b16 %v958, %v952
    %v1385 = vpack.c.b16 %v965, %v959
    %v1386 = vpack.c.b16 %v966, %v960
    %v1387 = vpack.c.b16 %v967, %v961
    %v1388 = vpack.c.b16 %v968, %v962
    %v1389 = vpack.c.b16 %v969, %v963
    %v1390 = vpack.c.b16 %v970, %v964
    %v1391 = vpack.c.b16 %v977, %v971
    %v1392 = vpack.c.b16 %v978, %v972
    %v1393 = vpack.c.b16 %v979, %v973
    %v1394 = vpack.c.b16 %v980, %v974
    %v1395 = vpack.c.b16 %v981, %v975
    %v1396 = vpack.c.b16 %v982, %v976
    %v1397 = vpack.c.b16 %v989, %v983
    %v1398 = vpack.c.b16 %v990, %v984
    %v1399 = vpack.c.b16 %v991, %v985
    %v1400 = vpack.c.b16 %v992, %v986
    %v1401 = vpack.c.b16 %v993, %v987
    %v1402 = vpack.c.b16 %v994, %v988
    %v1403 = vpack.c.b16 %v1001, %v995
    %v1404 = vpack.c.b16 %v1002, %v996
    %v1405 = vpack.c.b16 %v1003, %v997
    %v1406 = vpack.c.b16 %v1004, %v998
    %v1407 = vpack.c.b16 %v1005, %v999
    %v1408 = vpack.c.b16 %v1006, %v1000
    %v1409 = vpack.c.b16 %v1013, %v1007
    %v1410 = vpack.c.b16 %v1014, %v1008
    %v1411 = vpack.c.b16 %v1015, %v1009
    %v1412 = vpack.c.b16 %v1016, %v1010
    %v1413 = vpack.c.b16 %v1017, %v1011
    %v1414 = vpack.c.b16 %v1018, %v1012
    %v1415 = vpack.c.b16 %v1025, %v1019
    %v1416 = vpack.c.b16 %v1026, %v1020
    %v1417 = vpack.c.b16 %v1027, %v1021
    %v1418 = vpack.c.b16 %v1028, %v1022
    %v1419 = vpack.c.b16 %v1029, %v1023
    %v1420 = vpack.c.b16 %v1030, %v1024
    %v1421 = vpack.c.b16 %v1037, %v1031
    %v1422 = vpack.c.b16 %v1038, %v1032
    %v1423 = vpack.c.b16 %v1039, %v1033
    %v1424 = vpack.c.b16 %v1040, %v1034
    %v1425 = vpack.c.b16 %v1041, %v1035
    %v1426 = vpack.c.b16 %v1042, %v1036
    %v1427 = vpack.c.b16 %v1049, %v1043
    %v1428 = vpack.c.b16 %v1050, %v1044
    %v1429 = vpack.c.b16 %v1051, %v1045
    %v1430 = vpack.c.b16 %v1052, %v1046
    %v1431 = vpack.c.b16 %v1053, %v1047
    %v1432 = vpack.c.b16 %v1054, %v1048
    %v1433 = vpack.c.b16 %v1061, %v1055
    %v1434 = vpack.c.b16 %v1062, %v1056
    %v1435 = vpack.c.b16 %v1063, %v1057
    %v1436 = vpack.c.b16 %v1064, %v1058
    %v1437 = vpack.c.b16 %v1065, %v1059
    %v1438 = vpack.c.b16 %v1066, %v1060
    %v1439 = vpack.c.b16 %v1073, %v1067
    %v1440 = vpack.c.b16 %v1074, %v1068
    %v1441 = vpack.c.b16 %v1075, %v1069
    %v1442 = vpack.c.b16 %v1076, %v1070
    %v1443 = vpack.c.b16 %v1077, %v1071
    %v1444 = vpack.c.b16 %v1078, %v1072
    %v1445 = vpack.c.b16 %v1085, %v1079
    %v1446 = vpack.c.b16 %v1086, %v1080
    %v1447 = vpack.c.b16 %v1087, %v1081
    %v1448 = vpack.c.b16 %v1088, %v1082
    %v1449 = vpack.c.b16 %v1089, %v1083
    %v1450 = vpack.c.b16 %v1090, %v1084
    %v1451 = vpack.c.b16 %v1097, %v1091
    %v1452 = vpack.c.b16 %v1098, %v1092
    %v1453 = vpack.c.b16 %v1099, %v1093
    %v1454 = vpack.c.b16 %v1100, %v1094
    %v1455 = vpack.c.b16 %v1101, %v1095
    %v1456 = vpack.c.b16 %v1102, %v1096
    %v1457 = vpack.c.b16 %v1109, %v1103
    %v1458 = vpack.c.b16 %v1110, %v1104
    %v1459 = vpack.c.b16 %v1111, %v1105
    %v1460 = vpack.c.b16 %v1112, %v1106
    %v1461 = vpack.c.b16 %v1113, %v1107
    %v1462 = vpack.c.b16 %v1114, %v1108
    %v1463 = vpack.c.b16 %v1121, %v1115
    %v1464 = vpack.c.b16 %v1122, %v1116
    %v1465 = vpack.c.b16 %v1123, %v1117
    %v1466 = vpack.c.b16 %v1124, %v1118
    %v1467 = vpack.c.b16 %v1125, %v1119
    %v1468 = vpack.c.b16 %v1126, %v1120
    %v1469 = vpack.c.b16 %v1133, %v1127
    %v1470 = vpack.c.b16 %v1134, %v1128
    %v1471 = vpack.c.b16 %v1135, %v1129
    %v1472 = vpack.c.b16 %v1136, %v1130
    %v1473 = vpack.c.b16 %v1137, %v1131
    %v1474 = vpack.c.b16 %v1138, %v1132
    %v1475 = vpack.c.b16 %v1145, %v1139
    %v1476 = vpack.c.b16 %v1146, %v1140
    %v1477 = vpack.c.b16 %v1147, %v1141
    %v1478 = vpack.c.b16 %v1148, %v1142
    %v1479 = vpack.c.b16 %v1149, %v1143
    %v1480 = vpack.c.b16 %v1150, %v1144
    %v1481 = vpack.c.b16 %v1157, %v1151
    %v1482 = vpack.c.b16 %v1158, %v1152
    %v1483 = vpack.c.b16 %v1159, %v1153
    %v1484 = vpack.c.b16 %v1160, %v1154
    %v1485 = vpack.c.b16 %v1161, %v1155
    %v1486 = vpack.c.b16 %v1162, %v1156
    %v1487 = vpack.c.b16 %v1169, %v1163
    %v1488 = vpack.c.b16 %v1170, %v1164
    %v1489 = vpack.c.b16 %v1171, %v1165
    %v1490 = vpack.c.b16 %v1172, %v1166
    %v1491 = vpack.c.b16 %v1173, %v1167
    %v1492 = vpack.c.b16 %v1174, %v1168
    %v1493 = vpack.c.b16 %v1181, %v1175
    %v1494 = vpack.c.b16 %v1182, %v1176
    %v1495 = vpack.c.b16 %v1183, %v1177
    %v1496 = vpack.c.b16 %v1184, %v1178
    %v1497 = vpack.c.b16 %v1185, %v1179
    %v1498 = vpack.c.b16 %v1186, %v1180
    %v1499 = vpack.c.b16 %v1193, %v1187
    %v1500 = vpack.c.b16 %v1194, %v1188
    %v1501 = vpack.c.b16 %v1195, %v1189
    %v1502 = vpack.c.b16 %v1196, %v1190
    %v1503 = vpack.c.b16 %v1197, %v1191
    %v1504 = vpack.c.b16 %v1198, %v1192
    %v1505 = vpack.c.b16 %v1205, %v1199
    %v1506 = vpack.c.b16 %v1206, %v1200
    %v1507 = vpack.c.b16 %v1207, %v1201
    %v1508 = vpack.c.b16 %v1208, %v1202
    %v1509 = vpack.c.b16 %v1209, %v1203
    %v1510 = vpack.c.b16 %v1210, %v1204
    %v1511 = vpack.c.b16 %v1217, %v1211
    %v1512 = vpack.c.b16 %v1218, %v1212
    %v1513 = vpack.c.b16 %v1219, %v1213
    %v1514 = vpack.c.b16 %v1220, %v1214
    %v1515 = vpack.c.b16 %v1221, %v1215
    %v1516 = vpack.c.b16 %v1222, %v1216
    %v1517 = vpack.c.b16 %v1229, %v1223
    %v1518 = vpack.c.b16 %v1230, %v1224
    %v1519 = vpack.c.b16 %v1231, %v1225
    %v1520 = vpack.c.b16 %v1232, %v1226
    %v1521 = vpack.c.b16 %v1233, %v1227
    %v1522 = vpack.c.b16 %v1234, %v1228
    %1811 = vmatprep.subr.bf16.mxu0 %v1278
    %1812 = vmatpush1.bf16.msra.mxu0 %v1277
    %1813 = vmatprep.subr.bf16.mxu0 %v1272
    %1814 = vmatpush1.bf16.msra.mxu0 %v1271
    %1815 = vmatprep.subr.bf16.mxu0 %v1266
    %1816 = vmatpush1.bf16.msra.mxu0 %v1265
    %1817 = vmatprep.subr.bf16.mxu0 %v1260
    %1818 = vmatpush1.bf16.msra.mxu0 %v1259
    %1819 = vmatprep.subr.bf16.mxu0 %v1254
    %1820 = vmatpush1.bf16.msra.mxu0 %v1253
    %1821 = vmatprep.subr.bf16.mxu0 %v1248
    %1822 = vmatpush1.bf16.msra.mxu0 %v1247
    %1823 = vmatprep.subr.bf16.mxu0 %v1242
    %1824 = vmatpush1.bf16.msra.mxu0 %v1241
    %1825 = vmatprep.subr.bf16.mxu0 %v1236
    %1826 = vmatpush1.bf16.msra.mxu0 %v1235
    %1827 = vmatprep.subr.bf16.mxu0 %v1326
    %1828 = vmatpush2.bf16.msra.mxu0 %v1325
    %1829 = vmatprep.subr.bf16.mxu0 %v1320
    %1830 = vmatpush2.bf16.msra.mxu0 %v1319
    %1831 = vmatprep.subr.bf16.mxu0 %v1314
    %1832 = vmatpush2.bf16.msra.mxu0 %v1313
    %1833 = vmatprep.subr.bf16.mxu0 %v1308
    %1834 = vmatpush2.bf16.msra.mxu0 %v1307
    %1835 = vmatprep.subr.bf16.mxu0 %v1302
    %1836 = vmatpush2.bf16.msra.mxu0 %v1301
    %1837 = vmatprep.subr.bf16.mxu0 %v1296
    %1838 = vmatpush2.bf16.msra.mxu0 %v1295
    %1839 = vmatprep.subr.bf16.mxu0 %v1290
    %1840 = vmatpush2.bf16.msra.mxu0 %v1289
    %1841 = vmatprep.subr.bf16.mxu0 %v1284
    %1842 = vmatpush2.bf16.msra.mxu0 %v1283
    %1843 = vmatprep.mubr.bf16.mxu0 %v360
    %1844 = vmatmul.mubr.bf16.gmra.mxu0 %v359
    %v1845 = vpop.f32.mrf.mxu0
    %v1846 = vadd.f32 %v314, %v1845
    %v1847 = vpop.f32.mrf.mxu0
    %v1848 = vadd.f32 %v318, %v1847
    %v1849 = vpop.f32.mrf.mxu0
    %v1850 = vadd.f32 %v314, %v1849
    %v1851 = vpop.f32.mrf.mxu0
    %v1852 = vadd.f32 %v318, %v1851
    %1853 = vdwg.mxu0
    %1854 = vmatprep.subr.bf16.mxu0 %v1374
    %1855 = vmatpush1.bf16.msra.mxu0 %v1373
    %1856 = vmatprep.subr.bf16.mxu0 %v1368
    %1857 = vmatpush1.bf16.msra.mxu0 %v1367
    %1858 = vmatprep.subr.bf16.mxu0 %v1362
    %1859 = vmatpush1.bf16.msra.mxu0 %v1361
    %1860 = vmatprep.subr.bf16.mxu0 %v1356
    %1861 = vmatpush1.bf16.msra.mxu0 %v1355
    %1862 = vmatprep.subr.bf16.mxu0 %v1350
    %1863 = vmatpush1.bf16.msra.mxu0 %v1349
    %1864 = vmatprep.subr.bf16.mxu0 %v1344
    %1865 = vmatpush1.bf16.msra.mxu0 %v1343
    %1866 = vmatprep.subr.bf16.mxu0 %v1338
    %1867 = vmatpush1.bf16.msra.mxu0 %v1337
    %1868 = vmatprep.subr.bf16.mxu0 %v1332
    %1869 = vmatpush1.bf16.msra.mxu0 %v1331
    %1870 = vmatprep.subr.bf16.mxu0 %v1422
    %1871 = vmatpush2.bf16.msra.mxu0 %v1421
    %1872 = vmatprep.subr.bf16.mxu0 %v1416
    %1873 = vmatpush2.bf16.msra.mxu0 %v1415
    %1874 = vmatprep.subr.bf16.mxu0 %v1410
    %1875 = vmatpush2.bf16.msra.mxu0 %v1409
    %1876 = vmatprep.subr.bf16.mxu0 %v1404
    %1877 = vmatpush2.bf16.msra.mxu0 %v1403
    %1878 = vmatprep.subr.bf16.mxu0 %v1398
    %1879 = vmatpush2.bf16.msra.mxu0 %v1397
    %1880 = vmatprep.subr.bf16.mxu0 %v1392
    %1881 = vmatpush2.bf16.msra.mxu0 %v1391
    %1882 = vmatprep.subr.bf16.mxu0 %v1386
    %1883 = vmatpush2.bf16.msra.mxu0 %v1385
    %1884 = vmatprep.subr.bf16.mxu0 %v1380
    %1885 = vmatpush2.bf16.msra.mxu0 %v1379
    %1886 = vmatprep.mubr.bf16.mxu0 %v362
    %1887 = vmatmul.mubr.bf16.gmra.mxu0 %v361
    %v1888 = vpop.f32.mrf.mxu0
    %v1889 = vadd.f32 %v1846, %v1888
    %v1890 = vpop.f32.mrf.mxu0
    %v1891 = vadd.f32 %v1848, %v1890
    %v1892 = vpop.f32.mrf.mxu0
    %v1893 = vadd.f32 %v1850, %v1892
    %v1894 = vpop.f32.mrf.mxu0
    %v1895 = vadd.f32 %v1852, %v1894
    %1896 = vdwg.mxu0
    %1897 = vmatprep.subr.bf16.mxu0 %v1470
    %1898 = vmatpush1.bf16.msra.mxu0 %v1469
    %1899 = vmatprep.subr.bf16.mxu0 %v1464
    %1900 = vmatpush1.bf16.msra.mxu0 %v1463
    %1901 = vmatprep.subr.bf16.mxu0 %v1458
    %1902 = vmatpush1.bf16.msra.mxu0 %v1457
    %1903 = vmatprep.subr.bf16.mxu0 %v1452
    %1904 = vmatpush1.bf16.msra.mxu0 %v1451
    %1905 = vmatprep.subr.bf16.mxu0 %v1446
    %1906 = vmatpush1.bf16.msra.mxu0 %v1445
    %1907 = vmatprep.subr.bf16.mxu0 %v1440
    %1908 = vmatpush1.bf16.msra.mxu0 %v1439
    %1909 = vmatprep.subr.bf16.mxu0 %v1434
    %1910 = vmatpush1.bf16.msra.mxu0 %v1433
    %1911 = vmatprep.subr.bf16.mxu0 %v1428
    %1912 = vmatpush1.bf16.msra.mxu0 %v1427
    %1913 = vmatprep.subr.bf16.mxu0 %v1518
    %1914 = vmatpush2.bf16.msra.mxu0 %v1517
    %1915 = vmatprep.subr.bf16.mxu0 %v1512
    %1916 = vmatpush2.bf16.msra.mxu0 %v1511
    %1917 = vmatprep.subr.bf16.mxu0 %v1506
    %1918 = vmatpush2.bf16.msra.mxu0 %v1505
    %1919 = vmatprep.subr.bf16.mxu0 %v1500
    %1920 = vmatpush2.bf16.msra.mxu0 %v1499
    %1921 = vmatprep.subr.bf16.mxu0 %v1494
    %1922 = vmatpush2.bf16.msra.mxu0 %v1493
    %1923 = vmatprep.subr.bf16.mxu0 %v1488
    %1924 = vmatpush2.bf16.msra.mxu0 %v1487
    %1925 = vmatprep.subr.bf16.mxu0 %v1482
    %1926 = vmatpush2.bf16.msra.mxu0 %v1481
    %1927 = vmatprep.subr.bf16.mxu0 %v1476
    %1928 = vmatpush2.bf16.msra.mxu0 %v1475
    %1929 = vmatprep.mubr.bf16.mxu0 %v364
    %1930 = vmatmul.mubr.bf16.gmra.mxu0 %v363
    %v1931 = vpop.f32.mrf.mxu0
    %v1932 = vadd.f32 %v1889, %v1931
    %v1933 = vpop.f32.mrf.mxu0
    %v1934 = vadd.f32 %v1891, %v1933
    %v1935 = vpop.f32.mrf.mxu0
    %v1936 = vadd.f32 %v1893, %v1935
    %v1937 = vpop.f32.mrf.mxu0
    %v1938 = vadd.f32 %v1895, %v1937
    %1939 = vdwg.mxu0
    %1940 = vmatprep.subr.bf16.mxu0 %v1280
    %1941 = vmatpush1.bf16.msra.mxu0 %v1279
    %1942 = vmatprep.subr.bf16.mxu0 %v1274
    %1943 = vmatpush1.bf16.msra.mxu0 %v1273
    %1944 = vmatprep.subr.bf16.mxu0 %v1268
    %1945 = vmatpush1.bf16.msra.mxu0 %v1267
    %1946 = vmatprep.subr.bf16.mxu0 %v1262
    %1947 = vmatpush1.bf16.msra.mxu0 %v1261
    %1948 = vmatprep.subr.bf16.mxu0 %v1256
    %1949 = vmatpush1.bf16.msra.mxu0 %v1255
    %1950 = vmatprep.subr.bf16.mxu0 %v1250
    %1951 = vmatpush1.bf16.msra.mxu0 %v1249
    %1952 = vmatprep.subr.bf16.mxu0 %v1244
    %1953 = vmatpush1.bf16.msra.mxu0 %v1243
    %1954 = vmatprep.subr.bf16.mxu0 %v1238
    %1955 = vmatpush1.bf16.msra.mxu0 %v1237
    %1956 = vmatprep.subr.bf16.mxu0 %v1328
    %1957 = vmatpush2.bf16.msra.mxu0 %v1327
    %1958 = vmatprep.subr.bf16.mxu0 %v1322
    %1959 = vmatpush2.bf16.msra.mxu0 %v1321
    %1960 = vmatprep.subr.bf16.mxu0 %v1316
    %1961 = vmatpush2.bf16.msra.mxu0 %v1315
    %1962 = vmatprep.subr.bf16.mxu0 %v1310
    %1963 = vmatpush2.bf16.msra.mxu0 %v1309
    %1964 = vmatprep.subr.bf16.mxu0 %v1304
    %1965 = vmatpush2.bf16.msra.mxu0 %v1303
    %1966 = vmatprep.subr.bf16.mxu0 %v1298
    %1967 = vmatpush2.bf16.msra.mxu0 %v1297
    %1968 = vmatprep.subr.bf16.mxu0 %v1292
    %1969 = vmatpush2.bf16.msra.mxu0 %v1291
    %1970 = vmatprep.subr.bf16.mxu0 %v1286
    %1971 = vmatpush2.bf16.msra.mxu0 %v1285
    %1972 = vmatprep.mubr.bf16.mxu0 %v360
    %1973 = vmatmul.mubr.bf16.gmra.mxu0 %v359
    %v1974 = vpop.f32.mrf.mxu0
    %v1975 = vadd.f32 %v322, %v1974
    %v1976 = vpop.f32.mrf.mxu0
    %v1977 = vadd.f32 %v326, %v1976
    %v1978 = vpop.f32.mrf.mxu0
    %v1979 = vadd.f32 %v322, %v1978
    %v1980 = vpop.f32.mrf.mxu0
    %v1981 = vadd.f32 %v326, %v1980
    %1982 = vdwg.mxu0
    %1983 = vmatprep.subr.bf16.mxu0 %v1376
    %1984 = vmatpush1.bf16.msra.mxu0 %v1375
    %1985 = vmatprep.subr.bf16.mxu0 %v1370
    %1986 = vmatpush1.bf16.msra.mxu0 %v1369
    %1987 = vmatprep.subr.bf16.mxu0 %v1364
    %1988 = vmatpush1.bf16.msra.mxu0 %v1363
    %1989 = vmatprep.subr.bf16.mxu0 %v1358
    %1990 = vmatpush1.bf16.msra.mxu0 %v1357
    %1991 = vmatprep.subr.bf16.mxu0 %v1352
    %1992 = vmatpush1.bf16.msra.mxu0 %v1351
    %1993 = vmatprep.subr.bf16.mxu0 %v1346
    %1994 = vmatpush1.bf16.msra.mxu0 %v1345
    %1995 = vmatprep.subr.bf16.mxu0 %v1340
    %1996 = vmatpush1.bf16.msra.mxu0 %v1339
    %1997 = vmatprep.subr.bf16.mxu0 %v1334
    %1998 = vmatpush1.bf16.msra.mxu0 %v1333
    %1999 = vmatprep.subr.bf16.mxu0 %v1424
    %2000 = vmatpush2.bf16.msra.mxu0 %v1423
    %2001 = vmatprep.subr.bf16.mxu0 %v1418
    %2002 = vmatpush2.bf16.msra.mxu0 %v1417
    %2003 = vmatprep.subr.bf16.mxu0 %v1412
    %2004 = vmatpush2.bf16.msra.mxu0 %v1411
    %2005 = vmatprep.subr.bf16.mxu0 %v1406
    %2006 = vmatpush2.bf16.msra.mxu0 %v1405
    %2007 = vmatprep.subr.bf16.mxu0 %v1400
    %2008 = vmatpush2.bf16.msra.mxu0 %v1399
    %2009 = vmatprep.subr.bf16.mxu0 %v1394
    %2010 = vmatpush2.bf16.msra.mxu0 %v1393
    %2011 = vmatprep.subr.bf16.mxu0 %v1388
    %2012 = vmatpush2.bf16.msra.mxu0 %v1387
    %2013 = vmatprep.subr.bf16.mxu0 %v1382
    %2014 = vmatpush2.bf16.msra.mxu0 %v1381
    %2015 = vmatprep.mubr.bf16.mxu0 %v362
    %2016 = vmatmul.mubr.bf16.gmra.mxu0 %v361
    %v2017 = vpop.f32.mrf.mxu0
    %v2018 = vadd.f32 %v1975, %v2017
    %v2019 = vpop.f32.mrf.mxu0
    %v2020 = vadd.f32 %v1977, %v2019
    %v2021 = vpop.f32.mrf.mxu0
    %v2022 = vadd.f32 %v1979, %v2021
    %v2023 = vpop.f32.mrf.mxu0
    %v2024 = vadd.f32 %v1981, %v2023
    %2025 = vdwg.mxu0
    %2026 = vmatprep.subr.bf16.mxu0 %v1472
    %2027 = vmatpush1.bf16.msra.mxu0 %v1471
    %2028 = vmatprep.subr.bf16.mxu0 %v1466
    %2029 = vmatpush1.bf16.msra.mxu0 %v1465
    %2030 = vmatprep.subr.bf16.mxu0 %v1460
    %2031 = vmatpush1.bf16.msra.mxu0 %v1459
    %2032 = vmatprep.subr.bf16.mxu0 %v1454
    %2033 = vmatpush1.bf16.msra.mxu0 %v1453
    %2034 = vmatprep.subr.bf16.mxu0 %v1448
    %2035 = vmatpush1.bf16.msra.mxu0 %v1447
    %2036 = vmatprep.subr.bf16.mxu0 %v1442
    %2037 = vmatpush1.bf16.msra.mxu0 %v1441
    %2038 = vmatprep.subr.bf16.mxu0 %v1436
    %2039 = vmatpush1.bf16.msra.mxu0 %v1435
    %2040 = vmatprep.subr.bf16.mxu0 %v1430
    %2041 = vmatpush1.bf16.msra.mxu0 %v1429
    %2042 = vmatprep.subr.bf16.mxu0 %v1520
    %2043 = vmatpush2.bf16.msra.mxu0 %v1519
    %2044 = vmatprep.subr.bf16.mxu0 %v1514
    %2045 = vmatpush2.bf16.msra.mxu0 %v1513
    %2046 = vmatprep.subr.bf16.mxu0 %v1508
    %2047 = vmatpush2.bf16.msra.mxu0 %v1507
    %2048 = vmatprep.subr.bf16.mxu0 %v1502
    %2049 = vmatpush2.bf16.msra.mxu0 %v1501
    %2050 = vmatprep.subr.bf16.mxu0 %v1496
    %2051 = vmatpush2.bf16.msra.mxu0 %v1495
    %2052 = vmatprep.subr.bf16.mxu0 %v1490
    %2053 = vmatpush2.bf16.msra.mxu0 %v1489
    %2054 = vmatprep.subr.bf16.mxu0 %v1484
    %2055 = vmatpush2.bf16.msra.mxu0 %v1483
    %2056 = vmatprep.subr.bf16.mxu0 %v1478
    %2057 = vmatpush2.bf16.msra.mxu0 %v1477
    %2058 = vmatprep.mubr.bf16.mxu0 %v364
    %2059 = vmatmul.mubr.bf16.gmra.mxu0 %v363
    %v2060 = vpop.f32.mrf.mxu0
    %v2061 = vadd.f32 %v2018, %v2060
    %v2062 = vpop.f32.mrf.mxu0
    %v2063 = vadd.f32 %v2020, %v2062
    %v2064 = vpop.f32.mrf.mxu0
    %v2065 = vadd.f32 %v2022, %v2064
    %v2066 = vpop.f32.mrf.mxu0
    %v2067 = vadd.f32 %v2024, %v2066
    %2068 = vdwg.mxu0
    %2069 = vmatprep.subr.bf16.mxu0 %v1282
    %2070 = vmatpush1.bf16.msra.mxu0 %v1281
    %2071 = vmatprep.subr.bf16.mxu0 %v1276
    %2072 = vmatpush1.bf16.msra.mxu0 %v1275
    %2073 = vmatprep.subr.bf16.mxu0 %v1270
    %2074 = vmatpush1.bf16.msra.mxu0 %v1269
    %2075 = vmatprep.subr.bf16.mxu0 %v1264
    %2076 = vmatpush1.bf16.msra.mxu0 %v1263
    %2077 = vmatprep.subr.bf16.mxu0 %v1258
    %2078 = vmatpush1.bf16.msra.mxu0 %v1257
    %2079 = vmatprep.subr.bf16.mxu0 %v1252
    %2080 = vmatpush1.bf16.msra.mxu0 %v1251
    %2081 = vmatprep.subr.bf16.mxu0 %v1246
    %2082 = vmatpush1.bf16.msra.mxu0 %v1245
    %2083 = vmatprep.subr.bf16.mxu0 %v1240
    %2084 = vmatpush1.bf16.msra.mxu0 %v1239
    %2085 = vmatprep.subr.bf16.mxu0 %v1330
    %2086 = vmatpush2.bf16.msra.mxu0 %v1329
    %2087 = vmatprep.subr.bf16.mxu0 %v1324
    %2088 = vmatpush2.bf16.msra.mxu0 %v1323
    %2089 = vmatprep.subr.bf16.mxu0 %v1318
    %2090 = vmatpush2.bf16.msra.mxu0 %v1317
    %2091 = vmatprep.subr.bf16.mxu0 %v1312
    %2092 = vmatpush2.bf16.msra.mxu0 %v1311
    %2093 = vmatprep.subr.bf16.mxu0 %v1306
    %2094 = vmatpush2.bf16.msra.mxu0 %v1305
    %2095 = vmatprep.subr.bf16.mxu0 %v1300
    %2096 = vmatpush2.bf16.msra.mxu0 %v1299
    %2097 = vmatprep.subr.bf16.mxu0 %v1294
    %2098 = vmatpush2.bf16.msra.mxu0 %v1293
    %2099 = vmatprep.subr.bf16.mxu0 %v1288
    %2100 = vmatpush2.bf16.msra.mxu0 %v1287
    %2101 = vmatprep.mubr.bf16.mxu0 %v360
    %2102 = vmatmul.mubr.bf16.gmra.mxu0 %v359
    %v2103 = vpop.f32.mrf.mxu0
    %v2104 = vadd.f32 %v330, %v2103
    %v2105 = vpop.f32.mrf.mxu0
    %v2106 = vadd.f32 %v334, %v2105
    %v2107 = vpop.f32.mrf.mxu0
    %v2108 = vadd.f32 %v330, %v2107
    %v2109 = vpop.f32.mrf.mxu0
    %v2110 = vadd.f32 %v334, %v2109
    %2111 = vdwg.mxu0
    %2112 = vmatprep.subr.bf16.mxu0 %v1378
    %2113 = vmatpush1.bf16.msra.mxu0 %v1377
    %2114 = vmatprep.subr.bf16.mxu0 %v1372
    %2115 = vmatpush1.bf16.msra.mxu0 %v1371
    %2116 = vmatprep.subr.bf16.mxu0 %v1366
    %2117 = vmatpush1.bf16.msra.mxu0 %v1365
    %2118 = vmatprep.subr.bf16.mxu0 %v1360
    %2119 = vmatpush1.bf16.msra.mxu0 %v1359
    %2120 = vmatprep.subr.bf16.mxu0 %v1354
    %2121 = vmatpush1.bf16.msra.mxu0 %v1353
    %2122 = vmatprep.subr.bf16.mxu0 %v1348
    %2123 = vmatpush1.bf16.msra.mxu0 %v1347
    %2124 = vmatprep.subr.bf16.mxu0 %v1342
    %2125 = vmatpush1.bf16.msra.mxu0 %v1341
    %2126 = vmatprep.subr.bf16.mxu0 %v1336
    %2127 = vmatpush1.bf16.msra.mxu0 %v1335
    %2128 = vmatprep.subr.bf16.mxu0 %v1426
    %2129 = vmatpush2.bf16.msra.mxu0 %v1425
    %2130 = vmatprep.subr.bf16.mxu0 %v1420
    %2131 = vmatpush2.bf16.msra.mxu0 %v1419
    %2132 = vmatprep.subr.bf16.mxu0 %v1414
    %2133 = vmatpush2.bf16.msra.mxu0 %v1413
    %2134 = vmatprep.subr.bf16.mxu0 %v1408
    %2135 = vmatpush2.bf16.msra.mxu0 %v1407
    %2136 = vmatprep.subr.bf16.mxu0 %v1402
    %2137 = vmatpush2.bf16.msra.mxu0 %v1401
    %2138 = vmatprep.subr.bf16.mxu0 %v1396
    %2139 = vmatpush2.bf16.msra.mxu0 %v1395
    %2140 = vmatprep.subr.bf16.mxu0 %v1390
    %2141 = vmatpush2.bf16.msra.mxu0 %v1389
    %2142 = vmatprep.subr.bf16.mxu0 %v1384
    %2143 = vmatpush2.bf16.msra.mxu0 %v1383
    %2144 = vmatprep.mubr.bf16.mxu0 %v362
    %2145 = vmatmul.mubr.bf16.gmra.mxu0 %v361
    %v2146 = vpop.f32.mrf.mxu0
    %v2147 = vadd.f32 %v2104, %v2146
    %v2148 = vpop.f32.mrf.mxu0
    %v2149 = vadd.f32 %v2106, %v2148
    %v2150 = vpop.f32.mrf.mxu0
    %v2151 = vadd.f32 %v2108, %v2150
    %v2152 = vpop.f32.mrf.mxu0
    %v2153 = vadd.f32 %v2110, %v2152
    %2154 = vdwg.mxu0
    %2155 = vmatprep.subr.bf16.mxu0 %v1474
    %2156 = vmatpush1.bf16.msra.mxu0 %v1473
    %2157 = vmatprep.subr.bf16.mxu0 %v1468
    %2158 = vmatpush1.bf16.msra.mxu0 %v1467
    %2159 = vmatprep.subr.bf16.mxu0 %v1462
    %2160 = vmatpush1.bf16.msra.mxu0 %v1461
    %2161 = vmatprep.subr.bf16.mxu0 %v1456
    %2162 = vmatpush1.bf16.msra.mxu0 %v1455
    %2163 = vmatprep.subr.bf16.mxu0 %v1450
    %2164 = vmatpush1.bf16.msra.mxu0 %v1449
    %2165 = vmatprep.subr.bf16.mxu0 %v1444
    %2166 = vmatpush1.bf16.msra.mxu0 %v1443
    %2167 = vmatprep.subr.bf16.mxu0 %v1438
    %2168 = vmatpush1.bf16.msra.mxu0 %v1437
    %2169 = vmatprep.subr.bf16.mxu0 %v1432
    %2170 = vmatpush1.bf16.msra.mxu0 %v1431
    %2171 = vmatprep.subr.bf16.mxu0 %v1522
    %2172 = vmatpush2.bf16.msra.mxu0 %v1521
    %2173 = vmatprep.subr.bf16.mxu0 %v1516
    %2174 = vmatpush2.bf16.msra.mxu0 %v1515
    %2175 = vmatprep.subr.bf16.mxu0 %v1510
    %2176 = vmatpush2.bf16.msra.mxu0 %v1509
    %2177 = vmatprep.subr.bf16.mxu0 %v1504
    %2178 = vmatpush2.bf16.msra.mxu0 %v1503
    %2179 = vmatprep.subr.bf16.mxu0 %v1498
    %2180 = vmatpush2.bf16.msra.mxu0 %v1497
    %2181 = vmatprep.subr.bf16.mxu0 %v1492
    %2182 = vmatpush2.bf16.msra.mxu0 %v1491
    %2183 = vmatprep.subr.bf16.mxu0 %v1486
    %2184 = vmatpush2.bf16.msra.mxu0 %v1485
    %2185 = vmatprep.subr.bf16.mxu0 %v1480
    %2186 = vmatpush2.bf16.msra.mxu0 %v1479
    %2187 = vmatprep.mubr.bf16.mxu0 %v364
    %2188 = vmatmul.mubr.bf16.gmra.mxu0 %v363
    %v2189 = vpop.f32.mrf.mxu0
    %v2190 = vadd.f32 %v2147, %v2189
    %v2191 = vpop.f32.mrf.mxu0
    %v2192 = vadd.f32 %v2149, %v2191
    %v2193 = vpop.f32.mrf.mxu0
    %v2194 = vadd.f32 %v2151, %v2193
    %v2195 = vpop.f32.mrf.mxu0
    %v2196 = vadd.f32 %v2153, %v2195
    %2197 = vdwg.mxu0
    %2198 = vst [vmem:[#allocation2] sm:$0xff] %v1932
    %2199 = vst [vmem:[#allocation2 + $0x8] sm:$0xff] %v1934
    %2200 = vst [vmem:[#allocation2 + $0x10] sm:$0xff] %v2061
    %2201 = vst [vmem:[#allocation2 + $0x18] sm:$0xff] %v2063
    %2202 = vst [vmem:[#allocation2 + $0x20] sm:$0xff] %v2190
    %2203 = vst [vmem:[#allocation2 + $0x28] sm:$0xff] %v2192
    %2204 = vst [vmem:[#allocation2 + $0x30] sm:$0xff] %v1936
    %2205 = vst [vmem:[#allocation2 + $0x38] sm:$0xff] %v1938
    %2206 = vst [vmem:[#allocation2 + $0x40] sm:$0xff] %v2065
    %2207 = vst [vmem:[#allocation2 + $0x48] sm:$0xff] %v2067
    %2208 = vst [vmem:[#allocation2 + $0x50] sm:$0xff] %v2194
    %2209 = vst [vmem:[#allocation2 + $0x58] sm:$0xff] %v2196
    // Predicated region
    $region14: #{attention_forward.5} parent=1 // pred_check
      _
    $region15: #{attention_forward.5} parent=1 // pred_check_branch
      %2211 = sbr.rel (0) target = $region17
    $region16: #{attention_forward.5} parent=1 // pred_region
      %s2213 = ssub.s32 1536, 1536
      %2214 = vsyncadd [#allocation3], %s2213
      %s2215 = sshll.u32 [#allocation2], 4
      %s2216 = int_to_ptr.vmem [resolvable:$true] %s2215
      %2221 = dma.vmem_to_hbm [thread:$0]  %s2216, 1536, %s3, [#allocation3], 768, 768, 48
    $region17: #{attention_forward.5} parent=1 // pred_fallthru
      _
    // Predicated region
    $region18: #{attention_forward.5} parent=1 // pred_check
      _
    $region19: #{attention_forward.5} parent=1 // pred_check_branch
      %2223 = sbr.rel (0) target = $region21
    $region20: #{attention_forward.5} parent=1 // pred_region
      %2224 = dma.done [#allocation3], 1536
    $region21: #{attention_forward.5} parent=1 // pred_fallthru
      _
    %2225 = vsyncpa [#allocation3], 1

// kernel: attention_forward.3
$region0: #{attention_forward.3}
  #allocation0 [shape = 'u32[]', space=smem, size = 0x4, offset = 0x4, fixed_abs, tag = 'smem constant byte address 0x4 - core index']
  #allocation1 [shape = 'u32[144,128]{1,0:T(1,128)}', space=vmem, size = 0x12000, scoped, tag = 'internal scratch']
  %s0 = inlined_call_operand.hbm [shape: f32[16,768], index: 0, kind: input, shape index: {}]
  %s1 = inlined_call_operand.hbm [shape: bf16[768,2304], index: 1, kind: input, shape index: {}]
  %s2 = inlined_call_operand.vmem [shape: f32[1,2304], index: 2, kind: input, shape index: {}]
  %s3 = inlined_call_operand.vmem [shape: bf16[16,2304], index: 3, kind: output, shape index: {}]
  %s4 = sld [smem:[#allocation0]]
  $region30: #{attention_forward.3} parent=0
    _
  %s6 = ssub.s32 1, %s4
  %s7 = scalar_select 0, %s6, %s4
  $region1: #{attention_forward.3} parent=0
    #allocation2 [shape = 'u8[49152]{0}', space=vmem, size = 0xc000, scoped, tag = 'input window, operand 0, single buffered']
    #allocation3 [shape = 's32[1]{0}', space=sflag, size = 0x4, scoped, tag = 'scoped memory for attention_forward.3']
    #allocation4 [shape = 'u8[3538944]{0}', space=vmem, size = 0x360000, scoped, tag = 'input window, operand 1, single buffered']
    #allocation5 [shape = 's32[1]{0}', space=sflag, size = 0x4, scoped, tag = 'scoped memory for attention_forward.3']
    %8 = vsyncpa [#allocation3], 0
    %9 = vsyncpa [#allocation5], 0
    // Predicated region
    $region2: #{attention_forward.3} parent=1 // pred_check
      _
    $region3: #{attention_forward.3} parent=1 // pred_check_branch
      %11 = sbr.rel (0) target = $region5
    $region4: #{attention_forward.3} parent=1 // pred_region
      %s13 = ssub.s32 1536, 1536
      %14 = vsyncadd [#allocation3], %s13
      %s15 = sshll.u32 [#allocation2], 4
      %s16 = int_to_ptr.vmem [resolvable:$true] %s15
      %21 = dma.hbm_to_vmem [thread:$0]  %s0, 1536, %s16, [#allocation3], 768, 768, 48
    $region5: #{attention_forward.3} parent=1 // pred_fallthru
      _
    // Predicated region
    $region6: #{attention_forward.3} parent=1 // pred_check
      _
    $region7: #{attention_forward.3} parent=1 // pred_check_branch
      %23 = sbr.rel (0) target = $region9
    $region8: #{attention_forward.3} parent=1 // pred_region
      %s25 = ssub.s32 110592, 110592
      %26 = vsyncadd [#allocation5], %s25
      %s27 = sshll.u32 [#allocation4], 4
      %s28 = int_to_ptr.vmem [resolvable:$true] %s27
      %33 = dma.hbm_to_vmem [thread:$0]  %s1, 110592, %s28, [#allocation5], 1152, 1152, 72
    $region9: #{attention_forward.3} parent=1 // pred_fallthru
      _
    // Predicated region
    $region10: #{attention_forward.3} parent=1 // pred_check
      _
    $region11: #{attention_forward.3} parent=1 // pred_check_branch
      %35 = sbr.rel (0) target = $region13
    $region12: #{attention_forward.3} parent=1 // pred_region
      _
    $region13: #{attention_forward.3} parent=1 // pred_fallthru
      _
    // Predicated region
    $region14: #{attention_forward.3} parent=1 // pred_check
      _
    $region15: #{attention_forward.3} parent=1 // pred_check_branch
      %37 = sbr.rel (0) target = $region17
    $region16: #{attention_forward.3} parent=1 // pred_region
      %38 = dma.done [#allocation3], 1536
    $region17: #{attention_forward.3} parent=1 // pred_fallthru
      _
    // Predicated region
    $region18: #{attention_forward.3} parent=1 // pred_check
      _
    $region19: #{attention_forward.3} parent=1 // pred_check_branch
      %40 = sbr.rel (0) target = $region21
    $region20: #{attention_forward.3} parent=1 // pred_region
      %41 = dma.done [#allocation5], 110592
    $region21: #{attention_forward.3} parent=1 // pred_fallthru
      _
    %v42 = vld [vmem:[#allocation2] sm:$0xff]
    %v43 = vld [vmem:[#allocation2 + $0x8] sm:$0xff]
    %v44 = vld [vmem:[#allocation2 + $0x10] sm:$0xff]
    %v45 = vld [vmem:[#allocation2 + $0x18] sm:$0xff]
    %v46 = vld [vmem:[#allocation2 + $0x20] sm:$0xff]
    %v47 = vld [vmem:[#allocation2 + $0x28] sm:$0xff]
    %v48 = vld [vmem:[#allocation2 + $0x30] sm:$0xff]
    %v49 = vld [vmem:[#allocation2 + $0x38] sm:$0xff]
    %v50 = vld [vmem:[#allocation2 + $0x40] sm:$0xff]
    %v51 = vld [vmem:[#allocation2 + $0x48] sm:$0xff]
    %v52 = vld [vmem:[#allocation2 + $0x50] sm:$0xff]
    %v53 = vld [vmem:[#allocation2 + $0x58] sm:$0xff]
    %v54 = vpack.c.bf16 %v48, %v42
    %v55 = vpack.c.bf16 %v49, %v43
    %v56 = vpack.c.bf16 %v50, %v44
    %v57 = vpack.c.bf16 %v51, %v45
    %v58 = vpack.c.bf16 %v52, %v46
    %v59 = vpack.c.bf16 %v53, %v47
    %v60 = vld [vmem:[#allocation4] sm:$0xff]
    %v61 = vld [vmem:[#allocation4 + $0x8] sm:$0xff]
    %v62 = vld [vmem:[#allocation4 + $0x10] sm:$0xff]
    %v63 = vld [vmem:[#allocation4 + $0x18] sm:$0xff]
    %v64 = vld [vmem:[#allocation4 + $0x20] sm:$0xff]
    %v65 = vld [vmem:[#allocation4 + $0x28] sm:$0xff]
    %v66 = vld [vmem:[#allocation4 + $0x30] sm:$0xff]
    %v67 = vld [vmem:[#allocation4 + $0x38] sm:$0xff]
    %v68 = vld [vmem:[#allocation4 + $0x40] sm:$0xff]
    %v69 = vld [vmem:[#allocation4 + $0x48] sm:$0xff]
    %v70 = vld [vmem:[#allocation4 + $0x50] sm:$0xff]
    %v71 = vld [vmem:[#allocation4 + $0x58] sm:$0xff]
    %v72 = vld [vmem:[#allocation4 + $0x60] sm:$0xff]
    %v73 = vld [vmem:[#allocation4 + $0x68] sm:$0xff]
    %v74 = vld [vmem:[#allocation4 + $0x70] sm:$0xff]
    %v75 = vld [vmem:[#allocation4 + $0x78] sm:$0xff]
    %v76 = vld [vmem:[#allocation4 + $0x80] sm:$0xff]
    %v77 = vld [vmem:[#allocation4 + $0x88] sm:$0xff]
    %v78 = vld [vmem:[#allocation4 + $0x90] sm:$0xff]
    %v79 = vld [vmem:[#allocation4 + $0x98] sm:$0xff]
    %v80 = vld [vmem:[#allocation4 + $0xa0] sm:$0xff]
    %v81 = vld [vmem:[#allocation4 + $0xa8] sm:$0xff]
    %v82 = vld [vmem:[#allocation4 + $0xb0] sm:$0xff]
    %v83 = vld [vmem:[#allocation4 + $0xb8] sm:$0xff]
    %v84 = vld [vmem:[#allocation4 + $0xc0] sm:$0xff]
    %v85 = vld [vmem:[#allocation4 + $0xc8] sm:$0xff]
    %v86 = vld [vmem:[#allocation4 + $0xd0] sm:$0xff]
    %v87 = vld [vmem:[#allocation4 + $0xd8] sm:$0xff]
    %v88 = vld [vmem:[#allocation4 + $0xe0] sm:$0xff]
    %v89 = vld [vmem:[#allocation4 + $0xe8] sm:$0xff]
    %v90 = vld [vmem:[#allocation4 + $0xf0] sm:$0xff]
    %v91 = vld [vmem:[#allocation4 + $0xf8] sm:$0xff]
    %v92 = vld [vmem:[#allocation4 + $0x100] sm:$0xff]
    %v93 = vld [vmem:[#allocation4 + $0x108] sm:$0xff]
    %v94 = vld [vmem:[#allocation4 + $0x110] sm:$0xff]
    %v95 = vld [vmem:[#allocation4 + $0x118] sm:$0xff]
    %v96 = vld [vmem:[#allocation4 + $0x120] sm:$0xff]
    %v97 = vld [vmem:[#allocation4 + $0x128] sm:$0xff]
    %v98 = vld [vmem:[#allocation4 + $0x130] sm:$0xff]
    %v99 = vld [vmem:[#allocation4 + $0x138] sm:$0xff]
    %v100 = vld [vmem:[#allocation4 + $0x140] sm:$0xff]
    %v101 = vld [vmem:[#allocation4 + $0x148] sm:$0xff]
    %v102 = vld [vmem:[#allocation4 + $0x150] sm:$0xff]
    %v103 = vld [vmem:[#allocation4 + $0x158] sm:$0xff]
    %v104 = vld [vmem:[#allocation4 + $0x160] sm:$0xff]
    %v105 = vld [vmem:[#allocation4 + $0x168] sm:$0xff]
    %v106 = vld [vmem:[#allocation4 + $0x170] sm:$0xff]
    %v107 = vld [vmem:[#allocation4 + $0x178] sm:$0xff]
    %v108 = vld [vmem:[#allocation4 + $0x180] sm:$0xff]
    %v109 = vld [vmem:[#allocation4 + $0x188] sm:$0xff]
    %v110 = vld [vmem:[#allocation4 + $0x190] sm:$0xff]
    %v111 = vld [vmem:[#allocation4 + $0x198] sm:$0xff]
    %v112 = vld [vmem:[#allocation4 + $0x1a0] sm:$0xff]
    %v113 = vld [vmem:[#allocation4 + $0x1a8] sm:$0xff]
    %v114 = vld [vmem:[#allocation4 + $0x1b0] sm:$0xff]
    %v115 = vld [vmem:[#allocation4 + $0x1b8] sm:$0xff]
    %v116 = vld [vmem:[#allocation4 + $0x1c0] sm:$0xff]
    %v117 = vld [vmem:[#allocation4 + $0x1c8] sm:$0xff]
    %v118 = vld [vmem:[#allocation4 + $0x1d0] sm:$0xff]
    %v119 = vld [vmem:[#allocation4 + $0x1d8] sm:$0xff]
    %v120 = vld [vmem:[#allocation4 + $0x1e0] sm:$0xff]
    %v121 = vld [vmem:[#allocation4 + $0x1e8] sm:$0xff]
    %v122 = vld [vmem:[#allocation4 + $0x1f0] sm:$0xff]
    %v123 = vld [vmem:[#allocation4 + $0x1f8] sm:$0xff]
    %v124 = vld [vmem:[#allocation4 + $0x200] sm:$0xff]
    %v125 = vld [vmem:[#allocation4 + $0x208] sm:$0xff]
    %v126 = vld [vmem:[#allocation4 + $0x210] sm:$0xff]
    %v127 = vld [vmem:[#allocation4 + $0x218] sm:$0xff]
    %v128 = vld [vmem:[#allocation4 + $0x220] sm:$0xff]
    %v129 = vld [vmem:[#allocation4 + $0x228] sm:$0xff]
    %v130 = vld [vmem:[#allocation4 + $0x230] sm:$0xff]
    %v131 = vld [vmem:[#allocation4 + $0x238] sm:$0xff]
    %v132 = vld [vmem:[#allocation4 + $0x240] sm:$0xff]
    %v133 = vld [vmem:[#allocation4 + $0x248] sm:$0xff]
    %v134 = vld [vmem:[#allocation4 + $0x250] sm:$0xff]
    %v135 = vld [vmem:[#allocation4 + $0x258] sm:$0xff]
    %v136 = vld [vmem:[#allocation4 + $0x260] sm:$0xff]
    %v137 = vld [vmem:[#allocation4 + $0x268] sm:$0xff]
    %v138 = vld [vmem:[#allocation4 + $0x270] sm:$0xff]
    %v139 = vld [vmem:[#allocation4 + $0x278] sm:$0xff]
    %v140 = vld [vmem:[#allocation4 + $0x280] sm:$0xff]
    %v141 = vld [vmem:[#allocation4 + $0x288] sm:$0xff]
    %v142 = vld [vmem:[#allocation4 + $0x290] sm:$0xff]
    %v143 = vld [vmem:[#allocation4 + $0x298] sm:$0xff]
    %v144 = vld [vmem:[#allocation4 + $0x2a0] sm:$0xff]
    %v145 = vld [vmem:[#allocation4 + $0x2a8] sm:$0xff]
    %v146 = vld [vmem:[#allocation4 + $0x2b0] sm:$0xff]
    %v147 = vld [vmem:[#allocation4 + $0x2b8] sm:$0xff]
    %v148 = vld [vmem:[#allocation4 + $0x2c0] sm:$0xff]
    %v149 = vld [vmem:[#allocation4 + $0x2c8] sm:$0xff]
    %v150 = vld [vmem:[#allocation4 + $0x2d0] sm:$0xff]
    %v151 = vld [vmem:[#allocation4 + $0x2d8] sm:$0xff]
    %v152 = vld [vmem:[#allocation4 + $0x2e0] sm:$0xff]
    %v153 = vld [vmem:[#allocation4 + $0x2e8] sm:$0xff]
    %v154 = vld [vmem:[#allocation4 + $0x2f0] sm:$0xff]
    %v155 = vld [vmem:[#allocation4 + $0x2f8] sm:$0xff]
    %v156 = vld [vmem:[#allocation4 + $0x300] sm:$0xff]
    %v157 = vld [vmem:[#allocation4 + $0x308] sm:$0xff]
    %v158 = vld [vmem:[#allocation4 + $0x310] sm:$0xff]
    %v159 = vld [vmem:[#allocation4 + $0x318] sm:$0xff]
    %v160 = vld [vmem:[#allocation4 + $0x320] sm:$0xff]
    %v161 = vld [vmem:[#allocation4 + $0x328] sm:$0xff]
    %v162 = vld [vmem:[#allocation4 + $0x330] sm:$0xff]
    %v163 = vld [vmem:[#allocation4 + $0x338] sm:$0xff]
    %v164 = vld [vmem:[#allocation4 + $0x340] sm:$0xff]
    %v165 = vld [vmem:[#allocation4 + $0x348] sm:$0xff]
    %v166 = vld [vmem:[#allocation4 + $0x350] sm:$0xff]
    %v167 = vld [vmem:[#allocation4 + $0x358] sm:$0xff]
    %v168 = vld [vmem:[#allocation4 + $0x360] sm:$0xff]
    %v169 = vld [vmem:[#allocation4 + $0x368] sm:$0xff]
    %v170 = vld [vmem:[#allocation4 + $0x370] sm:$0xff]
    %v171 = vld [vmem:[#allocation4 + $0x378] sm:$0xff]
    %v172 = vld [vmem:[#allocation4 + $0x380] sm:$0xff]
    %v173 = vld [vmem:[#allocation4 + $0x388] sm:$0xff]
    %v174 = vld [vmem:[#allocation4 + $0x390] sm:$0xff]
    %v175 = vld [vmem:[#allocation4 + $0x398] sm:$0xff]
    %v176 = vld [vmem:[#allocation4 + $0x3a0] sm:$0xff]
    %v177 = vld [vmem:[#allocation4 + $0x3a8] sm:$0xff]
    %v178 = vld [vmem:[#allocation4 + $0x3b0] sm:$0xff]
    %v179 = vld [vmem:[#allocation4 + $0x3b8] sm:$0xff]
    %v180 = vld [vmem:[#allocation4 + $0x3c0] sm:$0xff]
    %v181 = vld [vmem:[#allocation4 + $0x3c8] sm:$0xff]
    %v182 = vld [vmem:[#allocation4 + $0x3d0] sm:$0xff]
    %v183 = vld [vmem:[#allocation4 + $0x3d8] sm:$0xff]
    %v184 = vld [vmem:[#allocation4 + $0x3e0] sm:$0xff]
    %v185 = vld [vmem:[#allocation4 + $0x3e8] sm:$0xff]
    %v186 = vld [vmem:[#allocation4 + $0x3f0] sm:$0xff]
    %v187 = vld [vmem:[#allocation4 + $0x3f8] sm:$0xff]
    %v188 = vld [vmem:[#allocation4 + $0x400] sm:$0xff]
    %v189 = vld [vmem:[#allocation4 + $0x408] sm:$0xff]
    %v190 = vld [vmem:[#allocation4 + $0x410] sm:$0xff]
    %v191 = vld [vmem:[#allocation4 + $0x418] sm:$0xff]
    %v192 = vld [vmem:[#allocation4 + $0x420] sm:$0xff]
    %v193 = vld [vmem:[#allocation4 + $0x428] sm:$0xff]
    %v194 = vld [vmem:[#allocation4 + $0x430] sm:$0xff]
    %v195 = vld [vmem:[#allocation4 + $0x438] sm:$0xff]
    %v196 = vld [vmem:[#allocation4 + $0x440] sm:$0xff]
    %v197 = vld [vmem:[#allocation4 + $0x448] sm:$0xff]
    %v198 = vld [vmem:[#allocation4 + $0x450] sm:$0xff]
    %v199 = vld [vmem:[#allocation4 + $0x458] sm:$0xff]
    %v200 = vld [vmem:[#allocation4 + $0x460] sm:$0xff]
    %v201 = vld [vmem:[#allocation4 + $0x468] sm:$0xff]
    %v202 = vld [vmem:[#allocation4 + $0x470] sm:$0xff]
    %v203 = vld [vmem:[#allocation4 + $0x478] sm:$0xff]
    %v204 = vld [vmem:[#allocation4 + $0x480] sm:$0xff]
    %v205 = vld [vmem:[#allocation4 + $0x488] sm:$0xff]
    %v206 = vld [vmem:[#allocation4 + $0x490] sm:$0xff]
    %v207 = vld [vmem:[#allocation4 + $0x498] sm:$0xff]
    %v208 = vld [vmem:[#allocation4 + $0x4a0] sm:$0xff]
    %v209 = vld [vmem:[#allocation4 + $0x4a8] sm:$0xff]
    %v210 = vld [vmem:[#allocation4 + $0x4b0] sm:$0xff]
    %v211 = vld [vmem:[#allocation4 + $0x4b8] sm:$0xff]
    %v212 = vld [vmem:[#allocation4 + $0x4c0] sm:$0xff]
    %v213 = vld [vmem:[#allocation4 + $0x4c8] sm:$0xff]
    %v214 = vld [vmem:[#allocation4 + $0x4d0] sm:$0xff]
    %v215 = vld [vmem:[#allocation4 + $0x4d8] sm:$0xff]
    %v216 = vld [vmem:[#allocation4 + $0x4e0] sm:$0xff]
    %v217 = vld [vmem:[#allocation4 + $0x4e8] sm:$0xff]
    %v218 = vld [vmem:[#allocation4 + $0x4f0] sm:$0xff]
    %v219 = vld [vmem:[#allocation4 + $0x4f8] sm:$0xff]
    %v220 = vld [vmem:[#allocation4 + $0x500] sm:$0xff]
    %v221 = vld [vmem:[#allocation4 + $0x508] sm:$0xff]
    %v222 = vld [vmem:[#allocation4 + $0x510] sm:$0xff]
    %v223 = vld [vmem:[#allocation4 + $0x518] sm:$0xff]
    %v224 = vld [vmem:[#allocation4 + $0x520] sm:$0xff]
    %v225 = vld [vmem:[#allocation4 + $0x528] sm:$0xff]
    %v226 = vld [vmem:[#allocation4 + $0x530] sm:$0xff]
    %v227 = vld [vmem:[#allocation4 + $0x538] sm:$0xff]
    %v228 = vld [vmem:[#allocation4 + $0x540] sm:$0xff]
    %v229 = vld [vmem:[#allocation4 + $0x548] sm:$0xff]
    %v230 = vld [vmem:[#allocation4 + $0x550] sm:$0xff]
    %v231 = vld [vmem:[#allocation4 + $0x558] sm:$0xff]
    %v232 = vld [vmem:[#allocation4 + $0x560] sm:$0xff]
    %v233 = vld [vmem:[#allocation4 + $0x568] sm:$0xff]
    %v234 = vld [vmem:[#allocation4 + $0x570] sm:$0xff]
    %v235 = vld [vmem:[#allocation4 + $0x578] sm:$0xff]
    %v236 = vld [vmem:[#allocation4 + $0x580] sm:$0xff]
    %v237 = vld [vmem:[#allocation4 + $0x588] sm:$0xff]
    %v238 = vld [vmem:[#allocation4 + $0x590] sm:$0xff]
    %v239 = vld [vmem:[#allocation4 + $0x598] sm:$0xff]
    %v240 = vld [vmem:[#allocation4 + $0x5a0] sm:$0xff]
    %v241 = vld [vmem:[#allocation4 + $0x5a8] sm:$0xff]
    %v242 = vld [vmem:[#allocation4 + $0x5b0] sm:$0xff]
    %v243 = vld [vmem:[#allocation4 + $0x5b8] sm:$0xff]
    %v244 = vld [vmem:[#allocation4 + $0x5c0] sm:$0xff]
    %v245 = vld [vmem:[#allocation4 + $0x5c8] sm:$0xff]
    %v246 = vld [vmem:[#allocation4 + $0x5d0] sm:$0xff]
    %v247 = vld [vmem:[#allocation4 + $0x5d8] sm:$0xff]
    %v248 = vld [vmem:[#allocation4 + $0x5e0] sm:$0xff]
    %v249 = vld [vmem:[#allocation4 + $0x5e8] sm:$0xff]
    %v250 = vld [vmem:[#allocation4 + $0x5f0] sm:$0xff]
    %v251 = vld [vmem:[#allocation4 + $0x5f8] sm:$0xff]
    %v252 = vld [vmem:[#allocation4 + $0x600] sm:$0xff]
    %v253 = vld [vmem:[#allocation4 + $0x608] sm:$0xff]
    %v254 = vld [vmem:[#allocation4 + $0x610] sm:$0xff]
    %v255 = vld [vmem:[#allocation4 + $0x618] sm:$0xff]
    %v256 = vld [vmem:[#allocation4 + $0x620] sm:$0xff]
    %v257 = vld [vmem:[#allocation4 + $0x628] sm:$0xff]
    %v258 = vld [vmem:[#allocation4 + $0x630] sm:$0xff]
    %v259 = vld [vmem:[#allocation4 + $0x638] sm:$0xff]
    %v260 = vld [vmem:[#allocation4 + $0x640] sm:$0xff]
    %v261 = vld [vmem:[#allocation4 + $0x648] sm:$0xff]
    %v262 = vld [vmem:[#allocation4 + $0x650] sm:$0xff]
    %v263 = vld [vmem:[#allocation4 + $0x658] sm:$0xff]
    %v264 = vld [vmem:[#allocation4 + $0x660] sm:$0xff]
    %v265 = vld [vmem:[#allocation4 + $0x668] sm:$0xff]
    %v266 = vld [vmem:[#allocation4 + $0x670] sm:$0xff]
    %v267 = vld [vmem:[#allocation4 + $0x678] sm:$0xff]
    %v268 = vld [vmem:[#allocation4 + $0x680] sm:$0xff]
    %v269 = vld [vmem:[#allocation4 + $0x688] sm:$0xff]
    %v270 = vld [vmem:[#allocation4 + $0x690] sm:$0xff]
    %v271 = vld [vmem:[#allocation4 + $0x698] sm:$0xff]
    %v272 = vld [vmem:[#allocation4 + $0x6a0] sm:$0xff]
    %v273 = vld [vmem:[#allocation4 + $0x6a8] sm:$0xff]
    %v274 = vld [vmem:[#allocation4 + $0x6b0] sm:$0xff]
    %v275 = vld [vmem:[#allocation4 + $0x6b8] sm:$0xff]
    %v276 = vld [vmem:[#allocation4 + $0x6c0] sm:$0xff]
    %v277 = vld [vmem:[#allocation4 + $0x6c8] sm:$0xff]
    %v278 = vld [vmem:[#allocation4 + $0x6d0] sm:$0xff]
    %v279 = vld [vmem:[#allocation4 + $0x6d8] sm:$0xff]
    %v280 = vld [vmem:[#allocation4 + $0x6e0] sm:$0xff]
    %v281 = vld [vmem:[#allocation4 + $0x6e8] sm:$0xff]
    %v282 = vld [vmem:[#allocation4 + $0x6f0] sm:$0xff]
    %v283 = vld [vmem:[#allocation4 + $0x6f8] sm:$0xff]
    %v284 = vld [vmem:[#allocation4 + $0x700] sm:$0xff]
    %v285 = vld [vmem:[#allocation4 + $0x708] sm:$0xff]
    %v286 = vld [vmem:[#allocation4 + $0x710] sm:$0xff]
    %v287 = vld [vmem:[#allocation4 + $0x718] sm:$0xff]
    %v288 = vld [vmem:[#allocation4 + $0x720] sm:$0xff]
    %v289 = vld [vmem:[#allocation4 + $0x728] sm:$0xff]
    %v290 = vld [vmem:[#allocation4 + $0x730] sm:$0xff]
    %v291 = vld [vmem:[#allocation4 + $0x738] sm:$0xff]
    %v292 = vld [vmem:[#allocation4 + $0x740] sm:$0xff]
    %v293 = vld [vmem:[#allocation4 + $0x748] sm:$0xff]
    %v294 = vld [vmem:[#allocation4 + $0x750] sm:$0xff]
    %v295 = vld [vmem:[#allocation4 + $0x758] sm:$0xff]
    %v296 = vld [vmem:[#allocation4 + $0x760] sm:$0xff]
    %v297 = vld [vmem:[#allocation4 + $0x768] sm:$0xff]
    %v298 = vld [vmem:[#allocation4 + $0x770] sm:$0xff]
    %v299 = vld [vmem:[#allocation4 + $0x778] sm:$0xff]
    %v300 = vld [vmem:[#allocation4 + $0x780] sm:$0xff]
    %v301 = vld [vmem:[#allocation4 + $0x788] sm:$0xff]
    %v302 = vld [vmem:[#allocation4 + $0x790] sm:$0xff]
    %v303 = vld [vmem:[#allocation4 + $0x798] sm:$0xff]
    %v304 = vld [vmem:[#allocation4 + $0x7a0] sm:$0xff]
    %v305 = vld [vmem:[#allocation4 + $0x7a8] sm:$0xff]
    %v306 = vld [vmem:[#allocation4 + $0x7b0] sm:$0xff]
    %v307 = vld [vmem:[#allocation4 + $0x7b8] sm:$0xff]
    %v308 = vld [vmem:[#allocation4 + $0x7c0] sm:$0xff]
    %v309 = vld [vmem:[#allocation4 + $0x7c8] sm:$0xff]
    %v310 = vld [vmem:[#allocation4 + $0x7d0] sm:$0xff]
    %v311 = vld [vmem:[#allocation4 + $0x7d8] sm:$0xff]
    %v312 = vld [vmem:[#allocation4 + $0x7e0] sm:$0xff]
    %v313 = vld [vmem:[#allocation4 + $0x7e8] sm:$0xff]
    %v314 = vld [vmem:[#allocation4 + $0x7f0] sm:$0xff]
    %v315 = vld [vmem:[#allocation4 + $0x7f8] sm:$0xff]
    %v316 = vld [vmem:[#allocation4 + $0x800] sm:$0xff]
    %v317 = vld [vmem:[#allocation4 + $0x808] sm:$0xff]
    %v318 = vld [vmem:[#allocation4 + $0x810] sm:$0xff]
    %v319 = vld [vmem:[#allocation4 + $0x818] sm:$0xff]
    %v320 = vld [vmem:[#allocation4 + $0x820] sm:$0xff]
    %v321 = vld [vmem:[#allocation4 + $0x828] sm:$0xff]
    %v322 = vld [vmem:[#allocation4 + $0x830] sm:$0xff]
    %v323 = vld [vmem:[#allocation4 + $0x838] sm:$0xff]
    %v324 = vld [vmem:[#allocation4 + $0x840] sm:$0xff]
    %v325 = vld [vmem:[#allocation4 + $0x848] sm:$0xff]
    %v326 = vld [vmem:[#allocation4 + $0x850] sm:$0xff]
    %v327 = vld [vmem:[#allocation4 + $0x858] sm:$0xff]
    %v328 = vld [vmem:[#allocation4 + $0x860] sm:$0xff]
    %v329 = vld [vmem:[#allocation4 + $0x868] sm:$0xff]
    %v330 = vld [vmem:[#allocation4 + $0x870] sm:$0xff]
    %v331 = vld [vmem:[#allocation4 + $0x878] sm:$0xff]
    %v332 = vld [vmem:[#allocation4 + $0x880] sm:$0xff]
    %v333 = vld [vmem:[#allocation4 + $0x888] sm:$0xff]
    %v334 = vld [vmem:[#allocation4 + $0x890] sm:$0xff]
    %v335 = vld [vmem:[#allocation4 + $0x898] sm:$0xff]
    %v336 = vld [vmem:[#allocation4 + $0x8a0] sm:$0xff]
    %v337 = vld [vmem:[#allocation4 + $0x8a8] sm:$0xff]
    %v338 = vld [vmem:[#allocation4 + $0x8b0] sm:$0xff]
    %v339 = vld [vmem:[#allocation4 + $0x8b8] sm:$0xff]
    %v340 = vld [vmem:[#allocation4 + $0x8c0] sm:$0xff]
    %v341 = vld [vmem:[#allocation4 + $0x8c8] sm:$0xff]
    %v342 = vld [vmem:[#allocation4 + $0x8d0] sm:$0xff]
    %v343 = vld [vmem:[#allocation4 + $0x8d8] sm:$0xff]
    %v344 = vld [vmem:[#allocation4 + $0x8e0] sm:$0xff]
    %v345 = vld [vmem:[#allocation4 + $0x8e8] sm:$0xff]
    %v346 = vld [vmem:[#allocation4 + $0x8f0] sm:$0xff]
    %v347 = vld [vmem:[#allocation4 + $0x8f8] sm:$0xff]
    %v348 = vld [vmem:[#allocation4 + $0x900] sm:$0xff]
    %v349 = vld [vmem:[#allocation4 + $0x908] sm:$0xff]
    %v350 = vld [vmem:[#allocation4 + $0x910] sm:$0xff]
    %v351 = vld [vmem:[#allocation4 + $0x918] sm:$0xff]
    %v352 = vld [vmem:[#allocation4 + $0x920] sm:$0xff]
    %v353 = vld [vmem:[#allocation4 + $0x928] sm:$0xff]
    %v354 = vld [vmem:[#allocation4 + $0x930] sm:$0xff]
    %v355 = vld [vmem:[#allocation4 + $0x938] sm:$0xff]
    %v356 = vld [vmem:[#allocation4 + $0x940] sm:$0xff]
    %v357 = vld [vmem:[#allocation4 + $0x948] sm:$0xff]
    %v358 = vld [vmem:[#allocation4 + $0x950] sm:$0xff]
    %v359 = vld [vmem:[#allocation4 + $0x958] sm:$0xff]
    %v360 = vld [vmem:[#allocation4 + $0x960] sm:$0xff]
    %v361 = vld [vmem:[#allocation4 + $0x968] sm:$0xff]
    %v362 = vld [vmem:[#allocation4 + $0x970] sm:$0xff]
    %v363 = vld [vmem:[#allocation4 + $0x978] sm:$0xff]
    %v364 = vld [vmem:[#allocation4 + $0x980] sm:$0xff]
    %v365 = vld [vmem:[#allocation4 + $0x988] sm:$0xff]
    %v366 = vld [vmem:[#allocation4 + $0x990] sm:$0xff]
    %v367 = vld [vmem:[#allocation4 + $0x998] sm:$0xff]
    %v368 = vld [vmem:[#allocation4 + $0x9a0] sm:$0xff]
    %v369 = vld [vmem:[#allocation4 + $0x9a8] sm:$0xff]
    %v370 = vld [vmem:[#allocation4 + $0x9b0] sm:$0xff]
    %v371 = vld [vmem:[#allocation4 + $0x9b8] sm:$0xff]
    %v372 = vld [vmem:[#allocation4 + $0x9c0] sm:$0xff]
    %v373 = vld [vmem:[#allocation4 + $0x9c8] sm:$0xff]
    %v374 = vld [vmem:[#allocation4 + $0x9d0] sm:$0xff]
    %v375 = vld [vmem:[#allocation4 + $0x9d8] sm:$0xff]
    %v376 = vld [vmem:[#allocation4 + $0x9e0] sm:$0xff]
    %v377 = vld [vmem:[#allocation4 + $0x9e8] sm:$0xff]
    %v378 = vld [vmem:[#allocation4 + $0x9f0] sm:$0xff]
    %v379 = vld [vmem:[#allocation4 + $0x9f8] sm:$0xff]
    %v380 = vld [vmem:[#allocation4 + $0xa00] sm:$0xff]
    %v381 = vld [vmem:[#allocation4 + $0xa08] sm:$0xff]
    %v382 = vld [vmem:[#allocation4 + $0xa10] sm:$0xff]
    %v383 = vld [vmem:[#allocation4 + $0xa18] sm:$0xff]
    %v384 = vld [vmem:[#allocation4 + $0xa20] sm:$0xff]
    %v385 = vld [vmem:[#allocation4 + $0xa28] sm:$0xff]
    %v386 = vld [vmem:[#allocation4 + $0xa30] sm:$0xff]
    %v387 = vld [vmem:[#allocation4 + $0xa38] sm:$0xff]
    %v388 = vld [vmem:[#allocation4 + $0xa40] sm:$0xff]
    %v389 = vld [vmem:[#allocation4 + $0xa48] sm:$0xff]
    %v390 = vld [vmem:[#allocation4 + $0xa50] sm:$0xff]
    %v391 = vld [vmem:[#allocation4 + $0xa58] sm:$0xff]
    %v392 = vld [vmem:[#allocation4 + $0xa60] sm:$0xff]
    %v393 = vld [vmem:[#allocation4 + $0xa68] sm:$0xff]
    %v394 = vld [vmem:[#allocation4 + $0xa70] sm:$0xff]
    %v395 = vld [vmem:[#allocation4 + $0xa78] sm:$0xff]
    %v396 = vld [vmem:[#allocation4 + $0xa80] sm:$0xff]
    %v397 = vld [vmem:[#allocation4 + $0xa88] sm:$0xff]
    %v398 = vld [vmem:[#allocation4 + $0xa90] sm:$0xff]
    %v399 = vld [vmem:[#allocation4 + $0xa98] sm:$0xff]
    %v400 = vld [vmem:[#allocation4 + $0xaa0] sm:$0xff]
    %v401 = vld [vmem:[#allocation4 + $0xaa8] sm:$0xff]
    %v402 = vld [vmem:[#allocation4 + $0xab0] sm:$0xff]
    %v403 = vld [vmem:[#allocation4 + $0xab8] sm:$0xff]
    %v404 = vld [vmem:[#allocation4 + $0xac0] sm:$0xff]
    %v405 = vld [vmem:[#allocation4 + $0xac8] sm:$0xff]
    %v406 = vld [vmem:[#allocation4 + $0xad0] sm:$0xff]
    %v407 = vld [vmem:[#allocation4 + $0xad8] sm:$0xff]
    %v408 = vld [vmem:[#allocation4 + $0xae0] sm:$0xff]
    %v409 = vld [vmem:[#allocation4 + $0xae8] sm:$0xff]
    %v410 = vld [vmem:[#allocation4 + $0xaf0] sm:$0xff]
    %v411 = vld [vmem:[#allocation4 + $0xaf8] sm:$0xff]
    %v412 = vld [vmem:[#allocation4 + $0xb00] sm:$0xff]
    %v413 = vld [vmem:[#allocation4 + $0xb08] sm:$0xff]
    %v414 = vld [vmem:[#allocation4 + $0xb10] sm:$0xff]
    %v415 = vld [vmem:[#allocation4 + $0xb18] sm:$0xff]
    %v416 = vld [vmem:[#allocation4 + $0xb20] sm:$0xff]
    %v417 = vld [vmem:[#allocation4 + $0xb28] sm:$0xff]
    %v418 = vld [vmem:[#allocation4 + $0xb30] sm:$0xff]
    %v419 = vld [vmem:[#allocation4 + $0xb38] sm:$0xff]
    %v420 = vld [vmem:[#allocation4 + $0xb40] sm:$0xff]
    %v421 = vld [vmem:[#allocation4 + $0xb48] sm:$0xff]
    %v422 = vld [vmem:[#allocation4 + $0xb50] sm:$0xff]
    %v423 = vld [vmem:[#allocation4 + $0xb58] sm:$0xff]
    %v424 = vld [vmem:[#allocation4 + $0xb60] sm:$0xff]
    %v425 = vld [vmem:[#allocation4 + $0xb68] sm:$0xff]
    %v426 = vld [vmem:[#allocation4 + $0xb70] sm:$0xff]
    %v427 = vld [vmem:[#allocation4 + $0xb78] sm:$0xff]
    %v428 = vld [vmem:[#allocation4 + $0xb80] sm:$0xff]
    %v429 = vld [vmem:[#allocation4 + $0xb88] sm:$0xff]
    %v430 = vld [vmem:[#allocation4 + $0xb90] sm:$0xff]
    %v431 = vld [vmem:[#allocation4 + $0xb98] sm:$0xff]
    %v432 = vld [vmem:[#allocation4 + $0xba0] sm:$0xff]
    %v433 = vld [vmem:[#allocation4 + $0xba8] sm:$0xff]
    %v434 = vld [vmem:[#allocation4 + $0xbb0] sm:$0xff]
    %v435 = vld [vmem:[#allocation4 + $0xbb8] sm:$0xff]
    %v436 = vld [vmem:[#allocation4 + $0xbc0] sm:$0xff]
    %v437 = vld [vmem:[#allocation4 + $0xbc8] sm:$0xff]
    %v438 = vld [vmem:[#allocation4 + $0xbd0] sm:$0xff]
    %v439 = vld [vmem:[#allocation4 + $0xbd8] sm:$0xff]
    %v440 = vld [vmem:[#allocation4 + $0xbe0] sm:$0xff]
    %v441 = vld [vmem:[#allocation4 + $0xbe8] sm:$0xff]
    %v442 = vld [vmem:[#allocation4 + $0xbf0] sm:$0xff]
    %v443 = vld [vmem:[#allocation4 + $0xbf8] sm:$0xff]
    %v444 = vld [vmem:[#allocation4 + $0xc00] sm:$0xff]
    %v445 = vld [vmem:[#allocation4 + $0xc08] sm:$0xff]
    %v446 = vld [vmem:[#allocation4 + $0xc10] sm:$0xff]
    %v447 = vld [vmem:[#allocation4 + $0xc18] sm:$0xff]
    %v448 = vld [vmem:[#allocation4 + $0xc20] sm:$0xff]
    %v449 = vld [vmem:[#allocation4 + $0xc28] sm:$0xff]
    %v450 = vld [vmem:[#allocation4 + $0xc30] sm:$0xff]
    %v451 = vld [vmem:[#allocation4 + $0xc38] sm:$0xff]
    %v452 = vld [vmem:[#allocation4 + $0xc40] sm:$0xff]
    %v453 = vld [vmem:[#allocation4 + $0xc48] sm:$0xff]
    %v454 = vld [vmem:[#allocation4 + $0xc50] sm:$0xff]
    %v455 = vld [vmem:[#allocation4 + $0xc58] sm:$0xff]
    %v456 = vld [vmem:[#allocation4 + $0xc60] sm:$0xff]
    %v457 = vld [vmem:[#allocation4 + $0xc68] sm:$0xff]
    %v458 = vld [vmem:[#allocation4 + $0xc70] sm:$0xff]
    %v459 = vld [vmem:[#allocation4 + $0xc78] sm:$0xff]
    %v460 = vld [vmem:[#allocation4 + $0xc80] sm:$0xff]
    %v461 = vld [vmem:[#allocation4 + $0xc88] sm:$0xff]
    %v462 = vld [vmem:[#allocation4 + $0xc90] sm:$0xff]
    %v463 = vld [vmem:[#allocation4 + $0xc98] sm:$0xff]
    %v464 = vld [vmem:[#allocation4 + $0xca0] sm:$0xff]
    %v465 = vld [vmem:[#allocation4 + $0xca8] sm:$0xff]
    %v466 = vld [vmem:[#allocation4 + $0xcb0] sm:$0xff]
    %v467 = vld [vmem:[#allocation4 + $0xcb8] sm:$0xff]
    %v468 = vld [vmem:[#allocation4 + $0xcc0] sm:$0xff]
    %v469 = vld [vmem:[#allocation4 + $0xcc8] sm:$0xff]
    %v470 = vld [vmem:[#allocation4 + $0xcd0] sm:$0xff]
    %v471 = vld [vmem:[#allocation4 + $0xcd8] sm:$0xff]
    %v472 = vld [vmem:[#allocation4 + $0xce0] sm:$0xff]
    %v473 = vld [vmem:[#allocation4 + $0xce8] sm:$0xff]
    %v474 = vld [vmem:[#allocation4 + $0xcf0] sm:$0xff]
    %v475 = vld [vmem:[#allocation4 + $0xcf8] sm:$0xff]
    %v476 = vld [vmem:[#allocation4 + $0xd00] sm:$0xff]
    %v477 = vld [vmem:[#allocation4 + $0xd08] sm:$0xff]
    %v478 = vld [vmem:[#allocation4 + $0xd10] sm:$0xff]
    %v479 = vld [vmem:[#allocation4 + $0xd18] sm:$0xff]
    %v480 = vld [vmem:[#allocation4 + $0xd20] sm:$0xff]
    %v481 = vld [vmem:[#allocation4 + $0xd28] sm:$0xff]
    %v482 = vld [vmem:[#allocation4 + $0xd30] sm:$0xff]
    %v483 = vld [vmem:[#allocation4 + $0xd38] sm:$0xff]
    %v484 = vld [vmem:[#allocation4 + $0xd40] sm:$0xff]
    %v485 = vld [vmem:[#allocation4 + $0xd48] sm:$0xff]
    %v486 = vld [vmem:[#allocation4 + $0xd50] sm:$0xff]
    %v487 = vld [vmem:[#allocation4 + $0xd58] sm:$0xff]
    %v488 = vld [vmem:[#allocation4 + $0xd60] sm:$0xff]
    %v489 = vld [vmem:[#allocation4 + $0xd68] sm:$0xff]
    %v490 = vld [vmem:[#allocation4 + $0xd70] sm:$0xff]
    %v491 = vld [vmem:[#allocation4 + $0xd78] sm:$0xff]
    %v492 = vld [vmem:[#allocation4 + $0xd80] sm:$0xff]
    %v493 = vld [vmem:[#allocation4 + $0xd88] sm:$0xff]
    %v494 = vld [vmem:[#allocation4 + $0xd90] sm:$0xff]
    %v495 = vld [vmem:[#allocation4 + $0xd98] sm:$0xff]
    %v496 = vld [vmem:[#allocation4 + $0xda0] sm:$0xff]
    %v497 = vld [vmem:[#allocation4 + $0xda8] sm:$0xff]
    %v498 = vld [vmem:[#allocation4 + $0xdb0] sm:$0xff]
    %v499 = vld [vmem:[#allocation4 + $0xdb8] sm:$0xff]
    %v500 = vld [vmem:[#allocation4 + $0xdc0] sm:$0xff]
    %v501 = vld [vmem:[#allocation4 + $0xdc8] sm:$0xff]
    %v502 = vld [vmem:[#allocation4 + $0xdd0] sm:$0xff]
    %v503 = vld [vmem:[#allocation4 + $0xdd8] sm:$0xff]
    %v504 = vld [vmem:[#allocation4 + $0xde0] sm:$0xff]
    %v505 = vld [vmem:[#allocation4 + $0xde8] sm:$0xff]
    %v506 = vld [vmem:[#allocation4 + $0xdf0] sm:$0xff]
    %v507 = vld [vmem:[#allocation4 + $0xdf8] sm:$0xff]
    %v508 = vld [vmem:[#allocation4 + $0xe00] sm:$0xff]
    %v509 = vld [vmem:[#allocation4 + $0xe08] sm:$0xff]
    %v510 = vld [vmem:[#allocation4 + $0xe10] sm:$0xff]
    %v511 = vld [vmem:[#allocation4 + $0xe18] sm:$0xff]
    %v512 = vld [vmem:[#allocation4 + $0xe20] sm:$0xff]
    %v513 = vld [vmem:[#allocation4 + $0xe28] sm:$0xff]
    %v514 = vld [vmem:[#allocation4 + $0xe30] sm:$0xff]
    %v515 = vld [vmem:[#allocation4 + $0xe38] sm:$0xff]
    %v516 = vld [vmem:[#allocation4 + $0xe40] sm:$0xff]
    %v517 = vld [vmem:[#allocation4 + $0xe48] sm:$0xff]
    %v518 = vld [vmem:[#allocation4 + $0xe50] sm:$0xff]
    %v519 = vld [vmem:[#allocation4 + $0xe58] sm:$0xff]
    %v520 = vld [vmem:[#allocation4 + $0xe60] sm:$0xff]
    %v521 = vld [vmem:[#allocation4 + $0xe68] sm:$0xff]
    %v522 = vld [vmem:[#allocation4 + $0xe70] sm:$0xff]
    %v523 = vld [vmem:[#allocation4 + $0xe78] sm:$0xff]
    %v524 = vld [vmem:[#allocation4 + $0xe80] sm:$0xff]
    %v525 = vld [vmem:[#allocation4 + $0xe88] sm:$0xff]
    %v526 = vld [vmem:[#allocation4 + $0xe90] sm:$0xff]
    %v527 = vld [vmem:[#allocation4 + $0xe98] sm:$0xff]
    %v528 = vld [vmem:[#allocation4 + $0xea0] sm:$0xff]
    %v529 = vld [vmem:[#allocation4 + $0xea8] sm:$0xff]
    %v530 = vld [vmem:[#allocation4 + $0xeb0] sm:$0xff]
    %v531 = vld [vmem:[#allocation4 + $0xeb8] sm:$0xff]
    %v532 = vld [vmem:[#allocation4 + $0xec0] sm:$0xff]
    %v533 = vld [vmem:[#allocation4 + $0xec8] sm:$0xff]
    %v534 = vld [vmem:[#allocation4 + $0xed0] sm:$0xff]
    %v535 = vld [vmem:[#allocation4 + $0xed8] sm:$0xff]
    %v536 = vld [vmem:[#allocation4 + $0xee0] sm:$0xff]
    %v537 = vld [vmem:[#allocation4 + $0xee8] sm:$0xff]
    %v538 = vld [vmem:[#allocation4 + $0xef0] sm:$0xff]
    %v539 = vld [vmem:[#allocation4 + $0xef8] sm:$0xff]
    %v540 = vld [vmem:[#allocation4 + $0xf00] sm:$0xff]
    %v541 = vld [vmem:[#allocation4 + $0xf08] sm:$0xff]
    %v542 = vld [vmem:[#allocation4 + $0xf10] sm:$0xff]
    %v543 = vld [vmem:[#allocation4 + $0xf18] sm:$0xff]
    %v544 = vld [vmem:[#allocation4 + $0xf20] sm:$0xff]
    %v545 = vld [vmem:[#allocation4 + $0xf28] sm:$0xff]
    %v546 = vld [vmem:[#allocation4 + $0xf30] sm:$0xff]
    %v547 = vld [vmem:[#allocation4 + $0xf38] sm:$0xff]
    %v548 = vld [vmem:[#allocation4 + $0xf40] sm:$0xff]
    %v549 = vld [vmem:[#allocation4 + $0xf48] sm:$0xff]
    %v550 = vld [vmem:[#allocation4 + $0xf50] sm:$0xff]
    %v551 = vld [vmem:[#allocation4 + $0xf58] sm:$0xff]
    %v552 = vld [vmem:[#allocation4 + $0xf60] sm:$0xff]
    %v553 = vld [vmem:[#allocation4 + $0xf68] sm:$0xff]
    %v554 = vld [vmem:[#allocation4 + $0xf70] sm:$0xff]
    %v555 = vld [vmem:[#allocation4 + $0xf78] sm:$0xff]
    %v556 = vld [vmem:[#allocation4 + $0xf80] sm:$0xff]
    %v557 = vld [vmem:[#allocation4 + $0xf88] sm:$0xff]
    %v558 = vld [vmem:[#allocation4 + $0xf90] sm:$0xff]
    %v559 = vld [vmem:[#allocation4 + $0xf98] sm:$0xff]
    %v560 = vld [vmem:[#allocation4 + $0xfa0] sm:$0xff]
    %v561 = vld [vmem:[#allocation4 + $0xfa8] sm:$0xff]
    %v562 = vld [vmem:[#allocation4 + $0xfb0] sm:$0xff]
    %v563 = vld [vmem:[#allocation4 + $0xfb8] sm:$0xff]
    %v564 = vld [vmem:[#allocation4 + $0xfc0] sm:$0xff]
    %v565 = vld [vmem:[#allocation4 + $0xfc8] sm:$0xff]
    %v566 = vld [vmem:[#allocation4 + $0xfd0] sm:$0xff]
    %v567 = vld [vmem:[#allocation4 + $0xfd8] sm:$0xff]
    %v568 = vld [vmem:[#allocation4 + $0xfe0] sm:$0xff]
    %v569 = vld [vmem:[#allocation4 + $0xfe8] sm:$0xff]
    %v570 = vld [vmem:[#allocation4 + $0xff0] sm:$0xff]
    %v571 = vld [vmem:[#allocation4 + $0xff8] sm:$0xff]
    %v572 = vld [vmem:[#allocation4 + $0x1000] sm:$0xff]
    %v573 = vld [vmem:[#allocation4 + $0x1008] sm:$0xff]
    %v574 = vld [vmem:[#allocation4 + $0x1010] sm:$0xff]
    %v575 = vld [vmem:[#allocation4 + $0x1018] sm:$0xff]
    %v576 = vld [vmem:[#allocation4 + $0x1020] sm:$0xff]
    %v577 = vld [vmem:[#allocation4 + $0x1028] sm:$0xff]
    %v578 = vld [vmem:[#allocation4 + $0x1030] sm:$0xff]
    %v579 = vld [vmem:[#allocation4 + $0x1038] sm:$0xff]
    %v580 = vld [vmem:[#allocation4 + $0x1040] sm:$0xff]
    %v581 = vld [vmem:[#allocation4 + $0x1048] sm:$0xff]
    %v582 = vld [vmem:[#allocation4 + $0x1050] sm:$0xff]
    %v583 = vld [vmem:[#allocation4 + $0x1058] sm:$0xff]
    %v584 = vld [vmem:[#allocation4 + $0x1060] sm:$0xff]
    %v585 = vld [vmem:[#allocation4 + $0x1068] sm:$0xff]
    %v586 = vld [vmem:[#allocation4 + $0x1070] sm:$0xff]
    %v587 = vld [vmem:[#allocation4 + $0x1078] sm:$0xff]
    %v588 = vld [vmem:[#allocation4 + $0x1080] sm:$0xff]
    %v589 = vld [vmem:[#allocation4 + $0x1088] sm:$0xff]
    %v590 = vld [vmem:[#allocation4 + $0x1090] sm:$0xff]
    %v591 = vld [vmem:[#allocation4 + $0x1098] sm:$0xff]
    %v592 = vld [vmem:[#allocation4 + $0x10a0] sm:$0xff]
    %v593 = vld [vmem:[#allocation4 + $0x10a8] sm:$0xff]
    %v594 = vld [vmem:[#allocation4 + $0x10b0] sm:$0xff]
    %v595 = vld [vmem:[#allocation4 + $0x10b8] sm:$0xff]
    %v596 = vld [vmem:[#allocation4 + $0x10c0] sm:$0xff]
    %v597 = vld [vmem:[#allocation4 + $0x10c8] sm:$0xff]
    %v598 = vld [vmem:[#allocation4 + $0x10d0] sm:$0xff]
    %v599 = vld [vmem:[#allocation4 + $0x10d8] sm:$0xff]
    %v600 = vld [vmem:[#allocation4 + $0x10e0] sm:$0xff]
    %v601 = vld [vmem:[#allocation4 + $0x10e8] sm:$0xff]
    %v602 = vld [vmem:[#allocation4 + $0x10f0] sm:$0xff]
    %v603 = vld [vmem:[#allocation4 + $0x10f8] sm:$0xff]
    %v604 = vld [vmem:[#allocation4 + $0x1100] sm:$0xff]
    %v605 = vld [vmem:[#allocation4 + $0x1108] sm:$0xff]
    %v606 = vld [vmem:[#allocation4 + $0x1110] sm:$0xff]
    %v607 = vld [vmem:[#allocation4 + $0x1118] sm:$0xff]
    %v608 = vld [vmem:[#allocation4 + $0x1120] sm:$0xff]
    %v609 = vld [vmem:[#allocation4 + $0x1128] sm:$0xff]
    %v610 = vld [vmem:[#allocation4 + $0x1130] sm:$0xff]
    %v611 = vld [vmem:[#allocation4 + $0x1138] sm:$0xff]
    %v612 = vld [vmem:[#allocation4 + $0x1140] sm:$0xff]
    %v613 = vld [vmem:[#allocation4 + $0x1148] sm:$0xff]
    %v614 = vld [vmem:[#allocation4 + $0x1150] sm:$0xff]
    %v615 = vld [vmem:[#allocation4 + $0x1158] sm:$0xff]
    %v616 = vld [vmem:[#allocation4 + $0x1160] sm:$0xff]
    %v617 = vld [vmem:[#allocation4 + $0x1168] sm:$0xff]
    %v618 = vld [vmem:[#allocation4 + $0x1170] sm:$0xff]
    %v619 = vld [vmem:[#allocation4 + $0x1178] sm:$0xff]
    %v620 = vld [vmem:[#allocation4 + $0x1180] sm:$0xff]
    %v621 = vld [vmem:[#allocation4 + $0x1188] sm:$0xff]
    %v622 = vld [vmem:[#allocation4 + $0x1190] sm:$0xff]
    %v623 = vld [vmem:[#allocation4 + $0x1198] sm:$0xff]
    %v624 = vld [vmem:[#allocation4 + $0x11a0] sm:$0xff]
    %v625 = vld [vmem:[#allocation4 + $0x11a8] sm:$0xff]
    %v626 = vld [vmem:[#allocation4 + $0x11b0] sm:$0xff]
    %v627 = vld [vmem:[#allocation4 + $0x11b8] sm:$0xff]
    %v628 = vld [vmem:[#allocation4 + $0x11c0] sm:$0xff]
    %v629 = vld [vmem:[#allocation4 + $0x11c8] sm:$0xff]
    %v630 = vld [vmem:[#allocation4 + $0x11d0] sm:$0xff]
    %v631 = vld [vmem:[#allocation4 + $0x11d8] sm:$0xff]
    %v632 = vld [vmem:[#allocation4 + $0x11e0] sm:$0xff]
    %v633 = vld [vmem:[#allocation4 + $0x11e8] sm:$0xff]
    %v634 = vld [vmem:[#allocation4 + $0x11f0] sm:$0xff]
    %v635 = vld [vmem:[#allocation4 + $0x11f8] sm:$0xff]
    %v636 = vld [vmem:[#allocation4 + $0x1200] sm:$0xff]
    %v637 = vld [vmem:[#allocation4 + $0x1208] sm:$0xff]
    %v638 = vld [vmem:[#allocation4 + $0x1210] sm:$0xff]
    %v639 = vld [vmem:[#allocation4 + $0x1218] sm:$0xff]
    %v640 = vld [vmem:[#allocation4 + $0x1220] sm:$0xff]
    %v641 = vld [vmem:[#allocation4 + $0x1228] sm:$0xff]
    %v642 = vld [vmem:[#allocation4 + $0x1230] sm:$0xff]
    %v643 = vld [vmem:[#allocation4 + $0x1238] sm:$0xff]
    %v644 = vld [vmem:[#allocation4 + $0x1240] sm:$0xff]
    %v645 = vld [vmem:[#allocation4 + $0x1248] sm:$0xff]
    %v646 = vld [vmem:[#allocation4 + $0x1250] sm:$0xff]
    %v647 = vld [vmem:[#allocation4 + $0x1258] sm:$0xff]
    %v648 = vld [vmem:[#allocation4 + $0x1260] sm:$0xff]
    %v649 = vld [vmem:[#allocation4 + $0x1268] sm:$0xff]
    %v650 = vld [vmem:[#allocation4 + $0x1270] sm:$0xff]
    %v651 = vld [vmem:[#allocation4 + $0x1278] sm:$0xff]
    %v652 = vld [vmem:[#allocation4 + $0x1280] sm:$0xff]
    %v653 = vld [vmem:[#allocation4 + $0x1288] sm:$0xff]
    %v654 = vld [vmem:[#allocation4 + $0x1290] sm:$0xff]
    %v655 = vld [vmem:[#allocation4 + $0x1298] sm:$0xff]
    %v656 = vld [vmem:[#allocation4 + $0x12a0] sm:$0xff]
    %v657 = vld [vmem:[#allocation4 + $0x12a8] sm:$0xff]
    %v658 = vld [vmem:[#allocation4 + $0x12b0] sm:$0xff]
    %v659 = vld [vmem:[#allocation4 + $0x12b8] sm:$0xff]
    %v660 = vld [vmem:[#allocation4 + $0x12c0] sm:$0xff]
    %v661 = vld [vmem:[#allocation4 + $0x12c8] sm:$0xff]
    %v662 = vld [vmem:[#allocation4 + $0x12d0] sm:$0xff]
    %v663 = vld [vmem:[#allocation4 + $0x12d8] sm:$0xff]
    %v664 = vld [vmem:[#allocation4 + $0x12e0] sm:$0xff]
    %v665 = vld [vmem:[#allocation4 + $0x12e8] sm:$0xff]
    %v666 = vld [vmem:[#allocation4 + $0x12f0] sm:$0xff]
    %v667 = vld [vmem:[#allocation4 + $0x12f8] sm:$0xff]
    %v668 = vld [vmem:[#allocation4 + $0x1300] sm:$0xff]
    %v669 = vld [vmem:[#allocation4 + $0x1308] sm:$0xff]
    %v670 = vld [vmem:[#allocation4 + $0x1310] sm:$0xff]
    %v671 = vld [vmem:[#allocation4 + $0x1318] sm:$0xff]
    %v672 = vld [vmem:[#allocation4 + $0x1320] sm:$0xff]
    %v673 = vld [vmem:[#allocation4 + $0x1328] sm:$0xff]
    %v674 = vld [vmem:[#allocation4 + $0x1330] sm:$0xff]
    %v675 = vld [vmem:[#allocation4 + $0x1338] sm:$0xff]
    %v676 = vld [vmem:[#allocation4 + $0x1340] sm:$0xff]
    %v677 = vld [vmem:[#allocation4 + $0x1348] sm:$0xff]
    %v678 = vld [vmem:[#allocation4 + $0x1350] sm:$0xff]
    %v679 = vld [vmem:[#allocation4 + $0x1358] sm:$0xff]
    %v680 = vld [vmem:[#allocation4 + $0x1360] sm:$0xff]
    %v681 = vld [vmem:[#allocation4 + $0x1368] sm:$0xff]
    %v682 = vld [vmem:[#allocation4 + $0x1370] sm:$0xff]
    %v683 = vld [vmem:[#allocation4 + $0x1378] sm:$0xff]
    %v684 = vld [vmem:[#allocation4 + $0x1380] sm:$0xff]
    %v685 = vld [vmem:[#allocation4 + $0x1388] sm:$0xff]
    %v686 = vld [vmem:[#allocation4 + $0x1390] sm:$0xff]
    %v687 = vld [vmem:[#allocation4 + $0x1398] sm:$0xff]
    %v688 = vld [vmem:[#allocation4 + $0x13a0] sm:$0xff]
    %v689 = vld [vmem:[#allocation4 + $0x13a8] sm:$0xff]
    %v690 = vld [vmem:[#allocation4 + $0x13b0] sm:$0xff]
    %v691 = vld [vmem:[#allocation4 + $0x13b8] sm:$0xff]
    %v692 = vld [vmem:[#allocation4 + $0x13c0] sm:$0xff]
    %v693 = vld [vmem:[#allocation4 + $0x13c8] sm:$0xff]
    %v694 = vld [vmem:[#allocation4 + $0x13d0] sm:$0xff]
    %v695 = vld [vmem:[#allocation4 + $0x13d8] sm:$0xff]
    %v696 = vld [vmem:[#allocation4 + $0x13e0] sm:$0xff]
    %v697 = vld [vmem:[#allocation4 + $0x13e8] sm:$0xff]
    %v698 = vld [vmem:[#allocation4 + $0x13f0] sm:$0xff]
    %v699 = vld [vmem:[#allocation4 + $0x13f8] sm:$0xff]
    %v700 = vld [vmem:[#allocation4 + $0x1400] sm:$0xff]
    %v701 = vld [vmem:[#allocation4 + $0x1408] sm:$0xff]
    %v702 = vld [vmem:[#allocation4 + $0x1410] sm:$0xff]
    %v703 = vld [vmem:[#allocation4 + $0x1418] sm:$0xff]
    %v704 = vld [vmem:[#allocation4 + $0x1420] sm:$0xff]
    %v705 = vld [vmem:[#allocation4 + $0x1428] sm:$0xff]
    %v706 = vld [vmem:[#allocation4 + $0x1430] sm:$0xff]
    %v707 = vld [vmem:[#allocation4 + $0x1438] sm:$0xff]
    %v708 = vld [vmem:[#allocation4 + $0x1440] sm:$0xff]
    %v709 = vld [vmem:[#allocation4 + $0x1448] sm:$0xff]
    %v710 = vld [vmem:[#allocation4 + $0x1450] sm:$0xff]
    %v711 = vld [vmem:[#allocation4 + $0x1458] sm:$0xff]
    %v712 = vld [vmem:[#allocation4 + $0x1460] sm:$0xff]
    %v713 = vld [vmem:[#allocation4 + $0x1468] sm:$0xff]
    %v714 = vld [vmem:[#allocation4 + $0x1470] sm:$0xff]
    %v715 = vld [vmem:[#allocation4 + $0x1478] sm:$0xff]
    %v716 = vld [vmem:[#allocation4 + $0x1480] sm:$0xff]
    %v717 = vld [vmem:[#allocation4 + $0x1488] sm:$0xff]
    %v718 = vld [vmem:[#allocation4 + $0x1490] sm:$0xff]
    %v719 = vld [vmem:[#allocation4 + $0x1498] sm:$0xff]
    %v720 = vld [vmem:[#allocation4 + $0x14a0] sm:$0xff]
    %v721 = vld [vmem:[#allocation4 + $0x14a8] sm:$0xff]
    %v722 = vld [vmem:[#allocation4 + $0x14b0] sm:$0xff]
    %v723 = vld [vmem:[#allocation4 + $0x14b8] sm:$0xff]
    %v724 = vld [vmem:[#allocation4 + $0x14c0] sm:$0xff]
    %v725 = vld [vmem:[#allocation4 + $0x14c8] sm:$0xff]
    %v726 = vld [vmem:[#allocation4 + $0x14d0] sm:$0xff]
    %v727 = vld [vmem:[#allocation4 + $0x14d8] sm:$0xff]
    %v728 = vld [vmem:[#allocation4 + $0x14e0] sm:$0xff]
    %v729 = vld [vmem:[#allocation4 + $0x14e8] sm:$0xff]
    %v730 = vld [vmem:[#allocation4 + $0x14f0] sm:$0xff]
    %v731 = vld [vmem:[#allocation4 + $0x14f8] sm:$0xff]
    %v732 = vld [vmem:[#allocation4 + $0x1500] sm:$0xff]
    %v733 = vld [vmem:[#allocation4 + $0x1508] sm:$0xff]
    %v734 = vld [vmem:[#allocation4 + $0x1510] sm:$0xff]
    %v735 = vld [vmem:[#allocation4 + $0x1518] sm:$0xff]
    %v736 = vld [vmem:[#allocation4 + $0x1520] sm:$0xff]
    %v737 = vld [vmem:[#allocation4 + $0x1528] sm:$0xff]
    %v738 = vld [vmem:[#allocation4 + $0x1530] sm:$0xff]
    %v739 = vld [vmem:[#allocation4 + $0x1538] sm:$0xff]
    %v740 = vld [vmem:[#allocation4 + $0x1540] sm:$0xff]
    %v741 = vld [vmem:[#allocation4 + $0x1548] sm:$0xff]
    %v742 = vld [vmem:[#allocation4 + $0x1550] sm:$0xff]
    %v743 = vld [vmem:[#allocation4 + $0x1558] sm:$0xff]
    %v744 = vld [vmem:[#allocation4 + $0x1560] sm:$0xff]
    %v745 = vld [vmem:[#allocation4 + $0x1568] sm:$0xff]
    %v746 = vld [vmem:[#allocation4 + $0x1570] sm:$0xff]
    %v747 = vld [vmem:[#allocation4 + $0x1578] sm:$0xff]
    %v748 = vld [vmem:[#allocation4 + $0x1580] sm:$0xff]
    %v749 = vld [vmem:[#allocation4 + $0x1588] sm:$0xff]
    %v750 = vld [vmem:[#allocation4 + $0x1590] sm:$0xff]
    %v751 = vld [vmem:[#allocation4 + $0x1598] sm:$0xff]
    %v752 = vld [vmem:[#allocation4 + $0x15a0] sm:$0xff]
    %v753 = vld [vmem:[#allocation4 + $0x15a8] sm:$0xff]
    %v754 = vld [vmem:[#allocation4 + $0x15b0] sm:$0xff]
    %v755 = vld [vmem:[#allocation4 + $0x15b8] sm:$0xff]
    %v756 = vld [vmem:[#allocation4 + $0x15c0] sm:$0xff]
    %v757 = vld [vmem:[#allocation4 + $0x15c8] sm:$0xff]
    %v758 = vld [vmem:[#allocation4 + $0x15d0] sm:$0xff]
    %v759 = vld [vmem:[#allocation4 + $0x15d8] sm:$0xff]
    %v760 = vld [vmem:[#allocation4 + $0x15e0] sm:$0xff]
    %v761 = vld [vmem:[#allocation4 + $0x15e8] sm:$0xff]
    %v762 = vld [vmem:[#allocation4 + $0x15f0] sm:$0xff]
    %v763 = vld [vmem:[#allocation4 + $0x15f8] sm:$0xff]
    %v764 = vld [vmem:[#allocation4 + $0x1600] sm:$0xff]
    %v765 = vld [vmem:[#allocation4 + $0x1608] sm:$0xff]
    %v766 = vld [vmem:[#allocation4 + $0x1610] sm:$0xff]
    %v767 = vld [vmem:[#allocation4 + $0x1618] sm:$0xff]
    %v768 = vld [vmem:[#allocation4 + $0x1620] sm:$0xff]
    %v769 = vld [vmem:[#allocation4 + $0x1628] sm:$0xff]
    %v770 = vld [vmem:[#allocation4 + $0x1630] sm:$0xff]
    %v771 = vld [vmem:[#allocation4 + $0x1638] sm:$0xff]
    %v772 = vld [vmem:[#allocation4 + $0x1640] sm:$0xff]
    %v773 = vld [vmem:[#allocation4 + $0x1648] sm:$0xff]
    %v774 = vld [vmem:[#allocation4 + $0x1650] sm:$0xff]
    %v775 = vld [vmem:[#allocation4 + $0x1658] sm:$0xff]
    %v776 = vld [vmem:[#allocation4 + $0x1660] sm:$0xff]
    %v777 = vld [vmem:[#allocation4 + $0x1668] sm:$0xff]
    %v778 = vld [vmem:[#allocation4 + $0x1670] sm:$0xff]
    %v779 = vld [vmem:[#allocation4 + $0x1678] sm:$0xff]
    %v780 = vld [vmem:[#allocation4 + $0x1680] sm:$0xff]
    %v781 = vld [vmem:[#allocation4 + $0x1688] sm:$0xff]
    %v782 = vld [vmem:[#allocation4 + $0x1690] sm:$0xff]
    %v783 = vld [vmem:[#allocation4 + $0x1698] sm:$0xff]
    %v784 = vld [vmem:[#allocation4 + $0x16a0] sm:$0xff]
    %v785 = vld [vmem:[#allocation4 + $0x16a8] sm:$0xff]
    %v786 = vld [vmem:[#allocation4 + $0x16b0] sm:$0xff]
    %v787 = vld [vmem:[#allocation4 + $0x16b8] sm:$0xff]
    %v788 = vld [vmem:[#allocation4 + $0x16c0] sm:$0xff]
    %v789 = vld [vmem:[#allocation4 + $0x16c8] sm:$0xff]
    %v790 = vld [vmem:[#allocation4 + $0x16d0] sm:$0xff]
    %v791 = vld [vmem:[#allocation4 + $0x16d8] sm:$0xff]
    %v792 = vld [vmem:[#allocation4 + $0x16e0] sm:$0xff]
    %v793 = vld [vmem:[#allocation4 + $0x16e8] sm:$0xff]
    %v794 = vld [vmem:[#allocation4 + $0x16f0] sm:$0xff]
    %v795 = vld [vmem:[#allocation4 + $0x16f8] sm:$0xff]
    %v796 = vld [vmem:[#allocation4 + $0x1700] sm:$0xff]
    %v797 = vld [vmem:[#allocation4 + $0x1708] sm:$0xff]
    %v798 = vld [vmem:[#allocation4 + $0x1710] sm:$0xff]
    %v799 = vld [vmem:[#allocation4 + $0x1718] sm:$0xff]
    %v800 = vld [vmem:[#allocation4 + $0x1720] sm:$0xff]
    %v801 = vld [vmem:[#allocation4 + $0x1728] sm:$0xff]
    %v802 = vld [vmem:[#allocation4 + $0x1730] sm:$0xff]
    %v803 = vld [vmem:[#allocation4 + $0x1738] sm:$0xff]
    %v804 = vld [vmem:[#allocation4 + $0x1740] sm:$0xff]
    %v805 = vld [vmem:[#allocation4 + $0x1748] sm:$0xff]
    %v806 = vld [vmem:[#allocation4 + $0x1750] sm:$0xff]
    %v807 = vld [vmem:[#allocation4 + $0x1758] sm:$0xff]
    %v808 = vld [vmem:[#allocation4 + $0x1760] sm:$0xff]
    %v809 = vld [vmem:[#allocation4 + $0x1768] sm:$0xff]
    %v810 = vld [vmem:[#allocation4 + $0x1770] sm:$0xff]
    %v811 = vld [vmem:[#allocation4 + $0x1778] sm:$0xff]
    %v812 = vld [vmem:[#allocation4 + $0x1780] sm:$0xff]
    %v813 = vld [vmem:[#allocation4 + $0x1788] sm:$0xff]
    %v814 = vld [vmem:[#allocation4 + $0x1790] sm:$0xff]
    %v815 = vld [vmem:[#allocation4 + $0x1798] sm:$0xff]
    %v816 = vld [vmem:[#allocation4 + $0x17a0] sm:$0xff]
    %v817 = vld [vmem:[#allocation4 + $0x17a8] sm:$0xff]
    %v818 = vld [vmem:[#allocation4 + $0x17b0] sm:$0xff]
    %v819 = vld [vmem:[#allocation4 + $0x17b8] sm:$0xff]
    %v820 = vld [vmem:[#allocation4 + $0x17c0] sm:$0xff]
    %v821 = vld [vmem:[#allocation4 + $0x17c8] sm:$0xff]
    %v822 = vld [vmem:[#allocation4 + $0x17d0] sm:$0xff]
    %v823 = vld [vmem:[#allocation4 + $0x17d8] sm:$0xff]
    %v824 = vld [vmem:[#allocation4 + $0x17e0] sm:$0xff]
    %v825 = vld [vmem:[#allocation4 + $0x17e8] sm:$0xff]
    %v826 = vld [vmem:[#allocation4 + $0x17f0] sm:$0xff]
    %v827 = vld [vmem:[#allocation4 + $0x17f8] sm:$0xff]
    %v828 = vld [vmem:[#allocation4 + $0x1800] sm:$0xff]
    %v829 = vld [vmem:[#allocation4 + $0x1808] sm:$0xff]
    %v830 = vld [vmem:[#allocation4 + $0x1810] sm:$0xff]
    %v831 = vld [vmem:[#allocation4 + $0x1818] sm:$0xff]
    %v832 = vld [vmem:[#allocation4 + $0x1820] sm:$0xff]
    %v833 = vld [vmem:[#allocation4 + $0x1828] sm:$0xff]
    %v834 = vld [vmem:[#allocation4 + $0x1830] sm:$0xff]
    %v835 = vld [vmem:[#allocation4 + $0x1838] sm:$0xff]
    %v836 = vld [vmem:[#allocation4 + $0x1840] sm:$0xff]
    %v837 = vld [vmem:[#allocation4 + $0x1848] sm:$0xff]
    %v838 = vld [vmem:[#allocation4 + $0x1850] sm:$0xff]
    %v839 = vld [vmem:[#allocation4 + $0x1858] sm:$0xff]
    %v840 = vld [vmem:[#allocation4 + $0x1860] sm:$0xff]
    %v841 = vld [vmem:[#allocation4 + $0x1868] sm:$0xff]
    %v842 = vld [vmem:[#allocation4 + $0x1870] sm:$0xff]
    %v843 = vld [vmem:[#allocation4 + $0x1878] sm:$0xff]
    %v844 = vld [vmem:[#allocation4 + $0x1880] sm:$0xff]
    %v845 = vld [vmem:[#allocation4 + $0x1888] sm:$0xff]
    %v846 = vld [vmem:[#allocation4 + $0x1890] sm:$0xff]
    %v847 = vld [vmem:[#allocation4 + $0x1898] sm:$0xff]
    %v848 = vld [vmem:[#allocation4 + $0x18a0] sm:$0xff]
    %v849 = vld [vmem:[#allocation4 + $0x18a8] sm:$0xff]
    %v850 = vld [vmem:[#allocation4 + $0x18b0] sm:$0xff]
    %v851 = vld [vmem:[#allocation4 + $0x18b8] sm:$0xff]
    %v852 = vld [vmem:[#allocation4 + $0x18c0] sm:$0xff]
    %v853 = vld [vmem:[#allocation4 + $0x18c8] sm:$0xff]
    %v854 = vld [vmem:[#allocation4 + $0x18d0] sm:$0xff]
    %v855 = vld [vmem:[#allocation4 + $0x18d8] sm:$0xff]
    %v856 = vld [vmem:[#allocation4 + $0x18e0] sm:$0xff]
    %v857 = vld [vmem:[#allocation4 + $0x18e8] sm:$0xff]
    %v858 = vld [vmem:[#allocation4 + $0x18f0] sm:$0xff]
    %v859 = vld [vmem:[#allocation4 + $0x18f8] sm:$0xff]
    %v860 = vld [vmem:[#allocation4 + $0x1900] sm:$0xff]
    %v861 = vld [vmem:[#allocation4 + $0x1908] sm:$0xff]
    %v862 = vld [vmem:[#allocation4 + $0x1910] sm:$0xff]
    %v863 = vld [vmem:[#allocation4 + $0x1918] sm:$0xff]
    %v864 = vld [vmem:[#allocation4 + $0x1920] sm:$0xff]
    %v865 = vld [vmem:[#allocation4 + $0x1928] sm:$0xff]
    %v866 = vld [vmem:[#allocation4 + $0x1930] sm:$0xff]
    %v867 = vld [vmem:[#allocation4 + $0x1938] sm:$0xff]
    %v868 = vld [vmem:[#allocation4 + $0x1940] sm:$0xff]
    %v869 = vld [vmem:[#allocation4 + $0x1948] sm:$0xff]
    %v870 = vld [vmem:[#allocation4 + $0x1950] sm:$0xff]
    %v871 = vld [vmem:[#allocation4 + $0x1958] sm:$0xff]
    %v872 = vld [vmem:[#allocation4 + $0x1960] sm:$0xff]
    %v873 = vld [vmem:[#allocation4 + $0x1968] sm:$0xff]
    %v874 = vld [vmem:[#allocation4 + $0x1970] sm:$0xff]
    %v875 = vld [vmem:[#allocation4 + $0x1978] sm:$0xff]
    %v876 = vld [vmem:[#allocation4 + $0x1980] sm:$0xff]
    %v877 = vld [vmem:[#allocation4 + $0x1988] sm:$0xff]
    %v878 = vld [vmem:[#allocation4 + $0x1990] sm:$0xff]
    %v879 = vld [vmem:[#allocation4 + $0x1998] sm:$0xff]
    %v880 = vld [vmem:[#allocation4 + $0x19a0] sm:$0xff]
    %v881 = vld [vmem:[#allocation4 + $0x19a8] sm:$0xff]
    %v882 = vld [vmem:[#allocation4 + $0x19b0] sm:$0xff]
    %v883 = vld [vmem:[#allocation4 + $0x19b8] sm:$0xff]
    %v884 = vld [vmem:[#allocation4 + $0x19c0] sm:$0xff]
    %v885 = vld [vmem:[#allocation4 + $0x19c8] sm:$0xff]
    %v886 = vld [vmem:[#allocation4 + $0x19d0] sm:$0xff]
    %v887 = vld [vmem:[#allocation4 + $0x19d8] sm:$0xff]
    %v888 = vld [vmem:[#allocation4 + $0x19e0] sm:$0xff]
    %v889 = vld [vmem:[#allocation4 + $0x19e8] sm:$0xff]
    %v890 = vld [vmem:[#allocation4 + $0x19f0] sm:$0xff]
    %v891 = vld [vmem:[#allocation4 + $0x19f8] sm:$0xff]
    %v892 = vld [vmem:[#allocation4 + $0x1a00] sm:$0xff]
    %v893 = vld [vmem:[#allocation4 + $0x1a08] sm:$0xff]
    %v894 = vld [vmem:[#allocation4 + $0x1a10] sm:$0xff]
    %v895 = vld [vmem:[#allocation4 + $0x1a18] sm:$0xff]
    %v896 = vld [vmem:[#allocation4 + $0x1a20] sm:$0xff]
    %v897 = vld [vmem:[#allocation4 + $0x1a28] sm:$0xff]
    %v898 = vld [vmem:[#allocation4 + $0x1a30] sm:$0xff]
    %v899 = vld [vmem:[#allocation4 + $0x1a38] sm:$0xff]
    %v900 = vld [vmem:[#allocation4 + $0x1a40] sm:$0xff]
    %v901 = vld [vmem:[#allocation4 + $0x1a48] sm:$0xff]
    %v902 = vld [vmem:[#allocation4 + $0x1a50] sm:$0xff]
    %v903 = vld [vmem:[#allocation4 + $0x1a58] sm:$0xff]
    %v904 = vld [vmem:[#allocation4 + $0x1a60] sm:$0xff]
    %v905 = vld [vmem:[#allocation4 + $0x1a68] sm:$0xff]
    %v906 = vld [vmem:[#allocation4 + $0x1a70] sm:$0xff]
    %v907 = vld [vmem:[#allocation4 + $0x1a78] sm:$0xff]
    %v908 = vld [vmem:[#allocation4 + $0x1a80] sm:$0xff]
    %v909 = vld [vmem:[#allocation4 + $0x1a88] sm:$0xff]
    %v910 = vld [vmem:[#allocation4 + $0x1a90] sm:$0xff]
    %v911 = vld [vmem:[#allocation4 + $0x1a98] sm:$0xff]
    %v912 = vld [vmem:[#allocation4 + $0x1aa0] sm:$0xff]
    %v913 = vld [vmem:[#allocation4 + $0x1aa8] sm:$0xff]
    %v914 = vld [vmem:[#allocation4 + $0x1ab0] sm:$0xff]
    %v915 = vld [vmem:[#allocation4 + $0x1ab8] sm:$0xff]
    %v916 = vld [vmem:[#allocation4 + $0x1ac0] sm:$0xff]
    %v917 = vld [vmem:[#allocation4 + $0x1ac8] sm:$0xff]
    %v918 = vld [vmem:[#allocation4 + $0x1ad0] sm:$0xff]
    %v919 = vld [vmem:[#allocation4 + $0x1ad8] sm:$0xff]
    %v920 = vld [vmem:[#allocation4 + $0x1ae0] sm:$0xff]
    %v921 = vld [vmem:[#allocation4 + $0x1ae8] sm:$0xff]
    %v922 = vld [vmem:[#allocation4 + $0x1af0] sm:$0xff]
    %v923 = vld [vmem:[#allocation4 + $0x1af8] sm:$0xff]
    %v924 = vld [vmem:[%s2] sm:$0xff]
    %v925 = vld [vmem:[%s2 + $0x8] sm:$0xff]
    %v926 = vld [vmem:[%s2 + $0x10] sm:$0x3]
    %v930 = vlaneseq
    %v931 = vshrl.u32 %v930, 7
    %v932 = vsub.s32 0, %v931
    %v933 = vrot.slane %v924, %v932
    %v934 = vlaneseq
    %v935 = vshrl.u32 %v934, 7
    %v936 = vsub.s32 1, %v935
    %v937 = vrot.slane %v924, %v936
    %v938 = vlaneseq
    %v939 = vshrl.u32 %v938, 7
    %v940 = vsub.s32 2, %v939
    %v941 = vrot.slane %v924, %v940
    %v942 = vlaneseq
    %v943 = vshrl.u32 %v942, 7
    %v944 = vsub.s32 3, %v943
    %v945 = vrot.slane %v924, %v944
    %v946 = vlaneseq
    %v947 = vshrl.u32 %v946, 7
    %v948 = vsub.s32 4, %v947
    %v949 = vrot.slane %v924, %v948
    %v950 = vlaneseq
    %v951 = vshrl.u32 %v950, 7
    %v952 = vsub.s32 5, %v951
    %v953 = vrot.slane %v924, %v952
    %v954 = vlaneseq
    %v955 = vshrl.u32 %v954, 7
    %v956 = vsub.s32 6, %v955
    %v957 = vrot.slane %v924, %v956
    %v958 = vlaneseq
    %v959 = vshrl.u32 %v958, 7
    %v960 = vsub.s32 7, %v959
    %v961 = vrot.slane %v924, %v960
    %v962 = vlaneseq
    %v963 = vshrl.u32 %v962, 7
    %v964 = vsub.s32 0, %v963
    %v965 = vrot.slane %v925, %v964
    %v966 = vlaneseq
    %v967 = vshrl.u32 %v966, 7
    %v968 = vsub.s32 1, %v967
    %v969 = vrot.slane %v925, %v968
    %v970 = vlaneseq
    %v971 = vshrl.u32 %v970, 7
    %v972 = vsub.s32 2, %v971
    %v973 = vrot.slane %v925, %v972
    %v974 = vlaneseq
    %v975 = vshrl.u32 %v974, 7
    %v976 = vsub.s32 3, %v975
    %v977 = vrot.slane %v925, %v976
    %v978 = vlaneseq
    %v979 = vshrl.u32 %v978, 7
    %v980 = vsub.s32 4, %v979
    %v981 = vrot.slane %v925, %v980
    %v982 = vlaneseq
    %v983 = vshrl.u32 %v982, 7
    %v984 = vsub.s32 5, %v983
    %v985 = vrot.slane %v925, %v984
    %v986 = vlaneseq
    %v987 = vshrl.u32 %v986, 7
    %v988 = vsub.s32 6, %v987
    %v989 = vrot.slane %v925, %v988
    %v990 = vlaneseq
    %v991 = vshrl.u32 %v990, 7
    %v992 = vsub.s32 7, %v991
    %v993 = vrot.slane %v925, %v992
    %v994 = vlaneseq
    %v995 = vshrl.u32 %v994, 7
    %v996 = vsub.s32 0, %v995
    %v997 = vrot.slane %v926, %v996
    %v998 = vlaneseq
    %v999 = vshrl.u32 %v998, 7
    %v1000 = vsub.s32 1, %v999
    %v1001 = vrot.slane %v926, %v1000
    %v1884 = vunpack.c.l.b16 %v60
    %v1885 = vunpack.c.h.b16 %v60
    %v1886 = vunpack.c.l.b16 %v61
    %v1887 = vunpack.c.h.b16 %v61
    %v1888 = vunpack.c.l.b16 %v62
    %v1889 = vunpack.c.h.b16 %v62
    %v1890 = vunpack.c.l.b16 %v63
    %v1891 = vunpack.c.h.b16 %v63
    %v1892 = vunpack.c.l.b16 %v64
    %v1893 = vunpack.c.h.b16 %v64
    %v1894 = vunpack.c.l.b16 %v65
    %v1895 = vunpack.c.h.b16 %v65
    %v1896 = vunpack.c.l.b16 %v66
    %v1897 = vunpack.c.h.b16 %v66
    %v1898 = vunpack.c.l.b16 %v67
    %v1899 = vunpack.c.h.b16 %v67
    %v1900 = vunpack.c.l.b16 %v68
    %v1901 = vunpack.c.h.b16 %v68
    %v1902 = vunpack.c.l.b16 %v69
    %v1903 = vunpack.c.h.b16 %v69
    %v1904 = vunpack.c.l.b16 %v70
    %v1905 = vunpack.c.h.b16 %v70
    %v1906 = vunpack.c.l.b16 %v71
    %v1907 = vunpack.c.h.b16 %v71
    %v1908 = vunpack.c.l.b16 %v72
    %v1909 = vunpack.c.h.b16 %v72
    %v1910 = vunpack.c.l.b16 %v73
    %v1911 = vunpack.c.h.b16 %v73
    %v1912 = vunpack.c.l.b16 %v74
    %v1913 = vunpack.c.h.b16 %v74
    %v1914 = vunpack.c.l.b16 %v75
    %v1915 = vunpack.c.h.b16 %v75
    %v1916 = vunpack.c.l.b16 %v76
    %v1917 = vunpack.c.h.b16 %v76
    %v1918 = vunpack.c.l.b16 %v77
    %v1919 = vunpack.c.h.b16 %v77
    %v1920 = vunpack.c.l.b16 %v78
    %v1921 = vunpack.c.h.b16 %v78
    %v1922 = vunpack.c.l.b16 %v79
    %v1923 = vunpack.c.h.b16 %v79
    %v1924 = vunpack.c.l.b16 %v80
    %v1925 = vunpack.c.h.b16 %v80
    %v1926 = vunpack.c.l.b16 %v81
    %v1927 = vunpack.c.h.b16 %v81
    %v1928 = vunpack.c.l.b16 %v82
    %v1929 = vunpack.c.h.b16 %v82
    %v1930 = vunpack.c.l.b16 %v83
    %v1931 = vunpack.c.h.b16 %v83
    %v1932 = vunpack.c.l.b16 %v84
    %v1933 = vunpack.c.h.b16 %v84
    %v1934 = vunpack.c.l.b16 %v85
    %v1935 = vunpack.c.h.b16 %v85
    %v1936 = vunpack.c.l.b16 %v86
    %v1937 = vunpack.c.h.b16 %v86
    %v1938 = vunpack.c.l.b16 %v87
    %v1939 = vunpack.c.h.b16 %v87
    %v1940 = vunpack.c.l.b16 %v88
    %v1941 = vunpack.c.h.b16 %v88
    %v1942 = vunpack.c.l.b16 %v89
    %v1943 = vunpack.c.h.b16 %v89
    %v1944 = vunpack.c.l.b16 %v90
    %v1945 = vunpack.c.h.b16 %v90
    %v1946 = vunpack.c.l.b16 %v91
    %v1947 = vunpack.c.h.b16 %v91
    %v1948 = vunpack.c.l.b16 %v92
    %v1949 = vunpack.c.h.b16 %v92
    %v1950 = vunpack.c.l.b16 %v93
    %v1951 = vunpack.c.h.b16 %v93
    %v1952 = vunpack.c.l.b16 %v94
    %v1953 = vunpack.c.h.b16 %v94
    %v1954 = vunpack.c.l.b16 %v95
    %v1955 = vunpack.c.h.b16 %v95
    %v1956 = vunpack.c.l.b16 %v96
    %v1957 = vunpack.c.h.b16 %v96
    %v1958 = vunpack.c.l.b16 %v97
    %v1959 = vunpack.c.h.b16 %v97
    %v1960 = vunpack.c.l.b16 %v98
    %v1961 = vunpack.c.h.b16 %v98
    %v1962 = vunpack.c.l.b16 %v99
    %v1963 = vunpack.c.h.b16 %v99
    %v1964 = vunpack.c.l.b16 %v100
    %v1965 = vunpack.c.h.b16 %v100
    %v1966 = vunpack.c.l.b16 %v101
    %v1967 = vunpack.c.h.b16 %v101
    %v1968 = vunpack.c.l.b16 %v102
    %v1969 = vunpack.c.h.b16 %v102
    %v1970 = vunpack.c.l.b16 %v103
    %v1971 = vunpack.c.h.b16 %v103
    %v1972 = vunpack.c.l.b16 %v104
    %v1973 = vunpack.c.h.b16 %v104
    %v1974 = vunpack.c.l.b16 %v105
    %v1975 = vunpack.c.h.b16 %v105
    %v1976 = vunpack.c.l.b16 %v106
    %v1977 = vunpack.c.h.b16 %v106
    %v1978 = vunpack.c.l.b16 %v107
    %v1979 = vunpack.c.h.b16 %v107
    %v1980 = vunpack.c.l.b16 %v108
    %v1981 = vunpack.c.h.b16 %v108
    %v1982 = vunpack.c.l.b16 %v109
    %v1983 = vunpack.c.h.b16 %v109
    %v1984 = vunpack.c.l.b16 %v110
    %v1985 = vunpack.c.h.b16 %v110
    %v1986 = vunpack.c.l.b16 %v111
    %v1987 = vunpack.c.h.b16 %v111
    %v1988 = vunpack.c.l.b16 %v112
    %v1989 = vunpack.c.h.b16 %v112
    %v1990 = vunpack.c.l.b16 %v113
    %v1991 = vunpack.c.h.b16 %v113
    %v1992 = vunpack.c.l.b16 %v114
    %v1993 = vunpack.c.h.b16 %v114
    %v1994 = vunpack.c.l.b16 %v115
    %v1995 = vunpack.c.h.b16 %v115
    %v1996 = vunpack.c.l.b16 %v116
    %v1997 = vunpack.c.h.b16 %v116
    %v1998 = vunpack.c.l.b16 %v117
    %v1999 = vunpack.c.h.b16 %v117
    %v2000 = vunpack.c.l.b16 %v118
    %v2001 = vunpack.c.h.b16 %v118
    %v2002 = vunpack.c.l.b16 %v119
    %v2003 = vunpack.c.h.b16 %v119
    %v2004 = vunpack.c.l.b16 %v120
    %v2005 = vunpack.c.h.b16 %v120
    %v2006 = vunpack.c.l.b16 %v121
    %v2007 = vunpack.c.h.b16 %v121
    %v2008 = vunpack.c.l.b16 %v122
    %v2009 = vunpack.c.h.b16 %v122
    %v2010 = vunpack.c.l.b16 %v123
    %v2011 = vunpack.c.h.b16 %v123
    %v2012 = vunpack.c.l.b16 %v124
    %v2013 = vunpack.c.h.b16 %v124
    %v2014 = vunpack.c.l.b16 %v125
    %v2015 = vunpack.c.h.b16 %v125
    %v2016 = vunpack.c.l.b16 %v126
    %v2017 = vunpack.c.h.b16 %v126
    %v2018 = vunpack.c.l.b16 %v127
    %v2019 = vunpack.c.h.b16 %v127
    %v2020 = vunpack.c.l.b16 %v128
    %v2021 = vunpack.c.h.b16 %v128
    %v2022 = vunpack.c.l.b16 %v129
    %v2023 = vunpack.c.h.b16 %v129
    %v2024 = vunpack.c.l.b16 %v130
    %v2025 = vunpack.c.h.b16 %v130
    %v2026 = vunpack.c.l.b16 %v131
    %v2027 = vunpack.c.h.b16 %v131
    %v2028 = vunpack.c.l.b16 %v132
    %v2029 = vunpack.c.h.b16 %v132
    %v2030 = vunpack.c.l.b16 %v133
    %v2031 = vunpack.c.h.b16 %v133
    %v2032 = vunpack.c.l.b16 %v134
    %v2033 = vunpack.c.h.b16 %v134
    %v2034 = vunpack.c.l.b16 %v135
    %v2035 = vunpack.c.h.b16 %v135
    %v2036 = vunpack.c.l.b16 %v136
    %v2037 = vunpack.c.h.b16 %v136
    %v2038 = vunpack.c.l.b16 %v137
    %v2039 = vunpack.c.h.b16 %v137
    %v2040 = vunpack.c.l.b16 %v138
    %v2041 = vunpack.c.h.b16 %v138
    %v2042 = vunpack.c.l.b16 %v139
    %v2043 = vunpack.c.h.b16 %v139
    %v2044 = vunpack.c.l.b16 %v140
    %v2045 = vunpack.c.h.b16 %v140
    %v2046 = vunpack.c.l.b16 %v141
    %v2047 = vunpack.c.h.b16 %v141
    %v2048 = vunpack.c.l.b16 %v142
    %v2049 = vunpack.c.h.b16 %v142
    %v2050 = vunpack.c.l.b16 %v143
    %v2051 = vunpack.c.h.b16 %v143
    %v2052 = vunpack.c.l.b16 %v144
    %v2053 = vunpack.c.h.b16 %v144
    %v2054 = vunpack.c.l.b16 %v145
    %v2055 = vunpack.c.h.b16 %v145
    %v2056 = vunpack.c.l.b16 %v146
    %v2057 = vunpack.c.h.b16 %v146
    %v2058 = vunpack.c.l.b16 %v147
    %v2059 = vunpack.c.h.b16 %v147
    %v2060 = vunpack.c.l.b16 %v148
    %v2061 = vunpack.c.h.b16 %v148
    %v2062 = vunpack.c.l.b16 %v149
    %v2063 = vunpack.c.h.b16 %v149
    %v2064 = vunpack.c.l.b16 %v150
    %v2065 = vunpack.c.h.b16 %v150
    %v2066 = vunpack.c.l.b16 %v151
    %v2067 = vunpack.c.h.b16 %v151
    %v2068 = vunpack.c.l.b16 %v152
    %v2069 = vunpack.c.h.b16 %v152
    %v2070 = vunpack.c.l.b16 %v153
    %v2071 = vunpack.c.h.b16 %v153
    %v2072 = vunpack.c.l.b16 %v154
    %v2073 = vunpack.c.h.b16 %v154
    %v2074 = vunpack.c.l.b16 %v155
    %v2075 = vunpack.c.h.b16 %v155
    %v2076 = vunpack.c.l.b16 %v156
    %v2077 = vunpack.c.h.b16 %v156
    %v2078 = vunpack.c.l.b16 %v157
    %v2079 = vunpack.c.h.b16 %v157
    %v2080 = vunpack.c.l.b16 %v158
    %v2081 = vunpack.c.h.b16 %v158
    %v2082 = vunpack.c.l.b16 %v159
    %v2083 = vunpack.c.h.b16 %v159
    %v2084 = vunpack.c.l.b16 %v160
    %v2085 = vunpack.c.h.b16 %v160
    %v2086 = vunpack.c.l.b16 %v161
    %v2087 = vunpack.c.h.b16 %v161
    %v2088 = vunpack.c.l.b16 %v162
    %v2089 = vunpack.c.h.b16 %v162
    %v2090 = vunpack.c.l.b16 %v163
    %v2091 = vunpack.c.h.b16 %v163
    %v2092 = vunpack.c.l.b16 %v164
    %v2093 = vunpack.c.h.b16 %v164
    %v2094 = vunpack.c.l.b16 %v165
    %v2095 = vunpack.c.h.b16 %v165
    %v2096 = vunpack.c.l.b16 %v166
    %v2097 = vunpack.c.h.b16 %v166
    %v2098 = vunpack.c.l.b16 %v167
    %v2099 = vunpack.c.h.b16 %v167
    %v2100 = vunpack.c.l.b16 %v168
    %v2101 = vunpack.c.h.b16 %v168
    %v2102 = vunpack.c.l.b16 %v169
    %v2103 = vunpack.c.h.b16 %v169
    %v2104 = vunpack.c.l.b16 %v170
    %v2105 = vunpack.c.h.b16 %v170
    %v2106 = vunpack.c.l.b16 %v171
    %v2107 = vunpack.c.h.b16 %v171
    %v2108 = vunpack.c.l.b16 %v172
    %v2109 = vunpack.c.h.b16 %v172
    %v2110 = vunpack.c.l.b16 %v173
    %v2111 = vunpack.c.h.b16 %v173
    %v2112 = vunpack.c.l.b16 %v174
    %v2113 = vunpack.c.h.b16 %v174
    %v2114 = vunpack.c.l.b16 %v175
    %v2115 = vunpack.c.h.b16 %v175
    %v2116 = vunpack.c.l.b16 %v176
    %v2117 = vunpack.c.h.b16 %v176
    %v2118 = vunpack.c.l.b16 %v177
    %v2119 = vunpack.c.h.b16 %v177
    %v2120 = vunpack.c.l.b16 %v178
    %v2121 = vunpack.c.h.b16 %v178
    %v2122 = vunpack.c.l.b16 %v179
    %v2123 = vunpack.c.h.b16 %v179
    %v2124 = vunpack.c.l.b16 %v180
    %v2125 = vunpack.c.h.b16 %v180
    %v2126 = vunpack.c.l.b16 %v181
    %v2127 = vunpack.c.h.b16 %v181
    %v2128 = vunpack.c.l.b16 %v182
    %v2129 = vunpack.c.h.b16 %v182
    %v2130 = vunpack.c.l.b16 %v183
    %v2131 = vunpack.c.h.b16 %v183
    %v2132 = vunpack.c.l.b16 %v184
    %v2133 = vunpack.c.h.b16 %v184
    %v2134 = vunpack.c.l.b16 %v185
    %v2135 = vunpack.c.h.b16 %v185
    %v2136 = vunpack.c.l.b16 %v186
    %v2137 = vunpack.c.h.b16 %v186
    %v2138 = vunpack.c.l.b16 %v187
    %v2139 = vunpack.c.h.b16 %v187
    %v2140 = vunpack.c.l.b16 %v188
    %v2141 = vunpack.c.h.b16 %v188
    %v2142 = vunpack.c.l.b16 %v189
    %v2143 = vunpack.c.h.b16 %v189
    %v2144 = vunpack.c.l.b16 %v190
    %v2145 = vunpack.c.h.b16 %v190
    %v2146 = vunpack.c.l.b16 %v191
    %v2147 = vunpack.c.h.b16 %v191
    %v2148 = vunpack.c.l.b16 %v192
    %v2149 = vunpack.c.h.b16 %v192
    %v2150 = vunpack.c.l.b16 %v193
    %v2151 = vunpack.c.h.b16 %v193
    %v2152 = vunpack.c.l.b16 %v194
    %v2153 = vunpack.c.h.b16 %v194
    %v2154 = vunpack.c.l.b16 %v195
    %v2155 = vunpack.c.h.b16 %v195
    %v2156 = vunpack.c.l.b16 %v196
    %v2157 = vunpack.c.h.b16 %v196
    %v2158 = vunpack.c.l.b16 %v197
    %v2159 = vunpack.c.h.b16 %v197
    %v2160 = vunpack.c.l.b16 %v198
    %v2161 = vunpack.c.h.b16 %v198
    %v2162 = vunpack.c.l.b16 %v199
    %v2163 = vunpack.c.h.b16 %v199
    %v2164 = vunpack.c.l.b16 %v200
    %v2165 = vunpack.c.h.b16 %v200
    %v2166 = vunpack.c.l.b16 %v201
    %v2167 = vunpack.c.h.b16 %v201
    %v2168 = vunpack.c.l.b16 %v202
    %v2169 = vunpack.c.h.b16 %v202
    %v2170 = vunpack.c.l.b16 %v203
    %v2171 = vunpack.c.h.b16 %v203
    %v2172 = vunpack.c.l.b16 %v204
    %v2173 = vunpack.c.h.b16 %v204
    %v2174 = vunpack.c.l.b16 %v205
    %v2175 = vunpack.c.h.b16 %v205
    %v2176 = vunpack.c.l.b16 %v206
    %v2177 = vunpack.c.h.b16 %v206
    %v2178 = vunpack.c.l.b16 %v207
    %v2179 = vunpack.c.h.b16 %v207
    %v2180 = vunpack.c.l.b16 %v208
    %v2181 = vunpack.c.h.b16 %v208
    %v2182 = vunpack.c.l.b16 %v209
    %v2183 = vunpack.c.h.b16 %v209
    %v2184 = vunpack.c.l.b16 %v210
    %v2185 = vunpack.c.h.b16 %v210
    %v2186 = vunpack.c.l.b16 %v211
    %v2187 = vunpack.c.h.b16 %v211
    %v2188 = vunpack.c.l.b16 %v212
    %v2189 = vunpack.c.h.b16 %v212
    %v2190 = vunpack.c.l.b16 %v213
    %v2191 = vunpack.c.h.b16 %v213
    %v2192 = vunpack.c.l.b16 %v214
    %v2193 = vunpack.c.h.b16 %v214
    %v2194 = vunpack.c.l.b16 %v215
    %v2195 = vunpack.c.h.b16 %v215
    %v2196 = vunpack.c.l.b16 %v216
    %v2197 = vunpack.c.h.b16 %v216
    %v2198 = vunpack.c.l.b16 %v217
    %v2199 = vunpack.c.h.b16 %v217
    %v2200 = vunpack.c.l.b16 %v218
    %v2201 = vunpack.c.h.b16 %v218
    %v2202 = vunpack.c.l.b16 %v219
    %v2203 = vunpack.c.h.b16 %v219
    %v2204 = vunpack.c.l.b16 %v220
    %v2205 = vunpack.c.h.b16 %v220
    %v2206 = vunpack.c.l.b16 %v221
    %v2207 = vunpack.c.h.b16 %v221
    %v2208 = vunpack.c.l.b16 %v222
    %v2209 = vunpack.c.h.b16 %v222
    %v2210 = vunpack.c.l.b16 %v223
    %v2211 = vunpack.c.h.b16 %v223
    %v2212 = vunpack.c.l.b16 %v224
    %v2213 = vunpack.c.h.b16 %v224
    %v2214 = vunpack.c.l.b16 %v225
    %v2215 = vunpack.c.h.b16 %v225
    %v2216 = vunpack.c.l.b16 %v226
    %v2217 = vunpack.c.h.b16 %v226
    %v2218 = vunpack.c.l.b16 %v227
    %v2219 = vunpack.c.h.b16 %v227
    %v2220 = vunpack.c.l.b16 %v228
    %v2221 = vunpack.c.h.b16 %v228
    %v2222 = vunpack.c.l.b16 %v229
    %v2223 = vunpack.c.h.b16 %v229
    %v2224 = vunpack.c.l.b16 %v230
    %v2225 = vunpack.c.h.b16 %v230
    %v2226 = vunpack.c.l.b16 %v231
    %v2227 = vunpack.c.h.b16 %v231
    %v2228 = vunpack.c.l.b16 %v232
    %v2229 = vunpack.c.h.b16 %v232
    %v2230 = vunpack.c.l.b16 %v233
    %v2231 = vunpack.c.h.b16 %v233
    %v2232 = vunpack.c.l.b16 %v234
    %v2233 = vunpack.c.h.b16 %v234
    %v2234 = vunpack.c.l.b16 %v235
    %v2235 = vunpack.c.h.b16 %v235
    %v2236 = vunpack.c.l.b16 %v236
    %v2237 = vunpack.c.h.b16 %v236
    %v2238 = vunpack.c.l.b16 %v237
    %v2239 = vunpack.c.h.b16 %v237
    %v2240 = vunpack.c.l.b16 %v238
    %v2241 = vunpack.c.h.b16 %v238
    %v2242 = vunpack.c.l.b16 %v239
    %v2243 = vunpack.c.h.b16 %v239
    %v2244 = vunpack.c.l.b16 %v240
    %v2245 = vunpack.c.h.b16 %v240
    %v2246 = vunpack.c.l.b16 %v241
    %v2247 = vunpack.c.h.b16 %v241
    %v2248 = vunpack.c.l.b16 %v242
    %v2249 = vunpack.c.h.b16 %v242
    %v2250 = vunpack.c.l.b16 %v243
    %v2251 = vunpack.c.h.b16 %v243
    %v2252 = vunpack.c.l.b16 %v244
    %v2253 = vunpack.c.h.b16 %v244
    %v2254 = vunpack.c.l.b16 %v245
    %v2255 = vunpack.c.h.b16 %v245
    %v2256 = vunpack.c.l.b16 %v246
    %v2257 = vunpack.c.h.b16 %v246
    %v2258 = vunpack.c.l.b16 %v247
    %v2259 = vunpack.c.h.b16 %v247
    %v2260 = vunpack.c.l.b16 %v248
    %v2261 = vunpack.c.h.b16 %v248
    %v2262 = vunpack.c.l.b16 %v249
    %v2263 = vunpack.c.h.b16 %v249
    %v2264 = vunpack.c.l.b16 %v250
    %v2265 = vunpack.c.h.b16 %v250
    %v2266 = vunpack.c.l.b16 %v251
    %v2267 = vunpack.c.h.b16 %v251
    %v2268 = vunpack.c.l.b16 %v252
    %v2269 = vunpack.c.h.b16 %v252
    %v2270 = vunpack.c.l.b16 %v253
    %v2271 = vunpack.c.h.b16 %v253
    %v2272 = vunpack.c.l.b16 %v254
    %v2273 = vunpack.c.h.b16 %v254
    %v2274 = vunpack.c.l.b16 %v255
    %v2275 = vunpack.c.h.b16 %v255
    %v2276 = vunpack.c.l.b16 %v256
    %v2277 = vunpack.c.h.b16 %v256
    %v2278 = vunpack.c.l.b16 %v257
    %v2279 = vunpack.c.h.b16 %v257
    %v2280 = vunpack.c.l.b16 %v258
    %v2281 = vunpack.c.h.b16 %v258
    %v2282 = vunpack.c.l.b16 %v259
    %v2283 = vunpack.c.h.b16 %v259
    %v2284 = vunpack.c.l.b16 %v260
    %v2285 = vunpack.c.h.b16 %v260
    %v2286 = vunpack.c.l.b16 %v261
    %v2287 = vunpack.c.h.b16 %v261
    %v2288 = vunpack.c.l.b16 %v262
    %v2289 = vunpack.c.h.b16 %v262
    %v2290 = vunpack.c.l.b16 %v263
    %v2291 = vunpack.c.h.b16 %v263
    %v2292 = vunpack.c.l.b16 %v264
    %v2293 = vunpack.c.h.b16 %v264
    %v2294 = vunpack.c.l.b16 %v265
    %v2295 = vunpack.c.h.b16 %v265
    %v2296 = vunpack.c.l.b16 %v266
    %v2297 = vunpack.c.h.b16 %v266
    %v2298 = vunpack.c.l.b16 %v267
    %v2299 = vunpack.c.h.b16 %v267
    %v2300 = vunpack.c.l.b16 %v268
    %v2301 = vunpack.c.h.b16 %v268
    %v2302 = vunpack.c.l.b16 %v269
    %v2303 = vunpack.c.h.b16 %v269
    %v2304 = vunpack.c.l.b16 %v270
    %v2305 = vunpack.c.h.b16 %v270
    %v2306 = vunpack.c.l.b16 %v271
    %v2307 = vunpack.c.h.b16 %v271
    %v2308 = vunpack.c.l.b16 %v272
    %v2309 = vunpack.c.h.b16 %v272
    %v2310 = vunpack.c.l.b16 %v273
    %v2311 = vunpack.c.h.b16 %v273
    %v2312 = vunpack.c.l.b16 %v274
    %v2313 = vunpack.c.h.b16 %v274
    %v2314 = vunpack.c.l.b16 %v275
    %v2315 = vunpack.c.h.b16 %v275
    %v2316 = vunpack.c.l.b16 %v276
    %v2317 = vunpack.c.h.b16 %v276
    %v2318 = vunpack.c.l.b16 %v277
    %v2319 = vunpack.c.h.b16 %v277
    %v2320 = vunpack.c.l.b16 %v278
    %v2321 = vunpack.c.h.b16 %v278
    %v2322 = vunpack.c.l.b16 %v279
    %v2323 = vunpack.c.h.b16 %v279
    %v2324 = vunpack.c.l.b16 %v280
    %v2325 = vunpack.c.h.b16 %v280
    %v2326 = vunpack.c.l.b16 %v281
    %v2327 = vunpack.c.h.b16 %v281
    %v2328 = vunpack.c.l.b16 %v282
    %v2329 = vunpack.c.h.b16 %v282
    %v2330 = vunpack.c.l.b16 %v283
    %v2331 = vunpack.c.h.b16 %v283
    %v2332 = vunpack.c.l.b16 %v284
    %v2333 = vunpack.c.h.b16 %v284
    %v2334 = vunpack.c.l.b16 %v285
    %v2335 = vunpack.c.h.b16 %v285
    %v2336 = vunpack.c.l.b16 %v286
    %v2337 = vunpack.c.h.b16 %v286
    %v2338 = vunpack.c.l.b16 %v287
    %v2339 = vunpack.c.h.b16 %v287
    %v2340 = vunpack.c.l.b16 %v288
    %v2341 = vunpack.c.h.b16 %v288
    %v2342 = vunpack.c.l.b16 %v289
    %v2343 = vunpack.c.h.b16 %v289
    %v2344 = vunpack.c.l.b16 %v290
    %v2345 = vunpack.c.h.b16 %v290
    %v2346 = vunpack.c.l.b16 %v291
    %v2347 = vunpack.c.h.b16 %v291
    %v2348 = vunpack.c.l.b16 %v292
    %v2349 = vunpack.c.h.b16 %v292
    %v2350 = vunpack.c.l.b16 %v293
    %v2351 = vunpack.c.h.b16 %v293
    %v2352 = vunpack.c.l.b16 %v294
    %v2353 = vunpack.c.h.b16 %v294
    %v2354 = vunpack.c.l.b16 %v295
    %v2355 = vunpack.c.h.b16 %v295
    %v2356 = vunpack.c.l.b16 %v296
    %v2357 = vunpack.c.h.b16 %v296
    %v2358 = vunpack.c.l.b16 %v297
    %v2359 = vunpack.c.h.b16 %v297
    %v2360 = vunpack.c.l.b16 %v298
    %v2361 = vunpack.c.h.b16 %v298
    %v2362 = vunpack.c.l.b16 %v299
    %v2363 = vunpack.c.h.b16 %v299
    %v2364 = vunpack.c.l.b16 %v300
    %v2365 = vunpack.c.h.b16 %v300
    %v2366 = vunpack.c.l.b16 %v301
    %v2367 = vunpack.c.h.b16 %v301
    %v2368 = vunpack.c.l.b16 %v302
    %v2369 = vunpack.c.h.b16 %v302
    %v2370 = vunpack.c.l.b16 %v303
    %v2371 = vunpack.c.h.b16 %v303
    %v2372 = vunpack.c.l.b16 %v304
    %v2373 = vunpack.c.h.b16 %v304
    %v2374 = vunpack.c.l.b16 %v305
    %v2375 = vunpack.c.h.b16 %v305
    %v2376 = vunpack.c.l.b16 %v306
    %v2377 = vunpack.c.h.b16 %v306
    %v2378 = vunpack.c.l.b16 %v307
    %v2379 = vunpack.c.h.b16 %v307
    %v2380 = vunpack.c.l.b16 %v308
    %v2381 = vunpack.c.h.b16 %v308
    %v2382 = vunpack.c.l.b16 %v309
    %v2383 = vunpack.c.h.b16 %v309
    %v2384 = vunpack.c.l.b16 %v310
    %v2385 = vunpack.c.h.b16 %v310
    %v2386 = vunpack.c.l.b16 %v311
    %v2387 = vunpack.c.h.b16 %v311
    %v2388 = vunpack.c.l.b16 %v312
    %v2389 = vunpack.c.h.b16 %v312
    %v2390 = vunpack.c.l.b16 %v313
    %v2391 = vunpack.c.h.b16 %v313
    %v2392 = vunpack.c.l.b16 %v314
    %v2393 = vunpack.c.h.b16 %v314
    %v2394 = vunpack.c.l.b16 %v315
    %v2395 = vunpack.c.h.b16 %v315
    %v2396 = vunpack.c.l.b16 %v316
    %v2397 = vunpack.c.h.b16 %v316
    %v2398 = vunpack.c.l.b16 %v317
    %v2399 = vunpack.c.h.b16 %v317
    %v2400 = vunpack.c.l.b16 %v318
    %v2401 = vunpack.c.h.b16 %v318
    %v2402 = vunpack.c.l.b16 %v319
    %v2403 = vunpack.c.h.b16 %v319
    %v2404 = vunpack.c.l.b16 %v320
    %v2405 = vunpack.c.h.b16 %v320
    %v2406 = vunpack.c.l.b16 %v321
    %v2407 = vunpack.c.h.b16 %v321
    %v2408 = vunpack.c.l.b16 %v322
    %v2409 = vunpack.c.h.b16 %v322
    %v2410 = vunpack.c.l.b16 %v323
    %v2411 = vunpack.c.h.b16 %v323
    %v2412 = vunpack.c.l.b16 %v324
    %v2413 = vunpack.c.h.b16 %v324
    %v2414 = vunpack.c.l.b16 %v325
    %v2415 = vunpack.c.h.b16 %v325
    %v2416 = vunpack.c.l.b16 %v326
    %v2417 = vunpack.c.h.b16 %v326
    %v2418 = vunpack.c.l.b16 %v327
    %v2419 = vunpack.c.h.b16 %v327
    %v2420 = vunpack.c.l.b16 %v328
    %v2421 = vunpack.c.h.b16 %v328
    %v2422 = vunpack.c.l.b16 %v329
    %v2423 = vunpack.c.h.b16 %v329
    %v2424 = vunpack.c.l.b16 %v330
    %v2425 = vunpack.c.h.b16 %v330
    %v2426 = vunpack.c.l.b16 %v331
    %v2427 = vunpack.c.h.b16 %v331
    %v2428 = vunpack.c.l.b16 %v332
    %v2429 = vunpack.c.h.b16 %v332
    %v2430 = vunpack.c.l.b16 %v333
    %v2431 = vunpack.c.h.b16 %v333
    %v2432 = vunpack.c.l.b16 %v334
    %v2433 = vunpack.c.h.b16 %v334
    %v2434 = vunpack.c.l.b16 %v335
    %v2435 = vunpack.c.h.b16 %v335
    %v2436 = vunpack.c.l.b16 %v336
    %v2437 = vunpack.c.h.b16 %v336
    %v2438 = vunpack.c.l.b16 %v337
    %v2439 = vunpack.c.h.b16 %v337
    %v2440 = vunpack.c.l.b16 %v338
    %v2441 = vunpack.c.h.b16 %v338
    %v2442 = vunpack.c.l.b16 %v339
    %v2443 = vunpack.c.h.b16 %v339
    %v2444 = vunpack.c.l.b16 %v340
    %v2445 = vunpack.c.h.b16 %v340
    %v2446 = vunpack.c.l.b16 %v341
    %v2447 = vunpack.c.h.b16 %v341
    %v2448 = vunpack.c.l.b16 %v342
    %v2449 = vunpack.c.h.b16 %v342
    %v2450 = vunpack.c.l.b16 %v343
    %v2451 = vunpack.c.h.b16 %v343
    %v2452 = vunpack.c.l.b16 %v344
    %v2453 = vunpack.c.h.b16 %v344
    %v2454 = vunpack.c.l.b16 %v345
    %v2455 = vunpack.c.h.b16 %v345
    %v2456 = vunpack.c.l.b16 %v346
    %v2457 = vunpack.c.h.b16 %v346
    %v2458 = vunpack.c.l.b16 %v347
    %v2459 = vunpack.c.h.b16 %v347
    %v2460 = vunpack.c.l.b16 %v348
    %v2461 = vunpack.c.h.b16 %v348
    %v2462 = vunpack.c.l.b16 %v349
    %v2463 = vunpack.c.h.b16 %v349
    %v2464 = vunpack.c.l.b16 %v350
    %v2465 = vunpack.c.h.b16 %v350
    %v2466 = vunpack.c.l.b16 %v351
    %v2467 = vunpack.c.h.b16 %v351
    %v2468 = vunpack.c.l.b16 %v352
    %v2469 = vunpack.c.h.b16 %v352
    %v2470 = vunpack.c.l.b16 %v353
    %v2471 = vunpack.c.h.b16 %v353
    %v2472 = vunpack.c.l.b16 %v354
    %v2473 = vunpack.c.h.b16 %v354
    %v2474 = vunpack.c.l.b16 %v355
    %v2475 = vunpack.c.h.b16 %v355
    %v2476 = vunpack.c.l.b16 %v356
    %v2477 = vunpack.c.h.b16 %v356
    %v2478 = vunpack.c.l.b16 %v357
    %v2479 = vunpack.c.h.b16 %v357
    %v2480 = vunpack.c.l.b16 %v358
    %v2481 = vunpack.c.h.b16 %v358
    %v2482 = vunpack.c.l.b16 %v359
    %v2483 = vunpack.c.h.b16 %v359
    %v2484 = vunpack.c.l.b16 %v360
    %v2485 = vunpack.c.h.b16 %v360
    %v2486 = vunpack.c.l.b16 %v361
    %v2487 = vunpack.c.h.b16 %v361
    %v2488 = vunpack.c.l.b16 %v362
    %v2489 = vunpack.c.h.b16 %v362
    %v2490 = vunpack.c.l.b16 %v363
    %v2491 = vunpack.c.h.b16 %v363
    %v2492 = vunpack.c.l.b16 %v364
    %v2493 = vunpack.c.h.b16 %v364
    %v2494 = vunpack.c.l.b16 %v365
    %v2495 = vunpack.c.h.b16 %v365
    %v2496 = vunpack.c.l.b16 %v366
    %v2497 = vunpack.c.h.b16 %v366
    %v2498 = vunpack.c.l.b16 %v367
    %v2499 = vunpack.c.h.b16 %v367
    %v2500 = vunpack.c.l.b16 %v368
    %v2501 = vunpack.c.h.b16 %v368
    %v2502 = vunpack.c.l.b16 %v369
    %v2503 = vunpack.c.h.b16 %v369
    %v2504 = vunpack.c.l.b16 %v370
    %v2505 = vunpack.c.h.b16 %v370
    %v2506 = vunpack.c.l.b16 %v371
    %v2507 = vunpack.c.h.b16 %v371
    %v2508 = vunpack.c.l.b16 %v372
    %v2509 = vunpack.c.h.b16 %v372
    %v2510 = vunpack.c.l.b16 %v373
    %v2511 = vunpack.c.h.b16 %v373
    %v2512 = vunpack.c.l.b16 %v374
    %v2513 = vunpack.c.h.b16 %v374
    %v2514 = vunpack.c.l.b16 %v375
    %v2515 = vunpack.c.h.b16 %v375
    %v2516 = vunpack.c.l.b16 %v376
    %v2517 = vunpack.c.h.b16 %v376
    %v2518 = vunpack.c.l.b16 %v377
    %v2519 = vunpack.c.h.b16 %v377
    %v2520 = vunpack.c.l.b16 %v378
    %v2521 = vunpack.c.h.b16 %v378
    %v2522 = vunpack.c.l.b16 %v379
    %v2523 = vunpack.c.h.b16 %v379
    %v2524 = vunpack.c.l.b16 %v380
    %v2525 = vunpack.c.h.b16 %v380
    %v2526 = vunpack.c.l.b16 %v381
    %v2527 = vunpack.c.h.b16 %v381
    %v2528 = vunpack.c.l.b16 %v382
    %v2529 = vunpack.c.h.b16 %v382
    %v2530 = vunpack.c.l.b16 %v383
    %v2531 = vunpack.c.h.b16 %v383
    %v2532 = vunpack.c.l.b16 %v384
    %v2533 = vunpack.c.h.b16 %v384
    %v2534 = vunpack.c.l.b16 %v385
    %v2535 = vunpack.c.h.b16 %v385
    %v2536 = vunpack.c.l.b16 %v386
    %v2537 = vunpack.c.h.b16 %v386
    %v2538 = vunpack.c.l.b16 %v387
    %v2539 = vunpack.c.h.b16 %v387
    %v2540 = vunpack.c.l.b16 %v388
    %v2541 = vunpack.c.h.b16 %v388
    %v2542 = vunpack.c.l.b16 %v389
    %v2543 = vunpack.c.h.b16 %v389
    %v2544 = vunpack.c.l.b16 %v390
    %v2545 = vunpack.c.h.b16 %v390
    %v2546 = vunpack.c.l.b16 %v391
    %v2547 = vunpack.c.h.b16 %v391
    %v2548 = vunpack.c.l.b16 %v392
    %v2549 = vunpack.c.h.b16 %v392
    %v2550 = vunpack.c.l.b16 %v393
    %v2551 = vunpack.c.h.b16 %v393
    %v2552 = vunpack.c.l.b16 %v394
    %v2553 = vunpack.c.h.b16 %v394
    %v2554 = vunpack.c.l.b16 %v395
    %v2555 = vunpack.c.h.b16 %v395
    %v2556 = vunpack.c.l.b16 %v396
    %v2557 = vunpack.c.h.b16 %v396
    %v2558 = vunpack.c.l.b16 %v397
    %v2559 = vunpack.c.h.b16 %v397
    %v2560 = vunpack.c.l.b16 %v398
    %v2561 = vunpack.c.h.b16 %v398
    %v2562 = vunpack.c.l.b16 %v399
    %v2563 = vunpack.c.h.b16 %v399
    %v2564 = vunpack.c.l.b16 %v400
    %v2565 = vunpack.c.h.b16 %v400
    %v2566 = vunpack.c.l.b16 %v401
    %v2567 = vunpack.c.h.b16 %v401
    %v2568 = vunpack.c.l.b16 %v402
    %v2569 = vunpack.c.h.b16 %v402
    %v2570 = vunpack.c.l.b16 %v403
    %v2571 = vunpack.c.h.b16 %v403
    %v2572 = vunpack.c.l.b16 %v404
    %v2573 = vunpack.c.h.b16 %v404
    %v2574 = vunpack.c.l.b16 %v405
    %v2575 = vunpack.c.h.b16 %v405
    %v2576 = vunpack.c.l.b16 %v406
    %v2577 = vunpack.c.h.b16 %v406
    %v2578 = vunpack.c.l.b16 %v407
    %v2579 = vunpack.c.h.b16 %v407
    %v2580 = vunpack.c.l.b16 %v408
    %v2581 = vunpack.c.h.b16 %v408
    %v2582 = vunpack.c.l.b16 %v409
    %v2583 = vunpack.c.h.b16 %v409
    %v2584 = vunpack.c.l.b16 %v410
    %v2585 = vunpack.c.h.b16 %v410
    %v2586 = vunpack.c.l.b16 %v411
    %v2587 = vunpack.c.h.b16 %v411
    %v2588 = vunpack.c.l.b16 %v412
    %v2589 = vunpack.c.h.b16 %v412
    %v2590 = vunpack.c.l.b16 %v413
    %v2591 = vunpack.c.h.b16 %v413
    %v2592 = vunpack.c.l.b16 %v414
    %v2593 = vunpack.c.h.b16 %v414
    %v2594 = vunpack.c.l.b16 %v415
    %v2595 = vunpack.c.h.b16 %v415
    %v2596 = vunpack.c.l.b16 %v416
    %v2597 = vunpack.c.h.b16 %v416
    %v2598 = vunpack.c.l.b16 %v417
    %v2599 = vunpack.c.h.b16 %v417
    %v2600 = vunpack.c.l.b16 %v418
    %v2601 = vunpack.c.h.b16 %v418
    %v2602 = vunpack.c.l.b16 %v419
    %v2603 = vunpack.c.h.b16 %v419
    %v2604 = vunpack.c.l.b16 %v420
    %v2605 = vunpack.c.h.b16 %v420
    %v2606 = vunpack.c.l.b16 %v421
    %v2607 = vunpack.c.h.b16 %v421
    %v2608 = vunpack.c.l.b16 %v422
    %v2609 = vunpack.c.h.b16 %v422
    %v2610 = vunpack.c.l.b16 %v423
    %v2611 = vunpack.c.h.b16 %v423
    %v2612 = vunpack.c.l.b16 %v424
    %v2613 = vunpack.c.h.b16 %v424
    %v2614 = vunpack.c.l.b16 %v425
    %v2615 = vunpack.c.h.b16 %v425
    %v2616 = vunpack.c.l.b16 %v426
    %v2617 = vunpack.c.h.b16 %v426
    %v2618 = vunpack.c.l.b16 %v427
    %v2619 = vunpack.c.h.b16 %v427
    %v2620 = vunpack.c.l.b16 %v428
    %v2621 = vunpack.c.h.b16 %v428
    %v2622 = vunpack.c.l.b16 %v429
    %v2623 = vunpack.c.h.b16 %v429
    %v2624 = vunpack.c.l.b16 %v430
    %v2625 = vunpack.c.h.b16 %v430
    %v2626 = vunpack.c.l.b16 %v431
    %v2627 = vunpack.c.h.b16 %v431
    %v2628 = vunpack.c.l.b16 %v432
    %v2629 = vunpack.c.h.b16 %v432
    %v2630 = vunpack.c.l.b16 %v433
    %v2631 = vunpack.c.h.b16 %v433
    %v2632 = vunpack.c.l.b16 %v434
    %v2633 = vunpack.c.h.b16 %v434
    %v2634 = vunpack.c.l.b16 %v435
    %v2635 = vunpack.c.h.b16 %v435
    %v2636 = vunpack.c.l.b16 %v436
    %v2637 = vunpack.c.h.b16 %v436
    %v2638 = vunpack.c.l.b16 %v437
    %v2639 = vunpack.c.h.b16 %v437
    %v2640 = vunpack.c.l.b16 %v438
    %v2641 = vunpack.c.h.b16 %v438
    %v2642 = vunpack.c.l.b16 %v439
    %v2643 = vunpack.c.h.b16 %v439
    %v2644 = vunpack.c.l.b16 %v440
    %v2645 = vunpack.c.h.b16 %v440
    %v2646 = vunpack.c.l.b16 %v441
    %v2647 = vunpack.c.h.b16 %v441
    %v2648 = vunpack.c.l.b16 %v442
    %v2649 = vunpack.c.h.b16 %v442
    %v2650 = vunpack.c.l.b16 %v443
    %v2651 = vunpack.c.h.b16 %v443
    %v2652 = vunpack.c.l.b16 %v444
    %v2653 = vunpack.c.h.b16 %v444
    %v2654 = vunpack.c.l.b16 %v445
    %v2655 = vunpack.c.h.b16 %v445
    %v2656 = vunpack.c.l.b16 %v446
    %v2657 = vunpack.c.h.b16 %v446
    %v2658 = vunpack.c.l.b16 %v447
    %v2659 = vunpack.c.h.b16 %v447
    %v2660 = vunpack.c.l.b16 %v448
    %v2661 = vunpack.c.h.b16 %v448
    %v2662 = vunpack.c.l.b16 %v449
    %v2663 = vunpack.c.h.b16 %v449
    %v2664 = vunpack.c.l.b16 %v450
    %v2665 = vunpack.c.h.b16 %v450
    %v2666 = vunpack.c.l.b16 %v451
    %v2667 = vunpack.c.h.b16 %v451
    %v2668 = vunpack.c.l.b16 %v452
    %v2669 = vunpack.c.h.b16 %v452
    %v2670 = vunpack.c.l.b16 %v453
    %v2671 = vunpack.c.h.b16 %v453
    %v2672 = vunpack.c.l.b16 %v454
    %v2673 = vunpack.c.h.b16 %v454
    %v2674 = vunpack.c.l.b16 %v455
    %v2675 = vunpack.c.h.b16 %v455
    %v2676 = vunpack.c.l.b16 %v456
    %v2677 = vunpack.c.h.b16 %v456
    %v2678 = vunpack.c.l.b16 %v457
    %v2679 = vunpack.c.h.b16 %v457
    %v2680 = vunpack.c.l.b16 %v458
    %v2681 = vunpack.c.h.b16 %v458
    %v2682 = vunpack.c.l.b16 %v459
    %v2683 = vunpack.c.h.b16 %v459
    %v2684 = vunpack.c.l.b16 %v460
    %v2685 = vunpack.c.h.b16 %v460
    %v2686 = vunpack.c.l.b16 %v461
    %v2687 = vunpack.c.h.b16 %v461
    %v2688 = vunpack.c.l.b16 %v462
    %v2689 = vunpack.c.h.b16 %v462
    %v2690 = vunpack.c.l.b16 %v463
    %v2691 = vunpack.c.h.b16 %v463
    %v2692 = vunpack.c.l.b16 %v464
    %v2693 = vunpack.c.h.b16 %v464
    %v2694 = vunpack.c.l.b16 %v465
    %v2695 = vunpack.c.h.b16 %v465
    %v2696 = vunpack.c.l.b16 %v466
    %v2697 = vunpack.c.h.b16 %v466
    %v2698 = vunpack.c.l.b16 %v467
    %v2699 = vunpack.c.h.b16 %v467
    %v2700 = vunpack.c.l.b16 %v468
    %v2701 = vunpack.c.h.b16 %v468
    %v2702 = vunpack.c.l.b16 %v469
    %v2703 = vunpack.c.h.b16 %v469
    %v2704 = vunpack.c.l.b16 %v470
    %v2705 = vunpack.c.h.b16 %v470
    %v2706 = vunpack.c.l.b16 %v471
    %v2707 = vunpack.c.h.b16 %v471
    %v2708 = vunpack.c.l.b16 %v472
    %v2709 = vunpack.c.h.b16 %v472
    %v2710 = vunpack.c.l.b16 %v473
    %v2711 = vunpack.c.h.b16 %v473
    %v2712 = vunpack.c.l.b16 %v474
    %v2713 = vunpack.c.h.b16 %v474
    %v2714 = vunpack.c.l.b16 %v475
    %v2715 = vunpack.c.h.b16 %v475
    %v2716 = vunpack.c.l.b16 %v476
    %v2717 = vunpack.c.h.b16 %v476
    %v2718 = vunpack.c.l.b16 %v477
    %v2719 = vunpack.c.h.b16 %v477
    %v2720 = vunpack.c.l.b16 %v478
    %v2721 = vunpack.c.h.b16 %v478
    %v2722 = vunpack.c.l.b16 %v479
    %v2723 = vunpack.c.h.b16 %v479
    %v2724 = vunpack.c.l.b16 %v480
    %v2725 = vunpack.c.h.b16 %v480
    %v2726 = vunpack.c.l.b16 %v481
    %v2727 = vunpack.c.h.b16 %v481
    %v2728 = vunpack.c.l.b16 %v482
    %v2729 = vunpack.c.h.b16 %v482
    %v2730 = vunpack.c.l.b16 %v483
    %v2731 = vunpack.c.h.b16 %v483
    %v2732 = vunpack.c.l.b16 %v484
    %v2733 = vunpack.c.h.b16 %v484
    %v2734 = vunpack.c.l.b16 %v485
    %v2735 = vunpack.c.h.b16 %v485
    %v2736 = vunpack.c.l.b16 %v486
    %v2737 = vunpack.c.h.b16 %v486
    %v2738 = vunpack.c.l.b16 %v487
    %v2739 = vunpack.c.h.b16 %v487
    %v2740 = vunpack.c.l.b16 %v488
    %v2741 = vunpack.c.h.b16 %v488
    %v2742 = vunpack.c.l.b16 %v489
    %v2743 = vunpack.c.h.b16 %v489
    %v2744 = vunpack.c.l.b16 %v490
    %v2745 = vunpack.c.h.b16 %v490
    %v2746 = vunpack.c.l.b16 %v491
    %v2747 = vunpack.c.h.b16 %v491
    %v2748 = vunpack.c.l.b16 %v492
    %v2749 = vunpack.c.h.b16 %v492
    %v2750 = vunpack.c.l.b16 %v493
    %v2751 = vunpack.c.h.b16 %v493
    %v2752 = vunpack.c.l.b16 %v494
    %v2753 = vunpack.c.h.b16 %v494
    %v2754 = vunpack.c.l.b16 %v495
    %v2755 = vunpack.c.h.b16 %v495
    %v2756 = vunpack.c.l.b16 %v496
    %v2757 = vunpack.c.h.b16 %v496
    %v2758 = vunpack.c.l.b16 %v497
    %v2759 = vunpack.c.h.b16 %v497
    %v2760 = vunpack.c.l.b16 %v498
    %v2761 = vunpack.c.h.b16 %v498
    %v2762 = vunpack.c.l.b16 %v499
    %v2763 = vunpack.c.h.b16 %v499
    %v2764 = vunpack.c.l.b16 %v500
    %v2765 = vunpack.c.h.b16 %v500
    %v2766 = vunpack.c.l.b16 %v501
    %v2767 = vunpack.c.h.b16 %v501
    %v2768 = vunpack.c.l.b16 %v502
    %v2769 = vunpack.c.h.b16 %v502
    %v2770 = vunpack.c.l.b16 %v503
    %v2771 = vunpack.c.h.b16 %v503
    %v2772 = vunpack.c.l.b16 %v504
    %v2773 = vunpack.c.h.b16 %v504
    %v2774 = vunpack.c.l.b16 %v505
    %v2775 = vunpack.c.h.b16 %v505
    %v2776 = vunpack.c.l.b16 %v506
    %v2777 = vunpack.c.h.b16 %v506
    %v2778 = vunpack.c.l.b16 %v507
    %v2779 = vunpack.c.h.b16 %v507
    %v2780 = vunpack.c.l.b16 %v508
    %v2781 = vunpack.c.h.b16 %v508
    %v2782 = vunpack.c.l.b16 %v509
    %v2783 = vunpack.c.h.b16 %v509
    %v2784 = vunpack.c.l.b16 %v510
    %v2785 = vunpack.c.h.b16 %v510
    %v2786 = vunpack.c.l.b16 %v511
    %v2787 = vunpack.c.h.b16 %v511
    %v2788 = vunpack.c.l.b16 %v512
    %v2789 = vunpack.c.h.b16 %v512
    %v2790 = vunpack.c.l.b16 %v513
    %v2791 = vunpack.c.h.b16 %v513
    %v2792 = vunpack.c.l.b16 %v514
    %v2793 = vunpack.c.h.b16 %v514
    %v2794 = vunpack.c.l.b16 %v515
    %v2795 = vunpack.c.h.b16 %v515
    %v2796 = vunpack.c.l.b16 %v516
    %v2797 = vunpack.c.h.b16 %v516
    %v2798 = vunpack.c.l.b16 %v517
    %v2799 = vunpack.c.h.b16 %v517
    %v2800 = vunpack.c.l.b16 %v518
    %v2801 = vunpack.c.h.b16 %v518
    %v2802 = vunpack.c.l.b16 %v519
    %v2803 = vunpack.c.h.b16 %v519
    %v2804 = vunpack.c.l.b16 %v520
    %v2805 = vunpack.c.h.b16 %v520
    %v2806 = vunpack.c.l.b16 %v521
    %v2807 = vunpack.c.h.b16 %v521
    %v2808 = vunpack.c.l.b16 %v522
    %v2809 = vunpack.c.h.b16 %v522
    %v2810 = vunpack.c.l.b16 %v523
    %v2811 = vunpack.c.h.b16 %v523
    %v2812 = vunpack.c.l.b16 %v524
    %v2813 = vunpack.c.h.b16 %v524
    %v2814 = vunpack.c.l.b16 %v525
    %v2815 = vunpack.c.h.b16 %v525
    %v2816 = vunpack.c.l.b16 %v526
    %v2817 = vunpack.c.h.b16 %v526
    %v2818 = vunpack.c.l.b16 %v527
    %v2819 = vunpack.c.h.b16 %v527
    %v2820 = vunpack.c.l.b16 %v528
    %v2821 = vunpack.c.h.b16 %v528
    %v2822 = vunpack.c.l.b16 %v529
    %v2823 = vunpack.c.h.b16 %v529
    %v2824 = vunpack.c.l.b16 %v530
    %v2825 = vunpack.c.h.b16 %v530
    %v2826 = vunpack.c.l.b16 %v531
    %v2827 = vunpack.c.h.b16 %v531
    %v2828 = vunpack.c.l.b16 %v532
    %v2829 = vunpack.c.h.b16 %v532
    %v2830 = vunpack.c.l.b16 %v533
    %v2831 = vunpack.c.h.b16 %v533
    %v2832 = vunpack.c.l.b16 %v534
    %v2833 = vunpack.c.h.b16 %v534
    %v2834 = vunpack.c.l.b16 %v535
    %v2835 = vunpack.c.h.b16 %v535
    %v2836 = vunpack.c.l.b16 %v536
    %v2837 = vunpack.c.h.b16 %v536
    %v2838 = vunpack.c.l.b16 %v537
    %v2839 = vunpack.c.h.b16 %v537
    %v2840 = vunpack.c.l.b16 %v538
    %v2841 = vunpack.c.h.b16 %v538
    %v2842 = vunpack.c.l.b16 %v539
    %v2843 = vunpack.c.h.b16 %v539
    %v2844 = vunpack.c.l.b16 %v540
    %v2845 = vunpack.c.h.b16 %v540
    %v2846 = vunpack.c.l.b16 %v541
    %v2847 = vunpack.c.h.b16 %v541
    %v2848 = vunpack.c.l.b16 %v542
    %v2849 = vunpack.c.h.b16 %v542
    %v2850 = vunpack.c.l.b16 %v543
    %v2851 = vunpack.c.h.b16 %v543
    %v2852 = vunpack.c.l.b16 %v544
    %v2853 = vunpack.c.h.b16 %v544
    %v2854 = vunpack.c.l.b16 %v545
    %v2855 = vunpack.c.h.b16 %v545
    %v2856 = vunpack.c.l.b16 %v546
    %v2857 = vunpack.c.h.b16 %v546
    %v2858 = vunpack.c.l.b16 %v547
    %v2859 = vunpack.c.h.b16 %v547
    %v2860 = vunpack.c.l.b16 %v548
    %v2861 = vunpack.c.h.b16 %v548
    %v2862 = vunpack.c.l.b16 %v549
    %v2863 = vunpack.c.h.b16 %v549
    %v2864 = vunpack.c.l.b16 %v550
    %v2865 = vunpack.c.h.b16 %v550
    %v2866 = vunpack.c.l.b16 %v551
    %v2867 = vunpack.c.h.b16 %v551
    %v2868 = vunpack.c.l.b16 %v552
    %v2869 = vunpack.c.h.b16 %v552
    %v2870 = vunpack.c.l.b16 %v553
    %v2871 = vunpack.c.h.b16 %v553
    %v2872 = vunpack.c.l.b16 %v554
    %v2873 = vunpack.c.h.b16 %v554
    %v2874 = vunpack.c.l.b16 %v555
    %v2875 = vunpack.c.h.b16 %v555
    %v2876 = vunpack.c.l.b16 %v556
    %v2877 = vunpack.c.h.b16 %v556
    %v2878 = vunpack.c.l.b16 %v557
    %v2879 = vunpack.c.h.b16 %v557
    %v2880 = vunpack.c.l.b16 %v558
    %v2881 = vunpack.c.h.b16 %v558
    %v2882 = vunpack.c.l.b16 %v559
    %v2883 = vunpack.c.h.b16 %v559
    %v2884 = vunpack.c.l.b16 %v560
    %v2885 = vunpack.c.h.b16 %v560
    %v2886 = vunpack.c.l.b16 %v561
    %v2887 = vunpack.c.h.b16 %v561
    %v2888 = vunpack.c.l.b16 %v562
    %v2889 = vunpack.c.h.b16 %v562
    %v2890 = vunpack.c.l.b16 %v563
    %v2891 = vunpack.c.h.b16 %v563
    %v2892 = vunpack.c.l.b16 %v564
    %v2893 = vunpack.c.h.b16 %v564
    %v2894 = vunpack.c.l.b16 %v565
    %v2895 = vunpack.c.h.b16 %v565
    %v2896 = vunpack.c.l.b16 %v566
    %v2897 = vunpack.c.h.b16 %v566
    %v2898 = vunpack.c.l.b16 %v567
    %v2899 = vunpack.c.h.b16 %v567
    %v2900 = vunpack.c.l.b16 %v568
    %v2901 = vunpack.c.h.b16 %v568
    %v2902 = vunpack.c.l.b16 %v569
    %v2903 = vunpack.c.h.b16 %v569
    %v2904 = vunpack.c.l.b16 %v570
    %v2905 = vunpack.c.h.b16 %v570
    %v2906 = vunpack.c.l.b16 %v571
    %v2907 = vunpack.c.h.b16 %v571
    %v2908 = vunpack.c.l.b16 %v572
    %v2909 = vunpack.c.h.b16 %v572
    %v2910 = vunpack.c.l.b16 %v573
    %v2911 = vunpack.c.h.b16 %v573
    %v2912 = vunpack.c.l.b16 %v574
    %v2913 = vunpack.c.h.b16 %v574
    %v2914 = vunpack.c.l.b16 %v575
    %v2915 = vunpack.c.h.b16 %v575
    %v2916 = vunpack.c.l.b16 %v576
    %v2917 = vunpack.c.h.b16 %v576
    %v2918 = vunpack.c.l.b16 %v577
    %v2919 = vunpack.c.h.b16 %v577
    %v2920 = vunpack.c.l.b16 %v578
    %v2921 = vunpack.c.h.b16 %v578
    %v2922 = vunpack.c.l.b16 %v579
    %v2923 = vunpack.c.h.b16 %v579
    %v2924 = vunpack.c.l.b16 %v580
    %v2925 = vunpack.c.h.b16 %v580
    %v2926 = vunpack.c.l.b16 %v581
    %v2927 = vunpack.c.h.b16 %v581
    %v2928 = vunpack.c.l.b16 %v582
    %v2929 = vunpack.c.h.b16 %v582
    %v2930 = vunpack.c.l.b16 %v583
    %v2931 = vunpack.c.h.b16 %v583
    %v2932 = vunpack.c.l.b16 %v584
    %v2933 = vunpack.c.h.b16 %v584
    %v2934 = vunpack.c.l.b16 %v585
    %v2935 = vunpack.c.h.b16 %v585
    %v2936 = vunpack.c.l.b16 %v586
    %v2937 = vunpack.c.h.b16 %v586
    %v2938 = vunpack.c.l.b16 %v587
    %v2939 = vunpack.c.h.b16 %v587
    %v2940 = vunpack.c.l.b16 %v588
    %v2941 = vunpack.c.h.b16 %v588
    %v2942 = vunpack.c.l.b16 %v589
    %v2943 = vunpack.c.h.b16 %v589
    %v2944 = vunpack.c.l.b16 %v590
    %v2945 = vunpack.c.h.b16 %v590
    %v2946 = vunpack.c.l.b16 %v591
    %v2947 = vunpack.c.h.b16 %v591
    %v2948 = vunpack.c.l.b16 %v592
    %v2949 = vunpack.c.h.b16 %v592
    %v2950 = vunpack.c.l.b16 %v593
    %v2951 = vunpack.c.h.b16 %v593
    %v2952 = vunpack.c.l.b16 %v594
    %v2953 = vunpack.c.h.b16 %v594
    %v2954 = vunpack.c.l.b16 %v595
    %v2955 = vunpack.c.h.b16 %v595
    %v2956 = vunpack.c.l.b16 %v596
    %v2957 = vunpack.c.h.b16 %v596
    %v2958 = vunpack.c.l.b16 %v597
    %v2959 = vunpack.c.h.b16 %v597
    %v2960 = vunpack.c.l.b16 %v598
    %v2961 = vunpack.c.h.b16 %v598
    %v2962 = vunpack.c.l.b16 %v599
    %v2963 = vunpack.c.h.b16 %v599
    %v2964 = vunpack.c.l.b16 %v600
    %v2965 = vunpack.c.h.b16 %v600
    %v2966 = vunpack.c.l.b16 %v601
    %v2967 = vunpack.c.h.b16 %v601
    %v2968 = vunpack.c.l.b16 %v602
    %v2969 = vunpack.c.h.b16 %v602
    %v2970 = vunpack.c.l.b16 %v603
    %v2971 = vunpack.c.h.b16 %v603
    %v2972 = vunpack.c.l.b16 %v604
    %v2973 = vunpack.c.h.b16 %v604
    %v2974 = vunpack.c.l.b16 %v605
    %v2975 = vunpack.c.h.b16 %v605
    %v2976 = vunpack.c.l.b16 %v606
    %v2977 = vunpack.c.h.b16 %v606
    %v2978 = vunpack.c.l.b16 %v607
    %v2979 = vunpack.c.h.b16 %v607
    %v2980 = vunpack.c.l.b16 %v608
    %v2981 = vunpack.c.h.b16 %v608
    %v2982 = vunpack.c.l.b16 %v609
    %v2983 = vunpack.c.h.b16 %v609
    %v2984 = vunpack.c.l.b16 %v610
    %v2985 = vunpack.c.h.b16 %v610
    %v2986 = vunpack.c.l.b16 %v611
    %v2987 = vunpack.c.h.b16 %v611
    %v2988 = vunpack.c.l.b16 %v612
    %v2989 = vunpack.c.h.b16 %v612
    %v2990 = vunpack.c.l.b16 %v613
    %v2991 = vunpack.c.h.b16 %v613
    %v2992 = vunpack.c.l.b16 %v614
    %v2993 = vunpack.c.h.b16 %v614
    %v2994 = vunpack.c.l.b16 %v615
    %v2995 = vunpack.c.h.b16 %v615
    %v2996 = vunpack.c.l.b16 %v616
    %v2997 = vunpack.c.h.b16 %v616
    %v2998 = vunpack.c.l.b16 %v617
    %v2999 = vunpack.c.h.b16 %v617
    %v3000 = vunpack.c.l.b16 %v618
    %v3001 = vunpack.c.h.b16 %v618
    %v3002 = vunpack.c.l.b16 %v619
    %v3003 = vunpack.c.h.b16 %v619
    %v3004 = vunpack.c.l.b16 %v620
    %v3005 = vunpack.c.h.b16 %v620
    %v3006 = vunpack.c.l.b16 %v621
    %v3007 = vunpack.c.h.b16 %v621
    %v3008 = vunpack.c.l.b16 %v622
    %v3009 = vunpack.c.h.b16 %v622
    %v3010 = vunpack.c.l.b16 %v623
    %v3011 = vunpack.c.h.b16 %v623
    %v3012 = vunpack.c.l.b16 %v624
    %v3013 = vunpack.c.h.b16 %v624
    %v3014 = vunpack.c.l.b16 %v625
    %v3015 = vunpack.c.h.b16 %v625
    %v3016 = vunpack.c.l.b16 %v626
    %v3017 = vunpack.c.h.b16 %v626
    %v3018 = vunpack.c.l.b16 %v627
    %v3019 = vunpack.c.h.b16 %v627
    %v3020 = vunpack.c.l.b16 %v628
    %v3021 = vunpack.c.h.b16 %v628
    %v3022 = vunpack.c.l.b16 %v629
    %v3023 = vunpack.c.h.b16 %v629
    %v3024 = vunpack.c.l.b16 %v630
    %v3025 = vunpack.c.h.b16 %v630
    %v3026 = vunpack.c.l.b16 %v631
    %v3027 = vunpack.c.h.b16 %v631
    %v3028 = vunpack.c.l.b16 %v632
    %v3029 = vunpack.c.h.b16 %v632
    %v3030 = vunpack.c.l.b16 %v633
    %v3031 = vunpack.c.h.b16 %v633
    %v3032 = vunpack.c.l.b16 %v634
    %v3033 = vunpack.c.h.b16 %v634
    %v3034 = vunpack.c.l.b16 %v635
    %v3035 = vunpack.c.h.b16 %v635
    %v3036 = vunpack.c.l.b16 %v636
    %v3037 = vunpack.c.h.b16 %v636
    %v3038 = vunpack.c.l.b16 %v637
    %v3039 = vunpack.c.h.b16 %v637
    %v3040 = vunpack.c.l.b16 %v638
    %v3041 = vunpack.c.h.b16 %v638
    %v3042 = vunpack.c.l.b16 %v639
    %v3043 = vunpack.c.h.b16 %v639
    %v3044 = vunpack.c.l.b16 %v640
    %v3045 = vunpack.c.h.b16 %v640
    %v3046 = vunpack.c.l.b16 %v641
    %v3047 = vunpack.c.h.b16 %v641
    %v3048 = vunpack.c.l.b16 %v642
    %v3049 = vunpack.c.h.b16 %v642
    %v3050 = vunpack.c.l.b16 %v643
    %v3051 = vunpack.c.h.b16 %v643
    %v3052 = vunpack.c.l.b16 %v644
    %v3053 = vunpack.c.h.b16 %v644
    %v3054 = vunpack.c.l.b16 %v645
    %v3055 = vunpack.c.h.b16 %v645
    %v3056 = vunpack.c.l.b16 %v646
    %v3057 = vunpack.c.h.b16 %v646
    %v3058 = vunpack.c.l.b16 %v647
    %v3059 = vunpack.c.h.b16 %v647
    %v3060 = vunpack.c.l.b16 %v648
    %v3061 = vunpack.c.h.b16 %v648
    %v3062 = vunpack.c.l.b16 %v649
    %v3063 = vunpack.c.h.b16 %v649
    %v3064 = vunpack.c.l.b16 %v650
    %v3065 = vunpack.c.h.b16 %v650
    %v3066 = vunpack.c.l.b16 %v651
    %v3067 = vunpack.c.h.b16 %v651
    %v3068 = vunpack.c.l.b16 %v652
    %v3069 = vunpack.c.h.b16 %v652
    %v3070 = vunpack.c.l.b16 %v653
    %v3071 = vunpack.c.h.b16 %v653
    %v3072 = vunpack.c.l.b16 %v654
    %v3073 = vunpack.c.h.b16 %v654
    %v3074 = vunpack.c.l.b16 %v655
    %v3075 = vunpack.c.h.b16 %v655
    %v3076 = vunpack.c.l.b16 %v656
    %v3077 = vunpack.c.h.b16 %v656
    %v3078 = vunpack.c.l.b16 %v657
    %v3079 = vunpack.c.h.b16 %v657
    %v3080 = vunpack.c.l.b16 %v658
    %v3081 = vunpack.c.h.b16 %v658
    %v3082 = vunpack.c.l.b16 %v659
    %v3083 = vunpack.c.h.b16 %v659
    %v3084 = vunpack.c.l.b16 %v660
    %v3085 = vunpack.c.h.b16 %v660
    %v3086 = vunpack.c.l.b16 %v661
    %v3087 = vunpack.c.h.b16 %v661
    %v3088 = vunpack.c.l.b16 %v662
    %v3089 = vunpack.c.h.b16 %v662
    %v3090 = vunpack.c.l.b16 %v663
    %v3091 = vunpack.c.h.b16 %v663
    %v3092 = vunpack.c.l.b16 %v664
    %v3093 = vunpack.c.h.b16 %v664
    %v3094 = vunpack.c.l.b16 %v665
    %v3095 = vunpack.c.h.b16 %v665
    %v3096 = vunpack.c.l.b16 %v666
    %v3097 = vunpack.c.h.b16 %v666
    %v3098 = vunpack.c.l.b16 %v667
    %v3099 = vunpack.c.h.b16 %v667
    %v3100 = vunpack.c.l.b16 %v668
    %v3101 = vunpack.c.h.b16 %v668
    %v3102 = vunpack.c.l.b16 %v669
    %v3103 = vunpack.c.h.b16 %v669
    %v3104 = vunpack.c.l.b16 %v670
    %v3105 = vunpack.c.h.b16 %v670
    %v3106 = vunpack.c.l.b16 %v671
    %v3107 = vunpack.c.h.b16 %v671
    %v3108 = vunpack.c.l.b16 %v672
    %v3109 = vunpack.c.h.b16 %v672
    %v3110 = vunpack.c.l.b16 %v673
    %v3111 = vunpack.c.h.b16 %v673
    %v3112 = vunpack.c.l.b16 %v674
    %v3113 = vunpack.c.h.b16 %v674
    %v3114 = vunpack.c.l.b16 %v675
    %v3115 = vunpack.c.h.b16 %v675
    %v3116 = vunpack.c.l.b16 %v676
    %v3117 = vunpack.c.h.b16 %v676
    %v3118 = vunpack.c.l.b16 %v677
    %v3119 = vunpack.c.h.b16 %v677
    %v3120 = vunpack.c.l.b16 %v678
    %v3121 = vunpack.c.h.b16 %v678
    %v3122 = vunpack.c.l.b16 %v679
    %v3123 = vunpack.c.h.b16 %v679
    %v3124 = vunpack.c.l.b16 %v680
    %v3125 = vunpack.c.h.b16 %v680
    %v3126 = vunpack.c.l.b16 %v681
    %v3127 = vunpack.c.h.b16 %v681
    %v3128 = vunpack.c.l.b16 %v682
    %v3129 = vunpack.c.h.b16 %v682
    %v3130 = vunpack.c.l.b16 %v683
    %v3131 = vunpack.c.h.b16 %v683
    %v3132 = vunpack.c.l.b16 %v684
    %v3133 = vunpack.c.h.b16 %v684
    %v3134 = vunpack.c.l.b16 %v685
    %v3135 = vunpack.c.h.b16 %v685
    %v3136 = vunpack.c.l.b16 %v686
    %v3137 = vunpack.c.h.b16 %v686
    %v3138 = vunpack.c.l.b16 %v687
    %v3139 = vunpack.c.h.b16 %v687
    %v3140 = vunpack.c.l.b16 %v688
    %v3141 = vunpack.c.h.b16 %v688
    %v3142 = vunpack.c.l.b16 %v689
    %v3143 = vunpack.c.h.b16 %v689
    %v3144 = vunpack.c.l.b16 %v690
    %v3145 = vunpack.c.h.b16 %v690
    %v3146 = vunpack.c.l.b16 %v691
    %v3147 = vunpack.c.h.b16 %v691
    %v3148 = vunpack.c.l.b16 %v692
    %v3149 = vunpack.c.h.b16 %v692
    %v3150 = vunpack.c.l.b16 %v693
    %v3151 = vunpack.c.h.b16 %v693
    %v3152 = vunpack.c.l.b16 %v694
    %v3153 = vunpack.c.h.b16 %v694
    %v3154 = vunpack.c.l.b16 %v695
    %v3155 = vunpack.c.h.b16 %v695
    %v3156 = vunpack.c.l.b16 %v696
    %v3157 = vunpack.c.h.b16 %v696
    %v3158 = vunpack.c.l.b16 %v697
    %v3159 = vunpack.c.h.b16 %v697
    %v3160 = vunpack.c.l.b16 %v698
    %v3161 = vunpack.c.h.b16 %v698
    %v3162 = vunpack.c.l.b16 %v699
    %v3163 = vunpack.c.h.b16 %v699
    %v3164 = vunpack.c.l.b16 %v700
    %v3165 = vunpack.c.h.b16 %v700
    %v3166 = vunpack.c.l.b16 %v701
    %v3167 = vunpack.c.h.b16 %v701
    %v3168 = vunpack.c.l.b16 %v702
    %v3169 = vunpack.c.h.b16 %v702
    %v3170 = vunpack.c.l.b16 %v703
    %v3171 = vunpack.c.h.b16 %v703
    %v3172 = vunpack.c.l.b16 %v704
    %v3173 = vunpack.c.h.b16 %v704
    %v3174 = vunpack.c.l.b16 %v705
    %v3175 = vunpack.c.h.b16 %v705
    %v3176 = vunpack.c.l.b16 %v706
    %v3177 = vunpack.c.h.b16 %v706
    %v3178 = vunpack.c.l.b16 %v707
    %v3179 = vunpack.c.h.b16 %v707
    %v3180 = vunpack.c.l.b16 %v708
    %v3181 = vunpack.c.h.b16 %v708
    %v3182 = vunpack.c.l.b16 %v709
    %v3183 = vunpack.c.h.b16 %v709
    %v3184 = vunpack.c.l.b16 %v710
    %v3185 = vunpack.c.h.b16 %v710
    %v3186 = vunpack.c.l.b16 %v711
    %v3187 = vunpack.c.h.b16 %v711
    %v3188 = vunpack.c.l.b16 %v712
    %v3189 = vunpack.c.h.b16 %v712
    %v3190 = vunpack.c.l.b16 %v713
    %v3191 = vunpack.c.h.b16 %v713
    %v3192 = vunpack.c.l.b16 %v714
    %v3193 = vunpack.c.h.b16 %v714
    %v3194 = vunpack.c.l.b16 %v715
    %v3195 = vunpack.c.h.b16 %v715
    %v3196 = vunpack.c.l.b16 %v716
    %v3197 = vunpack.c.h.b16 %v716
    %v3198 = vunpack.c.l.b16 %v717
    %v3199 = vunpack.c.h.b16 %v717
    %v3200 = vunpack.c.l.b16 %v718
    %v3201 = vunpack.c.h.b16 %v718
    %v3202 = vunpack.c.l.b16 %v719
    %v3203 = vunpack.c.h.b16 %v719
    %v3204 = vunpack.c.l.b16 %v720
    %v3205 = vunpack.c.h.b16 %v720
    %v3206 = vunpack.c.l.b16 %v721
    %v3207 = vunpack.c.h.b16 %v721
    %v3208 = vunpack.c.l.b16 %v722
    %v3209 = vunpack.c.h.b16 %v722
    %v3210 = vunpack.c.l.b16 %v723
    %v3211 = vunpack.c.h.b16 %v723
    %v3212 = vunpack.c.l.b16 %v724
    %v3213 = vunpack.c.h.b16 %v724
    %v3214 = vunpack.c.l.b16 %v725
    %v3215 = vunpack.c.h.b16 %v725
    %v3216 = vunpack.c.l.b16 %v726
    %v3217 = vunpack.c.h.b16 %v726
    %v3218 = vunpack.c.l.b16 %v727
    %v3219 = vunpack.c.h.b16 %v727
    %v3220 = vunpack.c.l.b16 %v728
    %v3221 = vunpack.c.h.b16 %v728
    %v3222 = vunpack.c.l.b16 %v729
    %v3223 = vunpack.c.h.b16 %v729
    %v3224 = vunpack.c.l.b16 %v730
    %v3225 = vunpack.c.h.b16 %v730
    %v3226 = vunpack.c.l.b16 %v731
    %v3227 = vunpack.c.h.b16 %v731
    %v3228 = vunpack.c.l.b16 %v732
    %v3229 = vunpack.c.h.b16 %v732
    %v3230 = vunpack.c.l.b16 %v733
    %v3231 = vunpack.c.h.b16 %v733
    %v3232 = vunpack.c.l.b16 %v734
    %v3233 = vunpack.c.h.b16 %v734
    %v3234 = vunpack.c.l.b16 %v735
    %v3235 = vunpack.c.h.b16 %v735
    %v3236 = vunpack.c.l.b16 %v736
    %v3237 = vunpack.c.h.b16 %v736
    %v3238 = vunpack.c.l.b16 %v737
    %v3239 = vunpack.c.h.b16 %v737
    %v3240 = vunpack.c.l.b16 %v738
    %v3241 = vunpack.c.h.b16 %v738
    %v3242 = vunpack.c.l.b16 %v739
    %v3243 = vunpack.c.h.b16 %v739
    %v3244 = vunpack.c.l.b16 %v740
    %v3245 = vunpack.c.h.b16 %v740
    %v3246 = vunpack.c.l.b16 %v741
    %v3247 = vunpack.c.h.b16 %v741
    %v3248 = vunpack.c.l.b16 %v742
    %v3249 = vunpack.c.h.b16 %v742
    %v3250 = vunpack.c.l.b16 %v743
    %v3251 = vunpack.c.h.b16 %v743
    %v3252 = vunpack.c.l.b16 %v744
    %v3253 = vunpack.c.h.b16 %v744
    %v3254 = vunpack.c.l.b16 %v745
    %v3255 = vunpack.c.h.b16 %v745
    %v3256 = vunpack.c.l.b16 %v746
    %v3257 = vunpack.c.h.b16 %v746
    %v3258 = vunpack.c.l.b16 %v747
    %v3259 = vunpack.c.h.b16 %v747
    %v3260 = vunpack.c.l.b16 %v748
    %v3261 = vunpack.c.h.b16 %v748
    %v3262 = vunpack.c.l.b16 %v749
    %v3263 = vunpack.c.h.b16 %v749
    %v3264 = vunpack.c.l.b16 %v750
    %v3265 = vunpack.c.h.b16 %v750
    %v3266 = vunpack.c.l.b16 %v751
    %v3267 = vunpack.c.h.b16 %v751
    %v3268 = vunpack.c.l.b16 %v752
    %v3269 = vunpack.c.h.b16 %v752
    %v3270 = vunpack.c.l.b16 %v753
    %v3271 = vunpack.c.h.b16 %v753
    %v3272 = vunpack.c.l.b16 %v754
    %v3273 = vunpack.c.h.b16 %v754
    %v3274 = vunpack.c.l.b16 %v755
    %v3275 = vunpack.c.h.b16 %v755
    %v3276 = vunpack.c.l.b16 %v756
    %v3277 = vunpack.c.h.b16 %v756
    %v3278 = vunpack.c.l.b16 %v757
    %v3279 = vunpack.c.h.b16 %v757
    %v3280 = vunpack.c.l.b16 %v758
    %v3281 = vunpack.c.h.b16 %v758
    %v3282 = vunpack.c.l.b16 %v759
    %v3283 = vunpack.c.h.b16 %v759
    %v3284 = vunpack.c.l.b16 %v760
    %v3285 = vunpack.c.h.b16 %v760
    %v3286 = vunpack.c.l.b16 %v761
    %v3287 = vunpack.c.h.b16 %v761
    %v3288 = vunpack.c.l.b16 %v762
    %v3289 = vunpack.c.h.b16 %v762
    %v3290 = vunpack.c.l.b16 %v763
    %v3291 = vunpack.c.h.b16 %v763
    %v3292 = vunpack.c.l.b16 %v764
    %v3293 = vunpack.c.h.b16 %v764
    %v3294 = vunpack.c.l.b16 %v765
    %v3295 = vunpack.c.h.b16 %v765
    %v3296 = vunpack.c.l.b16 %v766
    %v3297 = vunpack.c.h.b16 %v766
    %v3298 = vunpack.c.l.b16 %v767
    %v3299 = vunpack.c.h.b16 %v767
    %v3300 = vunpack.c.l.b16 %v768
    %v3301 = vunpack.c.h.b16 %v768
    %v3302 = vunpack.c.l.b16 %v769
    %v3303 = vunpack.c.h.b16 %v769
    %v3304 = vunpack.c.l.b16 %v770
    %v3305 = vunpack.c.h.b16 %v770
    %v3306 = vunpack.c.l.b16 %v771
    %v3307 = vunpack.c.h.b16 %v771
    %v3308 = vunpack.c.l.b16 %v772
    %v3309 = vunpack.c.h.b16 %v772
    %v3310 = vunpack.c.l.b16 %v773
    %v3311 = vunpack.c.h.b16 %v773
    %v3312 = vunpack.c.l.b16 %v774
    %v3313 = vunpack.c.h.b16 %v774
    %v3314 = vunpack.c.l.b16 %v775
    %v3315 = vunpack.c.h.b16 %v775
    %v3316 = vunpack.c.l.b16 %v776
    %v3317 = vunpack.c.h.b16 %v776
    %v3318 = vunpack.c.l.b16 %v777
    %v3319 = vunpack.c.h.b16 %v777
    %v3320 = vunpack.c.l.b16 %v778
    %v3321 = vunpack.c.h.b16 %v778
    %v3322 = vunpack.c.l.b16 %v779
    %v3323 = vunpack.c.h.b16 %v779
    %v3324 = vunpack.c.l.b16 %v780
    %v3325 = vunpack.c.h.b16 %v780
    %v3326 = vunpack.c.l.b16 %v781
    %v3327 = vunpack.c.h.b16 %v781
    %v3328 = vunpack.c.l.b16 %v782
    %v3329 = vunpack.c.h.b16 %v782
    %v3330 = vunpack.c.l.b16 %v783
    %v3331 = vunpack.c.h.b16 %v783
    %v3332 = vunpack.c.l.b16 %v784
    %v3333 = vunpack.c.h.b16 %v784
    %v3334 = vunpack.c.l.b16 %v785
    %v3335 = vunpack.c.h.b16 %v785
    %v3336 = vunpack.c.l.b16 %v786
    %v3337 = vunpack.c.h.b16 %v786
    %v3338 = vunpack.c.l.b16 %v787
    %v3339 = vunpack.c.h.b16 %v787
    %v3340 = vunpack.c.l.b16 %v788
    %v3341 = vunpack.c.h.b16 %v788
    %v3342 = vunpack.c.l.b16 %v789
    %v3343 = vunpack.c.h.b16 %v789
    %v3344 = vunpack.c.l.b16 %v790
    %v3345 = vunpack.c.h.b16 %v790
    %v3346 = vunpack.c.l.b16 %v791
    %v3347 = vunpack.c.h.b16 %v791
    %v3348 = vunpack.c.l.b16 %v792
    %v3349 = vunpack.c.h.b16 %v792
    %v3350 = vunpack.c.l.b16 %v793
    %v3351 = vunpack.c.h.b16 %v793
    %v3352 = vunpack.c.l.b16 %v794
    %v3353 = vunpack.c.h.b16 %v794
    %v3354 = vunpack.c.l.b16 %v795
    %v3355 = vunpack.c.h.b16 %v795
    %v3356 = vunpack.c.l.b16 %v796
    %v3357 = vunpack.c.h.b16 %v796
    %v3358 = vunpack.c.l.b16 %v797
    %v3359 = vunpack.c.h.b16 %v797
    %v3360 = vunpack.c.l.b16 %v798
    %v3361 = vunpack.c.h.b16 %v798
    %v3362 = vunpack.c.l.b16 %v799
    %v3363 = vunpack.c.h.b16 %v799
    %v3364 = vunpack.c.l.b16 %v800
    %v3365 = vunpack.c.h.b16 %v800
    %v3366 = vunpack.c.l.b16 %v801
    %v3367 = vunpack.c.h.b16 %v801
    %v3368 = vunpack.c.l.b16 %v802
    %v3369 = vunpack.c.h.b16 %v802
    %v3370 = vunpack.c.l.b16 %v803
    %v3371 = vunpack.c.h.b16 %v803
    %v3372 = vunpack.c.l.b16 %v804
    %v3373 = vunpack.c.h.b16 %v804
    %v3374 = vunpack.c.l.b16 %v805
    %v3375 = vunpack.c.h.b16 %v805
    %v3376 = vunpack.c.l.b16 %v806
    %v3377 = vunpack.c.h.b16 %v806
    %v3378 = vunpack.c.l.b16 %v807
    %v3379 = vunpack.c.h.b16 %v807
    %v3380 = vunpack.c.l.b16 %v808
    %v3381 = vunpack.c.h.b16 %v808
    %v3382 = vunpack.c.l.b16 %v809
    %v3383 = vunpack.c.h.b16 %v809
    %v3384 = vunpack.c.l.b16 %v810
    %v3385 = vunpack.c.h.b16 %v810
    %v3386 = vunpack.c.l.b16 %v811
    %v3387 = vunpack.c.h.b16 %v811
    %v3388 = vunpack.c.l.b16 %v812
    %v3389 = vunpack.c.h.b16 %v812
    %v3390 = vunpack.c.l.b16 %v813
    %v3391 = vunpack.c.h.b16 %v813
    %v3392 = vunpack.c.l.b16 %v814
    %v3393 = vunpack.c.h.b16 %v814
    %v3394 = vunpack.c.l.b16 %v815
    %v3395 = vunpack.c.h.b16 %v815
    %v3396 = vunpack.c.l.b16 %v816
    %v3397 = vunpack.c.h.b16 %v816
    %v3398 = vunpack.c.l.b16 %v817
    %v3399 = vunpack.c.h.b16 %v817
    %v3400 = vunpack.c.l.b16 %v818
    %v3401 = vunpack.c.h.b16 %v818
    %v3402 = vunpack.c.l.b16 %v819
    %v3403 = vunpack.c.h.b16 %v819
    %v3404 = vunpack.c.l.b16 %v820
    %v3405 = vunpack.c.h.b16 %v820
    %v3406 = vunpack.c.l.b16 %v821
    %v3407 = vunpack.c.h.b16 %v821
    %v3408 = vunpack.c.l.b16 %v822
    %v3409 = vunpack.c.h.b16 %v822
    %v3410 = vunpack.c.l.b16 %v823
    %v3411 = vunpack.c.h.b16 %v823
    %v3412 = vunpack.c.l.b16 %v824
    %v3413 = vunpack.c.h.b16 %v824
    %v3414 = vunpack.c.l.b16 %v825
    %v3415 = vunpack.c.h.b16 %v825
    %v3416 = vunpack.c.l.b16 %v826
    %v3417 = vunpack.c.h.b16 %v826
    %v3418 = vunpack.c.l.b16 %v827
    %v3419 = vunpack.c.h.b16 %v827
    %v3420 = vunpack.c.l.b16 %v828
    %v3421 = vunpack.c.h.b16 %v828
    %v3422 = vunpack.c.l.b16 %v829
    %v3423 = vunpack.c.h.b16 %v829
    %v3424 = vunpack.c.l.b16 %v830
    %v3425 = vunpack.c.h.b16 %v830
    %v3426 = vunpack.c.l.b16 %v831
    %v3427 = vunpack.c.h.b16 %v831
    %v3428 = vunpack.c.l.b16 %v832
    %v3429 = vunpack.c.h.b16 %v832
    %v3430 = vunpack.c.l.b16 %v833
    %v3431 = vunpack.c.h.b16 %v833
    %v3432 = vunpack.c.l.b16 %v834
    %v3433 = vunpack.c.h.b16 %v834
    %v3434 = vunpack.c.l.b16 %v835
    %v3435 = vunpack.c.h.b16 %v835
    %v3436 = vunpack.c.l.b16 %v836
    %v3437 = vunpack.c.h.b16 %v836
    %v3438 = vunpack.c.l.b16 %v837
    %v3439 = vunpack.c.h.b16 %v837
    %v3440 = vunpack.c.l.b16 %v838
    %v3441 = vunpack.c.h.b16 %v838
    %v3442 = vunpack.c.l.b16 %v839
    %v3443 = vunpack.c.h.b16 %v839
    %v3444 = vunpack.c.l.b16 %v840
    %v3445 = vunpack.c.h.b16 %v840
    %v3446 = vunpack.c.l.b16 %v841
    %v3447 = vunpack.c.h.b16 %v841
    %v3448 = vunpack.c.l.b16 %v842
    %v3449 = vunpack.c.h.b16 %v842
    %v3450 = vunpack.c.l.b16 %v843
    %v3451 = vunpack.c.h.b16 %v843
    %v3452 = vunpack.c.l.b16 %v844
    %v3453 = vunpack.c.h.b16 %v844
    %v3454 = vunpack.c.l.b16 %v845
    %v3455 = vunpack.c.h.b16 %v845
    %v3456 = vunpack.c.l.b16 %v846
    %v3457 = vunpack.c.h.b16 %v846
    %v3458 = vunpack.c.l.b16 %v847
    %v3459 = vunpack.c.h.b16 %v847
    %v3460 = vunpack.c.l.b16 %v848
    %v3461 = vunpack.c.h.b16 %v848
    %v3462 = vunpack.c.l.b16 %v849
    %v3463 = vunpack.c.h.b16 %v849
    %v3464 = vunpack.c.l.b16 %v850
    %v3465 = vunpack.c.h.b16 %v850
    %v3466 = vunpack.c.l.b16 %v851
    %v3467 = vunpack.c.h.b16 %v851
    %v3468 = vunpack.c.l.b16 %v852
    %v3469 = vunpack.c.h.b16 %v852
    %v3470 = vunpack.c.l.b16 %v853
    %v3471 = vunpack.c.h.b16 %v853
    %v3472 = vunpack.c.l.b16 %v854
    %v3473 = vunpack.c.h.b16 %v854
    %v3474 = vunpack.c.l.b16 %v855
    %v3475 = vunpack.c.h.b16 %v855
    %v3476 = vunpack.c.l.b16 %v856
    %v3477 = vunpack.c.h.b16 %v856
    %v3478 = vunpack.c.l.b16 %v857
    %v3479 = vunpack.c.h.b16 %v857
    %v3480 = vunpack.c.l.b16 %v858
    %v3481 = vunpack.c.h.b16 %v858
    %v3482 = vunpack.c.l.b16 %v859
    %v3483 = vunpack.c.h.b16 %v859
    %v3484 = vunpack.c.l.b16 %v860
    %v3485 = vunpack.c.h.b16 %v860
    %v3486 = vunpack.c.l.b16 %v861
    %v3487 = vunpack.c.h.b16 %v861
    %v3488 = vunpack.c.l.b16 %v862
    %v3489 = vunpack.c.h.b16 %v862
    %v3490 = vunpack.c.l.b16 %v863
    %v3491 = vunpack.c.h.b16 %v863
    %v3492 = vunpack.c.l.b16 %v864
    %v3493 = vunpack.c.h.b16 %v864
    %v3494 = vunpack.c.l.b16 %v865
    %v3495 = vunpack.c.h.b16 %v865
    %v3496 = vunpack.c.l.b16 %v866
    %v3497 = vunpack.c.h.b16 %v866
    %v3498 = vunpack.c.l.b16 %v867
    %v3499 = vunpack.c.h.b16 %v867
    %v3500 = vunpack.c.l.b16 %v868
    %v3501 = vunpack.c.h.b16 %v868
    %v3502 = vunpack.c.l.b16 %v869
    %v3503 = vunpack.c.h.b16 %v869
    %v3504 = vunpack.c.l.b16 %v870
    %v3505 = vunpack.c.h.b16 %v870
    %v3506 = vunpack.c.l.b16 %v871
    %v3507 = vunpack.c.h.b16 %v871
    %v3508 = vunpack.c.l.b16 %v872
    %v3509 = vunpack.c.h.b16 %v872
    %v3510 = vunpack.c.l.b16 %v873
    %v3511 = vunpack.c.h.b16 %v873
    %v3512 = vunpack.c.l.b16 %v874
    %v3513 = vunpack.c.h.b16 %v874
    %v3514 = vunpack.c.l.b16 %v875
    %v3515 = vunpack.c.h.b16 %v875
    %v3516 = vunpack.c.l.b16 %v876
    %v3517 = vunpack.c.h.b16 %v876
    %v3518 = vunpack.c.l.b16 %v877
    %v3519 = vunpack.c.h.b16 %v877
    %v3520 = vunpack.c.l.b16 %v878
    %v3521 = vunpack.c.h.b16 %v878
    %v3522 = vunpack.c.l.b16 %v879
    %v3523 = vunpack.c.h.b16 %v879
    %v3524 = vunpack.c.l.b16 %v880
    %v3525 = vunpack.c.h.b16 %v880
    %v3526 = vunpack.c.l.b16 %v881
    %v3527 = vunpack.c.h.b16 %v881
    %v3528 = vunpack.c.l.b16 %v882
    %v3529 = vunpack.c.h.b16 %v882
    %v3530 = vunpack.c.l.b16 %v883
    %v3531 = vunpack.c.h.b16 %v883
    %v3532 = vunpack.c.l.b16 %v884
    %v3533 = vunpack.c.h.b16 %v884
    %v3534 = vunpack.c.l.b16 %v885
    %v3535 = vunpack.c.h.b16 %v885
    %v3536 = vunpack.c.l.b16 %v886
    %v3537 = vunpack.c.h.b16 %v886
    %v3538 = vunpack.c.l.b16 %v887
    %v3539 = vunpack.c.h.b16 %v887
    %v3540 = vunpack.c.l.b16 %v888
    %v3541 = vunpack.c.h.b16 %v888
    %v3542 = vunpack.c.l.b16 %v889
    %v3543 = vunpack.c.h.b16 %v889
    %v3544 = vunpack.c.l.b16 %v890
    %v3545 = vunpack.c.h.b16 %v890
    %v3546 = vunpack.c.l.b16 %v891
    %v3547 = vunpack.c.h.b16 %v891
    %v3548 = vunpack.c.l.b16 %v892
    %v3549 = vunpack.c.h.b16 %v892
    %v3550 = vunpack.c.l.b16 %v893
    %v3551 = vunpack.c.h.b16 %v893
    %v3552 = vunpack.c.l.b16 %v894
    %v3553 = vunpack.c.h.b16 %v894
    %v3554 = vunpack.c.l.b16 %v895
    %v3555 = vunpack.c.h.b16 %v895
    %v3556 = vunpack.c.l.b16 %v896
    %v3557 = vunpack.c.h.b16 %v896
    %v3558 = vunpack.c.l.b16 %v897
    %v3559 = vunpack.c.h.b16 %v897
    %v3560 = vunpack.c.l.b16 %v898
    %v3561 = vunpack.c.h.b16 %v898
    %v3562 = vunpack.c.l.b16 %v899
    %v3563 = vunpack.c.h.b16 %v899
    %v3564 = vunpack.c.l.b16 %v900
    %v3565 = vunpack.c.h.b16 %v900
    %v3566 = vunpack.c.l.b16 %v901
    %v3567 = vunpack.c.h.b16 %v901
    %v3568 = vunpack.c.l.b16 %v902
    %v3569 = vunpack.c.h.b16 %v902
    %v3570 = vunpack.c.l.b16 %v903
    %v3571 = vunpack.c.h.b16 %v903
    %v3572 = vunpack.c.l.b16 %v904
    %v3573 = vunpack.c.h.b16 %v904
    %v3574 = vunpack.c.l.b16 %v905
    %v3575 = vunpack.c.h.b16 %v905
    %v3576 = vunpack.c.l.b16 %v906
    %v3577 = vunpack.c.h.b16 %v906
    %v3578 = vunpack.c.l.b16 %v907
    %v3579 = vunpack.c.h.b16 %v907
    %v3580 = vunpack.c.l.b16 %v908
    %v3581 = vunpack.c.h.b16 %v908
    %v3582 = vunpack.c.l.b16 %v909
    %v3583 = vunpack.c.h.b16 %v909
    %v3584 = vunpack.c.l.b16 %v910
    %v3585 = vunpack.c.h.b16 %v910
    %v3586 = vunpack.c.l.b16 %v911
    %v3587 = vunpack.c.h.b16 %v911
    %v3588 = vunpack.c.l.b16 %v912
    %v3589 = vunpack.c.h.b16 %v912
    %v3590 = vunpack.c.l.b16 %v913
    %v3591 = vunpack.c.h.b16 %v913
    %v3592 = vunpack.c.l.b16 %v914
    %v3593 = vunpack.c.h.b16 %v914
    %v3594 = vunpack.c.l.b16 %v915
    %v3595 = vunpack.c.h.b16 %v915
    %v3596 = vunpack.c.l.b16 %v916
    %v3597 = vunpack.c.h.b16 %v916
    %v3598 = vunpack.c.l.b16 %v917
    %v3599 = vunpack.c.h.b16 %v917
    %v3600 = vunpack.c.l.b16 %v918
    %v3601 = vunpack.c.h.b16 %v918
    %v3602 = vunpack.c.l.b16 %v919
    %v3603 = vunpack.c.h.b16 %v919
    %v3604 = vunpack.c.l.b16 %v920
    %v3605 = vunpack.c.h.b16 %v920
    %v3606 = vunpack.c.l.b16 %v921
    %v3607 = vunpack.c.h.b16 %v921
    %v3608 = vunpack.c.l.b16 %v922
    %v3609 = vunpack.c.h.b16 %v922
    %v3610 = vunpack.c.l.b16 %v923
    %v3611 = vunpack.c.h.b16 %v923
    %v3612 = vpack.c.b16 %v1902, %v1884
    %v3613 = vpack.c.b16 %v1903, %v1885
    %v3614 = vpack.c.b16 %v1904, %v1886
    %v3615 = vpack.c.b16 %v1905, %v1887
    %v3616 = vpack.c.b16 %v1906, %v1888
    %v3617 = vpack.c.b16 %v1907, %v1889
    %v3618 = vpack.c.b16 %v1908, %v1890
    %v3619 = vpack.c.b16 %v1909, %v1891
    %v3620 = vpack.c.b16 %v1910, %v1892
    %v3621 = vpack.c.b16 %v1911, %v1893
    %v3622 = vpack.c.b16 %v1912, %v1894
    %v3623 = vpack.c.b16 %v1913, %v1895
    %v3624 = vpack.c.b16 %v1914, %v1896
    %v3625 = vpack.c.b16 %v1915, %v1897
    %v3626 = vpack.c.b16 %v1916, %v1898
    %v3627 = vpack.c.b16 %v1917, %v1899
    %v3628 = vpack.c.b16 %v1918, %v1900
    %v3629 = vpack.c.b16 %v1919, %v1901
    %v3630 = vpack.c.b16 %v1938, %v1920
    %v3631 = vpack.c.b16 %v1939, %v1921
    %v3632 = vpack.c.b16 %v1940, %v1922
    %v3633 = vpack.c.b16 %v1941, %v1923
    %v3634 = vpack.c.b16 %v1942, %v1924
    %v3635 = vpack.c.b16 %v1943, %v1925
    %v3636 = vpack.c.b16 %v1944, %v1926
    %v3637 = vpack.c.b16 %v1945, %v1927
    %v3638 = vpack.c.b16 %v1946, %v1928
    %v3639 = vpack.c.b16 %v1947, %v1929
    %v3640 = vpack.c.b16 %v1948, %v1930
    %v3641 = vpack.c.b16 %v1949, %v1931
    %v3642 = vpack.c.b16 %v1950, %v1932
    %v3643 = vpack.c.b16 %v1951, %v1933
    %v3644 = vpack.c.b16 %v1952, %v1934
    %v3645 = vpack.c.b16 %v1953, %v1935
    %v3646 = vpack.c.b16 %v1954, %v1936
    %v3647 = vpack.c.b16 %v1955, %v1937
    %v3648 = vpack.c.b16 %v1974, %v1956
    %v3649 = vpack.c.b16 %v1975, %v1957
    %v3650 = vpack.c.b16 %v1976, %v1958
    %v3651 = vpack.c.b16 %v1977, %v1959
    %v3652 = vpack.c.b16 %v1978, %v1960
    %v3653 = vpack.c.b16 %v1979, %v1961
    %v3654 = vpack.c.b16 %v1980, %v1962
    %v3655 = vpack.c.b16 %v1981, %v1963
    %v3656 = vpack.c.b16 %v1982, %v1964
    %v3657 = vpack.c.b16 %v1983, %v1965
    %v3658 = vpack.c.b16 %v1984, %v1966
    %v3659 = vpack.c.b16 %v1985, %v1967
    %v3660 = vpack.c.b16 %v1986, %v1968
    %v3661 = vpack.c.b16 %v1987, %v1969
    %v3662 = vpack.c.b16 %v1988, %v1970
    %v3663 = vpack.c.b16 %v1989, %v1971
    %v3664 = vpack.c.b16 %v1990, %v1972
    %v3665 = vpack.c.b16 %v1991, %v1973
    %v3666 = vpack.c.b16 %v2010, %v1992
    %v3667 = vpack.c.b16 %v2011, %v1993
    %v3668 = vpack.c.b16 %v2012, %v1994
    %v3669 = vpack.c.b16 %v2013, %v1995
    %v3670 = vpack.c.b16 %v2014, %v1996
    %v3671 = vpack.c.b16 %v2015, %v1997
    %v3672 = vpack.c.b16 %v2016, %v1998
    %v3673 = vpack.c.b16 %v2017, %v1999
    %v3674 = vpack.c.b16 %v2018, %v2000
    %v3675 = vpack.c.b16 %v2019, %v2001
    %v3676 = vpack.c.b16 %v2020, %v2002
    %v3677 = vpack.c.b16 %v2021, %v2003
    %v3678 = vpack.c.b16 %v2022, %v2004
    %v3679 = vpack.c.b16 %v2023, %v2005
    %v3680 = vpack.c.b16 %v2024, %v2006
    %v3681 = vpack.c.b16 %v2025, %v2007
    %v3682 = vpack.c.b16 %v2026, %v2008
    %v3683 = vpack.c.b16 %v2027, %v2009
    %v3684 = vpack.c.b16 %v2046, %v2028
    %v3685 = vpack.c.b16 %v2047, %v2029
    %v3686 = vpack.c.b16 %v2048, %v2030
    %v3687 = vpack.c.b16 %v2049, %v2031
    %v3688 = vpack.c.b16 %v2050, %v2032
    %v3689 = vpack.c.b16 %v2051, %v2033
    %v3690 = vpack.c.b16 %v2052, %v2034
    %v3691 = vpack.c.b16 %v2053, %v2035
    %v3692 = vpack.c.b16 %v2054, %v2036
    %v3693 = vpack.c.b16 %v2055, %v2037
    %v3694 = vpack.c.b16 %v2056, %v2038
    %v3695 = vpack.c.b16 %v2057, %v2039
    %v3696 = vpack.c.b16 %v2058, %v2040
    %v3697 = vpack.c.b16 %v2059, %v2041
    %v3698 = vpack.c.b16 %v2060, %v2042
    %v3699 = vpack.c.b16 %v2061, %v2043
    %v3700 = vpack.c.b16 %v2062, %v2044
    %v3701 = vpack.c.b16 %v2063, %v2045
    %v3702 = vpack.c.b16 %v2082, %v2064
    %v3703 = vpack.c.b16 %v2083, %v2065
    %v3704 = vpack.c.b16 %v2084, %v2066
    %v3705 = vpack.c.b16 %v2085, %v2067
    %v3706 = vpack.c.b16 %v2086, %v2068
    %v3707 = vpack.c.b16 %v2087, %v2069
    %v3708 = vpack.c.b16 %v2088, %v2070
    %v3709 = vpack.c.b16 %v2089, %v2071
    %v3710 = vpack.c.b16 %v2090, %v2072
    %v3711 = vpack.c.b16 %v2091, %v2073
    %v3712 = vpack.c.b16 %v2092, %v2074
    %v3713 = vpack.c.b16 %v2093, %v2075
    %v3714 = vpack.c.b16 %v2094, %v2076
    %v3715 = vpack.c.b16 %v2095, %v2077
    %v3716 = vpack.c.b16 %v2096, %v2078
    %v3717 = vpack.c.b16 %v2097, %v2079
    %v3718 = vpack.c.b16 %v2098, %v2080
    %v3719 = vpack.c.b16 %v2099, %v2081
    %v3720 = vpack.c.b16 %v2118, %v2100
    %v3721 = vpack.c.b16 %v2119, %v2101
    %v3722 = vpack.c.b16 %v2120, %v2102
    %v3723 = vpack.c.b16 %v2121, %v2103
    %v3724 = vpack.c.b16 %v2122, %v2104
    %v3725 = vpack.c.b16 %v2123, %v2105
    %v3726 = vpack.c.b16 %v2124, %v2106
    %v3727 = vpack.c.b16 %v2125, %v2107
    %v3728 = vpack.c.b16 %v2126, %v2108
    %v3729 = vpack.c.b16 %v2127, %v2109
    %v3730 = vpack.c.b16 %v2128, %v2110
    %v3731 = vpack.c.b16 %v2129, %v2111
    %v3732 = vpack.c.b16 %v2130, %v2112
    %v3733 = vpack.c.b16 %v2131, %v2113
    %v3734 = vpack.c.b16 %v2132, %v2114
    %v3735 = vpack.c.b16 %v2133, %v2115
    %v3736 = vpack.c.b16 %v2134, %v2116
    %v3737 = vpack.c.b16 %v2135, %v2117
    %v3738 = vpack.c.b16 %v2154, %v2136
    %v3739 = vpack.c.b16 %v2155, %v2137
    %v3740 = vpack.c.b16 %v2156, %v2138
    %v3741 = vpack.c.b16 %v2157, %v2139
    %v3742 = vpack.c.b16 %v2158, %v2140
    %v3743 = vpack.c.b16 %v2159, %v2141
    %v3744 = vpack.c.b16 %v2160, %v2142
    %v3745 = vpack.c.b16 %v2161, %v2143
    %v3746 = vpack.c.b16 %v2162, %v2144
    %v3747 = vpack.c.b16 %v2163, %v2145
    %v3748 = vpack.c.b16 %v2164, %v2146
    %v3749 = vpack.c.b16 %v2165, %v2147
    %v3750 = vpack.c.b16 %v2166, %v2148
    %v3751 = vpack.c.b16 %v2167, %v2149
    %v3752 = vpack.c.b16 %v2168, %v2150
    %v3753 = vpack.c.b16 %v2169, %v2151
    %v3754 = vpack.c.b16 %v2170, %v2152
    %v3755 = vpack.c.b16 %v2171, %v2153
    %v3756 = vpack.c.b16 %v2190, %v2172
    %v3757 = vpack.c.b16 %v2191, %v2173
    %v3758 = vpack.c.b16 %v2192, %v2174
    %v3759 = vpack.c.b16 %v2193, %v2175
    %v3760 = vpack.c.b16 %v2194, %v2176
    %v3761 = vpack.c.b16 %v2195, %v2177
    %v3762 = vpack.c.b16 %v2196, %v2178
    %v3763 = vpack.c.b16 %v2197, %v2179
    %v3764 = vpack.c.b16 %v2198, %v2180
    %v3765 = vpack.c.b16 %v2199, %v2181
    %v3766 = vpack.c.b16 %v2200, %v2182
    %v3767 = vpack.c.b16 %v2201, %v2183
    %v3768 = vpack.c.b16 %v2202, %v2184
    %v3769 = vpack.c.b16 %v2203, %v2185
    %v3770 = vpack.c.b16 %v2204, %v2186
    %v3771 = vpack.c.b16 %v2205, %v2187
    %v3772 = vpack.c.b16 %v2206, %v2188
    %v3773 = vpack.c.b16 %v2207, %v2189
    %v3774 = vpack.c.b16 %v2226, %v2208
    %v3775 = vpack.c.b16 %v2227, %v2209
    %v3776 = vpack.c.b16 %v2228, %v2210
    %v3777 = vpack.c.b16 %v2229, %v2211
    %v3778 = vpack.c.b16 %v2230, %v2212
    %v3779 = vpack.c.b16 %v2231, %v2213
    %v3780 = vpack.c.b16 %v2232, %v2214
    %v3781 = vpack.c.b16 %v2233, %v2215
    %v3782 = vpack.c.b16 %v2234, %v2216
    %v3783 = vpack.c.b16 %v2235, %v2217
    %v3784 = vpack.c.b16 %v2236, %v2218
    %v3785 = vpack.c.b16 %v2237, %v2219
    %v3786 = vpack.c.b16 %v2238, %v2220
    %v3787 = vpack.c.b16 %v2239, %v2221
    %v3788 = vpack.c.b16 %v2240, %v2222
    %v3789 = vpack.c.b16 %v2241, %v2223
    %v3790 = vpack.c.b16 %v2242, %v2224
    %v3791 = vpack.c.b16 %v2243, %v2225
    %v3792 = vpack.c.b16 %v2262, %v2244
    %v3793 = vpack.c.b16 %v2263, %v2245
    %v3794 = vpack.c.b16 %v2264, %v2246
    %v3795 = vpack.c.b16 %v2265, %v2247
    %v3796 = vpack.c.b16 %v2266, %v2248
    %v3797 = vpack.c.b16 %v2267, %v2249
    %v3798 = vpack.c.b16 %v2268, %v2250
    %v3799 = vpack.c.b16 %v2269, %v2251
    %v3800 = vpack.c.b16 %v2270, %v2252
    %v3801 = vpack.c.b16 %v2271, %v2253
    %v3802 = vpack.c.b16 %v2272, %v2254
    %v3803 = vpack.c.b16 %v2273, %v2255
    %v3804 = vpack.c.b16 %v2274, %v2256
    %v3805 = vpack.c.b16 %v2275, %v2257
    %v3806 = vpack.c.b16 %v2276, %v2258
    %v3807 = vpack.c.b16 %v2277, %v2259
    %v3808 = vpack.c.b16 %v2278, %v2260
    %v3809 = vpack.c.b16 %v2279, %v2261
    %v3810 = vpack.c.b16 %v2298, %v2280
    %v3811 = vpack.c.b16 %v2299, %v2281
    %v3812 = vpack.c.b16 %v2300, %v2282
    %v3813 = vpack.c.b16 %v2301, %v2283
    %v3814 = vpack.c.b16 %v2302, %v2284
    %v3815 = vpack.c.b16 %v2303, %v2285
    %v3816 = vpack.c.b16 %v2304, %v2286
    %v3817 = vpack.c.b16 %v2305, %v2287
    %v3818 = vpack.c.b16 %v2306, %v2288
    %v3819 = vpack.c.b16 %v2307, %v2289
    %v3820 = vpack.c.b16 %v2308, %v2290
    %v3821 = vpack.c.b16 %v2309, %v2291
    %v3822 = vpack.c.b16 %v2310, %v2292
    %v3823 = vpack.c.b16 %v2311, %v2293
    %v3824 = vpack.c.b16 %v2312, %v2294
    %v3825 = vpack.c.b16 %v2313, %v2295
    %v3826 = vpack.c.b16 %v2314, %v2296
    %v3827 = vpack.c.b16 %v2315, %v2297
    %v3828 = vpack.c.b16 %v2334, %v2316
    %v3829 = vpack.c.b16 %v2335, %v2317
    %v3830 = vpack.c.b16 %v2336, %v2318
    %v3831 = vpack.c.b16 %v2337, %v2319
    %v3832 = vpack.c.b16 %v2338, %v2320
    %v3833 = vpack.c.b16 %v2339, %v2321
    %v3834 = vpack.c.b16 %v2340, %v2322
    %v3835 = vpack.c.b16 %v2341, %v2323
    %v3836 = vpack.c.b16 %v2342, %v2324
    %v3837 = vpack.c.b16 %v2343, %v2325
    %v3838 = vpack.c.b16 %v2344, %v2326
    %v3839 = vpack.c.b16 %v2345, %v2327
    %v3840 = vpack.c.b16 %v2346, %v2328
    %v3841 = vpack.c.b16 %v2347, %v2329
    %v3842 = vpack.c.b16 %v2348, %v2330
    %v3843 = vpack.c.b16 %v2349, %v2331
    %v3844 = vpack.c.b16 %v2350, %v2332
    %v3845 = vpack.c.b16 %v2351, %v2333
    %v3846 = vpack.c.b16 %v2370, %v2352
    %v3847 = vpack.c.b16 %v2371, %v2353
    %v3848 = vpack.c.b16 %v2372, %v2354
    %v3849 = vpack.c.b16 %v2373, %v2355
    %v3850 = vpack.c.b16 %v2374, %v2356
    %v3851 = vpack.c.b16 %v2375, %v2357
    %v3852 = vpack.c.b16 %v2376, %v2358
    %v3853 = vpack.c.b16 %v2377, %v2359
    %v3854 = vpack.c.b16 %v2378, %v2360
    %v3855 = vpack.c.b16 %v2379, %v2361
    %v3856 = vpack.c.b16 %v2380, %v2362
    %v3857 = vpack.c.b16 %v2381, %v2363
    %v3858 = vpack.c.b16 %v2382, %v2364
    %v3859 = vpack.c.b16 %v2383, %v2365
    %v3860 = vpack.c.b16 %v2384, %v2366
    %v3861 = vpack.c.b16 %v2385, %v2367
    %v3862 = vpack.c.b16 %v2386, %v2368
    %v3863 = vpack.c.b16 %v2387, %v2369
    %v3864 = vpack.c.b16 %v2406, %v2388
    %v3865 = vpack.c.b16 %v2407, %v2389
    %v3866 = vpack.c.b16 %v2408, %v2390
    %v3867 = vpack.c.b16 %v2409, %v2391
    %v3868 = vpack.c.b16 %v2410, %v2392
    %v3869 = vpack.c.b16 %v2411, %v2393
    %v3870 = vpack.c.b16 %v2412, %v2394
    %v3871 = vpack.c.b16 %v2413, %v2395
    %v3872 = vpack.c.b16 %v2414, %v2396
    %v3873 = vpack.c.b16 %v2415, %v2397
    %v3874 = vpack.c.b16 %v2416, %v2398
    %v3875 = vpack.c.b16 %v2417, %v2399
    %v3876 = vpack.c.b16 %v2418, %v2400
    %v3877 = vpack.c.b16 %v2419, %v2401
    %v3878 = vpack.c.b16 %v2420, %v2402
    %v3879 = vpack.c.b16 %v2421, %v2403
    %v3880 = vpack.c.b16 %v2422, %v2404
    %v3881 = vpack.c.b16 %v2423, %v2405
    %v3882 = vpack.c.b16 %v2442, %v2424
    %v3883 = vpack.c.b16 %v2443, %v2425
    %v3884 = vpack.c.b16 %v2444, %v2426
    %v3885 = vpack.c.b16 %v2445, %v2427
    %v3886 = vpack.c.b16 %v2446, %v2428
    %v3887 = vpack.c.b16 %v2447, %v2429
    %v3888 = vpack.c.b16 %v2448, %v2430
    %v3889 = vpack.c.b16 %v2449, %v2431
    %v3890 = vpack.c.b16 %v2450, %v2432
    %v3891 = vpack.c.b16 %v2451, %v2433
    %v3892 = vpack.c.b16 %v2452, %v2434
    %v3893 = vpack.c.b16 %v2453, %v2435
    %v3894 = vpack.c.b16 %v2454, %v2436
    %v3895 = vpack.c.b16 %v2455, %v2437
    %v3896 = vpack.c.b16 %v2456, %v2438
    %v3897 = vpack.c.b16 %v2457, %v2439
    %v3898 = vpack.c.b16 %v2458, %v2440
    %v3899 = vpack.c.b16 %v2459, %v2441
    %v3900 = vpack.c.b16 %v2478, %v2460
    %v3901 = vpack.c.b16 %v2479, %v2461
    %v3902 = vpack.c.b16 %v2480, %v2462
    %v3903 = vpack.c.b16 %v2481, %v2463
    %v3904 = vpack.c.b16 %v2482, %v2464
    %v3905 = vpack.c.b16 %v2483, %v2465
    %v3906 = vpack.c.b16 %v2484, %v2466
    %v3907 = vpack.c.b16 %v2485, %v2467
    %v3908 = vpack.c.b16 %v2486, %v2468
    %v3909 = vpack.c.b16 %v2487, %v2469
    %v3910 = vpack.c.b16 %v2488, %v2470
    %v3911 = vpack.c.b16 %v2489, %v2471
    %v3912 = vpack.c.b16 %v2490, %v2472
    %v3913 = vpack.c.b16 %v2491, %v2473
    %v3914 = vpack.c.b16 %v2492, %v2474
    %v3915 = vpack.c.b16 %v2493, %v2475
    %v3916 = vpack.c.b16 %v2494, %v2476
    %v3917 = vpack.c.b16 %v2495, %v2477
    %v3918 = vpack.c.b16 %v2514, %v2496
    %v3919 = vpack.c.b16 %v2515, %v2497
    %v3920 = vpack.c.b16 %v2516, %v2498
    %v3921 = vpack.c.b16 %v2517, %v2499
    %v3922 = vpack.c.b16 %v2518, %v2500
    %v3923 = vpack.c.b16 %v2519, %v2501
    %v3924 = vpack.c.b16 %v2520, %v2502
    %v3925 = vpack.c.b16 %v2521, %v2503
    %v3926 = vpack.c.b16 %v2522, %v2504
    %v3927 = vpack.c.b16 %v2523, %v2505
    %v3928 = vpack.c.b16 %v2524, %v2506
    %v3929 = vpack.c.b16 %v2525, %v2507
    %v3930 = vpack.c.b16 %v2526, %v2508
    %v3931 = vpack.c.b16 %v2527, %v2509
    %v3932 = vpack.c.b16 %v2528, %v2510
    %v3933 = vpack.c.b16 %v2529, %v2511
    %v3934 = vpack.c.b16 %v2530, %v2512
    %v3935 = vpack.c.b16 %v2531, %v2513
    %v3936 = vpack.c.b16 %v2550, %v2532
    %v3937 = vpack.c.b16 %v2551, %v2533
    %v3938 = vpack.c.b16 %v2552, %v2534
    %v3939 = vpack.c.b16 %v2553, %v2535
    %v3940 = vpack.c.b16 %v2554, %v2536
    %v3941 = vpack.c.b16 %v2555, %v2537
    %v3942 = vpack.c.b16 %v2556, %v2538
    %v3943 = vpack.c.b16 %v2557, %v2539
    %v3944 = vpack.c.b16 %v2558, %v2540
    %v3945 = vpack.c.b16 %v2559, %v2541
    %v3946 = vpack.c.b16 %v2560, %v2542
    %v3947 = vpack.c.b16 %v2561, %v2543
    %v3948 = vpack.c.b16 %v2562, %v2544
    %v3949 = vpack.c.b16 %v2563, %v2545
    %v3950 = vpack.c.b16 %v2564, %v2546
    %v3951 = vpack.c.b16 %v2565, %v2547
    %v3952 = vpack.c.b16 %v2566, %v2548
    %v3953 = vpack.c.b16 %v2567, %v2549
    %v3954 = vpack.c.b16 %v2586, %v2568
    %v3955 = vpack.c.b16 %v2587, %v2569
    %v3956 = vpack.c.b16 %v2588, %v2570
    %v3957 = vpack.c.b16 %v2589, %v2571
    %v3958 = vpack.c.b16 %v2590, %v2572
    %v3959 = vpack.c.b16 %v2591, %v2573
    %v3960 = vpack.c.b16 %v2592, %v2574
    %v3961 = vpack.c.b16 %v2593, %v2575
    %v3962 = vpack.c.b16 %v2594, %v2576
    %v3963 = vpack.c.b16 %v2595, %v2577
    %v3964 = vpack.c.b16 %v2596, %v2578
    %v3965 = vpack.c.b16 %v2597, %v2579
    %v3966 = vpack.c.b16 %v2598, %v2580
    %v3967 = vpack.c.b16 %v2599, %v2581
    %v3968 = vpack.c.b16 %v2600, %v2582
    %v3969 = vpack.c.b16 %v2601, %v2583
    %v3970 = vpack.c.b16 %v2602, %v2584
    %v3971 = vpack.c.b16 %v2603, %v2585
    %v3972 = vpack.c.b16 %v2622, %v2604
    %v3973 = vpack.c.b16 %v2623, %v2605
    %v3974 = vpack.c.b16 %v2624, %v2606
    %v3975 = vpack.c.b16 %v2625, %v2607
    %v3976 = vpack.c.b16 %v2626, %v2608
    %v3977 = vpack.c.b16 %v2627, %v2609
    %v3978 = vpack.c.b16 %v2628, %v2610
    %v3979 = vpack.c.b16 %v2629, %v2611
    %v3980 = vpack.c.b16 %v2630, %v2612
    %v3981 = vpack.c.b16 %v2631, %v2613
    %v3982 = vpack.c.b16 %v2632, %v2614
    %v3983 = vpack.c.b16 %v2633, %v2615
    %v3984 = vpack.c.b16 %v2634, %v2616
    %v3985 = vpack.c.b16 %v2635, %v2617
    %v3986 = vpack.c.b16 %v2636, %v2618
    %v3987 = vpack.c.b16 %v2637, %v2619
    %v3988 = vpack.c.b16 %v2638, %v2620
    %v3989 = vpack.c.b16 %v2639, %v2621
    %v3990 = vpack.c.b16 %v2658, %v2640
    %v3991 = vpack.c.b16 %v2659, %v2641
    %v3992 = vpack.c.b16 %v2660, %v2642
    %v3993 = vpack.c.b16 %v2661, %v2643
    %v3994 = vpack.c.b16 %v2662, %v2644
    %v3995 = vpack.c.b16 %v2663, %v2645
    %v3996 = vpack.c.b16 %v2664, %v2646
    %v3997 = vpack.c.b16 %v2665, %v2647
    %v3998 = vpack.c.b16 %v2666, %v2648
    %v3999 = vpack.c.b16 %v2667, %v2649
    %v4000 = vpack.c.b16 %v2668, %v2650
    %v4001 = vpack.c.b16 %v2669, %v2651
    %v4002 = vpack.c.b16 %v2670, %v2652
    %v4003 = vpack.c.b16 %v2671, %v2653
    %v4004 = vpack.c.b16 %v2672, %v2654
    %v4005 = vpack.c.b16 %v2673, %v2655
    %v4006 = vpack.c.b16 %v2674, %v2656
    %v4007 = vpack.c.b16 %v2675, %v2657
    %v4008 = vpack.c.b16 %v2694, %v2676
    %v4009 = vpack.c.b16 %v2695, %v2677
    %v4010 = vpack.c.b16 %v2696, %v2678
    %v4011 = vpack.c.b16 %v2697, %v2679
    %v4012 = vpack.c.b16 %v2698, %v2680
    %v4013 = vpack.c.b16 %v2699, %v2681
    %v4014 = vpack.c.b16 %v2700, %v2682
    %v4015 = vpack.c.b16 %v2701, %v2683
    %v4016 = vpack.c.b16 %v2702, %v2684
    %v4017 = vpack.c.b16 %v2703, %v2685
    %v4018 = vpack.c.b16 %v2704, %v2686
    %v4019 = vpack.c.b16 %v2705, %v2687
    %v4020 = vpack.c.b16 %v2706, %v2688
    %v4021 = vpack.c.b16 %v2707, %v2689
    %v4022 = vpack.c.b16 %v2708, %v2690
    %v4023 = vpack.c.b16 %v2709, %v2691
    %v4024 = vpack.c.b16 %v2710, %v2692
    %v4025 = vpack.c.b16 %v2711, %v2693
    %v4026 = vpack.c.b16 %v2730, %v2712
    %v4027 = vpack.c.b16 %v2731, %v2713
    %v4028 = vpack.c.b16 %v2732, %v2714
    %v4029 = vpack.c.b16 %v2733, %v2715
    %v4030 = vpack.c.b16 %v2734, %v2716
    %v4031 = vpack.c.b16 %v2735, %v2717
    %v4032 = vpack.c.b16 %v2736, %v2718
    %v4033 = vpack.c.b16 %v2737, %v2719
    %v4034 = vpack.c.b16 %v2738, %v2720
    %v4035 = vpack.c.b16 %v2739, %v2721
    %v4036 = vpack.c.b16 %v2740, %v2722
    %v4037 = vpack.c.b16 %v2741, %v2723
    %v4038 = vpack.c.b16 %v2742, %v2724
    %v4039 = vpack.c.b16 %v2743, %v2725
    %v4040 = vpack.c.b16 %v2744, %v2726
    %v4041 = vpack.c.b16 %v2745, %v2727
    %v4042 = vpack.c.b16 %v2746, %v2728
    %v4043 = vpack.c.b16 %v2747, %v2729
    %v4044 = vpack.c.b16 %v2766, %v2748
    %v4045 = vpack.c.b16 %v2767, %v2749
    %v4046 = vpack.c.b16 %v2768, %v2750
    %v4047 = vpack.c.b16 %v2769, %v2751
    %v4048 = vpack.c.b16 %v2770, %v2752
    %v4049 = vpack.c.b16 %v2771, %v2753
    %v4050 = vpack.c.b16 %v2772, %v2754
    %v4051 = vpack.c.b16 %v2773, %v2755
    %v4052 = vpack.c.b16 %v2774, %v2756
    %v4053 = vpack.c.b16 %v2775, %v2757
    %v4054 = vpack.c.b16 %v2776, %v2758
    %v4055 = vpack.c.b16 %v2777, %v2759
    %v4056 = vpack.c.b16 %v2778, %v2760
    %v4057 = vpack.c.b16 %v2779, %v2761
    %v4058 = vpack.c.b16 %v2780, %v2762
    %v4059 = vpack.c.b16 %v2781, %v2763
    %v4060 = vpack.c.b16 %v2782, %v2764
    %v4061 = vpack.c.b16 %v2783, %v2765
    %v4062 = vpack.c.b16 %v2802, %v2784
    %v4063 = vpack.c.b16 %v2803, %v2785
    %v4064 = vpack.c.b16 %v2804, %v2786
    %v4065 = vpack.c.b16 %v2805, %v2787
    %v4066 = vpack.c.b16 %v2806, %v2788
    %v4067 = vpack.c.b16 %v2807, %v2789
    %v4068 = vpack.c.b16 %v2808, %v2790
    %v4069 = vpack.c.b16 %v2809, %v2791
    %v4070 = vpack.c.b16 %v2810, %v2792
    %v4071 = vpack.c.b16 %v2811, %v2793
    %v4072 = vpack.c.b16 %v2812, %v2794
    %v4073 = vpack.c.b16 %v2813, %v2795
    %v4074 = vpack.c.b16 %v2814, %v2796
    %v4075 = vpack.c.b16 %v2815, %v2797
    %v4076 = vpack.c.b16 %v2816, %v2798
    %v4077 = vpack.c.b16 %v2817, %v2799
    %v4078 = vpack.c.b16 %v2818, %v2800
    %v4079 = vpack.c.b16 %v2819, %v2801
    %v4080 = vpack.c.b16 %v2838, %v2820
    %v4081 = vpack.c.b16 %v2839, %v2821
    %v4082 = vpack.c.b16 %v2840, %v2822
    %v4083 = vpack.c.b16 %v2841, %v2823
    %v4084 = vpack.c.b16 %v2842, %v2824
    %v4085 = vpack.c.b16 %v2843, %v2825
    %v4086 = vpack.c.b16 %v2844, %v2826
    %v4087 = vpack.c.b16 %v2845, %v2827
    %v4088 = vpack.c.b16 %v2846, %v2828
    %v4089 = vpack.c.b16 %v2847, %v2829
    %v4090 = vpack.c.b16 %v2848, %v2830
    %v4091 = vpack.c.b16 %v2849, %v2831
    %v4092 = vpack.c.b16 %v2850, %v2832
    %v4093 = vpack.c.b16 %v2851, %v2833
    %v4094 = vpack.c.b16 %v2852, %v2834
    %v4095 = vpack.c.b16 %v2853, %v2835
    %v4096 = vpack.c.b16 %v2854, %v2836
    %v4097 = vpack.c.b16 %v2855, %v2837
    %v4098 = vpack.c.b16 %v2874, %v2856
    %v4099 = vpack.c.b16 %v2875, %v2857
    %v4100 = vpack.c.b16 %v2876, %v2858
    %v4101 = vpack.c.b16 %v2877, %v2859
    %v4102 = vpack.c.b16 %v2878, %v2860
    %v4103 = vpack.c.b16 %v2879, %v2861
    %v4104 = vpack.c.b16 %v2880, %v2862
    %v4105 = vpack.c.b16 %v2881, %v2863
    %v4106 = vpack.c.b16 %v2882, %v2864
    %v4107 = vpack.c.b16 %v2883, %v2865
    %v4108 = vpack.c.b16 %v2884, %v2866
    %v4109 = vpack.c.b16 %v2885, %v2867
    %v4110 = vpack.c.b16 %v2886, %v2868
    %v4111 = vpack.c.b16 %v2887, %v2869
    %v4112 = vpack.c.b16 %v2888, %v2870
    %v4113 = vpack.c.b16 %v2889, %v2871
    %v4114 = vpack.c.b16 %v2890, %v2872
    %v4115 = vpack.c.b16 %v2891, %v2873
    %v4116 = vpack.c.b16 %v2910, %v2892
    %v4117 = vpack.c.b16 %v2911, %v2893
    %v4118 = vpack.c.b16 %v2912, %v2894
    %v4119 = vpack.c.b16 %v2913, %v2895
    %v4120 = vpack.c.b16 %v2914, %v2896
    %v4121 = vpack.c.b16 %v2915, %v2897
    %v4122 = vpack.c.b16 %v2916, %v2898
    %v4123 = vpack.c.b16 %v2917, %v2899
    %v4124 = vpack.c.b16 %v2918, %v2900
    %v4125 = vpack.c.b16 %v2919, %v2901
    %v4126 = vpack.c.b16 %v2920, %v2902
    %v4127 = vpack.c.b16 %v2921, %v2903
    %v4128 = vpack.c.b16 %v2922, %v2904
    %v4129 = vpack.c.b16 %v2923, %v2905
    %v4130 = vpack.c.b16 %v2924, %v2906
    %v4131 = vpack.c.b16 %v2925, %v2907
    %v4132 = vpack.c.b16 %v2926, %v2908
    %v4133 = vpack.c.b16 %v2927, %v2909
    %v4134 = vpack.c.b16 %v2946, %v2928
    %v4135 = vpack.c.b16 %v2947, %v2929
    %v4136 = vpack.c.b16 %v2948, %v2930
    %v4137 = vpack.c.b16 %v2949, %v2931
    %v4138 = vpack.c.b16 %v2950, %v2932
    %v4139 = vpack.c.b16 %v2951, %v2933
    %v4140 = vpack.c.b16 %v2952, %v2934
    %v4141 = vpack.c.b16 %v2953, %v2935
    %v4142 = vpack.c.b16 %v2954, %v2936
    %v4143 = vpack.c.b16 %v2955, %v2937
    %v4144 = vpack.c.b16 %v2956, %v2938
    %v4145 = vpack.c.b16 %v2957, %v2939
    %v4146 = vpack.c.b16 %v2958, %v2940
    %v4147 = vpack.c.b16 %v2959, %v2941
    %v4148 = vpack.c.b16 %v2960, %v2942
    %v4149 = vpack.c.b16 %v2961, %v2943
    %v4150 = vpack.c.b16 %v2962, %v2944
    %v4151 = vpack.c.b16 %v2963, %v2945
    %v4152 = vpack.c.b16 %v2982, %v2964
    %v4153 = vpack.c.b16 %v2983, %v2965
    %v4154 = vpack.c.b16 %v2984, %v2966
    %v4155 = vpack.c.b16 %v2985, %v2967
    %v4156 = vpack.c.b16 %v2986, %v2968
    %v4157 = vpack.c.b16 %v2987, %v2969
    %v4158 = vpack.c.b16 %v2988, %v2970
    %v4159 = vpack.c.b16 %v2989, %v2971
    %v4160 = vpack.c.b16 %v2990, %v2972
    %v4161 = vpack.c.b16 %v2991, %v2973
    %v4162 = vpack.c.b16 %v2992, %v2974
    %v4163 = vpack.c.b16 %v2993, %v2975
    %v4164 = vpack.c.b16 %v2994, %v2976
    %v4165 = vpack.c.b16 %v2995, %v2977
    %v4166 = vpack.c.b16 %v2996, %v2978
    %v4167 = vpack.c.b16 %v2997, %v2979
    %v4168 = vpack.c.b16 %v2998, %v2980
    %v4169 = vpack.c.b16 %v2999, %v2981
    %v4170 = vpack.c.b16 %v3018, %v3000
    %v4171 = vpack.c.b16 %v3019, %v3001
    %v4172 = vpack.c.b16 %v3020, %v3002
    %v4173 = vpack.c.b16 %v3021, %v3003
    %v4174 = vpack.c.b16 %v3022, %v3004
    %v4175 = vpack.c.b16 %v3023, %v3005
    %v4176 = vpack.c.b16 %v3024, %v3006
    %v4177 = vpack.c.b16 %v3025, %v3007
    %v4178 = vpack.c.b16 %v3026, %v3008
    %v4179 = vpack.c.b16 %v3027, %v3009
    %v4180 = vpack.c.b16 %v3028, %v3010
    %v4181 = vpack.c.b16 %v3029, %v3011
    %v4182 = vpack.c.b16 %v3030, %v3012
    %v4183 = vpack.c.b16 %v3031, %v3013
    %v4184 = vpack.c.b16 %v3032, %v3014
    %v4185 = vpack.c.b16 %v3033, %v3015
    %v4186 = vpack.c.b16 %v3034, %v3016
    %v4187 = vpack.c.b16 %v3035, %v3017
    %v4188 = vpack.c.b16 %v3054, %v3036
    %v4189 = vpack.c.b16 %v3055, %v3037
    %v4190 = vpack.c.b16 %v3056, %v3038
    %v4191 = vpack.c.b16 %v3057, %v3039
    %v4192 = vpack.c.b16 %v3058, %v3040
    %v4193 = vpack.c.b16 %v3059, %v3041
    %v4194 = vpack.c.b16 %v3060, %v3042
    %v4195 = vpack.c.b16 %v3061, %v3043
    %v4196 = vpack.c.b16 %v3062, %v3044
    %v4197 = vpack.c.b16 %v3063, %v3045
    %v4198 = vpack.c.b16 %v3064, %v3046
    %v4199 = vpack.c.b16 %v3065, %v3047
    %v4200 = vpack.c.b16 %v3066, %v3048
    %v4201 = vpack.c.b16 %v3067, %v3049
    %v4202 = vpack.c.b16 %v3068, %v3050
    %v4203 = vpack.c.b16 %v3069, %v3051
    %v4204 = vpack.c.b16 %v3070, %v3052
    %v4205 = vpack.c.b16 %v3071, %v3053
    %v4206 = vpack.c.b16 %v3090, %v3072
    %v4207 = vpack.c.b16 %v3091, %v3073
    %v4208 = vpack.c.b16 %v3092, %v3074
    %v4209 = vpack.c.b16 %v3093, %v3075
    %v4210 = vpack.c.b16 %v3094, %v3076
    %v4211 = vpack.c.b16 %v3095, %v3077
    %v4212 = vpack.c.b16 %v3096, %v3078
    %v4213 = vpack.c.b16 %v3097, %v3079
    %v4214 = vpack.c.b16 %v3098, %v3080
    %v4215 = vpack.c.b16 %v3099, %v3081
    %v4216 = vpack.c.b16 %v3100, %v3082
    %v4217 = vpack.c.b16 %v3101, %v3083
    %v4218 = vpack.c.b16 %v3102, %v3084
    %v4219 = vpack.c.b16 %v3103, %v3085
    %v4220 = vpack.c.b16 %v3104, %v3086
    %v4221 = vpack.c.b16 %v3105, %v3087
    %v4222 = vpack.c.b16 %v3106, %v3088
    %v4223 = vpack.c.b16 %v3107, %v3089
    %v4224 = vpack.c.b16 %v3126, %v3108
    %v4225 = vpack.c.b16 %v3127, %v3109
    %v4226 = vpack.c.b16 %v3128, %v3110
    %v4227 = vpack.c.b16 %v3129, %v3111
    %v4228 = vpack.c.b16 %v3130, %v3112
    %v4229 = vpack.c.b16 %v3131, %v3113
    %v4230 = vpack.c.b16 %v3132, %v3114
    %v4231 = vpack.c.b16 %v3133, %v3115
    %v4232 = vpack.c.b16 %v3134, %v3116
    %v4233 = vpack.c.b16 %v3135, %v3117
    %v4234 = vpack.c.b16 %v3136, %v3118
    %v4235 = vpack.c.b16 %v3137, %v3119
    %v4236 = vpack.c.b16 %v3138, %v3120
    %v4237 = vpack.c.b16 %v3139, %v3121
    %v4238 = vpack.c.b16 %v3140, %v3122
    %v4239 = vpack.c.b16 %v3141, %v3123
    %v4240 = vpack.c.b16 %v3142, %v3124
    %v4241 = vpack.c.b16 %v3143, %v3125
    %v4242 = vpack.c.b16 %v3162, %v3144
    %v4243 = vpack.c.b16 %v3163, %v3145
    %v4244 = vpack.c.b16 %v3164, %v3146
    %v4245 = vpack.c.b16 %v3165, %v3147
    %v4246 = vpack.c.b16 %v3166, %v3148
    %v4247 = vpack.c.b16 %v3167, %v3149
    %v4248 = vpack.c.b16 %v3168, %v3150
    %v4249 = vpack.c.b16 %v3169, %v3151
    %v4250 = vpack.c.b16 %v3170, %v3152
    %v4251 = vpack.c.b16 %v3171, %v3153
    %v4252 = vpack.c.b16 %v3172, %v3154
    %v4253 = vpack.c.b16 %v3173, %v3155
    %v4254 = vpack.c.b16 %v3174, %v3156
    %v4255 = vpack.c.b16 %v3175, %v3157
    %v4256 = vpack.c.b16 %v3176, %v3158
    %v4257 = vpack.c.b16 %v3177, %v3159
    %v4258 = vpack.c.b16 %v3178, %v3160
    %v4259 = vpack.c.b16 %v3179, %v3161
    %v4260 = vpack.c.b16 %v3198, %v3180
    %v4261 = vpack.c.b16 %v3199, %v3181
    %v4262 = vpack.c.b16 %v3200, %v3182
    %v4263 = vpack.c.b16 %v3201, %v3183
    %v4264 = vpack.c.b16 %v3202, %v3184
    %v4265 = vpack.c.b16 %v3203, %v3185
    %v4266 = vpack.c.b16 %v3204, %v3186
    %v4267 = vpack.c.b16 %v3205, %v3187
    %v4268 = vpack.c.b16 %v3206, %v3188
    %v4269 = vpack.c.b16 %v3207, %v3189
    %v4270 = vpack.c.b16 %v3208, %v3190
    %v4271 = vpack.c.b16 %v3209, %v3191
    %v4272 = vpack.c.b16 %v3210, %v3192
    %v4273 = vpack.c.b16 %v3211, %v3193
    %v4274 = vpack.c.b16 %v3212, %v3194
    %v4275 = vpack.c.b16 %v3213, %v3195
    %v4276 = vpack.c.b16 %v3214, %v3196
    %v4277 = vpack.c.b16 %v3215, %v3197
    %v4278 = vpack.c.b16 %v3234, %v3216
    %v4279 = vpack.c.b16 %v3235, %v3217
    %v4280 = vpack.c.b16 %v3236, %v3218
    %v4281 = vpack.c.b16 %v3237, %v3219
    %v4282 = vpack.c.b16 %v3238, %v3220
    %v4283 = vpack.c.b16 %v3239, %v3221
    %v4284 = vpack.c.b16 %v3240, %v3222
    %v4285 = vpack.c.b16 %v3241, %v3223
    %v4286 = vpack.c.b16 %v3242, %v3224
    %v4287 = vpack.c.b16 %v3243, %v3225
    %v4288 = vpack.c.b16 %v3244, %v3226
    %v4289 = vpack.c.b16 %v3245, %v3227
    %v4290 = vpack.c.b16 %v3246, %v3228
    %v4291 = vpack.c.b16 %v3247, %v3229
    %v4292 = vpack.c.b16 %v3248, %v3230
    %v4293 = vpack.c.b16 %v3249, %v3231
    %v4294 = vpack.c.b16 %v3250, %v3232
    %v4295 = vpack.c.b16 %v3251, %v3233
    %v4296 = vpack.c.b16 %v3270, %v3252
    %v4297 = vpack.c.b16 %v3271, %v3253
    %v4298 = vpack.c.b16 %v3272, %v3254
    %v4299 = vpack.c.b16 %v3273, %v3255
    %v4300 = vpack.c.b16 %v3274, %v3256
    %v4301 = vpack.c.b16 %v3275, %v3257
    %v4302 = vpack.c.b16 %v3276, %v3258
    %v4303 = vpack.c.b16 %v3277, %v3259
    %v4304 = vpack.c.b16 %v3278, %v3260
    %v4305 = vpack.c.b16 %v3279, %v3261
    %v4306 = vpack.c.b16 %v3280, %v3262
    %v4307 = vpack.c.b16 %v3281, %v3263
    %v4308 = vpack.c.b16 %v3282, %v3264
    %v4309 = vpack.c.b16 %v3283, %v3265
    %v4310 = vpack.c.b16 %v3284, %v3266
    %v4311 = vpack.c.b16 %v3285, %v3267
    %v4312 = vpack.c.b16 %v3286, %v3268
    %v4313 = vpack.c.b16 %v3287, %v3269
    %v4314 = vpack.c.b16 %v3306, %v3288
    %v4315 = vpack.c.b16 %v3307, %v3289
    %v4316 = vpack.c.b16 %v3308, %v3290
    %v4317 = vpack.c.b16 %v3309, %v3291
    %v4318 = vpack.c.b16 %v3310, %v3292
    %v4319 = vpack.c.b16 %v3311, %v3293
    %v4320 = vpack.c.b16 %v3312, %v3294
    %v4321 = vpack.c.b16 %v3313, %v3295
    %v4322 = vpack.c.b16 %v3314, %v3296
    %v4323 = vpack.c.b16 %v3315, %v3297
    %v4324 = vpack.c.b16 %v3316, %v3298
    %v4325 = vpack.c.b16 %v3317, %v3299
    %v4326 = vpack.c.b16 %v3318, %v3300
    %v4327 = vpack.c.b16 %v3319, %v3301
    %v4328 = vpack.c.b16 %v3320, %v3302
    %v4329 = vpack.c.b16 %v3321, %v3303
    %v4330 = vpack.c.b16 %v3322, %v3304
    %v4331 = vpack.c.b16 %v3323, %v3305
    %v4332 = vpack.c.b16 %v3342, %v3324
    %v4333 = vpack.c.b16 %v3343, %v3325
    %v4334 = vpack.c.b16 %v3344, %v3326
    %v4335 = vpack.c.b16 %v3345, %v3327
    %v4336 = vpack.c.b16 %v3346, %v3328
    %v4337 = vpack.c.b16 %v3347, %v3329
    %v4338 = vpack.c.b16 %v3348, %v3330
    %v4339 = vpack.c.b16 %v3349, %v3331
    %v4340 = vpack.c.b16 %v3350, %v3332
    %v4341 = vpack.c.b16 %v3351, %v3333
    %v4342 = vpack.c.b16 %v3352, %v3334
    %v4343 = vpack.c.b16 %v3353, %v3335
    %v4344 = vpack.c.b16 %v3354, %v3336
    %v4345 = vpack.c.b16 %v3355, %v3337
    %v4346 = vpack.c.b16 %v3356, %v3338
    %v4347 = vpack.c.b16 %v3357, %v3339
    %v4348 = vpack.c.b16 %v3358, %v3340
    %v4349 = vpack.c.b16 %v3359, %v3341
    %v4350 = vpack.c.b16 %v3378, %v3360
    %v4351 = vpack.c.b16 %v3379, %v3361
    %v4352 = vpack.c.b16 %v3380, %v3362
    %v4353 = vpack.c.b16 %v3381, %v3363
    %v4354 = vpack.c.b16 %v3382, %v3364
    %v4355 = vpack.c.b16 %v3383, %v3365
    %v4356 = vpack.c.b16 %v3384, %v3366
    %v4357 = vpack.c.b16 %v3385, %v3367
    %v4358 = vpack.c.b16 %v3386, %v3368
    %v4359 = vpack.c.b16 %v3387, %v3369
    %v4360 = vpack.c.b16 %v3388, %v3370
    %v4361 = vpack.c.b16 %v3389, %v3371
    %v4362 = vpack.c.b16 %v3390, %v3372
    %v4363 = vpack.c.b16 %v3391, %v3373
    %v4364 = vpack.c.b16 %v3392, %v3374
    %v4365 = vpack.c.b16 %v3393, %v3375
    %v4366 = vpack.c.b16 %v3394, %v3376
    %v4367 = vpack.c.b16 %v3395, %v3377
    %v4368 = vpack.c.b16 %v3414, %v3396
    %v4369 = vpack.c.b16 %v3415, %v3397
    %v4370 = vpack.c.b16 %v3416, %v3398
    %v4371 = vpack.c.b16 %v3417, %v3399
    %v4372 = vpack.c.b16 %v3418, %v3400
    %v4373 = vpack.c.b16 %v3419, %v3401
    %v4374 = vpack.c.b16 %v3420, %v3402
    %v4375 = vpack.c.b16 %v3421, %v3403
    %v4376 = vpack.c.b16 %v3422, %v3404
    %v4377 = vpack.c.b16 %v3423, %v3405
    %v4378 = vpack.c.b16 %v3424, %v3406
    %v4379 = vpack.c.b16 %v3425, %v3407
    %v4380 = vpack.c.b16 %v3426, %v3408
    %v4381 = vpack.c.b16 %v3427, %v3409
    %v4382 = vpack.c.b16 %v3428, %v3410
    %v4383 = vpack.c.b16 %v3429, %v3411
    %v4384 = vpack.c.b16 %v3430, %v3412
    %v4385 = vpack.c.b16 %v3431, %v3413
    %v4386 = vpack.c.b16 %v3450, %v3432
    %v4387 = vpack.c.b16 %v3451, %v3433
    %v4388 = vpack.c.b16 %v3452, %v3434
    %v4389 = vpack.c.b16 %v3453, %v3435
    %v4390 = vpack.c.b16 %v3454, %v3436
    %v4391 = vpack.c.b16 %v3455, %v3437
    %v4392 = vpack.c.b16 %v3456, %v3438
    %v4393 = vpack.c.b16 %v3457, %v3439
    %v4394 = vpack.c.b16 %v3458, %v3440
    %v4395 = vpack.c.b16 %v3459, %v3441
    %v4396 = vpack.c.b16 %v3460, %v3442
    %v4397 = vpack.c.b16 %v3461, %v3443
    %v4398 = vpack.c.b16 %v3462, %v3444
    %v4399 = vpack.c.b16 %v3463, %v3445
    %v4400 = vpack.c.b16 %v3464, %v3446
    %v4401 = vpack.c.b16 %v3465, %v3447
    %v4402 = vpack.c.b16 %v3466, %v3448
    %v4403 = vpack.c.b16 %v3467, %v3449
    %v4404 = vpack.c.b16 %v3486, %v3468
    %v4405 = vpack.c.b16 %v3487, %v3469
    %v4406 = vpack.c.b16 %v3488, %v3470
    %v4407 = vpack.c.b16 %v3489, %v3471
    %v4408 = vpack.c.b16 %v3490, %v3472
    %v4409 = vpack.c.b16 %v3491, %v3473
    %v4410 = vpack.c.b16 %v3492, %v3474
    %v4411 = vpack.c.b16 %v3493, %v3475
    %v4412 = vpack.c.b16 %v3494, %v3476
    %v4413 = vpack.c.b16 %v3495, %v3477
    %v4414 = vpack.c.b16 %v3496, %v3478
    %v4415 = vpack.c.b16 %v3497, %v3479
    %v4416 = vpack.c.b16 %v3498, %v3480
    %v4417 = vpack.c.b16 %v3499, %v3481
    %v4418 = vpack.c.b16 %v3500, %v3482
    %v4419 = vpack.c.b16 %v3501, %v3483
    %v4420 = vpack.c.b16 %v3502, %v3484
    %v4421 = vpack.c.b16 %v3503, %v3485
    %v4422 = vpack.c.b16 %v3522, %v3504
    %v4423 = vpack.c.b16 %v3523, %v3505
    %v4424 = vpack.c.b16 %v3524, %v3506
    %v4425 = vpack.c.b16 %v3525, %v3507
    %v4426 = vpack.c.b16 %v3526, %v3508
    %v4427 = vpack.c.b16 %v3527, %v3509
    %v4428 = vpack.c.b16 %v3528, %v3510
    %v4429 = vpack.c.b16 %v3529, %v3511
    %v4430 = vpack.c.b16 %v3530, %v3512
    %v4431 = vpack.c.b16 %v3531, %v3513
    %v4432 = vpack.c.b16 %v3532, %v3514
    %v4433 = vpack.c.b16 %v3533, %v3515
    %v4434 = vpack.c.b16 %v3534, %v3516
    %v4435 = vpack.c.b16 %v3535, %v3517
    %v4436 = vpack.c.b16 %v3536, %v3518
    %v4437 = vpack.c.b16 %v3537, %v3519
    %v4438 = vpack.c.b16 %v3538, %v3520
    %v4439 = vpack.c.b16 %v3539, %v3521
    %v4440 = vpack.c.b16 %v3558, %v3540
    %v4441 = vpack.c.b16 %v3559, %v3541
    %v4442 = vpack.c.b16 %v3560, %v3542
    %v4443 = vpack.c.b16 %v3561, %v3543
    %v4444 = vpack.c.b16 %v3562, %v3544
    %v4445 = vpack.c.b16 %v3563, %v3545
    %v4446 = vpack.c.b16 %v3564, %v3546
    %v4447 = vpack.c.b16 %v3565, %v3547
    %v4448 = vpack.c.b16 %v3566, %v3548
    %v4449 = vpack.c.b16 %v3567, %v3549
    %v4450 = vpack.c.b16 %v3568, %v3550
    %v4451 = vpack.c.b16 %v3569, %v3551
    %v4452 = vpack.c.b16 %v3570, %v3552
    %v4453 = vpack.c.b16 %v3571, %v3553
    %v4454 = vpack.c.b16 %v3572, %v3554
    %v4455 = vpack.c.b16 %v3573, %v3555
    %v4456 = vpack.c.b16 %v3574, %v3556
    %v4457 = vpack.c.b16 %v3575, %v3557
    %v4458 = vpack.c.b16 %v3594, %v3576
    %v4459 = vpack.c.b16 %v3595, %v3577
    %v4460 = vpack.c.b16 %v3596, %v3578
    %v4461 = vpack.c.b16 %v3597, %v3579
    %v4462 = vpack.c.b16 %v3598, %v3580
    %v4463 = vpack.c.b16 %v3599, %v3581
    %v4464 = vpack.c.b16 %v3600, %v3582
    %v4465 = vpack.c.b16 %v3601, %v3583
    %v4466 = vpack.c.b16 %v3602, %v3584
    %v4467 = vpack.c.b16 %v3603, %v3585
    %v4468 = vpack.c.b16 %v3604, %v3586
    %v4469 = vpack.c.b16 %v3605, %v3587
    %v4470 = vpack.c.b16 %v3606, %v3588
    %v4471 = vpack.c.b16 %v3607, %v3589
    %v4472 = vpack.c.b16 %v3608, %v3590
    %v4473 = vpack.c.b16 %v3609, %v3591
    %v4474 = vpack.c.b16 %v3610, %v3592
    %v4475 = vpack.c.b16 %v3611, %v3593
    %5340 = vmatprep.subr.bf16.mxu0 %v3739
    %5341 = vmatpush1.bf16.msra.mxu0 %v3738
    %5342 = vmatprep.subr.bf16.mxu0 %v3721
    %5343 = vmatpush1.bf16.msra.mxu0 %v3720
    %5344 = vmatprep.subr.bf16.mxu0 %v3703
    %5345 = vmatpush1.bf16.msra.mxu0 %v3702
    %5346 = vmatprep.subr.bf16.mxu0 %v3685
    %5347 = vmatpush1.bf16.msra.mxu0 %v3684
    %5348 = vmatprep.subr.bf16.mxu0 %v3667
    %5349 = vmatpush1.bf16.msra.mxu0 %v3666
    %5350 = vmatprep.subr.bf16.mxu0 %v3649
    %5351 = vmatpush1.bf16.msra.mxu0 %v3648
    %5352 = vmatprep.subr.bf16.mxu0 %v3631
    %5353 = vmatpush1.bf16.msra.mxu0 %v3630
    %5354 = vmatprep.subr.bf16.mxu0 %v3613
    %5355 = vmatpush1.bf16.msra.mxu0 %v3612
    %5356 = vmatprep.subr.bf16.mxu0 %v3883
    %5357 = vmatpush2.bf16.msra.mxu0 %v3882
    %5358 = vmatprep.subr.bf16.mxu0 %v3865
    %5359 = vmatpush2.bf16.msra.mxu0 %v3864
    %5360 = vmatprep.subr.bf16.mxu0 %v3847
    %5361 = vmatpush2.bf16.msra.mxu0 %v3846
    %5362 = vmatprep.subr.bf16.mxu0 %v3829
    %5363 = vmatpush2.bf16.msra.mxu0 %v3828
    %5364 = vmatprep.subr.bf16.mxu0 %v3811
    %5365 = vmatpush2.bf16.msra.mxu0 %v3810
    %5366 = vmatprep.subr.bf16.mxu0 %v3793
    %5367 = vmatpush2.bf16.msra.mxu0 %v3792
    %5368 = vmatprep.subr.bf16.mxu0 %v3775
    %5369 = vmatpush2.bf16.msra.mxu0 %v3774
    %5370 = vmatprep.subr.bf16.mxu0 %v3757
    %5371 = vmatpush2.bf16.msra.mxu0 %v3756
    %5372 = vmatprep.mubr.bf16.mxu0 %v55
    %5373 = vmatmul.mubr.bf16.gmra.mxu0 %v54
    %v5374 = vpop.f32.mrf.mxu0
    %v5375 = vadd.f32 %v933, %v5374
    %v5376 = vpop.f32.mrf.mxu0
    %v5377 = vadd.f32 %v937, %v5376
    %v5378 = vpop.f32.mrf.mxu0
    %v5379 = vadd.f32 %v933, %v5378
    %v5380 = vpop.f32.mrf.mxu0
    %v5381 = vadd.f32 %v937, %v5380
    %5382 = vdwg.mxu0
    %5383 = vmatprep.subr.bf16.mxu0 %v4027
    %5384 = vmatpush1.bf16.msra.mxu0 %v4026
    %5385 = vmatprep.subr.bf16.mxu0 %v4009
    %5386 = vmatpush1.bf16.msra.mxu0 %v4008
    %5387 = vmatprep.subr.bf16.mxu0 %v3991
    %5388 = vmatpush1.bf16.msra.mxu0 %v3990
    %5389 = vmatprep.subr.bf16.mxu0 %v3973
    %5390 = vmatpush1.bf16.msra.mxu0 %v3972
    %5391 = vmatprep.subr.bf16.mxu0 %v3955
    %5392 = vmatpush1.bf16.msra.mxu0 %v3954
    %5393 = vmatprep.subr.bf16.mxu0 %v3937
    %5394 = vmatpush1.bf16.msra.mxu0 %v3936
    %5395 = vmatprep.subr.bf16.mxu0 %v3919
    %5396 = vmatpush1.bf16.msra.mxu0 %v3918
    %5397 = vmatprep.subr.bf16.mxu0 %v3901
    %5398 = vmatpush1.bf16.msra.mxu0 %v3900
    %5399 = vmatprep.subr.bf16.mxu0 %v4171
    %5400 = vmatpush2.bf16.msra.mxu0 %v4170
    %5401 = vmatprep.subr.bf16.mxu0 %v4153
    %5402 = vmatpush2.bf16.msra.mxu0 %v4152
    %5403 = vmatprep.subr.bf16.mxu0 %v4135
    %5404 = vmatpush2.bf16.msra.mxu0 %v4134
    %5405 = vmatprep.subr.bf16.mxu0 %v4117
    %5406 = vmatpush2.bf16.msra.mxu0 %v4116
    %5407 = vmatprep.subr.bf16.mxu0 %v4099
    %5408 = vmatpush2.bf16.msra.mxu0 %v4098
    %5409 = vmatprep.subr.bf16.mxu0 %v4081
    %5410 = vmatpush2.bf16.msra.mxu0 %v4080
    %5411 = vmatprep.subr.bf16.mxu0 %v4063
    %5412 = vmatpush2.bf16.msra.mxu0 %v4062
    %5413 = vmatprep.subr.bf16.mxu0 %v4045
    %5414 = vmatpush2.bf16.msra.mxu0 %v4044
    %5415 = vmatprep.mubr.bf16.mxu0 %v57
    %5416 = vmatmul.mubr.bf16.gmra.mxu0 %v56
    %v5417 = vpop.f32.mrf.mxu0
    %v5418 = vadd.f32 %v5375, %v5417
    %v5419 = vpop.f32.mrf.mxu0
    %v5420 = vadd.f32 %v5377, %v5419
    %v5421 = vpop.f32.mrf.mxu0
    %v5422 = vadd.f32 %v5379, %v5421
    %v5423 = vpop.f32.mrf.mxu0
    %v5424 = vadd.f32 %v5381, %v5423
    %5425 = vdwg.mxu0
    %5426 = vmatprep.subr.bf16.mxu0 %v4315
    %5427 = vmatpush1.bf16.msra.mxu0 %v4314
    %5428 = vmatprep.subr.bf16.mxu0 %v4297
    %5429 = vmatpush1.bf16.msra.mxu0 %v4296
    %5430 = vmatprep.subr.bf16.mxu0 %v4279
    %5431 = vmatpush1.bf16.msra.mxu0 %v4278
    %5432 = vmatprep.subr.bf16.mxu0 %v4261
    %5433 = vmatpush1.bf16.msra.mxu0 %v4260
    %5434 = vmatprep.subr.bf16.mxu0 %v4243
    %5435 = vmatpush1.bf16.msra.mxu0 %v4242
    %5436 = vmatprep.subr.bf16.mxu0 %v4225
    %5437 = vmatpush1.bf16.msra.mxu0 %v4224
    %5438 = vmatprep.subr.bf16.mxu0 %v4207
    %5439 = vmatpush1.bf16.msra.mxu0 %v4206
    %5440 = vmatprep.subr.bf16.mxu0 %v4189
    %5441 = vmatpush1.bf16.msra.mxu0 %v4188
    %5442 = vmatprep.subr.bf16.mxu0 %v4459
    %5443 = vmatpush2.bf16.msra.mxu0 %v4458
    %5444 = vmatprep.subr.bf16.mxu0 %v4441
    %5445 = vmatpush2.bf16.msra.mxu0 %v4440
    %5446 = vmatprep.subr.bf16.mxu0 %v4423
    %5447 = vmatpush2.bf16.msra.mxu0 %v4422
    %5448 = vmatprep.subr.bf16.mxu0 %v4405
    %5449 = vmatpush2.bf16.msra.mxu0 %v4404
    %5450 = vmatprep.subr.bf16.mxu0 %v4387
    %5451 = vmatpush2.bf16.msra.mxu0 %v4386
    %5452 = vmatprep.subr.bf16.mxu0 %v4369
    %5453 = vmatpush2.bf16.msra.mxu0 %v4368
    %5454 = vmatprep.subr.bf16.mxu0 %v4351
    %5455 = vmatpush2.bf16.msra.mxu0 %v4350
    %5456 = vmatprep.subr.bf16.mxu0 %v4333
    %5457 = vmatpush2.bf16.msra.mxu0 %v4332
    %5458 = vmatprep.mubr.bf16.mxu0 %v59
    %5459 = vmatmul.mubr.bf16.gmra.mxu0 %v58
    %v5460 = vpop.f32.mrf.mxu0
    %v5461 = vadd.f32 %v5418, %v5460
    %v5462 = vpop.f32.mrf.mxu0
    %v5463 = vadd.f32 %v5420, %v5462
    %v5464 = vpop.f32.mrf.mxu0
    %v5465 = vadd.f32 %v5422, %v5464
    %v5466 = vpop.f32.mrf.mxu0
    %v5467 = vadd.f32 %v5424, %v5466
    %5468 = vdwg.mxu0
    %5469 = vmatprep.subr.bf16.mxu0 %v3741
    %5470 = vmatpush1.bf16.msra.mxu0 %v3740
    %5471 = vmatprep.subr.bf16.mxu0 %v3723
    %5472 = vmatpush1.bf16.msra.mxu0 %v3722
    %5473 = vmatprep.subr.bf16.mxu0 %v3705
    %5474 = vmatpush1.bf16.msra.mxu0 %v3704
    %5475 = vmatprep.subr.bf16.mxu0 %v3687
    %5476 = vmatpush1.bf16.msra.mxu0 %v3686
    %5477 = vmatprep.subr.bf16.mxu0 %v3669
    %5478 = vmatpush1.bf16.msra.mxu0 %v3668
    %5479 = vmatprep.subr.bf16.mxu0 %v3651
    %5480 = vmatpush1.bf16.msra.mxu0 %v3650
    %5481 = vmatprep.subr.bf16.mxu0 %v3633
    %5482 = vmatpush1.bf16.msra.mxu0 %v3632
    %5483 = vmatprep.subr.bf16.mxu0 %v3615
    %5484 = vmatpush1.bf16.msra.mxu0 %v3614
    %5485 = vmatprep.subr.bf16.mxu0 %v3885
    %5486 = vmatpush2.bf16.msra.mxu0 %v3884
    %5487 = vmatprep.subr.bf16.mxu0 %v3867
    %5488 = vmatpush2.bf16.msra.mxu0 %v3866
    %5489 = vmatprep.subr.bf16.mxu0 %v3849
    %5490 = vmatpush2.bf16.msra.mxu0 %v3848
    %5491 = vmatprep.subr.bf16.mxu0 %v3831
    %5492 = vmatpush2.bf16.msra.mxu0 %v3830
    %5493 = vmatprep.subr.bf16.mxu0 %v3813
    %5494 = vmatpush2.bf16.msra.mxu0 %v3812
    %5495 = vmatprep.subr.bf16.mxu0 %v3795
    %5496 = vmatpush2.bf16.msra.mxu0 %v3794
    %5497 = vmatprep.subr.bf16.mxu0 %v3777
    %5498 = vmatpush2.bf16.msra.mxu0 %v3776
    %5499 = vmatprep.subr.bf16.mxu0 %v3759
    %5500 = vmatpush2.bf16.msra.mxu0 %v3758
    %5501 = vmatprep.mubr.bf16.mxu0 %v55
    %5502 = vmatmul.mubr.bf16.gmra.mxu0 %v54
    %v5503 = vpop.f32.mrf.mxu0
    %v5504 = vadd.f32 %v941, %v5503
    %v5505 = vpop.f32.mrf.mxu0
    %v5506 = vadd.f32 %v945, %v5505
    %v5507 = vpop.f32.mrf.mxu0
    %v5508 = vadd.f32 %v941, %v5507
    %v5509 = vpop.f32.mrf.mxu0
    %v5510 = vadd.f32 %v945, %v5509
    %5511 = vdwg.mxu0
    %5512 = vmatprep.subr.bf16.mxu0 %v4029
    %5513 = vmatpush1.bf16.msra.mxu0 %v4028
    %5514 = vmatprep.subr.bf16.mxu0 %v4011
    %5515 = vmatpush1.bf16.msra.mxu0 %v4010
    %5516 = vmatprep.subr.bf16.mxu0 %v3993
    %5517 = vmatpush1.bf16.msra.mxu0 %v3992
    %5518 = vmatprep.subr.bf16.mxu0 %v3975
    %5519 = vmatpush1.bf16.msra.mxu0 %v3974
    %5520 = vmatprep.subr.bf16.mxu0 %v3957
    %5521 = vmatpush1.bf16.msra.mxu0 %v3956
    %5522 = vmatprep.subr.bf16.mxu0 %v3939
    %5523 = vmatpush1.bf16.msra.mxu0 %v3938
    %5524 = vmatprep.subr.bf16.mxu0 %v3921
    %5525 = vmatpush1.bf16.msra.mxu0 %v3920
    %5526 = vmatprep.subr.bf16.mxu0 %v3903
    %5527 = vmatpush1.bf16.msra.mxu0 %v3902
    %5528 = vmatprep.subr.bf16.mxu0 %v4173
    %5529 = vmatpush2.bf16.msra.mxu0 %v4172
    %5530 = vmatprep.subr.bf16.mxu0 %v4155
    %5531 = vmatpush2.bf16.msra.mxu0 %v4154
    %5532 = vmatprep.subr.bf16.mxu0 %v4137
    %5533 = vmatpush2.bf16.msra.mxu0 %v4136
    %5534 = vmatprep.subr.bf16.mxu0 %v4119
    %5535 = vmatpush2.bf16.msra.mxu0 %v4118
    %5536 = vmatprep.subr.bf16.mxu0 %v4101
    %5537 = vmatpush2.bf16.msra.mxu0 %v4100
    %5538 = vmatprep.subr.bf16.mxu0 %v4083
    %5539 = vmatpush2.bf16.msra.mxu0 %v4082
    %5540 = vmatprep.subr.bf16.mxu0 %v4065
    %5541 = vmatpush2.bf16.msra.mxu0 %v4064
    %5542 = vmatprep.subr.bf16.mxu0 %v4047
    %5543 = vmatpush2.bf16.msra.mxu0 %v4046
    %5544 = vmatprep.mubr.bf16.mxu0 %v57
    %5545 = vmatmul.mubr.bf16.gmra.mxu0 %v56
    %v5546 = vpop.f32.mrf.mxu0
    %v5547 = vadd.f32 %v5504, %v5546
    %v5548 = vpop.f32.mrf.mxu0
    %v5549 = vadd.f32 %v5506, %v5548
    %v5550 = vpop.f32.mrf.mxu0
    %v5551 = vadd.f32 %v5508, %v5550
    %v5552 = vpop.f32.mrf.mxu0
    %v5553 = vadd.f32 %v5510, %v5552
    %5554 = vdwg.mxu0
    %5555 = vmatprep.subr.bf16.mxu0 %v4317
    %5556 = vmatpush1.bf16.msra.mxu0 %v4316
    %5557 = vmatprep.subr.bf16.mxu0 %v4299
    %5558 = vmatpush1.bf16.msra.mxu0 %v4298
    %5559 = vmatprep.subr.bf16.mxu0 %v4281
    %5560 = vmatpush1.bf16.msra.mxu0 %v4280
    %5561 = vmatprep.subr.bf16.mxu0 %v4263
    %5562 = vmatpush1.bf16.msra.mxu0 %v4262
    %5563 = vmatprep.subr.bf16.mxu0 %v4245
    %5564 = vmatpush1.bf16.msra.mxu0 %v4244
    %5565 = vmatprep.subr.bf16.mxu0 %v4227
    %5566 = vmatpush1.bf16.msra.mxu0 %v4226
    %5567 = vmatprep.subr.bf16.mxu0 %v4209
    %5568 = vmatpush1.bf16.msra.mxu0 %v4208
    %5569 = vmatprep.subr.bf16.mxu0 %v4191
    %5570 = vmatpush1.bf16.msra.mxu0 %v4190
    %5571 = vmatprep.subr.bf16.mxu0 %v4461
    %5572 = vmatpush2.bf16.msra.mxu0 %v4460
    %5573 = vmatprep.subr.bf16.mxu0 %v4443
    %5574 = vmatpush2.bf16.msra.mxu0 %v4442
    %5575 = vmatprep.subr.bf16.mxu0 %v4425
    %5576 = vmatpush2.bf16.msra.mxu0 %v4424
    %5577 = vmatprep.subr.bf16.mxu0 %v4407
    %5578 = vmatpush2.bf16.msra.mxu0 %v4406
    %5579 = vmatprep.subr.bf16.mxu0 %v4389
    %5580 = vmatpush2.bf16.msra.mxu0 %v4388
    %5581 = vmatprep.subr.bf16.mxu0 %v4371
    %5582 = vmatpush2.bf16.msra.mxu0 %v4370
    %5583 = vmatprep.subr.bf16.mxu0 %v4353
    %5584 = vmatpush2.bf16.msra.mxu0 %v4352
    %5585 = vmatprep.subr.bf16.mxu0 %v4335
    %5586 = vmatpush2.bf16.msra.mxu0 %v4334
    %5587 = vmatprep.mubr.bf16.mxu0 %v59
    %5588 = vmatmul.mubr.bf16.gmra.mxu0 %v58
    %v5589 = vpop.f32.mrf.mxu0
    %v5590 = vadd.f32 %v5547, %v5589
    %v5591 = vpop.f32.mrf.mxu0
    %v5592 = vadd.f32 %v5549, %v5591
    %v5593 = vpop.f32.mrf.mxu0
    %v5594 = vadd.f32 %v5551, %v5593
    %v5595 = vpop.f32.mrf.mxu0
    %v5596 = vadd.f32 %v5553, %v5595
    %5597 = vdwg.mxu0
    %5598 = vmatprep.subr.bf16.mxu0 %v3743
    %5599 = vmatpush1.bf16.msra.mxu0 %v3742
    %5600 = vmatprep.subr.bf16.mxu0 %v3725
    %5601 = vmatpush1.bf16.msra.mxu0 %v3724
    %5602 = vmatprep.subr.bf16.mxu0 %v3707
    %5603 = vmatpush1.bf16.msra.mxu0 %v3706
    %5604 = vmatprep.subr.bf16.mxu0 %v3689
    %5605 = vmatpush1.bf16.msra.mxu0 %v3688
    %5606 = vmatprep.subr.bf16.mxu0 %v3671
    %5607 = vmatpush1.bf16.msra.mxu0 %v3670
    %5608 = vmatprep.subr.bf16.mxu0 %v3653
    %5609 = vmatpush1.bf16.msra.mxu0 %v3652
    %5610 = vmatprep.subr.bf16.mxu0 %v3635
    %5611 = vmatpush1.bf16.msra.mxu0 %v3634
    %5612 = vmatprep.subr.bf16.mxu0 %v3617
    %5613 = vmatpush1.bf16.msra.mxu0 %v3616
    %5614 = vmatprep.subr.bf16.mxu0 %v3887
    %5615 = vmatpush2.bf16.msra.mxu0 %v3886
    %5616 = vmatprep.subr.bf16.mxu0 %v3869
    %5617 = vmatpush2.bf16.msra.mxu0 %v3868
    %5618 = vmatprep.subr.bf16.mxu0 %v3851
    %5619 = vmatpush2.bf16.msra.mxu0 %v3850
    %5620 = vmatprep.subr.bf16.mxu0 %v3833
    %5621 = vmatpush2.bf16.msra.mxu0 %v3832
    %5622 = vmatprep.subr.bf16.mxu0 %v3815
    %5623 = vmatpush2.bf16.msra.mxu0 %v3814
    %5624 = vmatprep.subr.bf16.mxu0 %v3797
    %5625 = vmatpush2.bf16.msra.mxu0 %v3796
    %5626 = vmatprep.subr.bf16.mxu0 %v3779
    %5627 = vmatpush2.bf16.msra.mxu0 %v3778
    %5628 = vmatprep.subr.bf16.mxu0 %v3761
    %5629 = vmatpush2.bf16.msra.mxu0 %v3760
    %5630 = vmatprep.mubr.bf16.mxu0 %v55
    %5631 = vmatmul.mubr.bf16.gmra.mxu0 %v54
    %v5632 = vpop.f32.mrf.mxu0
    %v5633 = vadd.f32 %v949, %v5632
    %v5634 = vpop.f32.mrf.mxu0
    %v5635 = vadd.f32 %v953, %v5634
    %v5636 = vpop.f32.mrf.mxu0
    %v5637 = vadd.f32 %v949, %v5636
    %v5638 = vpop.f32.mrf.mxu0
    %v5639 = vadd.f32 %v953, %v5638
    %5640 = vdwg.mxu0
    %5641 = vmatprep.subr.bf16.mxu0 %v4031
    %5642 = vmatpush1.bf16.msra.mxu0 %v4030
    %5643 = vmatprep.subr.bf16.mxu0 %v4013
    %5644 = vmatpush1.bf16.msra.mxu0 %v4012
    %5645 = vmatprep.subr.bf16.mxu0 %v3995
    %5646 = vmatpush1.bf16.msra.mxu0 %v3994
    %5647 = vmatprep.subr.bf16.mxu0 %v3977
    %5648 = vmatpush1.bf16.msra.mxu0 %v3976
    %5649 = vmatprep.subr.bf16.mxu0 %v3959
    %5650 = vmatpush1.bf16.msra.mxu0 %v3958
    %5651 = vmatprep.subr.bf16.mxu0 %v3941
    %5652 = vmatpush1.bf16.msra.mxu0 %v3940
    %5653 = vmatprep.subr.bf16.mxu0 %v3923
    %5654 = vmatpush1.bf16.msra.mxu0 %v3922
    %5655 = vmatprep.subr.bf16.mxu0 %v3905
    %5656 = vmatpush1.bf16.msra.mxu0 %v3904
    %5657 = vmatprep.subr.bf16.mxu0 %v4175
    %5658 = vmatpush2.bf16.msra.mxu0 %v4174
    %5659 = vmatprep.subr.bf16.mxu0 %v4157
    %5660 = vmatpush2.bf16.msra.mxu0 %v4156
    %5661 = vmatprep.subr.bf16.mxu0 %v4139
    %5662 = vmatpush2.bf16.msra.mxu0 %v4138
    %5663 = vmatprep.subr.bf16.mxu0 %v4121
    %5664 = vmatpush2.bf16.msra.mxu0 %v4120
    %5665 = vmatprep.subr.bf16.mxu0 %v4103
    %5666 = vmatpush2.bf16.msra.mxu0 %v4102
    %5667 = vmatprep.subr.bf16.mxu0 %v4085
    %5668 = vmatpush2.bf16.msra.mxu0 %v4084
    %5669 = vmatprep.subr.bf16.mxu0 %v4067
    %5670 = vmatpush2.bf16.msra.mxu0 %v4066
    %5671 = vmatprep.subr.bf16.mxu0 %v4049
    %5672 = vmatpush2.bf16.msra.mxu0 %v4048
    %5673 = vmatprep.mubr.bf16.mxu0 %v57
    %5674 = vmatmul.mubr.bf16.gmra.mxu0 %v56
    %v5675 = vpop.f32.mrf.mxu0
    %v5676 = vadd.f32 %v5633, %v5675
    %v5677 = vpop.f32.mrf.mxu0
    %v5678 = vadd.f32 %v5635, %v5677
    %v5679 = vpop.f32.mrf.mxu0
    %v5680 = vadd.f32 %v5637, %v5679
    %v5681 = vpop.f32.mrf.mxu0
    %v5682 = vadd.f32 %v5639, %v5681
    %5683 = vdwg.mxu0
    %5684 = vmatprep.subr.bf16.mxu0 %v4319
    %5685 = vmatpush1.bf16.msra.mxu0 %v4318
    %5686 = vmatprep.subr.bf16.mxu0 %v4301
    %5687 = vmatpush1.bf16.msra.mxu0 %v4300
    %5688 = vmatprep.subr.bf16.mxu0 %v4283
    %5689 = vmatpush1.bf16.msra.mxu0 %v4282
    %5690 = vmatprep.subr.bf16.mxu0 %v4265
    %5691 = vmatpush1.bf16.msra.mxu0 %v4264
    %5692 = vmatprep.subr.bf16.mxu0 %v4247
    %5693 = vmatpush1.bf16.msra.mxu0 %v4246
    %5694 = vmatprep.subr.bf16.mxu0 %v4229
    %5695 = vmatpush1.bf16.msra.mxu0 %v4228
    %5696 = vmatprep.subr.bf16.mxu0 %v4211
    %5697 = vmatpush1.bf16.msra.mxu0 %v4210
    %5698 = vmatprep.subr.bf16.mxu0 %v4193
    %5699 = vmatpush1.bf16.msra.mxu0 %v4192
    %5700 = vmatprep.subr.bf16.mxu0 %v4463
    %5701 = vmatpush2.bf16.msra.mxu0 %v4462
    %5702 = vmatprep.subr.bf16.mxu0 %v4445
    %5703 = vmatpush2.bf16.msra.mxu0 %v4444
    %5704 = vmatprep.subr.bf16.mxu0 %v4427
    %5705 = vmatpush2.bf16.msra.mxu0 %v4426
    %5706 = vmatprep.subr.bf16.mxu0 %v4409
    %5707 = vmatpush2.bf16.msra.mxu0 %v4408
    %5708 = vmatprep.subr.bf16.mxu0 %v4391
    %5709 = vmatpush2.bf16.msra.mxu0 %v4390
    %5710 = vmatprep.subr.bf16.mxu0 %v4373
    %5711 = vmatpush2.bf16.msra.mxu0 %v4372
    %5712 = vmatprep.subr.bf16.mxu0 %v4355
    %5713 = vmatpush2.bf16.msra.mxu0 %v4354
    %5714 = vmatprep.subr.bf16.mxu0 %v4337
    %5715 = vmatpush2.bf16.msra.mxu0 %v4336
    %5716 = vmatprep.mubr.bf16.mxu0 %v59
    %5717 = vmatmul.mubr.bf16.gmra.mxu0 %v58
    %v5718 = vpop.f32.mrf.mxu0
    %v5719 = vadd.f32 %v5676, %v5718
    %v5720 = vpop.f32.mrf.mxu0
    %v5721 = vadd.f32 %v5678, %v5720
    %v5722 = vpop.f32.mrf.mxu0
    %v5723 = vadd.f32 %v5680, %v5722
    %v5724 = vpop.f32.mrf.mxu0
    %v5725 = vadd.f32 %v5682, %v5724
    %5726 = vdwg.mxu0
    %5727 = vmatprep.subr.bf16.mxu0 %v3745
    %5728 = vmatpush1.bf16.msra.mxu0 %v3744
    %5729 = vmatprep.subr.bf16.mxu0 %v3727
    %5730 = vmatpush1.bf16.msra.mxu0 %v3726
    %5731 = vmatprep.subr.bf16.mxu0 %v3709
    %5732 = vmatpush1.bf16.msra.mxu0 %v3708
    %5733 = vmatprep.subr.bf16.mxu0 %v3691
    %5734 = vmatpush1.bf16.msra.mxu0 %v3690
    %5735 = vmatprep.subr.bf16.mxu0 %v3673
    %5736 = vmatpush1.bf16.msra.mxu0 %v3672
    %5737 = vmatprep.subr.bf16.mxu0 %v3655
    %5738 = vmatpush1.bf16.msra.mxu0 %v3654
    %5739 = vmatprep.subr.bf16.mxu0 %v3637
    %5740 = vmatpush1.bf16.msra.mxu0 %v3636
    %5741 = vmatprep.subr.bf16.mxu0 %v3619
    %5742 = vmatpush1.bf16.msra.mxu0 %v3618
    %5743 = vmatprep.subr.bf16.mxu0 %v3889
    %5744 = vmatpush2.bf16.msra.mxu0 %v3888
    %5745 = vmatprep.subr.bf16.mxu0 %v3871
    %5746 = vmatpush2.bf16.msra.mxu0 %v3870
    %5747 = vmatprep.subr.bf16.mxu0 %v3853
    %5748 = vmatpush2.bf16.msra.mxu0 %v3852
    %5749 = vmatprep.subr.bf16.mxu0 %v3835
    %5750 = vmatpush2.bf16.msra.mxu0 %v3834
    %5751 = vmatprep.subr.bf16.mxu0 %v3817
    %5752 = vmatpush2.bf16.msra.mxu0 %v3816
    %5753 = vmatprep.subr.bf16.mxu0 %v3799
    %5754 = vmatpush2.bf16.msra.mxu0 %v3798
    %5755 = vmatprep.subr.bf16.mxu0 %v3781
    %5756 = vmatpush2.bf16.msra.mxu0 %v3780
    %5757 = vmatprep.subr.bf16.mxu0 %v3763
    %5758 = vmatpush2.bf16.msra.mxu0 %v3762
    %5759 = vmatprep.mubr.bf16.mxu0 %v55
    %5760 = vmatmul.mubr.bf16.gmra.mxu0 %v54
    %v5761 = vpop.f32.mrf.mxu0
    %v5762 = vadd.f32 %v957, %v5761
    %v5763 = vpop.f32.mrf.mxu0
    %v5764 = vadd.f32 %v961, %v5763
    %v5765 = vpop.f32.mrf.mxu0
    %v5766 = vadd.f32 %v957, %v5765
    %v5767 = vpop.f32.mrf.mxu0
    %v5768 = vadd.f32 %v961, %v5767
    %5769 = vdwg.mxu0
    %5770 = vmatprep.subr.bf16.mxu0 %v4033
    %5771 = vmatpush1.bf16.msra.mxu0 %v4032
    %5772 = vmatprep.subr.bf16.mxu0 %v4015
    %5773 = vmatpush1.bf16.msra.mxu0 %v4014
    %5774 = vmatprep.subr.bf16.mxu0 %v3997
    %5775 = vmatpush1.bf16.msra.mxu0 %v3996
    %5776 = vmatprep.subr.bf16.mxu0 %v3979
    %5777 = vmatpush1.bf16.msra.mxu0 %v3978
    %5778 = vmatprep.subr.bf16.mxu0 %v3961
    %5779 = vmatpush1.bf16.msra.mxu0 %v3960
    %5780 = vmatprep.subr.bf16.mxu0 %v3943
    %5781 = vmatpush1.bf16.msra.mxu0 %v3942
    %5782 = vmatprep.subr.bf16.mxu0 %v3925
    %5783 = vmatpush1.bf16.msra.mxu0 %v3924
    %5784 = vmatprep.subr.bf16.mxu0 %v3907
    %5785 = vmatpush1.bf16.msra.mxu0 %v3906
    %5786 = vmatprep.subr.bf16.mxu0 %v4177
    %5787 = vmatpush2.bf16.msra.mxu0 %v4176
    %5788 = vmatprep.subr.bf16.mxu0 %v4159
    %5789 = vmatpush2.bf16.msra.mxu0 %v4158
    %5790 = vmatprep.subr.bf16.mxu0 %v4141
    %5791 = vmatpush2.bf16.msra.mxu0 %v4140
    %5792 = vmatprep.subr.bf16.mxu0 %v4123
    %5793 = vmatpush2.bf16.msra.mxu0 %v4122
    %5794 = vmatprep.subr.bf16.mxu0 %v4105
    %5795 = vmatpush2.bf16.msra.mxu0 %v4104
    %5796 = vmatprep.subr.bf16.mxu0 %v4087
    %5797 = vmatpush2.bf16.msra.mxu0 %v4086
    %5798 = vmatprep.subr.bf16.mxu0 %v4069
    %5799 = vmatpush2.bf16.msra.mxu0 %v4068
    %5800 = vmatprep.subr.bf16.mxu0 %v4051
    %5801 = vmatpush2.bf16.msra.mxu0 %v4050
    %5802 = vmatprep.mubr.bf16.mxu0 %v57
    %5803 = vmatmul.mubr.bf16.gmra.mxu0 %v56
    %v5804 = vpop.f32.mrf.mxu0
    %v5805 = vadd.f32 %v5762, %v5804
    %v5806 = vpop.f32.mrf.mxu0
    %v5807 = vadd.f32 %v5764, %v5806
    %v5808 = vpop.f32.mrf.mxu0
    %v5809 = vadd.f32 %v5766, %v5808
    %v5810 = vpop.f32.mrf.mxu0
    %v5811 = vadd.f32 %v5768, %v5810
    %5812 = vdwg.mxu0
    %5813 = vmatprep.subr.bf16.mxu0 %v4321
    %5814 = vmatpush1.bf16.msra.mxu0 %v4320
    %5815 = vmatprep.subr.bf16.mxu0 %v4303
    %5816 = vmatpush1.bf16.msra.mxu0 %v4302
    %5817 = vmatprep.subr.bf16.mxu0 %v4285
    %5818 = vmatpush1.bf16.msra.mxu0 %v4284
    %5819 = vmatprep.subr.bf16.mxu0 %v4267
    %5820 = vmatpush1.bf16.msra.mxu0 %v4266
    %5821 = vmatprep.subr.bf16.mxu0 %v4249
    %5822 = vmatpush1.bf16.msra.mxu0 %v4248
    %5823 = vmatprep.subr.bf16.mxu0 %v4231
    %5824 = vmatpush1.bf16.msra.mxu0 %v4230
    %5825 = vmatprep.subr.bf16.mxu0 %v4213
    %5826 = vmatpush1.bf16.msra.mxu0 %v4212
    %5827 = vmatprep.subr.bf16.mxu0 %v4195
    %5828 = vmatpush1.bf16.msra.mxu0 %v4194
    %5829 = vmatprep.subr.bf16.mxu0 %v4465
    %5830 = vmatpush2.bf16.msra.mxu0 %v4464
    %5831 = vmatprep.subr.bf16.mxu0 %v4447
    %5832 = vmatpush2.bf16.msra.mxu0 %v4446
    %5833 = vmatprep.subr.bf16.mxu0 %v4429
    %5834 = vmatpush2.bf16.msra.mxu0 %v4428
    %5835 = vmatprep.subr.bf16.mxu0 %v4411
    %5836 = vmatpush2.bf16.msra.mxu0 %v4410
    %5837 = vmatprep.subr.bf16.mxu0 %v4393
    %5838 = vmatpush2.bf16.msra.mxu0 %v4392
    %5839 = vmatprep.subr.bf16.mxu0 %v4375
    %5840 = vmatpush2.bf16.msra.mxu0 %v4374
    %5841 = vmatprep.subr.bf16.mxu0 %v4357
    %5842 = vmatpush2.bf16.msra.mxu0 %v4356
    %5843 = vmatprep.subr.bf16.mxu0 %v4339
    %5844 = vmatpush2.bf16.msra.mxu0 %v4338
    %5845 = vmatprep.mubr.bf16.mxu0 %v59
    %5846 = vmatmul.mubr.bf16.gmra.mxu0 %v58
    %v5847 = vpop.f32.mrf.mxu0
    %v5848 = vadd.f32 %v5805, %v5847
    %v5849 = vpop.f32.mrf.mxu0
    %v5850 = vadd.f32 %v5807, %v5849
    %v5851 = vpop.f32.mrf.mxu0
    %v5852 = vadd.f32 %v5809, %v5851
    %v5853 = vpop.f32.mrf.mxu0
    %v5854 = vadd.f32 %v5811, %v5853
    %5855 = vdwg.mxu0
    %5856 = vmatprep.subr.bf16.mxu0 %v3747
    %5857 = vmatpush1.bf16.msra.mxu0 %v3746
    %5858 = vmatprep.subr.bf16.mxu0 %v3729
    %5859 = vmatpush1.bf16.msra.mxu0 %v3728
    %5860 = vmatprep.subr.bf16.mxu0 %v3711
    %5861 = vmatpush1.bf16.msra.mxu0 %v3710
    %5862 = vmatprep.subr.bf16.mxu0 %v3693
    %5863 = vmatpush1.bf16.msra.mxu0 %v3692
    %5864 = vmatprep.subr.bf16.mxu0 %v3675
    %5865 = vmatpush1.bf16.msra.mxu0 %v3674
    %5866 = vmatprep.subr.bf16.mxu0 %v3657
    %5867 = vmatpush1.bf16.msra.mxu0 %v3656
    %5868 = vmatprep.subr.bf16.mxu0 %v3639
    %5869 = vmatpush1.bf16.msra.mxu0 %v3638
    %5870 = vmatprep.subr.bf16.mxu0 %v3621
    %5871 = vmatpush1.bf16.msra.mxu0 %v3620
    %5872 = vmatprep.subr.bf16.mxu0 %v3891
    %5873 = vmatpush2.bf16.msra.mxu0 %v3890
    %5874 = vmatprep.subr.bf16.mxu0 %v3873
    %5875 = vmatpush2.bf16.msra.mxu0 %v3872
    %5876 = vmatprep.subr.bf16.mxu0 %v3855
    %5877 = vmatpush2.bf16.msra.mxu0 %v3854
    %5878 = vmatprep.subr.bf16.mxu0 %v3837
    %5879 = vmatpush2.bf16.msra.mxu0 %v3836
    %5880 = vmatprep.subr.bf16.mxu0 %v3819
    %5881 = vmatpush2.bf16.msra.mxu0 %v3818
    %5882 = vmatprep.subr.bf16.mxu0 %v3801
    %5883 = vmatpush2.bf16.msra.mxu0 %v3800
    %5884 = vmatprep.subr.bf16.mxu0 %v3783
    %5885 = vmatpush2.bf16.msra.mxu0 %v3782
    %5886 = vmatprep.subr.bf16.mxu0 %v3765
    %5887 = vmatpush2.bf16.msra.mxu0 %v3764
    %5888 = vmatprep.mubr.bf16.mxu0 %v55
    %5889 = vmatmul.mubr.bf16.gmra.mxu0 %v54
    %v5890 = vpop.f32.mrf.mxu0
    %v5891 = vadd.f32 %v965, %v5890
    %v5892 = vpop.f32.mrf.mxu0
    %v5893 = vadd.f32 %v969, %v5892
    %v5894 = vpop.f32.mrf.mxu0
    %v5895 = vadd.f32 %v965, %v5894
    %v5896 = vpop.f32.mrf.mxu0
    %v5897 = vadd.f32 %v969, %v5896
    %5898 = vdwg.mxu0
    %5899 = vmatprep.subr.bf16.mxu0 %v4035
    %5900 = vmatpush1.bf16.msra.mxu0 %v4034
    %5901 = vmatprep.subr.bf16.mxu0 %v4017
    %5902 = vmatpush1.bf16.msra.mxu0 %v4016
    %5903 = vmatprep.subr.bf16.mxu0 %v3999
    %5904 = vmatpush1.bf16.msra.mxu0 %v3998
    %5905 = vmatprep.subr.bf16.mxu0 %v3981
    %5906 = vmatpush1.bf16.msra.mxu0 %v3980
    %5907 = vmatprep.subr.bf16.mxu0 %v3963
    %5908 = vmatpush1.bf16.msra.mxu0 %v3962
    %5909 = vmatprep.subr.bf16.mxu0 %v3945
    %5910 = vmatpush1.bf16.msra.mxu0 %v3944
    %5911 = vmatprep.subr.bf16.mxu0 %v3927
    %5912 = vmatpush1.bf16.msra.mxu0 %v3926
    %5913 = vmatprep.subr.bf16.mxu0 %v3909
    %5914 = vmatpush1.bf16.msra.mxu0 %v3908
    %5915 = vmatprep.subr.bf16.mxu0 %v4179
    %5916 = vmatpush2.bf16.msra.mxu0 %v4178
    %5917 = vmatprep.subr.bf16.mxu0 %v4161
    %5918 = vmatpush2.bf16.msra.mxu0 %v4160
    %5919 = vmatprep.subr.bf16.mxu0 %v4143
    %5920 = vmatpush2.bf16.msra.mxu0 %v4142
    %5921 = vmatprep.subr.bf16.mxu0 %v4125
    %5922 = vmatpush2.bf16.msra.mxu0 %v4124
    %5923 = vmatprep.subr.bf16.mxu0 %v4107
    %5924 = vmatpush2.bf16.msra.mxu0 %v4106
    %5925 = vmatprep.subr.bf16.mxu0 %v4089
    %5926 = vmatpush2.bf16.msra.mxu0 %v4088
    %5927 = vmatprep.subr.bf16.mxu0 %v4071
    %5928 = vmatpush2.bf16.msra.mxu0 %v4070
    %5929 = vmatprep.subr.bf16.mxu0 %v4053
    %5930 = vmatpush2.bf16.msra.mxu0 %v4052
    %5931 = vmatprep.mubr.bf16.mxu0 %v57
    %5932 = vmatmul.mubr.bf16.gmra.mxu0 %v56
    %v5933 = vpop.f32.mrf.mxu0
    %v5934 = vadd.f32 %v5891, %v5933
    %v5935 = vpop.f32.mrf.mxu0
    %v5936 = vadd.f32 %v5893, %v5935
    %v5937 = vpop.f32.mrf.mxu0
    %v5938 = vadd.f32 %v5895, %v5937
    %v5939 = vpop.f32.mrf.mxu0
    %v5940 = vadd.f32 %v5897, %v5939
    %5941 = vdwg.mxu0
    %5942 = vmatprep.subr.bf16.mxu0 %v4323
    %5943 = vmatpush1.bf16.msra.mxu0 %v4322
    %5944 = vmatprep.subr.bf16.mxu0 %v4305
    %5945 = vmatpush1.bf16.msra.mxu0 %v4304
    %5946 = vmatprep.subr.bf16.mxu0 %v4287
    %5947 = vmatpush1.bf16.msra.mxu0 %v4286
    %5948 = vmatprep.subr.bf16.mxu0 %v4269
    %5949 = vmatpush1.bf16.msra.mxu0 %v4268
    %5950 = vmatprep.subr.bf16.mxu0 %v4251
    %5951 = vmatpush1.bf16.msra.mxu0 %v4250
    %5952 = vmatprep.subr.bf16.mxu0 %v4233
    %5953 = vmatpush1.bf16.msra.mxu0 %v4232
    %5954 = vmatprep.subr.bf16.mxu0 %v4215
    %5955 = vmatpush1.bf16.msra.mxu0 %v4214
    %5956 = vmatprep.subr.bf16.mxu0 %v4197
    %5957 = vmatpush1.bf16.msra.mxu0 %v4196
    %5958 = vmatprep.subr.bf16.mxu0 %v4467
    %5959 = vmatpush2.bf16.msra.mxu0 %v4466
    %5960 = vmatprep.subr.bf16.mxu0 %v4449
    %5961 = vmatpush2.bf16.msra.mxu0 %v4448
    %5962 = vmatprep.subr.bf16.mxu0 %v4431
    %5963 = vmatpush2.bf16.msra.mxu0 %v4430
    %5964 = vmatprep.subr.bf16.mxu0 %v4413
    %5965 = vmatpush2.bf16.msra.mxu0 %v4412
    %5966 = vmatprep.subr.bf16.mxu0 %v4395
    %5967 = vmatpush2.bf16.msra.mxu0 %v4394
    %5968 = vmatprep.subr.bf16.mxu0 %v4377
    %5969 = vmatpush2.bf16.msra.mxu0 %v4376
    %5970 = vmatprep.subr.bf16.mxu0 %v4359
    %5971 = vmatpush2.bf16.msra.mxu0 %v4358
    %5972 = vmatprep.subr.bf16.mxu0 %v4341
    %5973 = vmatpush2.bf16.msra.mxu0 %v4340
    %5974 = vmatprep.mubr.bf16.mxu0 %v59
    %5975 = vmatmul.mubr.bf16.gmra.mxu0 %v58
    %v5976 = vpop.f32.mrf.mxu0
    %v5977 = vadd.f32 %v5934, %v5976
    %v5978 = vpop.f32.mrf.mxu0
    %v5979 = vadd.f32 %v5936, %v5978
    %v5980 = vpop.f32.mrf.mxu0
    %v5981 = vadd.f32 %v5938, %v5980
    %v5982 = vpop.f32.mrf.mxu0
    %v5983 = vadd.f32 %v5940, %v5982
    %5984 = vdwg.mxu0
    %5985 = vmatprep.subr.bf16.mxu0 %v3749
    %5986 = vmatpush1.bf16.msra.mxu0 %v3748
    %5987 = vmatprep.subr.bf16.mxu0 %v3731
    %5988 = vmatpush1.bf16.msra.mxu0 %v3730
    %5989 = vmatprep.subr.bf16.mxu0 %v3713
    %5990 = vmatpush1.bf16.msra.mxu0 %v3712
    %5991 = vmatprep.subr.bf16.mxu0 %v3695
    %5992 = vmatpush1.bf16.msra.mxu0 %v3694
    %5993 = vmatprep.subr.bf16.mxu0 %v3677
    %5994 = vmatpush1.bf16.msra.mxu0 %v3676
    %5995 = vmatprep.subr.bf16.mxu0 %v3659
    %5996 = vmatpush1.bf16.msra.mxu0 %v3658
    %5997 = vmatprep.subr.bf16.mxu0 %v3641
    %5998 = vmatpush1.bf16.msra.mxu0 %v3640
    %5999 = vmatprep.subr.bf16.mxu0 %v3623
    %6000 = vmatpush1.bf16.msra.mxu0 %v3622
    %6001 = vmatprep.subr.bf16.mxu0 %v3893
    %6002 = vmatpush2.bf16.msra.mxu0 %v3892
    %6003 = vmatprep.subr.bf16.mxu0 %v3875
    %6004 = vmatpush2.bf16.msra.mxu0 %v3874
    %6005 = vmatprep.subr.bf16.mxu0 %v3857
    %6006 = vmatpush2.bf16.msra.mxu0 %v3856
    %6007 = vmatprep.subr.bf16.mxu0 %v3839
    %6008 = vmatpush2.bf16.msra.mxu0 %v3838
    %6009 = vmatprep.subr.bf16.mxu0 %v3821
    %6010 = vmatpush2.bf16.msra.mxu0 %v3820
    %6011 = vmatprep.subr.bf16.mxu0 %v3803
    %6012 = vmatpush2.bf16.msra.mxu0 %v3802
    %6013 = vmatprep.subr.bf16.mxu0 %v3785
    %6014 = vmatpush2.bf16.msra.mxu0 %v3784
    %6015 = vmatprep.subr.bf16.mxu0 %v3767
    %6016 = vmatpush2.bf16.msra.mxu0 %v3766
    %6017 = vmatprep.mubr.bf16.mxu0 %v55
    %6018 = vmatmul.mubr.bf16.gmra.mxu0 %v54
    %v6019 = vpop.f32.mrf.mxu0
    %v6020 = vadd.f32 %v973, %v6019
    %v6021 = vpop.f32.mrf.mxu0
    %v6022 = vadd.f32 %v977, %v6021
    %v6023 = vpop.f32.mrf.mxu0
    %v6024 = vadd.f32 %v973, %v6023
    %v6025 = vpop.f32.mrf.mxu0
    %v6026 = vadd.f32 %v977, %v6025
    %6027 = vdwg.mxu0
    %6028 = vmatprep.subr.bf16.mxu0 %v4037
    %6029 = vmatpush1.bf16.msra.mxu0 %v4036
    %6030 = vmatprep.subr.bf16.mxu0 %v4019
    %6031 = vmatpush1.bf16.msra.mxu0 %v4018
    %6032 = vmatprep.subr.bf16.mxu0 %v4001
    %6033 = vmatpush1.bf16.msra.mxu0 %v4000
    %6034 = vmatprep.subr.bf16.mxu0 %v3983
    %6035 = vmatpush1.bf16.msra.mxu0 %v3982
    %6036 = vmatprep.subr.bf16.mxu0 %v3965
    %6037 = vmatpush1.bf16.msra.mxu0 %v3964
    %6038 = vmatprep.subr.bf16.mxu0 %v3947
    %6039 = vmatpush1.bf16.msra.mxu0 %v3946
    %6040 = vmatprep.subr.bf16.mxu0 %v3929
    %6041 = vmatpush1.bf16.msra.mxu0 %v3928
    %6042 = vmatprep.subr.bf16.mxu0 %v3911
    %6043 = vmatpush1.bf16.msra.mxu0 %v3910
    %6044 = vmatprep.subr.bf16.mxu0 %v4181
    %6045 = vmatpush2.bf16.msra.mxu0 %v4180
    %6046 = vmatprep.subr.bf16.mxu0 %v4163
    %6047 = vmatpush2.bf16.msra.mxu0 %v4162
    %6048 = vmatprep.subr.bf16.mxu0 %v4145
    %6049 = vmatpush2.bf16.msra.mxu0 %v4144
    %6050 = vmatprep.subr.bf16.mxu0 %v4127
    %6051 = vmatpush2.bf16.msra.mxu0 %v4126
    %6052 = vmatprep.subr.bf16.mxu0 %v4109
    %6053 = vmatpush2.bf16.msra.mxu0 %v4108
    %6054 = vmatprep.subr.bf16.mxu0 %v4091
    %6055 = vmatpush2.bf16.msra.mxu0 %v4090
    %6056 = vmatprep.subr.bf16.mxu0 %v4073
    %6057 = vmatpush2.bf16.msra.mxu0 %v4072
    %6058 = vmatprep.subr.bf16.mxu0 %v4055
    %6059 = vmatpush2.bf16.msra.mxu0 %v4054
    %6060 = vmatprep.mubr.bf16.mxu0 %v57
    %6061 = vmatmul.mubr.bf16.gmra.mxu0 %v56
    %v6062 = vpop.f32.mrf.mxu0
    %v6063 = vadd.f32 %v6020, %v6062
    %v6064 = vpop.f32.mrf.mxu0
    %v6065 = vadd.f32 %v6022, %v6064
    %v6066 = vpop.f32.mrf.mxu0
    %v6067 = vadd.f32 %v6024, %v6066
    %v6068 = vpop.f32.mrf.mxu0
    %v6069 = vadd.f32 %v6026, %v6068
    %6070 = vdwg.mxu0
    %6071 = vmatprep.subr.bf16.mxu0 %v4325
    %6072 = vmatpush1.bf16.msra.mxu0 %v4324
    %6073 = vmatprep.subr.bf16.mxu0 %v4307
    %6074 = vmatpush1.bf16.msra.mxu0 %v4306
    %6075 = vmatprep.subr.bf16.mxu0 %v4289
    %6076 = vmatpush1.bf16.msra.mxu0 %v4288
    %6077 = vmatprep.subr.bf16.mxu0 %v4271
    %6078 = vmatpush1.bf16.msra.mxu0 %v4270
    %6079 = vmatprep.subr.bf16.mxu0 %v4253
    %6080 = vmatpush1.bf16.msra.mxu0 %v4252
    %6081 = vmatprep.subr.bf16.mxu0 %v4235
    %6082 = vmatpush1.bf16.msra.mxu0 %v4234
    %6083 = vmatprep.subr.bf16.mxu0 %v4217
    %6084 = vmatpush1.bf16.msra.mxu0 %v4216
    %6085 = vmatprep.subr.bf16.mxu0 %v4199
    %6086 = vmatpush1.bf16.msra.mxu0 %v4198
    %6087 = vmatprep.subr.bf16.mxu0 %v4469
    %6088 = vmatpush2.bf16.msra.mxu0 %v4468
    %6089 = vmatprep.subr.bf16.mxu0 %v4451
    %6090 = vmatpush2.bf16.msra.mxu0 %v4450
    %6091 = vmatprep.subr.bf16.mxu0 %v4433
    %6092 = vmatpush2.bf16.msra.mxu0 %v4432
    %6093 = vmatprep.subr.bf16.mxu0 %v4415
    %6094 = vmatpush2.bf16.msra.mxu0 %v4414
    %6095 = vmatprep.subr.bf16.mxu0 %v4397
    %6096 = vmatpush2.bf16.msra.mxu0 %v4396
    %6097 = vmatprep.subr.bf16.mxu0 %v4379
    %6098 = vmatpush2.bf16.msra.mxu0 %v4378
    %6099 = vmatprep.subr.bf16.mxu0 %v4361
    %6100 = vmatpush2.bf16.msra.mxu0 %v4360
    %6101 = vmatprep.subr.bf16.mxu0 %v4343
    %6102 = vmatpush2.bf16.msra.mxu0 %v4342
    %6103 = vmatprep.mubr.bf16.mxu0 %v59
    %6104 = vmatmul.mubr.bf16.gmra.mxu0 %v58
    %v6105 = vpop.f32.mrf.mxu0
    %v6106 = vadd.f32 %v6063, %v6105
    %v6107 = vpop.f32.mrf.mxu0
    %v6108 = vadd.f32 %v6065, %v6107
    %v6109 = vpop.f32.mrf.mxu0
    %v6110 = vadd.f32 %v6067, %v6109
    %v6111 = vpop.f32.mrf.mxu0
    %v6112 = vadd.f32 %v6069, %v6111
    %6113 = vdwg.mxu0
    %6114 = vmatprep.subr.bf16.mxu0 %v3751
    %6115 = vmatpush1.bf16.msra.mxu0 %v3750
    %6116 = vmatprep.subr.bf16.mxu0 %v3733
    %6117 = vmatpush1.bf16.msra.mxu0 %v3732
    %6118 = vmatprep.subr.bf16.mxu0 %v3715
    %6119 = vmatpush1.bf16.msra.mxu0 %v3714
    %6120 = vmatprep.subr.bf16.mxu0 %v3697
    %6121 = vmatpush1.bf16.msra.mxu0 %v3696
    %6122 = vmatprep.subr.bf16.mxu0 %v3679
    %6123 = vmatpush1.bf16.msra.mxu0 %v3678
    %6124 = vmatprep.subr.bf16.mxu0 %v3661
    %6125 = vmatpush1.bf16.msra.mxu0 %v3660
    %6126 = vmatprep.subr.bf16.mxu0 %v3643
    %6127 = vmatpush1.bf16.msra.mxu0 %v3642
    %6128 = vmatprep.subr.bf16.mxu0 %v3625
    %6129 = vmatpush1.bf16.msra.mxu0 %v3624
    %6130 = vmatprep.subr.bf16.mxu0 %v3895
    %6131 = vmatpush2.bf16.msra.mxu0 %v3894
    %6132 = vmatprep.subr.bf16.mxu0 %v3877
    %6133 = vmatpush2.bf16.msra.mxu0 %v3876
    %6134 = vmatprep.subr.bf16.mxu0 %v3859
    %6135 = vmatpush2.bf16.msra.mxu0 %v3858
    %6136 = vmatprep.subr.bf16.mxu0 %v3841
    %6137 = vmatpush2.bf16.msra.mxu0 %v3840
    %6138 = vmatprep.subr.bf16.mxu0 %v3823
    %6139 = vmatpush2.bf16.msra.mxu0 %v3822
    %6140 = vmatprep.subr.bf16.mxu0 %v3805
    %6141 = vmatpush2.bf16.msra.mxu0 %v3804
    %6142 = vmatprep.subr.bf16.mxu0 %v3787
    %6143 = vmatpush2.bf16.msra.mxu0 %v3786
    %6144 = vmatprep.subr.bf16.mxu0 %v3769
    %6145 = vmatpush2.bf16.msra.mxu0 %v3768
    %6146 = vmatprep.mubr.bf16.mxu0 %v55
    %6147 = vmatmul.mubr.bf16.gmra.mxu0 %v54
    %v6148 = vpop.f32.mrf.mxu0
    %v6149 = vadd.f32 %v981, %v6148
    %v6150 = vpop.f32.mrf.mxu0
    %v6151 = vadd.f32 %v985, %v6150
    %v6152 = vpop.f32.mrf.mxu0
    %v6153 = vadd.f32 %v981, %v6152
    %v6154 = vpop.f32.mrf.mxu0
    %v6155 = vadd.f32 %v985, %v6154
    %6156 = vdwg.mxu0
    %6157 = vmatprep.subr.bf16.mxu0 %v4039
    %6158 = vmatpush1.bf16.msra.mxu0 %v4038
    %6159 = vmatprep.subr.bf16.mxu0 %v4021
    %6160 = vmatpush1.bf16.msra.mxu0 %v4020
    %6161 = vmatprep.subr.bf16.mxu0 %v4003
    %6162 = vmatpush1.bf16.msra.mxu0 %v4002
    %6163 = vmatprep.subr.bf16.mxu0 %v3985
    %6164 = vmatpush1.bf16.msra.mxu0 %v3984
    %6165 = vmatprep.subr.bf16.mxu0 %v3967
    %6166 = vmatpush1.bf16.msra.mxu0 %v3966
    %6167 = vmatprep.subr.bf16.mxu0 %v3949
    %6168 = vmatpush1.bf16.msra.mxu0 %v3948
    %6169 = vmatprep.subr.bf16.mxu0 %v3931
    %6170 = vmatpush1.bf16.msra.mxu0 %v3930
    %6171 = vmatprep.subr.bf16.mxu0 %v3913
    %6172 = vmatpush1.bf16.msra.mxu0 %v3912
    %6173 = vmatprep.subr.bf16.mxu0 %v4183
    %6174 = vmatpush2.bf16.msra.mxu0 %v4182
    %6175 = vmatprep.subr.bf16.mxu0 %v4165
    %6176 = vmatpush2.bf16.msra.mxu0 %v4164
    %6177 = vmatprep.subr.bf16.mxu0 %v4147
    %6178 = vmatpush2.bf16.msra.mxu0 %v4146
    %6179 = vmatprep.subr.bf16.mxu0 %v4129
    %6180 = vmatpush2.bf16.msra.mxu0 %v4128
    %6181 = vmatprep.subr.bf16.mxu0 %v4111
    %6182 = vmatpush2.bf16.msra.mxu0 %v4110
    %6183 = vmatprep.subr.bf16.mxu0 %v4093
    %6184 = vmatpush2.bf16.msra.mxu0 %v4092
    %6185 = vmatprep.subr.bf16.mxu0 %v4075
    %6186 = vmatpush2.bf16.msra.mxu0 %v4074
    %6187 = vmatprep.subr.bf16.mxu0 %v4057
    %6188 = vmatpush2.bf16.msra.mxu0 %v4056
    %6189 = vmatprep.mubr.bf16.mxu0 %v57
    %6190 = vmatmul.mubr.bf16.gmra.mxu0 %v56
    %v6191 = vpop.f32.mrf.mxu0
    %v6192 = vadd.f32 %v6149, %v6191
    %v6193 = vpop.f32.mrf.mxu0
    %v6194 = vadd.f32 %v6151, %v6193
    %v6195 = vpop.f32.mrf.mxu0
    %v6196 = vadd.f32 %v6153, %v6195
    %v6197 = vpop.f32.mrf.mxu0
    %v6198 = vadd.f32 %v6155, %v6197
    %6199 = vdwg.mxu0
    %6200 = vmatprep.subr.bf16.mxu0 %v4327
    %6201 = vmatpush1.bf16.msra.mxu0 %v4326
    %6202 = vmatprep.subr.bf16.mxu0 %v4309
    %6203 = vmatpush1.bf16.msra.mxu0 %v4308
    %6204 = vmatprep.subr.bf16.mxu0 %v4291
    %6205 = vmatpush1.bf16.msra.mxu0 %v4290
    %6206 = vmatprep.subr.bf16.mxu0 %v4273
    %6207 = vmatpush1.bf16.msra.mxu0 %v4272
    %6208 = vmatprep.subr.bf16.mxu0 %v4255
    %6209 = vmatpush1.bf16.msra.mxu0 %v4254
    %6210 = vmatprep.subr.bf16.mxu0 %v4237
    %6211 = vmatpush1.bf16.msra.mxu0 %v4236
    %6212 = vmatprep.subr.bf16.mxu0 %v4219
    %6213 = vmatpush1.bf16.msra.mxu0 %v4218
    %6214 = vmatprep.subr.bf16.mxu0 %v4201
    %6215 = vmatpush1.bf16.msra.mxu0 %v4200
    %6216 = vmatprep.subr.bf16.mxu0 %v4471
    %6217 = vmatpush2.bf16.msra.mxu0 %v4470
    %6218 = vmatprep.subr.bf16.mxu0 %v4453
    %6219 = vmatpush2.bf16.msra.mxu0 %v4452
    %6220 = vmatprep.subr.bf16.mxu0 %v4435
    %6221 = vmatpush2.bf16.msra.mxu0 %v4434
    %6222 = vmatprep.subr.bf16.mxu0 %v4417
    %6223 = vmatpush2.bf16.msra.mxu0 %v4416
    %6224 = vmatprep.subr.bf16.mxu0 %v4399
    %6225 = vmatpush2.bf16.msra.mxu0 %v4398
    %6226 = vmatprep.subr.bf16.mxu0 %v4381
    %6227 = vmatpush2.bf16.msra.mxu0 %v4380
    %6228 = vmatprep.subr.bf16.mxu0 %v4363
    %6229 = vmatpush2.bf16.msra.mxu0 %v4362
    %6230 = vmatprep.subr.bf16.mxu0 %v4345
    %6231 = vmatpush2.bf16.msra.mxu0 %v4344
    %6232 = vmatprep.mubr.bf16.mxu0 %v59
    %6233 = vmatmul.mubr.bf16.gmra.mxu0 %v58
    %v6234 = vpop.f32.mrf.mxu0
    %v6235 = vadd.f32 %v6192, %v6234
    %v6236 = vpop.f32.mrf.mxu0
    %v6237 = vadd.f32 %v6194, %v6236
    %v6238 = vpop.f32.mrf.mxu0
    %v6239 = vadd.f32 %v6196, %v6238
    %v6240 = vpop.f32.mrf.mxu0
    %v6241 = vadd.f32 %v6198, %v6240
    %6242 = vdwg.mxu0
    %6243 = vmatprep.subr.bf16.mxu0 %v3753
    %6244 = vmatpush1.bf16.msra.mxu0 %v3752
    %6245 = vmatprep.subr.bf16.mxu0 %v3735
    %6246 = vmatpush1.bf16.msra.mxu0 %v3734
    %6247 = vmatprep.subr.bf16.mxu0 %v3717
    %6248 = vmatpush1.bf16.msra.mxu0 %v3716
    %6249 = vmatprep.subr.bf16.mxu0 %v3699
    %6250 = vmatpush1.bf16.msra.mxu0 %v3698
    %6251 = vmatprep.subr.bf16.mxu0 %v3681
    %6252 = vmatpush1.bf16.msra.mxu0 %v3680
    %6253 = vmatprep.subr.bf16.mxu0 %v3663
    %6254 = vmatpush1.bf16.msra.mxu0 %v3662
    %6255 = vmatprep.subr.bf16.mxu0 %v3645
    %6256 = vmatpush1.bf16.msra.mxu0 %v3644
    %6257 = vmatprep.subr.bf16.mxu0 %v3627
    %6258 = vmatpush1.bf16.msra.mxu0 %v3626
    %6259 = vmatprep.subr.bf16.mxu0 %v3897
    %6260 = vmatpush2.bf16.msra.mxu0 %v3896
    %6261 = vmatprep.subr.bf16.mxu0 %v3879
    %6262 = vmatpush2.bf16.msra.mxu0 %v3878
    %6263 = vmatprep.subr.bf16.mxu0 %v3861
    %6264 = vmatpush2.bf16.msra.mxu0 %v3860
    %6265 = vmatprep.subr.bf16.mxu0 %v3843
    %6266 = vmatpush2.bf16.msra.mxu0 %v3842
    %6267 = vmatprep.subr.bf16.mxu0 %v3825
    %6268 = vmatpush2.bf16.msra.mxu0 %v3824
    %6269 = vmatprep.subr.bf16.mxu0 %v3807
    %6270 = vmatpush2.bf16.msra.mxu0 %v3806
    %6271 = vmatprep.subr.bf16.mxu0 %v3789
    %6272 = vmatpush2.bf16.msra.mxu0 %v3788
    %6273 = vmatprep.subr.bf16.mxu0 %v3771
    %6274 = vmatpush2.bf16.msra.mxu0 %v3770
    %6275 = vmatprep.mubr.bf16.mxu0 %v55
    %6276 = vmatmul.mubr.bf16.gmra.mxu0 %v54
    %v6277 = vpop.f32.mrf.mxu0
    %v6278 = vadd.f32 %v989, %v6277
    %v6279 = vpop.f32.mrf.mxu0
    %v6280 = vadd.f32 %v993, %v6279
    %v6281 = vpop.f32.mrf.mxu0
    %v6282 = vadd.f32 %v989, %v6281
    %v6283 = vpop.f32.mrf.mxu0
    %v6284 = vadd.f32 %v993, %v6283
    %6285 = vdwg.mxu0
    %6286 = vmatprep.subr.bf16.mxu0 %v4041
    %6287 = vmatpush1.bf16.msra.mxu0 %v4040
    %6288 = vmatprep.subr.bf16.mxu0 %v4023
    %6289 = vmatpush1.bf16.msra.mxu0 %v4022
    %6290 = vmatprep.subr.bf16.mxu0 %v4005
    %6291 = vmatpush1.bf16.msra.mxu0 %v4004
    %6292 = vmatprep.subr.bf16.mxu0 %v3987
    %6293 = vmatpush1.bf16.msra.mxu0 %v3986
    %6294 = vmatprep.subr.bf16.mxu0 %v3969
    %6295 = vmatpush1.bf16.msra.mxu0 %v3968
    %6296 = vmatprep.subr.bf16.mxu0 %v3951
    %6297 = vmatpush1.bf16.msra.mxu0 %v3950
    %6298 = vmatprep.subr.bf16.mxu0 %v3933
    %6299 = vmatpush1.bf16.msra.mxu0 %v3932
    %6300 = vmatprep.subr.bf16.mxu0 %v3915
    %6301 = vmatpush1.bf16.msra.mxu0 %v3914
    %6302 = vmatprep.subr.bf16.mxu0 %v4185
    %6303 = vmatpush2.bf16.msra.mxu0 %v4184
    %6304 = vmatprep.subr.bf16.mxu0 %v4167
    %6305 = vmatpush2.bf16.msra.mxu0 %v4166
    %6306 = vmatprep.subr.bf16.mxu0 %v4149
    %6307 = vmatpush2.bf16.msra.mxu0 %v4148
    %6308 = vmatprep.subr.bf16.mxu0 %v4131
    %6309 = vmatpush2.bf16.msra.mxu0 %v4130
    %6310 = vmatprep.subr.bf16.mxu0 %v4113
    %6311 = vmatpush2.bf16.msra.mxu0 %v4112
    %6312 = vmatprep.subr.bf16.mxu0 %v4095
    %6313 = vmatpush2.bf16.msra.mxu0 %v4094
    %6314 = vmatprep.subr.bf16.mxu0 %v4077
    %6315 = vmatpush2.bf16.msra.mxu0 %v4076
    %6316 = vmatprep.subr.bf16.mxu0 %v4059
    %6317 = vmatpush2.bf16.msra.mxu0 %v4058
    %6318 = vmatprep.mubr.bf16.mxu0 %v57
    %6319 = vmatmul.mubr.bf16.gmra.mxu0 %v56
    %v6320 = vpop.f32.mrf.mxu0
    %v6321 = vadd.f32 %v6278, %v6320
    %v6322 = vpop.f32.mrf.mxu0
    %v6323 = vadd.f32 %v6280, %v6322
    %v6324 = vpop.f32.mrf.mxu0
    %v6325 = vadd.f32 %v6282, %v6324
    %v6326 = vpop.f32.mrf.mxu0
    %v6327 = vadd.f32 %v6284, %v6326
    %6328 = vdwg.mxu0
    %6329 = vmatprep.subr.bf16.mxu0 %v4329
    %6330 = vmatpush1.bf16.msra.mxu0 %v4328
    %6331 = vmatprep.subr.bf16.mxu0 %v4311
    %6332 = vmatpush1.bf16.msra.mxu0 %v4310
    %6333 = vmatprep.subr.bf16.mxu0 %v4293
    %6334 = vmatpush1.bf16.msra.mxu0 %v4292
    %6335 = vmatprep.subr.bf16.mxu0 %v4275
    %6336 = vmatpush1.bf16.msra.mxu0 %v4274
    %6337 = vmatprep.subr.bf16.mxu0 %v4257
    %6338 = vmatpush1.bf16.msra.mxu0 %v4256
    %6339 = vmatprep.subr.bf16.mxu0 %v4239
    %6340 = vmatpush1.bf16.msra.mxu0 %v4238
    %6341 = vmatprep.subr.bf16.mxu0 %v4221
    %6342 = vmatpush1.bf16.msra.mxu0 %v4220
    %6343 = vmatprep.subr.bf16.mxu0 %v4203
    %6344 = vmatpush1.bf16.msra.mxu0 %v4202
    %6345 = vmatprep.subr.bf16.mxu0 %v4473
    %6346 = vmatpush2.bf16.msra.mxu0 %v4472
    %6347 = vmatprep.subr.bf16.mxu0 %v4455
    %6348 = vmatpush2.bf16.msra.mxu0 %v4454
    %6349 = vmatprep.subr.bf16.mxu0 %v4437
    %6350 = vmatpush2.bf16.msra.mxu0 %v4436
    %6351 = vmatprep.subr.bf16.mxu0 %v4419
    %6352 = vmatpush2.bf16.msra.mxu0 %v4418
    %6353 = vmatprep.subr.bf16.mxu0 %v4401
    %6354 = vmatpush2.bf16.msra.mxu0 %v4400
    %6355 = vmatprep.subr.bf16.mxu0 %v4383
    %6356 = vmatpush2.bf16.msra.mxu0 %v4382
    %6357 = vmatprep.subr.bf16.mxu0 %v4365
    %6358 = vmatpush2.bf16.msra.mxu0 %v4364
    %6359 = vmatprep.subr.bf16.mxu0 %v4347
    %6360 = vmatpush2.bf16.msra.mxu0 %v4346
    %6361 = vmatprep.mubr.bf16.mxu0 %v59
    %6362 = vmatmul.mubr.bf16.gmra.mxu0 %v58
    %v6363 = vpop.f32.mrf.mxu0
    %v6364 = vadd.f32 %v6321, %v6363
    %v6365 = vpop.f32.mrf.mxu0
    %v6366 = vadd.f32 %v6323, %v6365
    %v6367 = vpop.f32.mrf.mxu0
    %v6368 = vadd.f32 %v6325, %v6367
    %v6369 = vpop.f32.mrf.mxu0
    %v6370 = vadd.f32 %v6327, %v6369
    %6371 = vdwg.mxu0
    %6372 = vmatprep.subr.bf16.mxu0 %v3755
    %6373 = vmatpush1.bf16.msra.mxu0 %v3754
    %6374 = vmatprep.subr.bf16.mxu0 %v3737
    %6375 = vmatpush1.bf16.msra.mxu0 %v3736
    %6376 = vmatprep.subr.bf16.mxu0 %v3719
    %6377 = vmatpush1.bf16.msra.mxu0 %v3718
    %6378 = vmatprep.subr.bf16.mxu0 %v3701
    %6379 = vmatpush1.bf16.msra.mxu0 %v3700
    %6380 = vmatprep.subr.bf16.mxu0 %v3683
    %6381 = vmatpush1.bf16.msra.mxu0 %v3682
    %6382 = vmatprep.subr.bf16.mxu0 %v3665
    %6383 = vmatpush1.bf16.msra.mxu0 %v3664
    %6384 = vmatprep.subr.bf16.mxu0 %v3647
    %6385 = vmatpush1.bf16.msra.mxu0 %v3646
    %6386 = vmatprep.subr.bf16.mxu0 %v3629
    %6387 = vmatpush1.bf16.msra.mxu0 %v3628
    %6388 = vmatprep.subr.bf16.mxu0 %v3899
    %6389 = vmatpush2.bf16.msra.mxu0 %v3898
    %6390 = vmatprep.subr.bf16.mxu0 %v3881
    %6391 = vmatpush2.bf16.msra.mxu0 %v3880
    %6392 = vmatprep.subr.bf16.mxu0 %v3863
    %6393 = vmatpush2.bf16.msra.mxu0 %v3862
    %6394 = vmatprep.subr.bf16.mxu0 %v3845
    %6395 = vmatpush2.bf16.msra.mxu0 %v3844
    %6396 = vmatprep.subr.bf16.mxu0 %v3827
    %6397 = vmatpush2.bf16.msra.mxu0 %v3826
    %6398 = vmatprep.subr.bf16.mxu0 %v3809
    %6399 = vmatpush2.bf16.msra.mxu0 %v3808
    %6400 = vmatprep.subr.bf16.mxu0 %v3791
    %6401 = vmatpush2.bf16.msra.mxu0 %v3790
    %6402 = vmatprep.subr.bf16.mxu0 %v3773
    %6403 = vmatpush2.bf16.msra.mxu0 %v3772
    %6404 = vmatprep.mubr.bf16.mxu0 %v55
    %6405 = vmatmul.mubr.bf16.gmra.mxu0 %v54
    %v6406 = vpop.f32.mrf.mxu0
    %v6407 = vadd.f32 %v997, %v6406
    %v6408 = vpop.f32.mrf.mxu0
    %v6409 = vadd.f32 %v1001, %v6408
    %v6410 = vpop.f32.mrf.mxu0
    %v6411 = vadd.f32 %v997, %v6410
    %v6412 = vpop.f32.mrf.mxu0
    %v6413 = vadd.f32 %v1001, %v6412
    %6414 = vdwg.mxu0
    %6415 = vmatprep.subr.bf16.mxu0 %v4043
    %6416 = vmatpush1.bf16.msra.mxu0 %v4042
    %6417 = vmatprep.subr.bf16.mxu0 %v4025
    %6418 = vmatpush1.bf16.msra.mxu0 %v4024
    %6419 = vmatprep.subr.bf16.mxu0 %v4007
    %6420 = vmatpush1.bf16.msra.mxu0 %v4006
    %6421 = vmatprep.subr.bf16.mxu0 %v3989
    %6422 = vmatpush1.bf16.msra.mxu0 %v3988
    %6423 = vmatprep.subr.bf16.mxu0 %v3971
    %6424 = vmatpush1.bf16.msra.mxu0 %v3970
    %6425 = vmatprep.subr.bf16.mxu0 %v3953
    %6426 = vmatpush1.bf16.msra.mxu0 %v3952
    %6427 = vmatprep.subr.bf16.mxu0 %v3935
    %6428 = vmatpush1.bf16.msra.mxu0 %v3934
    %6429 = vmatprep.subr.bf16.mxu0 %v3917
    %6430 = vmatpush1.bf16.msra.mxu0 %v3916
    %6431 = vmatprep.subr.bf16.mxu0 %v4187
    %6432 = vmatpush2.bf16.msra.mxu0 %v4186
    %6433 = vmatprep.subr.bf16.mxu0 %v4169
    %6434 = vmatpush2.bf16.msra.mxu0 %v4168
    %6435 = vmatprep.subr.bf16.mxu0 %v4151
    %6436 = vmatpush2.bf16.msra.mxu0 %v4150
    %6437 = vmatprep.subr.bf16.mxu0 %v4133
    %6438 = vmatpush2.bf16.msra.mxu0 %v4132
    %6439 = vmatprep.subr.bf16.mxu0 %v4115
    %6440 = vmatpush2.bf16.msra.mxu0 %v4114
    %6441 = vmatprep.subr.bf16.mxu0 %v4097
    %6442 = vmatpush2.bf16.msra.mxu0 %v4096
    %6443 = vmatprep.subr.bf16.mxu0 %v4079
    %6444 = vmatpush2.bf16.msra.mxu0 %v4078
    %6445 = vmatprep.subr.bf16.mxu0 %v4061
    %6446 = vmatpush2.bf16.msra.mxu0 %v4060
    %6447 = vmatprep.mubr.bf16.mxu0 %v57
    %6448 = vmatmul.mubr.bf16.gmra.mxu0 %v56
    %v6449 = vpop.f32.mrf.mxu0
    %v6450 = vadd.f32 %v6407, %v6449
    %v6451 = vpop.f32.mrf.mxu0
    %v6452 = vadd.f32 %v6409, %v6451
    %v6453 = vpop.f32.mrf.mxu0
    %v6454 = vadd.f32 %v6411, %v6453
    %v6455 = vpop.f32.mrf.mxu0
    %v6456 = vadd.f32 %v6413, %v6455
    %6457 = vdwg.mxu0
    %6458 = vmatprep.subr.bf16.mxu0 %v4331
    %6459 = vmatpush1.bf16.msra.mxu0 %v4330
    %6460 = vmatprep.subr.bf16.mxu0 %v4313
    %6461 = vmatpush1.bf16.msra.mxu0 %v4312
    %6462 = vmatprep.subr.bf16.mxu0 %v4295
    %6463 = vmatpush1.bf16.msra.mxu0 %v4294
    %6464 = vmatprep.subr.bf16.mxu0 %v4277
    %6465 = vmatpush1.bf16.msra.mxu0 %v4276
    %6466 = vmatprep.subr.bf16.mxu0 %v4259
    %6467 = vmatpush1.bf16.msra.mxu0 %v4258
    %6468 = vmatprep.subr.bf16.mxu0 %v4241
    %6469 = vmatpush1.bf16.msra.mxu0 %v4240
    %6470 = vmatprep.subr.bf16.mxu0 %v4223
    %6471 = vmatpush1.bf16.msra.mxu0 %v4222
    %6472 = vmatprep.subr.bf16.mxu0 %v4205
    %6473 = vmatpush1.bf16.msra.mxu0 %v4204
    %6474 = vmatprep.subr.bf16.mxu0 %v4475
    %6475 = vmatpush2.bf16.msra.mxu0 %v4474
    %6476 = vmatprep.subr.bf16.mxu0 %v4457
    %6477 = vmatpush2.bf16.msra.mxu0 %v4456
    %6478 = vmatprep.subr.bf16.mxu0 %v4439
    %6479 = vmatpush2.bf16.msra.mxu0 %v4438
    %6480 = vmatprep.subr.bf16.mxu0 %v4421
    %6481 = vmatpush2.bf16.msra.mxu0 %v4420
    %6482 = vmatprep.subr.bf16.mxu0 %v4403
    %6483 = vmatpush2.bf16.msra.mxu0 %v4402
    %6484 = vmatprep.subr.bf16.mxu0 %v4385
    %6485 = vmatpush2.bf16.msra.mxu0 %v4384
    %6486 = vmatprep.subr.bf16.mxu0 %v4367
    %6487 = vmatpush2.bf16.msra.mxu0 %v4366
    %6488 = vmatprep.subr.bf16.mxu0 %v4349
    %6489 = vmatpush2.bf16.msra.mxu0 %v4348
    %6490 = vmatprep.mubr.bf16.mxu0 %v59
    %6491 = vmatmul.mubr.bf16.gmra.mxu0 %v58
    %v6492 = vpop.f32.mrf.mxu0
    %v6493 = vadd.f32 %v6450, %v6492
    %v6494 = vpop.f32.mrf.mxu0
    %v6495 = vadd.f32 %v6452, %v6494
    %v6496 = vpop.f32.mrf.mxu0
    %v6497 = vadd.f32 %v6454, %v6496
    %v6498 = vpop.f32.mrf.mxu0
    %v6499 = vadd.f32 %v6456, %v6498
    %6500 = vdwg.mxu0
    %v6501 = vpack.c.bf16 %v5465, %v5461
    %v6502 = vpack.c.bf16 %v5467, %v5463
    %v6503 = vpack.c.bf16 %v5594, %v5590
    %v6504 = vpack.c.bf16 %v5596, %v5592
    %v6505 = vpack.c.bf16 %v5723, %v5719
    %v6506 = vpack.c.bf16 %v5725, %v5721
    %v6507 = vpack.c.bf16 %v5852, %v5848
    %v6508 = vpack.c.bf16 %v5854, %v5850
    %v6509 = vpack.c.bf16 %v5981, %v5977
    %v6510 = vpack.c.bf16 %v5983, %v5979
    %v6511 = vpack.c.bf16 %v6110, %v6106
    %v6512 = vpack.c.bf16 %v6112, %v6108
    %v6513 = vpack.c.bf16 %v6239, %v6235
    %v6514 = vpack.c.bf16 %v6241, %v6237
    %v6515 = vpack.c.bf16 %v6368, %v6364
    %v6516 = vpack.c.bf16 %v6370, %v6366
    %v6517 = vpack.c.bf16 %v6497, %v6493
    %v6518 = vpack.c.bf16 %v6499, %v6495
    %v6537 = vunpack.c.l.b16 %v6501
    %v6538 = vunpack.c.l.b16 %v6502
    %v6539 = vunpack.c.l.b16 %v6503
    %v6540 = vunpack.c.l.b16 %v6504
    %v6541 = vunpack.c.l.b16 %v6505
    %v6542 = vunpack.c.l.b16 %v6506
    %v6543 = vunpack.c.l.b16 %v6507
    %v6544 = vunpack.c.l.b16 %v6508
    %v6545 = vunpack.c.l.b16 %v6509
    %v6546 = vunpack.c.l.b16 %v6510
    %v6547 = vunpack.c.l.b16 %v6511
    %v6548 = vunpack.c.l.b16 %v6512
    %v6549 = vunpack.c.l.b16 %v6513
    %v6550 = vunpack.c.l.b16 %v6514
    %v6551 = vunpack.c.l.b16 %v6515
    %v6552 = vunpack.c.l.b16 %v6516
    %v6553 = vunpack.c.l.b16 %v6517
    %v6554 = vunpack.c.l.b16 %v6518
    %v6555 = vunpack.c.h.b16 %v6501
    %v6556 = vunpack.c.h.b16 %v6502
    %v6557 = vunpack.c.h.b16 %v6503
    %v6558 = vunpack.c.h.b16 %v6504
    %v6559 = vunpack.c.h.b16 %v6505
    %v6560 = vunpack.c.h.b16 %v6506
    %v6561 = vunpack.c.h.b16 %v6507
    %v6562 = vunpack.c.h.b16 %v6508
    %v6563 = vunpack.c.h.b16 %v6509
    %v6564 = vunpack.c.h.b16 %v6510
    %v6565 = vunpack.c.h.b16 %v6511
    %v6566 = vunpack.c.h.b16 %v6512
    %v6567 = vunpack.c.h.b16 %v6513
    %v6568 = vunpack.c.h.b16 %v6514
    %v6569 = vunpack.c.h.b16 %v6515
    %v6570 = vunpack.c.h.b16 %v6516
    %v6571 = vunpack.c.h.b16 %v6517
    %v6572 = vunpack.c.h.b16 %v6518
    %v6573 = vpack.c.b16 %v6538, %v6537
    %v6574 = vpack.c.b16 %v6540, %v6539
    %v6575 = vpack.c.b16 %v6542, %v6541
    %v6576 = vpack.c.b16 %v6544, %v6543
    %v6577 = vpack.c.b16 %v6546, %v6545
    %v6578 = vpack.c.b16 %v6548, %v6547
    %v6579 = vpack.c.b16 %v6550, %v6549
    %v6580 = vpack.c.b16 %v6552, %v6551
    %v6581 = vpack.c.b16 %v6554, %v6553
    %v6582 = vpack.c.b16 %v6556, %v6555
    %v6583 = vpack.c.b16 %v6558, %v6557
    %v6584 = vpack.c.b16 %v6560, %v6559
    %v6585 = vpack.c.b16 %v6562, %v6561
    %v6586 = vpack.c.b16 %v6564, %v6563
    %v6587 = vpack.c.b16 %v6566, %v6565
    %v6588 = vpack.c.b16 %v6568, %v6567
    %v6589 = vpack.c.b16 %v6570, %v6569
    %v6590 = vpack.c.b16 %v6572, %v6571
    %6609 = vst [vmem:[%s3] sm:$0xff] %v6573
    %6610 = vst [vmem:[%s3 + $0x8] sm:$0xff] %v6574
    %6611 = vst [vmem:[%s3 + $0x10] sm:$0xff] %v6575
    %6612 = vst [vmem:[%s3 + $0x18] sm:$0xff] %v6576
    %6613 = vst [vmem:[%s3 + $0x20] sm:$0xff] %v6577
    %6614 = vst [vmem:[%s3 + $0x28] sm:$0xff] %v6578
    %6615 = vst [vmem:[%s3 + $0x30] sm:$0xff] %v6579
    %6616 = vst [vmem:[%s3 + $0x38] sm:$0xff] %v6580
    %6617 = vst [vmem:[%s3 + $0x40] sm:$0xff] %v6581
    %6618 = vst [vmem:[%s3 + $0x48] sm:$0xff] %v6582
    %6619 = vst [vmem:[%s3 + $0x50] sm:$0xff] %v6583
    %6620 = vst [vmem:[%s3 + $0x58] sm:$0xff] %v6584
    %6621 = vst [vmem:[%s3 + $0x60] sm:$0xff] %v6585
    %6622 = vst [vmem:[%s3 + $0x68] sm:$0xff] %v6586
    %6623 = vst [vmem:[%s3 + $0x70] sm:$0xff] %v6587
    %6624 = vst [vmem:[%s3 + $0x78] sm:$0xff] %v6588
    %6625 = vst [vmem:[%s3 + $0x80] sm:$0xff] %v6589
    %6626 = vst [vmem:[%s3 + $0x88] sm:$0xff] %v6590
    // Predicated region
    $region22: #{attention_forward.3} parent=1 // pred_check
      _
    $region23: #{attention_forward.3} parent=1 // pred_check_branch
      %6628 = sbr.rel (0) target = $region25
    $region24: #{attention_forward.3} parent=1 // pred_region
      _
    $region25: #{attention_forward.3} parent=1 // pred_fallthru
      _
    // Predicated region
    $region26: #{attention_forward.3} parent=1 // pred_check
      _
    $region27: #{attention_forward.3} parent=1 // pred_check_branch
      %6630 = sbr.rel (0) target = $region29
    $region28: #{attention_forward.3} parent=1 // pred_region
      _
    $region29: #{attention_forward.3} parent=1 // pred_fallthru
      _
    %6631 = vsyncpa [#allocation3], 1
    %6632 = vsyncpa [#allocation5], 1

</llo_original>
